<compile_context>
chip_gen: v7x
topology: tpu7x:2x2x1
jax: 0.10.0
libtpu: 0.0.40
codegen_flags: <defaults>
</compile_context>

<pallas_src>
import numpy as np
import jax
import jax.numpy as jnp
from jax.experimental import pallas as pl
from jax.experimental.pallas import tpu as pltpu

IN_CH = 4
OUT_CH = 8
CPAD = 8                       # input channels zero-padded to one f32 sublane tile
H = 16
W = 16
H2, W2 = 2 * H, 2 * W          # bilinear upsample, scale_factor=2
NPIX = H2 * W2                 # 1024 pixels -> lane axis (8 lane tiles)
EPS = 1e-5                     # InstanceNorm2d default eps
INV_SQRT2 = 0.7071067811865476
# tap order t = (dy+1)*3 + (dx+1) == kh*3 + kw  (matches PyTorch weight layout)
TAPS = [(dy, dx) for dy in (-1, 0, 1) for dx in (-1, 0, 1)]


# ----------------------------- host-side helpers -----------------------------

def _bilinear_matrix(n_in, n_out):
    """Interpolation matrix M (n_out, n_in) for 1-D bilinear, align_corners=True."""
    m = np.zeros((n_out, n_in), dtype=np.float32)
    if n_out == 1:
        src = np.zeros((n_out,), dtype=np.float64)
    else:
        src = np.arange(n_out, dtype=np.float64) * (n_in - 1) / (n_out - 1)
    i0 = np.clip(np.floor(src).astype(np.int64), 0, n_in - 1)
    i1 = np.clip(i0 + 1, 0, n_in - 1)
    frac = (src - i0).astype(np.float32)
    for p in range(n_out):
        m[p, i0[p]] += 1.0 - frac[p]
        m[p, i1[p]] += frac[p]
    return m


# ------------------------------ in-kernel helpers -----------------------------

def _gelu(y):
    # nn.GELU(approximate='none'): y * 0.5 * (1 + erf(y / sqrt(2))).
    # TODO(synk): lax.erf has no guaranteed Mosaic lowering; use a float32
    # rational approximation.  1/(1+a/2) goes to the EUP via approx reciprocal.
    z = y * INV_SQRT2
    a = jnp.abs(z)
    t = pl.reciprocal(1.0 + 0.5 * a, approx=True)
    poly = -1.26551223 + t * (1.00002368 + t * (0.37409196 + t * (0.09678418 +
           t * (-0.18628806 + t * (0.27886807 + t * (-1.13520398 + t * (1.48851587 +
           t * (-0.82215223 + t * 0.17087277))))))))
    erfc_a = t * jnp.exp(-a * a + poly)
    erf_z = jnp.where(z >= 0.0, 1.0 - erfc_a, erfc_a - 1.0)
    return 0.5 * y * (1.0 + erf_z)


def _instance_norm(y):
    # InstanceNorm2d (affine=False): per-(sample, channel) stats over the H2*W2
    # pixels = per-row stats of the (C, NPIX) slab.  Biased variance, eps=1e-5.
    inv_n = 1.0 / NPIX
    mean = jnp.sum(y, axis=1, keepdims=True) * inv_n
    d = y - mean
    var = jnp.sum(d * d, axis=1, keepdims=True) * inv_n
    return d * jax.lax.rsqrt(var + EPS)


def _conv3x3(act, w_ref, b_ref, masks):
    """3x3 conv, padding=1, bias, on a lane-dense slab.

    act:    (CPAD, NPIX) float32, pixel p = h*W2 + w on the lane axis.
    w_ref:  (9, OUT_CH, CPAD) VMEM; w_ref[t][o, c] = weight[o, c, kh, kw], t=kh*3+kw.
    b_ref:  (OUT_CH, 1) VMEM.
    masks:  dict {(dy,dx): bool (CPAD, NPIX) or None} zero-padding validity masks.
    """
    acc = jnp.zeros((OUT_CH, NPIX), jnp.float32)
    for t, (dy, dx) in enumerate(TAPS):
        s = dy * W2 + dx                 # sampling in[h+dy, w+dx] == flat p + s
        if s == 0:
            patch = act
        else:
            # roll(x, -s)[p] == x[p + s]; rolls go to the XLU, MXU/VPU untouched
            patch = pltpu.roll(act, shift=(-s) % NPIX, axis=1)
        m = masks[(dy, dx)]
        if m is not None:
            patch = jnp.where(m, patch, 0.0)
        acc = acc + jnp.dot(w_ref[t], patch, preferred_element_type=jnp.float32)
    return acc + b_ref[...]


# ---------------------------------- kernel ------------------------------------

def _block_kernel(x_ref, k_ref, w1_ref, b1_ref, w2_ref, b2_ref, o_ref):
    # Zero-padding masks for the 8 shifted taps (pixel-index arithmetic only;
    # W2 is a power of two so column extraction is a bitwise AND).
    p_idx = jax.lax.broadcasted_iota(jnp.int32, (CPAD, NPIX), 1)
    col = p_idx & (W2 - 1)
    row_ok = {-1: p_idx >= W2, 1: p_idx < NPIX - W2}
    col_ok = {-1: col >= 1, 1: col < W2 - 1}
    masks = {}
    for dy, dx in TAPS:
        m = None
        if dy != 0:
            m = row_ok[dy]
        if dx != 0:
            m = col_ok[dx] if m is None else jnp.logical_and(m, col_ok[dx])
        masks[(dy, dx)] = m

    # --- bilinear upsample (align_corners=True), all channels in one matmul ---
    # (CPAD, H*W) @ (H*W, H2*W2) -> (CPAD, NPIX); padded channel rows stay zero.
    ups = jnp.dot(x_ref[0], k_ref[...], preferred_element_type=jnp.float32)

    # --- Conv3x3 -> InstanceNorm -> GELU (stage 1) ---
    h = _conv3x3(ups, w1_ref, b1_ref, masks)
    h = _gelu(_instance_norm(h))

    # --- Conv3x3 -> InstanceNorm -> GELU (stage 2) ---
    h = _conv3x3(h, w2_ref, b2_ref, masks)
    o_ref[0] = _gelu(_instance_norm(h))


# --------------------------------- wrapper -------------------------------------

@jax.jit
def residual_upsample_block(x, w1, b1, w2, b2, k_up):
    n = x.shape[0]
    # Host-side layout plumbing: channels -> sublanes (padded to 8), pixels -> lanes.
    x_pad = jnp.pad(x.reshape(n, IN_CH, H * W),
                    ((0, 0), (0, CPAD - IN_CH), (0, 0)))
    # Per-tap weight matrices: w_taps[kh*3+kw, o, c] = w[o, c, kh, kw] (c padded).
    w1_taps = jnp.pad(jnp.transpose(w1, (2, 3, 0, 1)).reshape(9, OUT_CH, IN_CH),
                      ((0, 0), (0, 0), (0, CPAD - IN_CH)))
    w2_taps = jnp.transpose(w2, (2, 3, 0, 1)).reshape(9, OUT_CH, OUT_CH)
    b1c = b1.reshape(OUT_CH, 1)
    b2c = b2.reshape(OUT_CH, 1)

    out = pl.pallas_call(
        _block_kernel,
        out_shape=jax.ShapeDtypeStruct((n, OUT_CH, NPIX), jnp.float32),
        grid=(n,),
        in_specs=[
            pl.BlockSpec((1, CPAD, H * W), lambda i: (i, 0, 0)),      # x (per sample)
            pl.BlockSpec((H * W, NPIX), lambda i: (0, 0)),            # upsample matrix
            pl.BlockSpec((9, OUT_CH, CPAD), lambda i: (0, 0, 0)),     # conv1 tap weights
            pl.BlockSpec((OUT_CH, 1), lambda i: (0, 0)),              # conv1 bias
            pl.BlockSpec((9, OUT_CH, CPAD), lambda i: (0, 0, 0)),     # conv2 tap weights
            pl.BlockSpec((OUT_CH, 1), lambda i: (0, 0)),              # conv2 bias
        ],
        out_specs=pl.BlockSpec((1, OUT_CH, NPIX), lambda i: (i, 0, 0)),
        compiler_params=pltpu.CompilerParams(dimension_semantics=("parallel",)),
    )(x_pad, k_up, w1_taps, b1c, w2_taps, b2c)
    return out.reshape(n, OUT_CH, H2, W2)


# ----------------------------------- main --------------------------------------

if __name__ == "__main__":
    key = jax.random.PRNGKey(0)
    k1, k2, k3, k4, k5 = jax.random.split(key, 5)

    # input: (N, C, H, W) = (2, 4, 16, 16)
    x = jax.random.normal(k1, (2, IN_CH, H, W), jnp.float32)

    # deterministic parameter init (uniform(+-1/sqrt(fan_in)), like PyTorch Conv2d)
    fan1 = IN_CH * 9
    w1 = jax.random.uniform(k2, (OUT_CH, IN_CH, 3, 3), jnp.float32,
                            -1.0 / np.sqrt(fan1), 1.0 / np.sqrt(fan1))
    b1 = jax.random.uniform(k3, (OUT_CH,), jnp.float32,
                            -1.0 / np.sqrt(fan1), 1.0 / np.sqrt(fan1))
    fan2 = OUT_CH * 9
    w2 = jax.random.uniform(k4, (OUT_CH, OUT_CH, 3, 3), jnp.float32,
                            -1.0 / np.sqrt(fan2), 1.0 / np.sqrt(fan2))
    b2 = jax.random.uniform(k5, (OUT_CH,), jnp.float32,
                            -1.0 / np.sqrt(fan2), 1.0 / np.sqrt(fan2))

    # Separable bilinear interpolation folded into one matrix:
    #   out_flat[c, i*W2+j] = sum_{h,w} x_flat[c, h*W+w] * wh[i,h] * ww[j,w]
    wh = _bilinear_matrix(H, H2)                     # (H2, H)
    ww = _bilinear_matrix(W, W2)                     # (W2, W)
    k_up = jnp.asarray(np.kron(wh.T, ww.T))          # (H*W, H2*W2) = (256, 1024)

    out = residual_upsample_block(x, w1, b1, w2, b2, k_up)
    out = jax.block_until_ready(out)

    assert out.shape == (2, OUT_CH, H2, W2), out.shape
    assert bool(jnp.all(jnp.isfinite(out)))
    print("KERNEL_OK")
</pallas_src>

<mosaic_0001>
module attributes {stable_mosaic.version = 11 : i64} {
  func.func @_block_kernel(%arg0: i32, %arg1: memref<1x8x256xf32, #tpu.memory_space<vmem>>, %arg2: memref<256x1024xf32, #tpu.memory_space<vmem>>, %arg3: memref<9x8x8xf32, #tpu.memory_space<vmem>>, %arg4: memref<8x1xf32, #tpu.memory_space<vmem>>, %arg5: memref<9x8x8xf32, #tpu.memory_space<vmem>>, %arg6: memref<8x1xf32, #tpu.memory_space<vmem>>, %arg7: memref<1x8x1024xf32, #tpu.memory_space<vmem>>) attributes {dimension_semantics = [#tpu.dimension_semantics<parallel>], iteration_bounds = array<i64: 2>, scalar_prefetch = 0 : i64, scratch_operands = 0 : i64, tpu.core_type = #tpu.core_type<tc>, window_params = [{transform_indices = @transform_0, window_bounds = array<i64: 1, 8, 256>}, {pipeline_mode = #tpu.pipeline_mode<synchronous>, transform_indices = @transform_1, window_bounds = array<i64: 256, 1024>}, {pipeline_mode = #tpu.pipeline_mode<synchronous>, transform_indices = @transform_2, window_bounds = array<i64: 9, 8, 8>}, {pipeline_mode = #tpu.pipeline_mode<synchronous>, transform_indices = @transform_3, window_bounds = array<i64: 8, 1>}, {pipeline_mode = #tpu.pipeline_mode<synchronous>, transform_indices = @transform_4, window_bounds = array<i64: 9, 8, 8>}, {pipeline_mode = #tpu.pipeline_mode<synchronous>, transform_indices = @transform_5, window_bounds = array<i64: 8, 1>}, {transform_indices = @transform_6, window_bounds = array<i64: 1, 8, 1024>}]} {
    %0 = tpu.iota {dimensions = array<i32: 1>} : vector<8x1024xi32>
    %c31_i32 = arith.constant 31 : i32
    %1 = vector.broadcast %c31_i32 : i32 to vector<8x1024xi32>
    %2 = arith.andi %0, %1 : vector<8x1024xi32>
    %c32_i32 = arith.constant 32 : i32
    %3 = vector.broadcast %c32_i32 : i32 to vector<8x1024xi32>
    %4 = arith.cmpi sge, %0, %3 : vector<8x1024xi32>
    %c992_i32 = arith.constant 992 : i32
    %5 = vector.broadcast %c992_i32 : i32 to vector<8x1024xi32>
    %6 = arith.cmpi slt, %0, %5 : vector<8x1024xi32>
    %c1_i32 = arith.constant 1 : i32
    %7 = vector.broadcast %c1_i32 : i32 to vector<8x1024xi32>
    %8 = arith.cmpi sge, %2, %7 : vector<8x1024xi32>
    %c31_i32_0 = arith.constant 31 : i32
    %9 = vector.broadcast %c31_i32_0 : i32 to vector<8x1024xi32>
    %10 = arith.cmpi slt, %2, %9 : vector<8x1024xi32>
    %11 = arith.andi %4, %8 : vector<8x1024xi1>
    %12 = arith.andi %4, %10 : vector<8x1024xi1>
    %13 = arith.andi %6, %8 : vector<8x1024xi1>
    %14 = arith.andi %6, %10 : vector<8x1024xi1>
    %c0 = arith.constant 0 : index
    %c0_1 = arith.constant 0 : index
    %c0_2 = arith.constant 0 : index
    %15 = vector.load %arg1[%c0, %c0_1, %c0_2] : memref<1x8x256xf32, #tpu.memory_space<vmem>>, vector<1x8x256xf32>
    %16 = vector.shape_cast %15 : vector<1x8x256xf32> to vector<8x256xf32>
    %c0_3 = arith.constant 0 : index
    %c0_4 = arith.constant 0 : index
    %17 = vector.load %arg2[%c0_3, %c0_4] : memref<256x1024xf32, #tpu.memory_space<vmem>>, vector<256x1024xf32>
    %cst = arith.constant dense<0.000000e+00> : vector<8x1024xf32>
    %18 = tpu.matmul %16, %17, %cst {dimension_numbers = #tpu.dot_dimension_numbers<[1], [0], [0], [1], [0, 0, 1, 1], [], []>} : vector<8x256xf32>, vector<256x1024xf32>, vector<8x1024xf32> -> vector<8x1024xf32>
    %cst_5 = arith.constant 0.000000e+00 : f32
    %19 = vector.broadcast %cst_5 : f32 to vector<8x1024xf32>
    %c33_i32 = arith.constant 33 : i32
    %20 = tpu.dynamic_rotate %18 by %c33_i32 dim 1 : vector<8x1024xf32>, i32 -> vector<8x1024xf32>
    %cst_6 = arith.constant 0.000000e+00 : f32
    %21 = vector.broadcast %cst_6 : f32 to vector<8x1024xf32>
    %22 = arith.select %11, %20, %21 : vector<8x1024xi1>, vector<8x1024xf32>
    %c0_7 = arith.constant 0 : index
    %c0_8 = arith.constant 0 : index
    %c0_9 = arith.constant 0 : index
    %23 = vector.load %arg3[%c0_7, %c0_8, %c0_9] : memref<9x8x8xf32, #tpu.memory_space<vmem>>, vector<1x8x8xf32>
    %24 = vector.shape_cast %23 : vector<1x8x8xf32> to vector<8x8xf32>
    %cst_10 = arith.constant dense<0.000000e+00> : vector<8x1024xf32>
    %25 = tpu.matmul %24, %22, %cst_10 {dimension_numbers = #tpu.dot_dimension_numbers<[1], [0], [0], [1], [0, 0, 1, 1], [], []>} : vector<8x8xf32>, vector<8x1024xf32>, vector<8x1024xf32> -> vector<8x1024xf32>
    %26 = arith.addf %19, %25 : vector<8x1024xf32>
    %c32_i32_11 = arith.constant 32 : i32
    %27 = tpu.dynamic_rotate %18 by %c32_i32_11 dim 1 : vector<8x1024xf32>, i32 -> vector<8x1024xf32>
    %cst_12 = arith.constant 0.000000e+00 : f32
    %28 = vector.broadcast %cst_12 : f32 to vector<8x1024xf32>
    %29 = arith.select %4, %27, %28 : vector<8x1024xi1>, vector<8x1024xf32>
    %c1 = arith.constant 1 : index
    %c0_13 = arith.constant 0 : index
    %c0_14 = arith.constant 0 : index
    %30 = vector.load %arg3[%c1, %c0_13, %c0_14] : memref<9x8x8xf32, #tpu.memory_space<vmem>>, vector<1x8x8xf32>
    %31 = vector.shape_cast %30 : vector<1x8x8xf32> to vector<8x8xf32>
    %cst_15 = arith.constant dense<0.000000e+00> : vector<8x1024xf32>
    %32 = tpu.matmul %31, %29, %cst_15 {dimension_numbers = #tpu.dot_dimension_numbers<[1], [0], [0], [1], [0, 0, 1, 1], [], []>} : vector<8x8xf32>, vector<8x1024xf32>, vector<8x1024xf32> -> vector<8x1024xf32>
    %33 = arith.addf %26, %32 : vector<8x1024xf32>
    %c31_i32_16 = arith.constant 31 : i32
    %34 = tpu.dynamic_rotate %18 by %c31_i32_16 dim 1 : vector<8x1024xf32>, i32 -> vector<8x1024xf32>
    %cst_17 = arith.constant 0.000000e+00 : f32
    %35 = vector.broadcast %cst_17 : f32 to vector<8x1024xf32>
    %36 = arith.select %12, %34, %35 : vector<8x1024xi1>, vector<8x1024xf32>
    %c2 = arith.constant 2 : index
    %c0_18 = arith.constant 0 : index
    %c0_19 = arith.constant 0 : index
    %37 = vector.load %arg3[%c2, %c0_18, %c0_19] : memref<9x8x8xf32, #tpu.memory_space<vmem>>, vector<1x8x8xf32>
    %38 = vector.shape_cast %37 : vector<1x8x8xf32> to vector<8x8xf32>
    %cst_20 = arith.constant dense<0.000000e+00> : vector<8x1024xf32>
    %39 = tpu.matmul %38, %36, %cst_20 {dimension_numbers = #tpu.dot_dimension_numbers<[1], [0], [0], [1], [0, 0, 1, 1], [], []>} : vector<8x8xf32>, vector<8x1024xf32>, vector<8x1024xf32> -> vector<8x1024xf32>
    %40 = arith.addf %33, %39 : vector<8x1024xf32>
    %c1_i32_21 = arith.constant 1 : i32
    %41 = tpu.dynamic_rotate %18 by %c1_i32_21 dim 1 : vector<8x1024xf32>, i32 -> vector<8x1024xf32>
    %cst_22 = arith.constant 0.000000e+00 : f32
    %42 = vector.broadcast %cst_22 : f32 to vector<8x1024xf32>
    %43 = arith.select %8, %41, %42 : vector<8x1024xi1>, vector<8x1024xf32>
    %c3 = arith.constant 3 : index
    %c0_23 = arith.constant 0 : index
    %c0_24 = arith.constant 0 : index
    %44 = vector.load %arg3[%c3, %c0_23, %c0_24] : memref<9x8x8xf32, #tpu.memory_space<vmem>>, vector<1x8x8xf32>
    %45 = vector.shape_cast %44 : vector<1x8x8xf32> to vector<8x8xf32>
    %cst_25 = arith.constant dense<0.000000e+00> : vector<8x1024xf32>
    %46 = tpu.matmul %45, %43, %cst_25 {dimension_numbers = #tpu.dot_dimension_numbers<[1], [0], [0], [1], [0, 0, 1, 1], [], []>} : vector<8x8xf32>, vector<8x1024xf32>, vector<8x1024xf32> -> vector<8x1024xf32>
    %47 = arith.addf %40, %46 : vector<8x1024xf32>
    %c4 = arith.constant 4 : index
    %c0_26 = arith.constant 0 : index
    %c0_27 = arith.constant 0 : index
    %48 = vector.load %arg3[%c4, %c0_26, %c0_27] : memref<9x8x8xf32, #tpu.memory_space<vmem>>, vector<1x8x8xf32>
    %49 = vector.shape_cast %48 : vector<1x8x8xf32> to vector<8x8xf32>
    %cst_28 = arith.constant dense<0.000000e+00> : vector<8x1024xf32>
    %50 = tpu.matmul %49, %18, %cst_28 {dimension_numbers = #tpu.dot_dimension_numbers<[1], [0], [0], [1], [0, 0, 1, 1], [], []>} : vector<8x8xf32>, vector<8x1024xf32>, vector<8x1024xf32> -> vector<8x1024xf32>
    %51 = arith.addf %47, %50 : vector<8x1024xf32>
    %c1023_i32 = arith.constant 1023 : i32
    %52 = tpu.dynamic_rotate %18 by %c1023_i32 dim 1 : vector<8x1024xf32>, i32 -> vector<8x1024xf32>
    %cst_29 = arith.constant 0.000000e+00 : f32
    %53 = vector.broadcast %cst_29 : f32 to vector<8x1024xf32>
    %54 = arith.select %10, %52, %53 : vector<8x1024xi1>, vector<8x1024xf32>
    %c5 = arith.constant 5 : index
    %c0_30 = arith.constant 0 : index
    %c0_31 = arith.constant 0 : index
    %55 = vector.load %arg3[%c5, %c0_30, %c0_31] : memref<9x8x8xf32, #tpu.memory_space<vmem>>, vector<1x8x8xf32>
    %56 = vector.shape_cast %55 : vector<1x8x8xf32> to vector<8x8xf32>
    %cst_32 = arith.constant dense<0.000000e+00> : vector<8x1024xf32>
    %57 = tpu.matmul %56, %54, %cst_32 {dimension_numbers = #tpu.dot_dimension_numbers<[1], [0], [0], [1], [0, 0, 1, 1], [], []>} : vector<8x8xf32>, vector<8x1024xf32>, vector<8x1024xf32> -> vector<8x1024xf32>
    %58 = arith.addf %51, %57 : vector<8x1024xf32>
    %c993_i32 = arith.constant 993 : i32
    %59 = tpu.dynamic_rotate %18 by %c993_i32 dim 1 : vector<8x1024xf32>, i32 -> vector<8x1024xf32>
    %cst_33 = arith.constant 0.000000e+00 : f32
    %60 = vector.broadcast %cst_33 : f32 to vector<8x1024xf32>
    %61 = arith.select %13, %59, %60 : vector<8x1024xi1>, vector<8x1024xf32>
    %c6 = arith.constant 6 : index
    %c0_34 = arith.constant 0 : index
    %c0_35 = arith.constant 0 : index
    %62 = vector.load %arg3[%c6, %c0_34, %c0_35] : memref<9x8x8xf32, #tpu.memory_space<vmem>>, vector<1x8x8xf32>
    %63 = vector.shape_cast %62 : vector<1x8x8xf32> to vector<8x8xf32>
    %cst_36 = arith.constant dense<0.000000e+00> : vector<8x1024xf32>
    %64 = tpu.matmul %63, %61, %cst_36 {dimension_numbers = #tpu.dot_dimension_numbers<[1], [0], [0], [1], [0, 0, 1, 1], [], []>} : vector<8x8xf32>, vector<8x1024xf32>, vector<8x1024xf32> -> vector<8x1024xf32>
    %65 = arith.addf %58, %64 : vector<8x1024xf32>
    %c992_i32_37 = arith.constant 992 : i32
    %66 = tpu.dynamic_rotate %18 by %c992_i32_37 dim 1 : vector<8x1024xf32>, i32 -> vector<8x1024xf32>
    %cst_38 = arith.constant 0.000000e+00 : f32
    %67 = vector.broadcast %cst_38 : f32 to vector<8x1024xf32>
    %68 = arith.select %6, %66, %67 : vector<8x1024xi1>, vector<8x1024xf32>
    %c7 = arith.constant 7 : index
    %c0_39 = arith.constant 0 : index
    %c0_40 = arith.constant 0 : index
    %69 = vector.load %arg3[%c7, %c0_39, %c0_40] : memref<9x8x8xf32, #tpu.memory_space<vmem>>, vector<1x8x8xf32>
    %70 = vector.shape_cast %69 : vector<1x8x8xf32> to vector<8x8xf32>
    %cst_41 = arith.constant dense<0.000000e+00> : vector<8x1024xf32>
    %71 = tpu.matmul %70, %68, %cst_41 {dimension_numbers = #tpu.dot_dimension_numbers<[1], [0], [0], [1], [0, 0, 1, 1], [], []>} : vector<8x8xf32>, vector<8x1024xf32>, vector<8x1024xf32> -> vector<8x1024xf32>
    %72 = arith.addf %65, %71 : vector<8x1024xf32>
    %c991_i32 = arith.constant 991 : i32
    %73 = tpu.dynamic_rotate %18 by %c991_i32 dim 1 : vector<8x1024xf32>, i32 -> vector<8x1024xf32>
    %cst_42 = arith.constant 0.000000e+00 : f32
    %74 = vector.broadcast %cst_42 : f32 to vector<8x1024xf32>
    %75 = arith.select %14, %73, %74 : vector<8x1024xi1>, vector<8x1024xf32>
    %c8 = arith.constant 8 : index
    %c0_43 = arith.constant 0 : index
    %c0_44 = arith.constant 0 : index
    %76 = vector.load %arg3[%c8, %c0_43, %c0_44] : memref<9x8x8xf32, #tpu.memory_space<vmem>>, vector<1x8x8xf32>
    %77 = vector.shape_cast %76 : vector<1x8x8xf32> to vector<8x8xf32>
    %cst_45 = arith.constant dense<0.000000e+00> : vector<8x1024xf32>
    %78 = tpu.matmul %77, %75, %cst_45 {dimension_numbers = #tpu.dot_dimension_numbers<[1], [0], [0], [1], [0, 0, 1, 1], [], []>} : vector<8x8xf32>, vector<8x1024xf32>, vector<8x1024xf32> -> vector<8x1024xf32>
    %79 = arith.addf %72, %78 : vector<8x1024xf32>
    %c0_46 = arith.constant 0 : index
    %c0_47 = arith.constant 0 : index
    %80 = vector.load %arg4[%c0_46, %c0_47] : memref<8x1xf32, #tpu.memory_space<vmem>>, vector<8x1xf32>
    %81 = vector.broadcast %80 : vector<8x1xf32> to vector<8x1024xf32>
    %82 = arith.addf %79, %81 : vector<8x1024xf32>
    %cst_48 = arith.constant dense<0.000000e+00> : vector<8xf32>
    %83 = vector.multi_reduction <add>, %82, %cst_48 [1] : vector<8x1024xf32> to vector<8xf32>
    %84 = vector.shape_cast %83 : vector<8xf32> to vector<8x1xf32>
    %cst_49 = arith.constant 9.765625E-4 : f32
    %85 = vector.broadcast %cst_49 : f32 to vector<8x1xf32>
    %86 = arith.mulf %84, %85 : vector<8x1xf32>
    %87 = vector.broadcast %86 : vector<8x1xf32> to vector<8x1024xf32>
    %88 = arith.subf %82, %87 : vector<8x1024xf32>
    %89 = arith.mulf %88, %88 : vector<8x1024xf32>
    %cst_50 = arith.constant dense<0.000000e+00> : vector<8xf32>
    %90 = vector.multi_reduction <add>, %89, %cst_50 [1] : vector<8x1024xf32> to vector<8xf32>
    %91 = vector.shape_cast %90 : vector<8xf32> to vector<8x1xf32>
    %cst_51 = arith.constant 9.765625E-4 : f32
    %92 = vector.broadcast %cst_51 : f32 to vector<8x1xf32>
    %93 = arith.mulf %91, %92 : vector<8x1xf32>
    %cst_52 = arith.constant 9.99999974E-6 : f32
    %94 = vector.broadcast %cst_52 : f32 to vector<8x1xf32>
    %95 = arith.addf %93, %94 : vector<8x1xf32>
    %96 = math.rsqrt %95 : vector<8x1xf32>
    %97 = vector.broadcast %96 : vector<8x1xf32> to vector<8x1024xf32>
    %98 = arith.mulf %88, %97 : vector<8x1024xf32>
    %cst_53 = arith.constant 0.707106769 : f32
    %99 = vector.broadcast %cst_53 : f32 to vector<8x1024xf32>
    %100 = arith.mulf %98, %99 : vector<8x1024xf32>
    %101 = math.absf %100 : vector<8x1024xf32>
    %cst_54 = arith.constant 5.000000e-01 : f32
    %102 = vector.broadcast %cst_54 : f32 to vector<8x1024xf32>
    %103 = arith.mulf %102, %101 : vector<8x1024xf32>
    %cst_55 = arith.constant 1.000000e+00 : f32
    %104 = vector.broadcast %cst_55 : f32 to vector<8x1024xf32>
    %105 = arith.addf %104, %103 : vector<8x1024xf32>
    %106 = tpu.reciprocal %105 {approx = true} : vector<8x1024xf32> -> vector<8x1024xf32>
    %cst_56 = arith.constant 0.170872763 : f32
    %107 = vector.broadcast %cst_56 : f32 to vector<8x1024xf32>
    %108 = arith.mulf %106, %107 : vector<8x1024xf32>
    %cst_57 = arith.constant -0.822152256 : f32
    %109 = vector.broadcast %cst_57 : f32 to vector<8x1024xf32>
    %110 = arith.addf %109, %108 : vector<8x1024xf32>
    %111 = arith.mulf %106, %110 : vector<8x1024xf32>
    %cst_58 = arith.constant 1.48851585 : f32
    %112 = vector.broadcast %cst_58 : f32 to vector<8x1024xf32>
    %113 = arith.addf %112, %111 : vector<8x1024xf32>
    %114 = arith.mulf %106, %113 : vector<8x1024xf32>
    %cst_59 = arith.constant -1.13520396 : f32
    %115 = vector.broadcast %cst_59 : f32 to vector<8x1024xf32>
    %116 = arith.addf %115, %114 : vector<8x1024xf32>
    %117 = arith.mulf %106, %116 : vector<8x1024xf32>
    %cst_60 = arith.constant 0.278868079 : f32
    %118 = vector.broadcast %cst_60 : f32 to vector<8x1024xf32>
    %119 = arith.addf %118, %117 : vector<8x1024xf32>
    %120 = arith.mulf %106, %119 : vector<8x1024xf32>
    %cst_61 = arith.constant -0.186288059 : f32
    %121 = vector.broadcast %cst_61 : f32 to vector<8x1024xf32>
    %122 = arith.addf %121, %120 : vector<8x1024xf32>
    %123 = arith.mulf %106, %122 : vector<8x1024xf32>
    %cst_62 = arith.constant 0.0967841818 : f32
    %124 = vector.broadcast %cst_62 : f32 to vector<8x1024xf32>
    %125 = arith.addf %124, %123 : vector<8x1024xf32>
    %126 = arith.mulf %106, %125 : vector<8x1024xf32>
    %cst_63 = arith.constant 0.374091953 : f32
    %127 = vector.broadcast %cst_63 : f32 to vector<8x1024xf32>
    %128 = arith.addf %127, %126 : vector<8x1024xf32>
    %129 = arith.mulf %106, %128 : vector<8x1024xf32>
    %cst_64 = arith.constant 1.00002372 : f32
    %130 = vector.broadcast %cst_64 : f32 to vector<8x1024xf32>
    %131 = arith.addf %130, %129 : vector<8x1024xf32>
    %132 = arith.mulf %106, %131 : vector<8x1024xf32>
    %cst_65 = arith.constant -1.26551223 : f32
    %133 = vector.broadcast %cst_65 : f32 to vector<8x1024xf32>
    %134 = arith.addf %133, %132 : vector<8x1024xf32>
    %cst_66 = arith.constant 0.000000e+00 : f32
    %135 = vector.broadcast %cst_66 : f32 to vector<8x1024xf32>
    %136 = arith.subf %135, %101 : vector<8x1024xf32>
    %137 = arith.mulf %136, %101 : vector<8x1024xf32>
    %138 = arith.addf %137, %134 : vector<8x1024xf32>
    %139 = math.exp %138 : vector<8x1024xf32>
    %140 = arith.mulf %106, %139 : vector<8x1024xf32>
    %cst_67 = arith.constant 0.000000e+00 : f32
    %141 = vector.broadcast %cst_67 : f32 to vector<8x1024xf32>
    %142 = arith.cmpf oge, %100, %141 : vector<8x1024xf32>
    %cst_68 = arith.constant 1.000000e+00 : f32
    %143 = vector.broadcast %cst_68 : f32 to vector<8x1024xf32>
    %144 = arith.subf %143, %140 : vector<8x1024xf32>
    %cst_69 = arith.constant 1.000000e+00 : f32
    %145 = vector.broadcast %cst_69 : f32 to vector<8x1024xf32>
    %146 = arith.subf %140, %145 : vector<8x1024xf32>
    %147 = arith.select %142, %144, %146 : vector<8x1024xi1>, vector<8x1024xf32>
    %cst_70 = arith.constant 5.000000e-01 : f32
    %148 = vector.broadcast %cst_70 : f32 to vector<8x1024xf32>
    %149 = arith.mulf %148, %98 : vector<8x1024xf32>
    %cst_71 = arith.constant 1.000000e+00 : f32
    %150 = vector.broadcast %cst_71 : f32 to vector<8x1024xf32>
    %151 = arith.addf %150, %147 : vector<8x1024xf32>
    %152 = arith.mulf %149, %151 : vector<8x1024xf32>
    %cst_72 = arith.constant 0.000000e+00 : f32
    %153 = vector.broadcast %cst_72 : f32 to vector<8x1024xf32>
    %c33_i32_73 = arith.constant 33 : i32
    %154 = tpu.dynamic_rotate %152 by %c33_i32_73 dim 1 : vector<8x1024xf32>, i32 -> vector<8x1024xf32>
    %cst_74 = arith.constant 0.000000e+00 : f32
    %155 = vector.broadcast %cst_74 : f32 to vector<8x1024xf32>
    %156 = arith.select %11, %154, %155 : vector<8x1024xi1>, vector<8x1024xf32>
    %c0_75 = arith.constant 0 : index
    %c0_76 = arith.constant 0 : index
    %c0_77 = arith.constant 0 : index
    %157 = vector.load %arg5[%c0_75, %c0_76, %c0_77] : memref<9x8x8xf32, #tpu.memory_space<vmem>>, vector<1x8x8xf32>
    %158 = vector.shape_cast %157 : vector<1x8x8xf32> to vector<8x8xf32>
    %cst_78 = arith.constant dense<0.000000e+00> : vector<8x1024xf32>
    %159 = tpu.matmul %158, %156, %cst_78 {dimension_numbers = #tpu.dot_dimension_numbers<[1], [0], [0], [1], [0, 0, 1, 1], [], []>} : vector<8x8xf32>, vector<8x1024xf32>, vector<8x1024xf32> -> vector<8x1024xf32>
    %160 = arith.addf %153, %159 : vector<8x1024xf32>
    %c32_i32_79 = arith.constant 32 : i32
    %161 = tpu.dynamic_rotate %152 by %c32_i32_79 dim 1 : vector<8x1024xf32>, i32 -> vector<8x1024xf32>
    %cst_80 = arith.constant 0.000000e+00 : f32
    %162 = vector.broadcast %cst_80 : f32 to vector<8x1024xf32>
    %163 = arith.select %4, %161, %162 : vector<8x1024xi1>, vector<8x1024xf32>
    %c1_81 = arith.constant 1 : index
    %c0_82 = arith.constant 0 : index
    %c0_83 = arith.constant 0 : index
    %164 = vector.load %arg5[%c1_81, %c0_82, %c0_83] : memref<9x8x8xf32, #tpu.memory_space<vmem>>, vector<1x8x8xf32>
    %165 = vector.shape_cast %164 : vector<1x8x8xf32> to vector<8x8xf32>
    %cst_84 = arith.constant dense<0.000000e+00> : vector<8x1024xf32>
    %166 = tpu.matmul %165, %163, %cst_84 {dimension_numbers = #tpu.dot_dimension_numbers<[1], [0], [0], [1], [0, 0, 1, 1], [], []>} : vector<8x8xf32>, vector<8x1024xf32>, vector<8x1024xf32> -> vector<8x1024xf32>
    %167 = arith.addf %160, %166 : vector<8x1024xf32>
    %c31_i32_85 = arith.constant 31 : i32
    %168 = tpu.dynamic_rotate %152 by %c31_i32_85 dim 1 : vector<8x1024xf32>, i32 -> vector<8x1024xf32>
    %cst_86 = arith.constant 0.000000e+00 : f32
    %169 = vector.broadcast %cst_86 : f32 to vector<8x1024xf32>
    %170 = arith.select %12, %168, %169 : vector<8x1024xi1>, vector<8x1024xf32>
    %c2_87 = arith.constant 2 : index
    %c0_88 = arith.constant 0 : index
    %c0_89 = arith.constant 0 : index
    %171 = vector.load %arg5[%c2_87, %c0_88, %c0_89] : memref<9x8x8xf32, #tpu.memory_space<vmem>>, vector<1x8x8xf32>
    %172 = vector.shape_cast %171 : vector<1x8x8xf32> to vector<8x8xf32>
    %cst_90 = arith.constant dense<0.000000e+00> : vector<8x1024xf32>
    %173 = tpu.matmul %172, %170, %cst_90 {dimension_numbers = #tpu.dot_dimension_numbers<[1], [0], [0], [1], [0, 0, 1, 1], [], []>} : vector<8x8xf32>, vector<8x1024xf32>, vector<8x1024xf32> -> vector<8x1024xf32>
    %174 = arith.addf %167, %173 : vector<8x1024xf32>
    %c1_i32_91 = arith.constant 1 : i32
    %175 = tpu.dynamic_rotate %152 by %c1_i32_91 dim 1 : vector<8x1024xf32>, i32 -> vector<8x1024xf32>
    %cst_92 = arith.constant 0.000000e+00 : f32
    %176 = vector.broadcast %cst_92 : f32 to vector<8x1024xf32>
    %177 = arith.select %8, %175, %176 : vector<8x1024xi1>, vector<8x1024xf32>
    %c3_93 = arith.constant 3 : index
    %c0_94 = arith.constant 0 : index
    %c0_95 = arith.constant 0 : index
    %178 = vector.load %arg5[%c3_93, %c0_94, %c0_95] : memref<9x8x8xf32, #tpu.memory_space<vmem>>, vector<1x8x8xf32>
    %179 = vector.shape_cast %178 : vector<1x8x8xf32> to vector<8x8xf32>
    %cst_96 = arith.constant dense<0.000000e+00> : vector<8x1024xf32>
    %180 = tpu.matmul %179, %177, %cst_96 {dimension_numbers = #tpu.dot_dimension_numbers<[1], [0], [0], [1], [0, 0, 1, 1], [], []>} : vector<8x8xf32>, vector<8x1024xf32>, vector<8x1024xf32> -> vector<8x1024xf32>
    %181 = arith.addf %174, %180 : vector<8x1024xf32>
    %c4_97 = arith.constant 4 : index
    %c0_98 = arith.constant 0 : index
    %c0_99 = arith.constant 0 : index
    %182 = vector.load %arg5[%c4_97, %c0_98, %c0_99] : memref<9x8x8xf32, #tpu.memory_space<vmem>>, vector<1x8x8xf32>
    %183 = vector.shape_cast %182 : vector<1x8x8xf32> to vector<8x8xf32>
    %cst_100 = arith.constant dense<0.000000e+00> : vector<8x1024xf32>
    %184 = tpu.matmul %183, %152, %cst_100 {dimension_numbers = #tpu.dot_dimension_numbers<[1], [0], [0], [1], [0, 0, 1, 1], [], []>} : vector<8x8xf32>, vector<8x1024xf32>, vector<8x1024xf32> -> vector<8x1024xf32>
    %185 = arith.addf %181, %184 : vector<8x1024xf32>
    %c1023_i32_101 = arith.constant 1023 : i32
    %186 = tpu.dynamic_rotate %152 by %c1023_i32_101 dim 1 : vector<8x1024xf32>, i32 -> vector<8x1024xf32>
    %cst_102 = arith.constant 0.000000e+00 : f32
    %187 = vector.broadcast %cst_102 : f32 to vector<8x1024xf32>
    %188 = arith.select %10, %186, %187 : vector<8x1024xi1>, vector<8x1024xf32>
    %c5_103 = arith.constant 5 : index
    %c0_104 = arith.constant 0 : index
    %c0_105 = arith.constant 0 : index
    %189 = vector.load %arg5[%c5_103, %c0_104, %c0_105] : memref<9x8x8xf32, #tpu.memory_space<vmem>>, vector<1x8x8xf32>
    %190 = vector.shape_cast %189 : vector<1x8x8xf32> to vector<8x8xf32>
    %cst_106 = arith.constant dense<0.000000e+00> : vector<8x1024xf32>
    %191 = tpu.matmul %190, %188, %cst_106 {dimension_numbers = #tpu.dot_dimension_numbers<[1], [0], [0], [1], [0, 0, 1, 1], [], []>} : vector<8x8xf32>, vector<8x1024xf32>, vector<8x1024xf32> -> vector<8x1024xf32>
    %192 = arith.addf %185, %191 : vector<8x1024xf32>
    %c993_i32_107 = arith.constant 993 : i32
    %193 = tpu.dynamic_rotate %152 by %c993_i32_107 dim 1 : vector<8x1024xf32>, i32 -> vector<8x1024xf32>
    %cst_108 = arith.constant 0.000000e+00 : f32
    %194 = vector.broadcast %cst_108 : f32 to vector<8x1024xf32>
    %195 = arith.select %13, %193, %194 : vector<8x1024xi1>, vector<8x1024xf32>
    %c6_109 = arith.constant 6 : index
    %c0_110 = arith.constant 0 : index
    %c0_111 = arith.constant 0 : index
    %196 = vector.load %arg5[%c6_109, %c0_110, %c0_111] : memref<9x8x8xf32, #tpu.memory_space<vmem>>, vector<1x8x8xf32>
    %197 = vector.shape_cast %196 : vector<1x8x8xf32> to vector<8x8xf32>
    %cst_112 = arith.constant dense<0.000000e+00> : vector<8x1024xf32>
    %198 = tpu.matmul %197, %195, %cst_112 {dimension_numbers = #tpu.dot_dimension_numbers<[1], [0], [0], [1], [0, 0, 1, 1], [], []>} : vector<8x8xf32>, vector<8x1024xf32>, vector<8x1024xf32> -> vector<8x1024xf32>
    %199 = arith.addf %192, %198 : vector<8x1024xf32>
    %c992_i32_113 = arith.constant 992 : i32
    %200 = tpu.dynamic_rotate %152 by %c992_i32_113 dim 1 : vector<8x1024xf32>, i32 -> vector<8x1024xf32>
    %cst_114 = arith.constant 0.000000e+00 : f32
    %201 = vector.broadcast %cst_114 : f32 to vector<8x1024xf32>
    %202 = arith.select %6, %200, %201 : vector<8x1024xi1>, vector<8x1024xf32>
    %c7_115 = arith.constant 7 : index
    %c0_116 = arith.constant 0 : index
    %c0_117 = arith.constant 0 : index
    %203 = vector.load %arg5[%c7_115, %c0_116, %c0_117] : memref<9x8x8xf32, #tpu.memory_space<vmem>>, vector<1x8x8xf32>
    %204 = vector.shape_cast %203 : vector<1x8x8xf32> to vector<8x8xf32>
    %cst_118 = arith.constant dense<0.000000e+00> : vector<8x1024xf32>
    %205 = tpu.matmul %204, %202, %cst_118 {dimension_numbers = #tpu.dot_dimension_numbers<[1], [0], [0], [1], [0, 0, 1, 1], [], []>} : vector<8x8xf32>, vector<8x1024xf32>, vector<8x1024xf32> -> vector<8x1024xf32>
    %206 = arith.addf %199, %205 : vector<8x1024xf32>
    %c991_i32_119 = arith.constant 991 : i32
    %207 = tpu.dynamic_rotate %152 by %c991_i32_119 dim 1 : vector<8x1024xf32>, i32 -> vector<8x1024xf32>
    %cst_120 = arith.constant 0.000000e+00 : f32
    %208 = vector.broadcast %cst_120 : f32 to vector<8x1024xf32>
    %209 = arith.select %14, %207, %208 : vector<8x1024xi1>, vector<8x1024xf32>
    %c8_121 = arith.constant 8 : index
    %c0_122 = arith.constant 0 : index
    %c0_123 = arith.constant 0 : index
    %210 = vector.load %arg5[%c8_121, %c0_122, %c0_123] : memref<9x8x8xf32, #tpu.memory_space<vmem>>, vector<1x8x8xf32>
    %211 = vector.shape_cast %210 : vector<1x8x8xf32> to vector<8x8xf32>
    %cst_124 = arith.constant dense<0.000000e+00> : vector<8x1024xf32>
    %212 = tpu.matmul %211, %209, %cst_124 {dimension_numbers = #tpu.dot_dimension_numbers<[1], [0], [0], [1], [0, 0, 1, 1], [], []>} : vector<8x8xf32>, vector<8x1024xf32>, vector<8x1024xf32> -> vector<8x1024xf32>
    %213 = arith.addf %206, %212 : vector<8x1024xf32>
    %c0_125 = arith.constant 0 : index
    %c0_126 = arith.constant 0 : index
    %214 = vector.load %arg6[%c0_125, %c0_126] : memref<8x1xf32, #tpu.memory_space<vmem>>, vector<8x1xf32>
    %215 = vector.broadcast %214 : vector<8x1xf32> to vector<8x1024xf32>
    %216 = arith.addf %213, %215 : vector<8x1024xf32>
    %cst_127 = arith.constant dense<0.000000e+00> : vector<8xf32>
    %217 = vector.multi_reduction <add>, %216, %cst_127 [1] : vector<8x1024xf32> to vector<8xf32>
    %218 = vector.shape_cast %217 : vector<8xf32> to vector<8x1xf32>
    %cst_128 = arith.constant 9.765625E-4 : f32
    %219 = vector.broadcast %cst_128 : f32 to vector<8x1xf32>
    %220 = arith.mulf %218, %219 : vector<8x1xf32>
    %221 = vector.broadcast %220 : vector<8x1xf32> to vector<8x1024xf32>
    %222 = arith.subf %216, %221 : vector<8x1024xf32>
    %223 = arith.mulf %222, %222 : vector<8x1024xf32>
    %cst_129 = arith.constant dense<0.000000e+00> : vector<8xf32>
    %224 = vector.multi_reduction <add>, %223, %cst_129 [1] : vector<8x1024xf32> to vector<8xf32>
    %225 = vector.shape_cast %224 : vector<8xf32> to vector<8x1xf32>
    %cst_130 = arith.constant 9.765625E-4 : f32
    %226 = vector.broadcast %cst_130 : f32 to vector<8x1xf32>
    %227 = arith.mulf %225, %226 : vector<8x1xf32>
    %cst_131 = arith.constant 9.99999974E-6 : f32
    %228 = vector.broadcast %cst_131 : f32 to vector<8x1xf32>
    %229 = arith.addf %227, %228 : vector<8x1xf32>
    %230 = math.rsqrt %229 : vector<8x1xf32>
    %231 = vector.broadcast %230 : vector<8x1xf32> to vector<8x1024xf32>
    %232 = arith.mulf %222, %231 : vector<8x1024xf32>
    %cst_132 = arith.constant 0.707106769 : f32
    %233 = vector.broadcast %cst_132 : f32 to vector<8x1024xf32>
    %234 = arith.mulf %232, %233 : vector<8x1024xf32>
    %235 = math.absf %234 : vector<8x1024xf32>
    %cst_133 = arith.constant 5.000000e-01 : f32
    %236 = vector.broadcast %cst_133 : f32 to vector<8x1024xf32>
    %237 = arith.mulf %236, %235 : vector<8x1024xf32>
    %cst_134 = arith.constant 1.000000e+00 : f32
    %238 = vector.broadcast %cst_134 : f32 to vector<8x1024xf32>
    %239 = arith.addf %238, %237 : vector<8x1024xf32>
    %240 = tpu.reciprocal %239 {approx = true} : vector<8x1024xf32> -> vector<8x1024xf32>
    %cst_135 = arith.constant 0.170872763 : f32
    %241 = vector.broadcast %cst_135 : f32 to vector<8x1024xf32>
    %242 = arith.mulf %240, %241 : vector<8x1024xf32>
    %cst_136 = arith.constant -0.822152256 : f32
    %243 = vector.broadcast %cst_136 : f32 to vector<8x1024xf32>
    %244 = arith.addf %243, %242 : vector<8x1024xf32>
    %245 = arith.mulf %240, %244 : vector<8x1024xf32>
    %cst_137 = arith.constant 1.48851585 : f32
    %246 = vector.broadcast %cst_137 : f32 to vector<8x1024xf32>
    %247 = arith.addf %246, %245 : vector<8x1024xf32>
    %248 = arith.mulf %240, %247 : vector<8x1024xf32>
    %cst_138 = arith.constant -1.13520396 : f32
    %249 = vector.broadcast %cst_138 : f32 to vector<8x1024xf32>
    %250 = arith.addf %249, %248 : vector<8x1024xf32>
    %251 = arith.mulf %240, %250 : vector<8x1024xf32>
    %cst_139 = arith.constant 0.278868079 : f32
    %252 = vector.broadcast %cst_139 : f32 to vector<8x1024xf32>
    %253 = arith.addf %252, %251 : vector<8x1024xf32>
    %254 = arith.mulf %240, %253 : vector<8x1024xf32>
    %cst_140 = arith.constant -0.186288059 : f32
    %255 = vector.broadcast %cst_140 : f32 to vector<8x1024xf32>
    %256 = arith.addf %255, %254 : vector<8x1024xf32>
    %257 = arith.mulf %240, %256 : vector<8x1024xf32>
    %cst_141 = arith.constant 0.0967841818 : f32
    %258 = vector.broadcast %cst_141 : f32 to vector<8x1024xf32>
    %259 = arith.addf %258, %257 : vector<8x1024xf32>
    %260 = arith.mulf %240, %259 : vector<8x1024xf32>
    %cst_142 = arith.constant 0.374091953 : f32
    %261 = vector.broadcast %cst_142 : f32 to vector<8x1024xf32>
    %262 = arith.addf %261, %260 : vector<8x1024xf32>
    %263 = arith.mulf %240, %262 : vector<8x1024xf32>
    %cst_143 = arith.constant 1.00002372 : f32
    %264 = vector.broadcast %cst_143 : f32 to vector<8x1024xf32>
    %265 = arith.addf %264, %263 : vector<8x1024xf32>
    %266 = arith.mulf %240, %265 : vector<8x1024xf32>
    %cst_144 = arith.constant -1.26551223 : f32
    %267 = vector.broadcast %cst_144 : f32 to vector<8x1024xf32>
    %268 = arith.addf %267, %266 : vector<8x1024xf32>
    %cst_145 = arith.constant 0.000000e+00 : f32
    %269 = vector.broadcast %cst_145 : f32 to vector<8x1024xf32>
    %270 = arith.subf %269, %235 : vector<8x1024xf32>
    %271 = arith.mulf %270, %235 : vector<8x1024xf32>
    %272 = arith.addf %271, %268 : vector<8x1024xf32>
    %273 = math.exp %272 : vector<8x1024xf32>
    %274 = arith.mulf %240, %273 : vector<8x1024xf32>
    %cst_146 = arith.constant 0.000000e+00 : f32
    %275 = vector.broadcast %cst_146 : f32 to vector<8x1024xf32>
    %276 = arith.cmpf oge, %234, %275 : vector<8x1024xf32>
    %cst_147 = arith.constant 1.000000e+00 : f32
    %277 = vector.broadcast %cst_147 : f32 to vector<8x1024xf32>
    %278 = arith.subf %277, %274 : vector<8x1024xf32>
    %cst_148 = arith.constant 1.000000e+00 : f32
    %279 = vector.broadcast %cst_148 : f32 to vector<8x1024xf32>
    %280 = arith.subf %274, %279 : vector<8x1024xf32>
    %281 = arith.select %276, %278, %280 : vector<8x1024xi1>, vector<8x1024xf32>
    %cst_149 = arith.constant 5.000000e-01 : f32
    %282 = vector.broadcast %cst_149 : f32 to vector<8x1024xf32>
    %283 = arith.mulf %282, %232 : vector<8x1024xf32>
    %cst_150 = arith.constant 1.000000e+00 : f32
    %284 = vector.broadcast %cst_150 : f32 to vector<8x1024xf32>
    %285 = arith.addf %284, %281 : vector<8x1024xf32>
    %286 = arith.mulf %283, %285 : vector<8x1024xf32>
    %c0_151 = arith.constant 0 : index
    %c0_152 = arith.constant 0 : index
    %c0_153 = arith.constant 0 : index
    %287 = vector.load %arg7[%c0_151, %c0_152, %c0_153] : memref<1x8x1024xf32, #tpu.memory_space<vmem>>, vector<1x8x1024xf32>
    %288 = vector.shape_cast %287 : vector<1x8x1024xf32> to vector<8x1024xf32>
    %289 = vector.shape_cast %286 : vector<8x1024xf32> to vector<1x8x1024xf32>
    tpu.vector_store %arg7[%c0_151, %c0_152, %c0_153], %289 {strides = array<i32>} : memref<1x8x1024xf32, #tpu.memory_space<vmem>>, vector<1x8x1024xf32>,
    return
  }
  func.func @transform_0(%arg0: i32) -> (i32, i32, i32) {
    %c0_i32 = arith.constant 0 : i32
    %c0_i32_0 = arith.constant 0 : i32
    %c0_i32_1 = arith.constant 0 : i32
    return %arg0, %c0_i32, %c0_i32_0 : i32, i32, i32
  }
  func.func @transform_1(%arg0: i32) -> (i32, i32) {
    %c0_i32 = arith.constant 0 : i32
    %c0_i32_0 = arith.constant 0 : i32
    %c0_i32_1 = arith.constant 0 : i32
    return %c0_i32, %c0_i32_0 : i32, i32
  }
  func.func @transform_2(%arg0: i32) -> (i32, i32, i32) {
    %c0_i32 = arith.constant 0 : i32
    %c0_i32_0 = arith.constant 0 : i32
    %c0_i32_1 = arith.constant 0 : i32
    %c0_i32_2 = arith.constant 0 : i32
    return %c0_i32, %c0_i32_0, %c0_i32_1 : i32, i32, i32
  }
  func.func @transform_3(%arg0: i32) -> (i32, i32) {
    %c0_i32 = arith.constant 0 : i32
    %c0_i32_0 = arith.constant 0 : i32
    %c0_i32_1 = arith.constant 0 : i32
    return %c0_i32, %c0_i32_0 : i32, i32
  }
  func.func @transform_4(%arg0: i32) -> (i32, i32, i32) {
    %c0_i32 = arith.constant 0 : i32
    %c0_i32_0 = arith.constant 0 : i32
    %c0_i32_1 = arith.constant 0 : i32
    %c0_i32_2 = arith.constant 0 : i32
    return %c0_i32, %c0_i32_0, %c0_i32_1 : i32, i32, i32
  }
  func.func @transform_5(%arg0: i32) -> (i32, i32) {
    %c0_i32 = arith.constant 0 : i32
    %c0_i32_0 = arith.constant 0 : i32
    %c0_i32_1 = arith.constant 0 : i32
    return %c0_i32, %c0_i32_0 : i32, i32
  }
  func.func @transform_6(%arg0: i32) -> (i32, i32, i32) {
    %c0_i32 = arith.constant 0 : i32
    %c0_i32_0 = arith.constant 0 : i32
    %c0_i32_1 = arith.constant 0 : i32
    return %arg0, %c0_i32, %c0_i32_0 : i32, i32, i32
  }
}

</mosaic_0001>

<llo_original>
// kernel: residual_upsample_block.1
$region0: #{residual_upsample_block.1}
  #allocation0 [shape = 'u32[]', space=smem, size = 0x4, offset = 0x4, fixed_abs, tag = 'smem constant byte address 0x4 - core index']
  #allocation1 [shape = 'u32[144,128]{1,0:T(1,128)}', space=vmem, size = 0x12000, scoped, tag = 'internal scratch']
  %s0 = inlined_call_operand.vmem [shape: f32[2,8,256], index: 0, kind: input, shape index: {}]
  %s1 = inlined_call_operand.hbm [shape: f32[256,1024], index: 1, kind: input, shape index: {}]
  %s2 = inlined_call_operand.vmem [shape: f32[9,8,8], index: 2, kind: input, shape index: {}]
  %s3 = inlined_call_operand.vmem [shape: f32[8,1], index: 3, kind: input, shape index: {}]
  %s4 = inlined_call_operand.vmem [shape: f32[9,8,8], index: 4, kind: input, shape index: {}]
  %s5 = inlined_call_operand.vmem [shape: f32[8,1], index: 5, kind: input, shape index: {}]
  %s6 = inlined_call_operand.vmem [shape: f32[2,8,1024], index: 6, kind: output, shape index: {}]
  %s7 = sld [smem:[#allocation0]]
  $region61: #{residual_upsample_block.1} parent=0
    _
  %s9 = ssub.s32 1, %s7
  %s10 = scalar_select 0, %s9, %s7
  $region1: #{residual_upsample_block.1} parent=0
    #allocation2 [shape = 'u8[1048576]{0}', space=vmem, size = 0x100000, scoped, tag = 'input window, operand 1, single buffered']
    #allocation3 [shape = 's32[2]{0}', space=sflag, size = 0x8, scoped, tag = 'scoped memory for residual_upsample_block.1']
    %11 = vsyncpa [#allocation3], 0
    loop: start=0, step=1, limit=4
    $region2: #{residual_upsample_block.1} parent=1 // loop_pre_header
      _
    $region3: #{residual_upsample_block.1} parent=1 // loop_header
      %s13 = sphi 0, %s17
      %p14 = scmp.ge.s32.totalorder %s13, 4
      %s23 = sphi 0, %s25
      %s26 = sphi 0, %s23
      %s27 = sphi 0, %s26
      %s43 = sphi 0, %s27
      %s47 = sphi 0, %s47
      %s49 = sphi 0, %s47
      %s50 = sphi 0, %s49
      %s64 = sphi 0, %s50
      %s68 = sphi 0, %s68
      %s70 = sphi 0, %s68
      %s71 = sphi 0, %s70
      %s85 = sphi 0, %s71
      %s89 = sphi 0, %s89
      %s91 = sphi 0, %s89
      %s92 = sphi 0, %s91
      %s106 = sphi 0, %s92
      %s110 = sphi 0, %s110
      %s112 = sphi 0, %s110
      %s113 = sphi 0, %s112
      %s127 = sphi 0, %s113
      %s131 = sphi 0, %s131
      %s133 = sphi 0, %s131
      %s134 = sphi 0, %s133
      %s148 = sphi 0, %s134
      %s154 = sphi 0, %s156
      %s157 = sphi 0, %s154
      %s158 = sphi 0, %s157
      %s174 = sphi 0, %s158
    $region4: #{residual_upsample_block.1} parent=1 // loop_header_branch
      %16 = sbr.rel (%p14) target = $region8
    $region5: #{residual_upsample_block.1} parent=1 // loop_body
      %s18 = ssub.s32 %s13, 1
      %s19 = ssub.s32 %s13, 2
      %s20 = sadd.s32 %s13, 1
      %s21 = ssub.s32 %s13, %s20
      %p22 = scmp.eq.s32.totalorder %s21, 0
      %s24 = sadd.s32 %s23, 1
      %s25 = scalar_select %p22, %s23, %s24
      %p28 = pneg %p22
      %p29 = scmp.eq.s32.totalorder %s13, 1
      %p30 = por %p28, %p29
      %p31 = scmp.ne.s32.totalorder %s23, %s26
      %p32 = scmp.eq.s32.totalorder %s13, 0
      %p33 = por %p31, %p32
      %p34 = scmp.ne.s32.totalorder %s23, %s26
      %p35 = scmp.eq.s32.totalorder %s18, 1
      %p36 = por %p34, %p35
      %p37 = scmp.ne.s32.totalorder %s26, %s27
      %p38 = scmp.eq.s32.totalorder %s18, 0
      %p39 = por %p37, %p38
      %p40 = scmp.ne.s32.totalorder %s26, %s27
      %p41 = scmp.eq.s32.totalorder %s19, 1
      %p42 = por %p40, %p41
      %p44 = scmp.ne.s32.totalorder %s27, %s43
      %p45 = scmp.eq.s32.totalorder %s19, 0
      %p46 = por %p44, %p45
      %s48 = sadd.s32 %s47, 1
      %p51 = scmp.eq.s32.totalorder %s13, 1
      %p52 = scmp.ne.s32.totalorder %s47, %s49
      %p53 = scmp.eq.s32.totalorder %s13, 0
      %p54 = por %p52, %p53
      %p55 = scmp.ne.s32.totalorder %s47, %s49
      %p56 = scmp.eq.s32.totalorder %s18, 1
      %p57 = por %p55, %p56
      %p58 = scmp.ne.s32.totalorder %s49, %s50
      %p59 = scmp.eq.s32.totalorder %s18, 0
      %p60 = por %p58, %p59
      %p61 = scmp.ne.s32.totalorder %s49, %s50
      %p62 = scmp.eq.s32.totalorder %s19, 1
      %p63 = por %p61, %p62
      %p65 = scmp.ne.s32.totalorder %s50, %s64
      %p66 = scmp.eq.s32.totalorder %s19, 0
      %p67 = por %p65, %p66
      %s69 = sadd.s32 %s68, 1
      %p72 = scmp.eq.s32.totalorder %s13, 1
      %p73 = scmp.ne.s32.totalorder %s68, %s70
      %p74 = scmp.eq.s32.totalorder %s13, 0
      %p75 = por %p73, %p74
      %p76 = scmp.ne.s32.totalorder %s68, %s70
      %p77 = scmp.eq.s32.totalorder %s18, 1
      %p78 = por %p76, %p77
      %p79 = scmp.ne.s32.totalorder %s70, %s71
      %p80 = scmp.eq.s32.totalorder %s18, 0
      %p81 = por %p79, %p80
      %p82 = scmp.ne.s32.totalorder %s70, %s71
      %p83 = scmp.eq.s32.totalorder %s19, 1
      %p84 = por %p82, %p83
      %p86 = scmp.ne.s32.totalorder %s71, %s85
      %p87 = scmp.eq.s32.totalorder %s19, 0
      %p88 = por %p86, %p87
      %s90 = sadd.s32 %s89, 1
      %p93 = scmp.eq.s32.totalorder %s13, 1
      %p94 = scmp.ne.s32.totalorder %s89, %s91
      %p95 = scmp.eq.s32.totalorder %s13, 0
      %p96 = por %p94, %p95
      %p97 = scmp.ne.s32.totalorder %s89, %s91
      %p98 = scmp.eq.s32.totalorder %s18, 1
      %p99 = por %p97, %p98
      %p100 = scmp.ne.s32.totalorder %s91, %s92
      %p101 = scmp.eq.s32.totalorder %s18, 0
      %p102 = por %p100, %p101
      %p103 = scmp.ne.s32.totalorder %s91, %s92
      %p104 = scmp.eq.s32.totalorder %s19, 1
      %p105 = por %p103, %p104
      %p107 = scmp.ne.s32.totalorder %s92, %s106
      %p108 = scmp.eq.s32.totalorder %s19, 0
      %p109 = por %p107, %p108
      %s111 = sadd.s32 %s110, 1
      %p114 = scmp.eq.s32.totalorder %s13, 1
      %p115 = scmp.ne.s32.totalorder %s110, %s112
      %p116 = scmp.eq.s32.totalorder %s13, 0
      %p117 = por %p115, %p116
      %p118 = scmp.ne.s32.totalorder %s110, %s112
      %p119 = scmp.eq.s32.totalorder %s18, 1
      %p120 = por %p118, %p119
      %p121 = scmp.ne.s32.totalorder %s112, %s113
      %p122 = scmp.eq.s32.totalorder %s18, 0
      %p123 = por %p121, %p122
      %p124 = scmp.ne.s32.totalorder %s112, %s113
      %p125 = scmp.eq.s32.totalorder %s19, 1
      %p126 = por %p124, %p125
      %p128 = scmp.ne.s32.totalorder %s113, %s127
      %p129 = scmp.eq.s32.totalorder %s19, 0
      %p130 = por %p128, %p129
      %s132 = sadd.s32 %s131, 1
      %p135 = scmp.eq.s32.totalorder %s13, 1
      %p136 = scmp.ne.s32.totalorder %s131, %s133
      %p137 = scmp.eq.s32.totalorder %s13, 0
      %p138 = por %p136, %p137
      %p139 = scmp.ne.s32.totalorder %s131, %s133
      %p140 = scmp.eq.s32.totalorder %s18, 1
      %p141 = por %p139, %p140
      %p142 = scmp.ne.s32.totalorder %s133, %s134
      %p143 = scmp.eq.s32.totalorder %s18, 0
      %p144 = por %p142, %p143
      %p145 = scmp.ne.s32.totalorder %s133, %s134
      %p146 = scmp.eq.s32.totalorder %s19, 1
      %p147 = por %p145, %p146
      %p149 = scmp.ne.s32.totalorder %s134, %s148
      %p150 = scmp.eq.s32.totalorder %s19, 0
      %p151 = por %p149, %p150
      %s152 = ssub.s32 %s13, %s20
      %p153 = scmp.eq.s32.totalorder %s152, 0
      %s155 = sadd.s32 %s154, 1
      %s156 = scalar_select %p153, %s154, %s155
      %p159 = pneg %p153
      %p160 = scmp.eq.s32.totalorder %s13, 1
      %p161 = por %p159, %p160
      %p162 = scmp.ne.s32.totalorder %s154, %s157
      %p163 = scmp.eq.s32.totalorder %s13, 0
      %p164 = por %p162, %p163
      %p165 = scmp.ne.s32.totalorder %s154, %s157
      %p166 = scmp.eq.s32.totalorder %s18, 1
      %p167 = por %p165, %p166
      %p168 = scmp.ne.s32.totalorder %s157, %s158
      %p169 = scmp.eq.s32.totalorder %s18, 0
      %p170 = por %p168, %p169
      %p171 = scmp.ne.s32.totalorder %s157, %s158
      %p172 = scmp.eq.s32.totalorder %s19, 1
      %p173 = por %p171, %p172
      %p175 = scmp.ne.s32.totalorder %s158, %s174
      %p176 = scmp.eq.s32.totalorder %s19, 0
      %p177 = por %p175, %p176
      %p178 = scmp.le.s32.totalorder 1, %s13
      %p179 = scmp.lt.s32.totalorder %s13, 3
      %p180 = pnand %p178, %p179
      %p181 = pneg %p180
      // Predicated region
      $region9: #{residual_upsample_block.1} parent=5 // pred_check
        _
      $region10: #{residual_upsample_block.1} parent=5 // pred_check_branch
        %183 = sbr.rel (%p180) target = $region12
      $region11: #{residual_upsample_block.1} parent=5 // pred_region
        %s184 = ssub.s32 %s13, 1
        // Predicated region
        $region13: #{residual_upsample_block.1} parent=11 // pred_check
          %p185 = pneg %p60
        $region14: #{residual_upsample_block.1} parent=11 // pred_check_branch
          %187 = sbr.rel (%p185) target = $region16
        $region15: #{residual_upsample_block.1} parent=11 // pred_region
          %s189 = ssub.s32 32768, 32768
          %190 = vsyncadd [#allocation3], %s189
          %s191 = sshll.u32 [#allocation2], 4
          %s192 = int_to_ptr.vmem [resolvable:$true] %s191
          %197 = dma.hbm_to_vmem [thread:$0]  %s1, 32768, %s192, [#allocation3], 1024, 1024, 64
        $region16: #{residual_upsample_block.1} parent=11 // pred_fallthru
          _
        // Predicated region
        $region17: #{residual_upsample_block.1} parent=11 // pred_check
          %p198 = pneg %p81
        $region18: #{residual_upsample_block.1} parent=11 // pred_check_branch
          %200 = sbr.rel (%p198) target = $region20
        $region19: #{residual_upsample_block.1} parent=11 // pred_region
          _
        $region20: #{residual_upsample_block.1} parent=11 // pred_fallthru
          _
        // Predicated region
        $region21: #{residual_upsample_block.1} parent=11 // pred_check
          %p201 = pneg %p102
        $region22: #{residual_upsample_block.1} parent=11 // pred_check_branch
          %203 = sbr.rel (%p201) target = $region24
        $region23: #{residual_upsample_block.1} parent=11 // pred_region
          _
        $region24: #{residual_upsample_block.1} parent=11 // pred_fallthru
          _
        // Predicated region
        $region25: #{residual_upsample_block.1} parent=11 // pred_check
          %p204 = pneg %p123
        $region26: #{residual_upsample_block.1} parent=11 // pred_check_branch
          %206 = sbr.rel (%p204) target = $region28
        $region27: #{residual_upsample_block.1} parent=11 // pred_region
          _
        $region28: #{residual_upsample_block.1} parent=11 // pred_fallthru
          _
        // Predicated region
        $region29: #{residual_upsample_block.1} parent=11 // pred_check
          %p207 = pneg %p144
        $region30: #{residual_upsample_block.1} parent=11 // pred_check_branch
          %209 = sbr.rel (%p207) target = $region32
        $region31: #{residual_upsample_block.1} parent=11 // pred_region
          _
        $region32: #{residual_upsample_block.1} parent=11 // pred_fallthru
          _
      $region12: #{residual_upsample_block.1} parent=5 // pred_fallthru
        _
      %p210 = scmp.lt.s32.totalorder %s13, 2
      // Predicated region
      $region33: #{residual_upsample_block.1} parent=5 // pred_check
        %p211 = pneg %p210
      $region34: #{residual_upsample_block.1} parent=5 // pred_check_branch
        %213 = sbr.rel (%p211) target = $region36
      $region35: #{residual_upsample_block.1} parent=5 // pred_region
        // Predicated region
        $region37: #{residual_upsample_block.1} parent=35 // pred_check
          %p214 = pneg %p33
        $region38: #{residual_upsample_block.1} parent=35 // pred_check_branch
          %216 = sbr.rel (%p214) target = $region40
        $region39: #{residual_upsample_block.1} parent=35 // pred_region
          %p217 = scmp.lt.s32.totalorder %s13, 1
          %s218 = scalar_select %p217, %s13, 1
          %s219 = smul.addr %s218, 2
          %s220 = smul.addr %s219, 8
          %s221 = scalar_lea.vmem %s0, %s220
        $region40: #{residual_upsample_block.1} parent=35 // pred_fallthru
          _
      $region36: #{residual_upsample_block.1} parent=5 // pred_fallthru
        _
      %p222 = scmp.le.s32.totalorder 1, %s13
      %p223 = scmp.lt.s32.totalorder %s13, 3
      %p224 = pnand %p222, %p223
      %p225 = pneg %p224
      // Predicated region
      $region41: #{residual_upsample_block.1} parent=5 // pred_check
        _
      $region42: #{residual_upsample_block.1} parent=5 // pred_check_branch
        %227 = sbr.rel (%p224) target = $region44
      $region43: #{residual_upsample_block.1} parent=5 // pred_region
        %s228 = ssub.s32 %s13, 1
        // Predicated region
        $region45: #{residual_upsample_block.1} parent=43 // pred_check
          %p229 = pneg %p60
        $region46: #{residual_upsample_block.1} parent=43 // pred_check_branch
          %231 = sbr.rel (%p229) target = $region48
        $region47: #{residual_upsample_block.1} parent=43 // pred_region
          %232 = dma.done [#allocation3], 32768
        $region48: #{residual_upsample_block.1} parent=43 // pred_fallthru
          _
        %p233 = scmp.lt.s32.totalorder %s18, 1
        %s234 = scalar_select %p233, %s18, 1
        %s235 = smul.addr %s234, 2
        %s236 = smul.addr %s235, 8
        %s237 = scalar_lea.vmem %s0, %s236
        %p238 = pneg %p39
        %p239 = pneg %p36
        %p240 = pneg %p60
        %p241 = pneg %p57
        %p242 = pneg %p81
        %p243 = pneg %p78
        %p244 = pneg %p102
        %p245 = pneg %p99
        %p246 = pneg %p123
        %p247 = pneg %p120
        %p248 = pneg %p144
        %p249 = pneg %p141
        %p250 = pneg %p170
        %p251 = pneg %p167
        %p252 = scmp.lt.s32.totalorder %s18, 1
        %s253 = scalar_select %p252, %s18, 1
        %s254 = smul.addr %s253, 8
        %s255 = smul.addr %s254, 8
        %s256 = scalar_lea.vmem %s6, %s255
        %p257 = scmp.lt.s32.totalorder %s18, 1
        %s258 = scalar_select %p257, %s18, 1
        %s259 = smul.addr %s258, 2
        %s260 = smul.addr %s259, 8
        %s261 = scalar_lea.vmem %s0, %s260
        %p262 = scmp.lt.s32.totalorder %s18, 1
        %s263 = scalar_select %p262, %s18, 1
        %s264 = smul.addr %s263, 8
        %s265 = smul.addr %s264, 8
        %s266 = scalar_lea.vmem %s6, %s265
        %v267 = vlaneseq
        %v268 = vand.u32 %v267, 127
        %v269 = vadd.s32 %v268, 128
        %v270 = vadd.s32 %v268, 256
        %v271 = vadd.s32 %v268, 384
        %v272 = vadd.s32 %v268, 512
        %v273 = vadd.s32 %v268, 640
        %v274 = vadd.s32 %v268, 768
        %v275 = vadd.s32 %v268, 896
        %v276 = vand.u32 %v268, 31
        %v277 = vand.u32 %v269, 31
        %v278 = vand.u32 %v270, 31
        %v279 = vand.u32 %v271, 31
        %v280 = vand.u32 %v272, 31
        %v281 = vand.u32 %v273, 31
        %v282 = vand.u32 %v274, 31
        %v283 = vand.u32 %v275, 31
        %vm284 = vcmp.ge.s32.totalorder %v268, 32
        %vm285 = vcmp.ge.s32.totalorder %v269, 32
        %vm286 = vcmp.ge.s32.totalorder %v270, 32
        %vm287 = vcmp.ge.s32.totalorder %v271, 32
        %vm288 = vcmp.ge.s32.totalorder %v272, 32
        %vm289 = vcmp.ge.s32.totalorder %v273, 32
        %vm290 = vcmp.ge.s32.totalorder %v274, 32
        %vm291 = vcmp.ge.s32.totalorder %v275, 32
        %vm292 = vcmp.lt.s32.totalorder %v268, 992
        %vm293 = vcmp.lt.s32.totalorder %v269, 992
        %vm294 = vcmp.lt.s32.totalorder %v270, 992
        %vm295 = vcmp.lt.s32.totalorder %v271, 992
        %vm296 = vcmp.lt.s32.totalorder %v272, 992
        %vm297 = vcmp.lt.s32.totalorder %v273, 992
        %vm298 = vcmp.lt.s32.totalorder %v274, 992
        %vm299 = vcmp.lt.s32.totalorder %v275, 992
        %vm300 = vcmp.ge.s32.totalorder %v276, 1
        %vm301 = vcmp.ge.s32.totalorder %v277, 1
        %vm302 = vcmp.ge.s32.totalorder %v278, 1
        %vm303 = vcmp.ge.s32.totalorder %v279, 1
        %vm304 = vcmp.ge.s32.totalorder %v280, 1
        %vm305 = vcmp.ge.s32.totalorder %v281, 1
        %vm306 = vcmp.ge.s32.totalorder %v282, 1
        %vm307 = vcmp.ge.s32.totalorder %v283, 1
        %vm308 = vcmp.lt.s32.totalorder %v276, 31
        %vm309 = vcmp.lt.s32.totalorder %v277, 31
        %vm310 = vcmp.lt.s32.totalorder %v278, 31
        %vm311 = vcmp.lt.s32.totalorder %v279, 31
        %vm312 = vcmp.lt.s32.totalorder %v280, 31
        %vm313 = vcmp.lt.s32.totalorder %v281, 31
        %vm314 = vcmp.lt.s32.totalorder %v282, 31
        %vm315 = vcmp.lt.s32.totalorder %v283, 31
        %vm316 = vmand %vm284, %vm300
        %vm317 = vmand %vm285, %vm301
        %vm318 = vmand %vm286, %vm302
        %vm319 = vmand %vm287, %vm303
        %vm320 = vmand %vm288, %vm304
        %vm321 = vmand %vm289, %vm305
        %vm322 = vmand %vm290, %vm306
        %vm323 = vmand %vm291, %vm307
        %vm324 = vmand %vm284, %vm308
        %vm325 = vmand %vm285, %vm309
        %vm326 = vmand %vm286, %vm310
        %vm327 = vmand %vm287, %vm311
        %vm328 = vmand %vm288, %vm312
        %vm329 = vmand %vm289, %vm313
        %vm330 = vmand %vm290, %vm314
        %vm331 = vmand %vm291, %vm315
        %vm332 = vmand %vm292, %vm300
        %vm333 = vmand %vm293, %vm301
        %vm334 = vmand %vm294, %vm302
        %vm335 = vmand %vm295, %vm303
        %vm336 = vmand %vm296, %vm304
        %vm337 = vmand %vm297, %vm305
        %vm338 = vmand %vm298, %vm306
        %vm339 = vmand %vm299, %vm307
        %vm340 = vmand %vm292, %vm308
        %vm341 = vmand %vm293, %vm309
        %vm342 = vmand %vm294, %vm310
        %vm343 = vmand %vm295, %vm311
        %vm344 = vmand %vm296, %vm312
        %vm345 = vmand %vm297, %vm313
        %vm346 = vmand %vm298, %vm314
        %vm347 = vmand %vm299, %vm315
        %v348 = vld [vmem:[%s261] sm:$0xff]
        %v349 = vld [vmem:[%s261 + $0x8] sm:$0xff]
        %v350 = vld [vmem:[#allocation2] sm:$0xff]
        %v351 = vld [vmem:[#allocation2 + $0x8] sm:$0xff]
        %v352 = vld [vmem:[#allocation2 + $0x10] sm:$0xff]
        %v353 = vld [vmem:[#allocation2 + $0x18] sm:$0xff]
        %v354 = vld [vmem:[#allocation2 + $0x20] sm:$0xff]
        %v355 = vld [vmem:[#allocation2 + $0x28] sm:$0xff]
        %v356 = vld [vmem:[#allocation2 + $0x30] sm:$0xff]
        %v357 = vld [vmem:[#allocation2 + $0x38] sm:$0xff]
        %v358 = vld [vmem:[#allocation2 + $0x40] sm:$0xff]
        %v359 = vld [vmem:[#allocation2 + $0x48] sm:$0xff]
        %v360 = vld [vmem:[#allocation2 + $0x50] sm:$0xff]
        %v361 = vld [vmem:[#allocation2 + $0x58] sm:$0xff]
        %v362 = vld [vmem:[#allocation2 + $0x60] sm:$0xff]
        %v363 = vld [vmem:[#allocation2 + $0x68] sm:$0xff]
        %v364 = vld [vmem:[#allocation2 + $0x70] sm:$0xff]
        %v365 = vld [vmem:[#allocation2 + $0x78] sm:$0xff]
        %v366 = vld [vmem:[#allocation2 + $0x80] sm:$0xff]
        %v367 = vld [vmem:[#allocation2 + $0x88] sm:$0xff]
        %v368 = vld [vmem:[#allocation2 + $0x90] sm:$0xff]
        %v369 = vld [vmem:[#allocation2 + $0x98] sm:$0xff]
        %v370 = vld [vmem:[#allocation2 + $0xa0] sm:$0xff]
        %v371 = vld [vmem:[#allocation2 + $0xa8] sm:$0xff]
        %v372 = vld [vmem:[#allocation2 + $0xb0] sm:$0xff]
        %v373 = vld [vmem:[#allocation2 + $0xb8] sm:$0xff]
        %v374 = vld [vmem:[#allocation2 + $0xc0] sm:$0xff]
        %v375 = vld [vmem:[#allocation2 + $0xc8] sm:$0xff]
        %v376 = vld [vmem:[#allocation2 + $0xd0] sm:$0xff]
        %v377 = vld [vmem:[#allocation2 + $0xd8] sm:$0xff]
        %v378 = vld [vmem:[#allocation2 + $0xe0] sm:$0xff]
        %v379 = vld [vmem:[#allocation2 + $0xe8] sm:$0xff]
        %v380 = vld [vmem:[#allocation2 + $0xf0] sm:$0xff]
        %v381 = vld [vmem:[#allocation2 + $0xf8] sm:$0xff]
        %v382 = vld [vmem:[#allocation2 + $0x100] sm:$0xff]
        %v383 = vld [vmem:[#allocation2 + $0x108] sm:$0xff]
        %v384 = vld [vmem:[#allocation2 + $0x110] sm:$0xff]
        %v385 = vld [vmem:[#allocation2 + $0x118] sm:$0xff]
        %v386 = vld [vmem:[#allocation2 + $0x120] sm:$0xff]
        %v387 = vld [vmem:[#allocation2 + $0x128] sm:$0xff]
        %v388 = vld [vmem:[#allocation2 + $0x130] sm:$0xff]
        %v389 = vld [vmem:[#allocation2 + $0x138] sm:$0xff]
        %v390 = vld [vmem:[#allocation2 + $0x140] sm:$0xff]
        %v391 = vld [vmem:[#allocation2 + $0x148] sm:$0xff]
        %v392 = vld [vmem:[#allocation2 + $0x150] sm:$0xff]
        %v393 = vld [vmem:[#allocation2 + $0x158] sm:$0xff]
        %v394 = vld [vmem:[#allocation2 + $0x160] sm:$0xff]
        %v395 = vld [vmem:[#allocation2 + $0x168] sm:$0xff]
        %v396 = vld [vmem:[#allocation2 + $0x170] sm:$0xff]
        %v397 = vld [vmem:[#allocation2 + $0x178] sm:$0xff]
        %v398 = vld [vmem:[#allocation2 + $0x180] sm:$0xff]
        %v399 = vld [vmem:[#allocation2 + $0x188] sm:$0xff]
        %v400 = vld [vmem:[#allocation2 + $0x190] sm:$0xff]
        %v401 = vld [vmem:[#allocation2 + $0x198] sm:$0xff]
        %v402 = vld [vmem:[#allocation2 + $0x1a0] sm:$0xff]
        %v403 = vld [vmem:[#allocation2 + $0x1a8] sm:$0xff]
        %v404 = vld [vmem:[#allocation2 + $0x1b0] sm:$0xff]
        %v405 = vld [vmem:[#allocation2 + $0x1b8] sm:$0xff]
        %v406 = vld [vmem:[#allocation2 + $0x1c0] sm:$0xff]
        %v407 = vld [vmem:[#allocation2 + $0x1c8] sm:$0xff]
        %v408 = vld [vmem:[#allocation2 + $0x1d0] sm:$0xff]
        %v409 = vld [vmem:[#allocation2 + $0x1d8] sm:$0xff]
        %v410 = vld [vmem:[#allocation2 + $0x1e0] sm:$0xff]
        %v411 = vld [vmem:[#allocation2 + $0x1e8] sm:$0xff]
        %v412 = vld [vmem:[#allocation2 + $0x1f0] sm:$0xff]
        %v413 = vld [vmem:[#allocation2 + $0x1f8] sm:$0xff]
        %v414 = vld [vmem:[#allocation2 + $0x200] sm:$0xff]
        %v415 = vld [vmem:[#allocation2 + $0x208] sm:$0xff]
        %v416 = vld [vmem:[#allocation2 + $0x210] sm:$0xff]
        %v417 = vld [vmem:[#allocation2 + $0x218] sm:$0xff]
        %v418 = vld [vmem:[#allocation2 + $0x220] sm:$0xff]
        %v419 = vld [vmem:[#allocation2 + $0x228] sm:$0xff]
        %v420 = vld [vmem:[#allocation2 + $0x230] sm:$0xff]
        %v421 = vld [vmem:[#allocation2 + $0x238] sm:$0xff]
        %v422 = vld [vmem:[#allocation2 + $0x240] sm:$0xff]
        %v423 = vld [vmem:[#allocation2 + $0x248] sm:$0xff]
        %v424 = vld [vmem:[#allocation2 + $0x250] sm:$0xff]
        %v425 = vld [vmem:[#allocation2 + $0x258] sm:$0xff]
        %v426 = vld [vmem:[#allocation2 + $0x260] sm:$0xff]
        %v427 = vld [vmem:[#allocation2 + $0x268] sm:$0xff]
        %v428 = vld [vmem:[#allocation2 + $0x270] sm:$0xff]
        %v429 = vld [vmem:[#allocation2 + $0x278] sm:$0xff]
        %v430 = vld [vmem:[#allocation2 + $0x280] sm:$0xff]
        %v431 = vld [vmem:[#allocation2 + $0x288] sm:$0xff]
        %v432 = vld [vmem:[#allocation2 + $0x290] sm:$0xff]
        %v433 = vld [vmem:[#allocation2 + $0x298] sm:$0xff]
        %v434 = vld [vmem:[#allocation2 + $0x2a0] sm:$0xff]
        %v435 = vld [vmem:[#allocation2 + $0x2a8] sm:$0xff]
        %v436 = vld [vmem:[#allocation2 + $0x2b0] sm:$0xff]
        %v437 = vld [vmem:[#allocation2 + $0x2b8] sm:$0xff]
        %v438 = vld [vmem:[#allocation2 + $0x2c0] sm:$0xff]
        %v439 = vld [vmem:[#allocation2 + $0x2c8] sm:$0xff]
        %v440 = vld [vmem:[#allocation2 + $0x2d0] sm:$0xff]
        %v441 = vld [vmem:[#allocation2 + $0x2d8] sm:$0xff]
        %v442 = vld [vmem:[#allocation2 + $0x2e0] sm:$0xff]
        %v443 = vld [vmem:[#allocation2 + $0x2e8] sm:$0xff]
        %v444 = vld [vmem:[#allocation2 + $0x2f0] sm:$0xff]
        %v445 = vld [vmem:[#allocation2 + $0x2f8] sm:$0xff]
        %v446 = vld [vmem:[#allocation2 + $0x300] sm:$0xff]
        %v447 = vld [vmem:[#allocation2 + $0x308] sm:$0xff]
        %v448 = vld [vmem:[#allocation2 + $0x310] sm:$0xff]
        %v449 = vld [vmem:[#allocation2 + $0x318] sm:$0xff]
        %v450 = vld [vmem:[#allocation2 + $0x320] sm:$0xff]
        %v451 = vld [vmem:[#allocation2 + $0x328] sm:$0xff]
        %v452 = vld [vmem:[#allocation2 + $0x330] sm:$0xff]
        %v453 = vld [vmem:[#allocation2 + $0x338] sm:$0xff]
        %v454 = vld [vmem:[#allocation2 + $0x340] sm:$0xff]
        %v455 = vld [vmem:[#allocation2 + $0x348] sm:$0xff]
        %v456 = vld [vmem:[#allocation2 + $0x350] sm:$0xff]
        %v457 = vld [vmem:[#allocation2 + $0x358] sm:$0xff]
        %v458 = vld [vmem:[#allocation2 + $0x360] sm:$0xff]
        %v459 = vld [vmem:[#allocation2 + $0x368] sm:$0xff]
        %v460 = vld [vmem:[#allocation2 + $0x370] sm:$0xff]
        %v461 = vld [vmem:[#allocation2 + $0x378] sm:$0xff]
        %v462 = vld [vmem:[#allocation2 + $0x380] sm:$0xff]
        %v463 = vld [vmem:[#allocation2 + $0x388] sm:$0xff]
        %v464 = vld [vmem:[#allocation2 + $0x390] sm:$0xff]
        %v465 = vld [vmem:[#allocation2 + $0x398] sm:$0xff]
        %v466 = vld [vmem:[#allocation2 + $0x3a0] sm:$0xff]
        %v467 = vld [vmem:[#allocation2 + $0x3a8] sm:$0xff]
        %v468 = vld [vmem:[#allocation2 + $0x3b0] sm:$0xff]
        %v469 = vld [vmem:[#allocation2 + $0x3b8] sm:$0xff]
        %v470 = vld [vmem:[#allocation2 + $0x3c0] sm:$0xff]
        %v471 = vld [vmem:[#allocation2 + $0x3c8] sm:$0xff]
        %v472 = vld [vmem:[#allocation2 + $0x3d0] sm:$0xff]
        %v473 = vld [vmem:[#allocation2 + $0x3d8] sm:$0xff]
        %v474 = vld [vmem:[#allocation2 + $0x3e0] sm:$0xff]
        %v475 = vld [vmem:[#allocation2 + $0x3e8] sm:$0xff]
        %v476 = vld [vmem:[#allocation2 + $0x3f0] sm:$0xff]
        %v477 = vld [vmem:[#allocation2 + $0x3f8] sm:$0xff]
        %v478 = vld [vmem:[#allocation2 + $0x400] sm:$0xff]
        %v479 = vld [vmem:[#allocation2 + $0x408] sm:$0xff]
        %v480 = vld [vmem:[#allocation2 + $0x410] sm:$0xff]
        %v481 = vld [vmem:[#allocation2 + $0x418] sm:$0xff]
        %v482 = vld [vmem:[#allocation2 + $0x420] sm:$0xff]
        %v483 = vld [vmem:[#allocation2 + $0x428] sm:$0xff]
        %v484 = vld [vmem:[#allocation2 + $0x430] sm:$0xff]
        %v485 = vld [vmem:[#allocation2 + $0x438] sm:$0xff]
        %v486 = vld [vmem:[#allocation2 + $0x440] sm:$0xff]
        %v487 = vld [vmem:[#allocation2 + $0x448] sm:$0xff]
        %v488 = vld [vmem:[#allocation2 + $0x450] sm:$0xff]
        %v489 = vld [vmem:[#allocation2 + $0x458] sm:$0xff]
        %v490 = vld [vmem:[#allocation2 + $0x460] sm:$0xff]
        %v491 = vld [vmem:[#allocation2 + $0x468] sm:$0xff]
        %v492 = vld [vmem:[#allocation2 + $0x470] sm:$0xff]
        %v493 = vld [vmem:[#allocation2 + $0x478] sm:$0xff]
        %v494 = vld [vmem:[#allocation2 + $0x480] sm:$0xff]
        %v495 = vld [vmem:[#allocation2 + $0x488] sm:$0xff]
        %v496 = vld [vmem:[#allocation2 + $0x490] sm:$0xff]
        %v497 = vld [vmem:[#allocation2 + $0x498] sm:$0xff]
        %v498 = vld [vmem:[#allocation2 + $0x4a0] sm:$0xff]
        %v499 = vld [vmem:[#allocation2 + $0x4a8] sm:$0xff]
        %v500 = vld [vmem:[#allocation2 + $0x4b0] sm:$0xff]
        %v501 = vld [vmem:[#allocation2 + $0x4b8] sm:$0xff]
        %v502 = vld [vmem:[#allocation2 + $0x4c0] sm:$0xff]
        %v503 = vld [vmem:[#allocation2 + $0x4c8] sm:$0xff]
        %v504 = vld [vmem:[#allocation2 + $0x4d0] sm:$0xff]
        %v505 = vld [vmem:[#allocation2 + $0x4d8] sm:$0xff]
        %v506 = vld [vmem:[#allocation2 + $0x4e0] sm:$0xff]
        %v507 = vld [vmem:[#allocation2 + $0x4e8] sm:$0xff]
        %v508 = vld [vmem:[#allocation2 + $0x4f0] sm:$0xff]
        %v509 = vld [vmem:[#allocation2 + $0x4f8] sm:$0xff]
        %v510 = vld [vmem:[#allocation2 + $0x500] sm:$0xff]
        %v511 = vld [vmem:[#allocation2 + $0x508] sm:$0xff]
        %v512 = vld [vmem:[#allocation2 + $0x510] sm:$0xff]
        %v513 = vld [vmem:[#allocation2 + $0x518] sm:$0xff]
        %v514 = vld [vmem:[#allocation2 + $0x520] sm:$0xff]
        %v515 = vld [vmem:[#allocation2 + $0x528] sm:$0xff]
        %v516 = vld [vmem:[#allocation2 + $0x530] sm:$0xff]
        %v517 = vld [vmem:[#allocation2 + $0x538] sm:$0xff]
        %v518 = vld [vmem:[#allocation2 + $0x540] sm:$0xff]
        %v519 = vld [vmem:[#allocation2 + $0x548] sm:$0xff]
        %v520 = vld [vmem:[#allocation2 + $0x550] sm:$0xff]
        %v521 = vld [vmem:[#allocation2 + $0x558] sm:$0xff]
        %v522 = vld [vmem:[#allocation2 + $0x560] sm:$0xff]
        %v523 = vld [vmem:[#allocation2 + $0x568] sm:$0xff]
        %v524 = vld [vmem:[#allocation2 + $0x570] sm:$0xff]
        %v525 = vld [vmem:[#allocation2 + $0x578] sm:$0xff]
        %v526 = vld [vmem:[#allocation2 + $0x580] sm:$0xff]
        %v527 = vld [vmem:[#allocation2 + $0x588] sm:$0xff]
        %v528 = vld [vmem:[#allocation2 + $0x590] sm:$0xff]
        %v529 = vld [vmem:[#allocation2 + $0x598] sm:$0xff]
        %v530 = vld [vmem:[#allocation2 + $0x5a0] sm:$0xff]
        %v531 = vld [vmem:[#allocation2 + $0x5a8] sm:$0xff]
        %v532 = vld [vmem:[#allocation2 + $0x5b0] sm:$0xff]
        %v533 = vld [vmem:[#allocation2 + $0x5b8] sm:$0xff]
        %v534 = vld [vmem:[#allocation2 + $0x5c0] sm:$0xff]
        %v535 = vld [vmem:[#allocation2 + $0x5c8] sm:$0xff]
        %v536 = vld [vmem:[#allocation2 + $0x5d0] sm:$0xff]
        %v537 = vld [vmem:[#allocation2 + $0x5d8] sm:$0xff]
        %v538 = vld [vmem:[#allocation2 + $0x5e0] sm:$0xff]
        %v539 = vld [vmem:[#allocation2 + $0x5e8] sm:$0xff]
        %v540 = vld [vmem:[#allocation2 + $0x5f0] sm:$0xff]
        %v541 = vld [vmem:[#allocation2 + $0x5f8] sm:$0xff]
        %v542 = vld [vmem:[#allocation2 + $0x600] sm:$0xff]
        %v543 = vld [vmem:[#allocation2 + $0x608] sm:$0xff]
        %v544 = vld [vmem:[#allocation2 + $0x610] sm:$0xff]
        %v545 = vld [vmem:[#allocation2 + $0x618] sm:$0xff]
        %v546 = vld [vmem:[#allocation2 + $0x620] sm:$0xff]
        %v547 = vld [vmem:[#allocation2 + $0x628] sm:$0xff]
        %v548 = vld [vmem:[#allocation2 + $0x630] sm:$0xff]
        %v549 = vld [vmem:[#allocation2 + $0x638] sm:$0xff]
        %v550 = vld [vmem:[#allocation2 + $0x640] sm:$0xff]
        %v551 = vld [vmem:[#allocation2 + $0x648] sm:$0xff]
        %v552 = vld [vmem:[#allocation2 + $0x650] sm:$0xff]
        %v553 = vld [vmem:[#allocation2 + $0x658] sm:$0xff]
        %v554 = vld [vmem:[#allocation2 + $0x660] sm:$0xff]
        %v555 = vld [vmem:[#allocation2 + $0x668] sm:$0xff]
        %v556 = vld [vmem:[#allocation2 + $0x670] sm:$0xff]
        %v557 = vld [vmem:[#allocation2 + $0x678] sm:$0xff]
        %v558 = vld [vmem:[#allocation2 + $0x680] sm:$0xff]
        %v559 = vld [vmem:[#allocation2 + $0x688] sm:$0xff]
        %v560 = vld [vmem:[#allocation2 + $0x690] sm:$0xff]
        %v561 = vld [vmem:[#allocation2 + $0x698] sm:$0xff]
        %v562 = vld [vmem:[#allocation2 + $0x6a0] sm:$0xff]
        %v563 = vld [vmem:[#allocation2 + $0x6a8] sm:$0xff]
        %v564 = vld [vmem:[#allocation2 + $0x6b0] sm:$0xff]
        %v565 = vld [vmem:[#allocation2 + $0x6b8] sm:$0xff]
        %v566 = vld [vmem:[#allocation2 + $0x6c0] sm:$0xff]
        %v567 = vld [vmem:[#allocation2 + $0x6c8] sm:$0xff]
        %v568 = vld [vmem:[#allocation2 + $0x6d0] sm:$0xff]
        %v569 = vld [vmem:[#allocation2 + $0x6d8] sm:$0xff]
        %v570 = vld [vmem:[#allocation2 + $0x6e0] sm:$0xff]
        %v571 = vld [vmem:[#allocation2 + $0x6e8] sm:$0xff]
        %v572 = vld [vmem:[#allocation2 + $0x6f0] sm:$0xff]
        %v573 = vld [vmem:[#allocation2 + $0x6f8] sm:$0xff]
        %v574 = vld [vmem:[#allocation2 + $0x700] sm:$0xff]
        %v575 = vld [vmem:[#allocation2 + $0x708] sm:$0xff]
        %v576 = vld [vmem:[#allocation2 + $0x710] sm:$0xff]
        %v577 = vld [vmem:[#allocation2 + $0x718] sm:$0xff]
        %v578 = vld [vmem:[#allocation2 + $0x720] sm:$0xff]
        %v579 = vld [vmem:[#allocation2 + $0x728] sm:$0xff]
        %v580 = vld [vmem:[#allocation2 + $0x730] sm:$0xff]
        %v581 = vld [vmem:[#allocation2 + $0x738] sm:$0xff]
        %v582 = vld [vmem:[#allocation2 + $0x740] sm:$0xff]
        %v583 = vld [vmem:[#allocation2 + $0x748] sm:$0xff]
        %v584 = vld [vmem:[#allocation2 + $0x750] sm:$0xff]
        %v585 = vld [vmem:[#allocation2 + $0x758] sm:$0xff]
        %v586 = vld [vmem:[#allocation2 + $0x760] sm:$0xff]
        %v587 = vld [vmem:[#allocation2 + $0x768] sm:$0xff]
        %v588 = vld [vmem:[#allocation2 + $0x770] sm:$0xff]
        %v589 = vld [vmem:[#allocation2 + $0x778] sm:$0xff]
        %v590 = vld [vmem:[#allocation2 + $0x780] sm:$0xff]
        %v591 = vld [vmem:[#allocation2 + $0x788] sm:$0xff]
        %v592 = vld [vmem:[#allocation2 + $0x790] sm:$0xff]
        %v593 = vld [vmem:[#allocation2 + $0x798] sm:$0xff]
        %v594 = vld [vmem:[#allocation2 + $0x7a0] sm:$0xff]
        %v595 = vld [vmem:[#allocation2 + $0x7a8] sm:$0xff]
        %v596 = vld [vmem:[#allocation2 + $0x7b0] sm:$0xff]
        %v597 = vld [vmem:[#allocation2 + $0x7b8] sm:$0xff]
        %v598 = vld [vmem:[#allocation2 + $0x7c0] sm:$0xff]
        %v599 = vld [vmem:[#allocation2 + $0x7c8] sm:$0xff]
        %v600 = vld [vmem:[#allocation2 + $0x7d0] sm:$0xff]
        %v601 = vld [vmem:[#allocation2 + $0x7d8] sm:$0xff]
        %v602 = vld [vmem:[#allocation2 + $0x7e0] sm:$0xff]
        %v603 = vld [vmem:[#allocation2 + $0x7e8] sm:$0xff]
        %v604 = vld [vmem:[#allocation2 + $0x7f0] sm:$0xff]
        %v605 = vld [vmem:[#allocation2 + $0x7f8] sm:$0xff]
        %606 = vmatprep.subr.mxu0 %v351
        %607 = vmatpush1.msra.mxu0 %v350
        %608 = vmatprep.subr.mxu0 %v359
        %609 = vmatpush1.msra.mxu0 %v358
        %610 = vmatprep.subr.mxu0 %v367
        %611 = vmatpush1.msra.mxu0 %v366
        %612 = vmatprep.subr.mxu0 %v375
        %613 = vmatpush1.msra.mxu0 %v374
        %614 = vmatprep.subr.mxu0 %v383
        %615 = vmatpush1.msra.mxu0 %v382
        %616 = vmatprep.subr.mxu0 %v391
        %617 = vmatpush1.msra.mxu0 %v390
        %618 = vmatprep.subr.mxu0 %v399
        %619 = vmatpush1.msra.mxu0 %v398
        %620 = vmatprep.subr.mxu0 %v407
        %621 = vmatpush1.msra.mxu0 %v406
        %622 = vmatprep.subr.mxu0 %v415
        %623 = vmatpush1.msra.mxu0 %v414
        %624 = vmatprep.subr.mxu0 %v423
        %625 = vmatpush1.msra.mxu0 %v422
        %626 = vmatprep.subr.mxu0 %v431
        %627 = vmatpush1.msra.mxu0 %v430
        %628 = vmatprep.subr.mxu0 %v439
        %629 = vmatpush1.msra.mxu0 %v438
        %630 = vmatprep.subr.mxu0 %v447
        %631 = vmatpush1.msra.mxu0 %v446
        %632 = vmatprep.subr.mxu0 %v455
        %633 = vmatpush1.msra.mxu0 %v454
        %634 = vmatprep.subr.mxu0 %v463
        %635 = vmatpush1.msra.mxu0 %v462
        %636 = vmatprep.subr.mxu0 %v471
        %637 = vmatpush1.msra.mxu0 %v470
        %638 = vmatprep.subr.mxu0 %v479
        %639 = vmatpush1.msra.mxu0 %v478
        %640 = vmatprep.subr.mxu0 %v487
        %641 = vmatpush1.msra.mxu0 %v486
        %642 = vmatprep.subr.mxu0 %v495
        %643 = vmatpush1.msra.mxu0 %v494
        %644 = vmatprep.subr.mxu0 %v503
        %645 = vmatpush1.msra.mxu0 %v502
        %646 = vmatprep.subr.mxu0 %v511
        %647 = vmatpush1.msra.mxu0 %v510
        %648 = vmatprep.subr.mxu0 %v519
        %649 = vmatpush1.msra.mxu0 %v518
        %650 = vmatprep.subr.mxu0 %v527
        %651 = vmatpush1.msra.mxu0 %v526
        %652 = vmatprep.subr.mxu0 %v535
        %653 = vmatpush1.msra.mxu0 %v534
        %654 = vmatprep.subr.mxu0 %v543
        %655 = vmatpush1.msra.mxu0 %v542
        %656 = vmatprep.subr.mxu0 %v551
        %657 = vmatpush1.msra.mxu0 %v550
        %658 = vmatprep.subr.mxu0 %v559
        %659 = vmatpush1.msra.mxu0 %v558
        %660 = vmatprep.subr.mxu0 %v567
        %661 = vmatpush1.msra.mxu0 %v566
        %662 = vmatprep.subr.mxu0 %v575
        %663 = vmatpush1.msra.mxu0 %v574
        %664 = vmatprep.subr.mxu0 %v583
        %665 = vmatpush1.msra.mxu0 %v582
        %666 = vmatprep.subr.mxu0 %v591
        %667 = vmatpush1.msra.mxu0 %v590
        %668 = vmatprep.subr.mxu0 %v599
        %669 = vmatpush1.msra.mxu0 %v598
        %670 = vmatprep.mubr.f32.mxu0 %v349
        %671 = vmatmul.mubr.f32.gmra.mrb[0].mxu0 %v348
        %v672 = vpop.f32.mrb[0].mxu0
        %v673 = vadd.f32 0.0, %v672
        %v674 = vpop.f32.mrb[0].mxu0
        %v675 = vadd.f32 0.0, %v674
        %676 = vdwg.mxu0
        %677 = vmatprep.subr.mxu0 %v353
        %678 = vmatpush1.msra.mxu0 %v352
        %679 = vmatprep.subr.mxu0 %v361
        %680 = vmatpush1.msra.mxu0 %v360
        %681 = vmatprep.subr.mxu0 %v369
        %682 = vmatpush1.msra.mxu0 %v368
        %683 = vmatprep.subr.mxu0 %v377
        %684 = vmatpush1.msra.mxu0 %v376
        %685 = vmatprep.subr.mxu0 %v385
        %686 = vmatpush1.msra.mxu0 %v384
        %687 = vmatprep.subr.mxu0 %v393
        %688 = vmatpush1.msra.mxu0 %v392
        %689 = vmatprep.subr.mxu0 %v401
        %690 = vmatpush1.msra.mxu0 %v400
        %691 = vmatprep.subr.mxu0 %v409
        %692 = vmatpush1.msra.mxu0 %v408
        %693 = vmatprep.subr.mxu0 %v417
        %694 = vmatpush1.msra.mxu0 %v416
        %695 = vmatprep.subr.mxu0 %v425
        %696 = vmatpush1.msra.mxu0 %v424
        %697 = vmatprep.subr.mxu0 %v433
        %698 = vmatpush1.msra.mxu0 %v432
        %699 = vmatprep.subr.mxu0 %v441
        %700 = vmatpush1.msra.mxu0 %v440
        %701 = vmatprep.subr.mxu0 %v449
        %702 = vmatpush1.msra.mxu0 %v448
        %703 = vmatprep.subr.mxu0 %v457
        %704 = vmatpush1.msra.mxu0 %v456
        %705 = vmatprep.subr.mxu0 %v465
        %706 = vmatpush1.msra.mxu0 %v464
        %707 = vmatprep.subr.mxu0 %v473
        %708 = vmatpush1.msra.mxu0 %v472
        %709 = vmatprep.subr.mxu0 %v481
        %710 = vmatpush1.msra.mxu0 %v480
        %711 = vmatprep.subr.mxu0 %v489
        %712 = vmatpush1.msra.mxu0 %v488
        %713 = vmatprep.subr.mxu0 %v497
        %714 = vmatpush1.msra.mxu0 %v496
        %715 = vmatprep.subr.mxu0 %v505
        %716 = vmatpush1.msra.mxu0 %v504
        %717 = vmatprep.subr.mxu0 %v513
        %718 = vmatpush1.msra.mxu0 %v512
        %719 = vmatprep.subr.mxu0 %v521
        %720 = vmatpush1.msra.mxu0 %v520
        %721 = vmatprep.subr.mxu0 %v529
        %722 = vmatpush1.msra.mxu0 %v528
        %723 = vmatprep.subr.mxu0 %v537
        %724 = vmatpush1.msra.mxu0 %v536
        %725 = vmatprep.subr.mxu0 %v545
        %726 = vmatpush1.msra.mxu0 %v544
        %727 = vmatprep.subr.mxu0 %v553
        %728 = vmatpush1.msra.mxu0 %v552
        %729 = vmatprep.subr.mxu0 %v561
        %730 = vmatpush1.msra.mxu0 %v560
        %731 = vmatprep.subr.mxu0 %v569
        %732 = vmatpush1.msra.mxu0 %v568
        %733 = vmatprep.subr.mxu0 %v577
        %734 = vmatpush1.msra.mxu0 %v576
        %735 = vmatprep.subr.mxu0 %v585
        %736 = vmatpush1.msra.mxu0 %v584
        %737 = vmatprep.subr.mxu0 %v593
        %738 = vmatpush1.msra.mxu0 %v592
        %739 = vmatprep.subr.mxu0 %v601
        %740 = vmatpush1.msra.mxu0 %v600
        %741 = vmatprep.mubr.f32.mxu0 %v349
        %742 = vmatmul.mubr.f32.gmra.mrb[0].mxu0 %v348
        %v743 = vpop.f32.mrb[0].mxu0
        %v744 = vadd.f32 0.0, %v743
        %v745 = vpop.f32.mrb[0].mxu0
        %v746 = vadd.f32 0.0, %v745
        %747 = vdwg.mxu0
        %748 = vmatprep.subr.mxu0 %v355
        %749 = vmatpush1.msra.mxu0 %v354
        %750 = vmatprep.subr.mxu0 %v363
        %751 = vmatpush1.msra.mxu0 %v362
        %752 = vmatprep.subr.mxu0 %v371
        %753 = vmatpush1.msra.mxu0 %v370
        %754 = vmatprep.subr.mxu0 %v379
        %755 = vmatpush1.msra.mxu0 %v378
        %756 = vmatprep.subr.mxu0 %v387
        %757 = vmatpush1.msra.mxu0 %v386
        %758 = vmatprep.subr.mxu0 %v395
        %759 = vmatpush1.msra.mxu0 %v394
        %760 = vmatprep.subr.mxu0 %v403
        %761 = vmatpush1.msra.mxu0 %v402
        %762 = vmatprep.subr.mxu0 %v411
        %763 = vmatpush1.msra.mxu0 %v410
        %764 = vmatprep.subr.mxu0 %v419
        %765 = vmatpush1.msra.mxu0 %v418
        %766 = vmatprep.subr.mxu0 %v427
        %767 = vmatpush1.msra.mxu0 %v426
        %768 = vmatprep.subr.mxu0 %v435
        %769 = vmatpush1.msra.mxu0 %v434
        %770 = vmatprep.subr.mxu0 %v443
        %771 = vmatpush1.msra.mxu0 %v442
        %772 = vmatprep.subr.mxu0 %v451
        %773 = vmatpush1.msra.mxu0 %v450
        %774 = vmatprep.subr.mxu0 %v459
        %775 = vmatpush1.msra.mxu0 %v458
        %776 = vmatprep.subr.mxu0 %v467
        %777 = vmatpush1.msra.mxu0 %v466
        %778 = vmatprep.subr.mxu0 %v475
        %779 = vmatpush1.msra.mxu0 %v474
        %780 = vmatprep.subr.mxu0 %v483
        %781 = vmatpush1.msra.mxu0 %v482
        %782 = vmatprep.subr.mxu0 %v491
        %783 = vmatpush1.msra.mxu0 %v490
        %784 = vmatprep.subr.mxu0 %v499
        %785 = vmatpush1.msra.mxu0 %v498
        %786 = vmatprep.subr.mxu0 %v507
        %787 = vmatpush1.msra.mxu0 %v506
        %788 = vmatprep.subr.mxu0 %v515
        %789 = vmatpush1.msra.mxu0 %v514
        %790 = vmatprep.subr.mxu0 %v523
        %791 = vmatpush1.msra.mxu0 %v522
        %792 = vmatprep.subr.mxu0 %v531
        %793 = vmatpush1.msra.mxu0 %v530
        %794 = vmatprep.subr.mxu0 %v539
        %795 = vmatpush1.msra.mxu0 %v538
        %796 = vmatprep.subr.mxu0 %v547
        %797 = vmatpush1.msra.mxu0 %v546
        %798 = vmatprep.subr.mxu0 %v555
        %799 = vmatpush1.msra.mxu0 %v554
        %800 = vmatprep.subr.mxu0 %v563
        %801 = vmatpush1.msra.mxu0 %v562
        %802 = vmatprep.subr.mxu0 %v571
        %803 = vmatpush1.msra.mxu0 %v570
        %804 = vmatprep.subr.mxu0 %v579
        %805 = vmatpush1.msra.mxu0 %v578
        %806 = vmatprep.subr.mxu0 %v587
        %807 = vmatpush1.msra.mxu0 %v586
        %808 = vmatprep.subr.mxu0 %v595
        %809 = vmatpush1.msra.mxu0 %v594
        %810 = vmatprep.subr.mxu0 %v603
        %811 = vmatpush1.msra.mxu0 %v602
        %812 = vmatprep.mubr.f32.mxu0 %v349
        %813 = vmatmul.mubr.f32.gmra.mrb[0].mxu0 %v348
        %v814 = vpop.f32.mrb[0].mxu0
        %v815 = vadd.f32 0.0, %v814
        %v816 = vpop.f32.mrb[0].mxu0
        %v817 = vadd.f32 0.0, %v816
        %818 = vdwg.mxu0
        %819 = vmatprep.subr.mxu0 %v357
        %820 = vmatpush1.msra.mxu0 %v356
        %821 = vmatprep.subr.mxu0 %v365
        %822 = vmatpush1.msra.mxu0 %v364
        %823 = vmatprep.subr.mxu0 %v373
        %824 = vmatpush1.msra.mxu0 %v372
        %825 = vmatprep.subr.mxu0 %v381
        %826 = vmatpush1.msra.mxu0 %v380
        %827 = vmatprep.subr.mxu0 %v389
        %828 = vmatpush1.msra.mxu0 %v388
        %829 = vmatprep.subr.mxu0 %v397
        %830 = vmatpush1.msra.mxu0 %v396
        %831 = vmatprep.subr.mxu0 %v405
        %832 = vmatpush1.msra.mxu0 %v404
        %833 = vmatprep.subr.mxu0 %v413
        %834 = vmatpush1.msra.mxu0 %v412
        %835 = vmatprep.subr.mxu0 %v421
        %836 = vmatpush1.msra.mxu0 %v420
        %837 = vmatprep.subr.mxu0 %v429
        %838 = vmatpush1.msra.mxu0 %v428
        %839 = vmatprep.subr.mxu0 %v437
        %840 = vmatpush1.msra.mxu0 %v436
        %841 = vmatprep.subr.mxu0 %v445
        %842 = vmatpush1.msra.mxu0 %v444
        %843 = vmatprep.subr.mxu0 %v453
        %844 = vmatpush1.msra.mxu0 %v452
        %845 = vmatprep.subr.mxu0 %v461
        %846 = vmatpush1.msra.mxu0 %v460
        %847 = vmatprep.subr.mxu0 %v469
        %848 = vmatpush1.msra.mxu0 %v468
        %849 = vmatprep.subr.mxu0 %v477
        %850 = vmatpush1.msra.mxu0 %v476
        %851 = vmatprep.subr.mxu0 %v485
        %852 = vmatpush1.msra.mxu0 %v484
        %853 = vmatprep.subr.mxu0 %v493
        %854 = vmatpush1.msra.mxu0 %v492
        %855 = vmatprep.subr.mxu0 %v501
        %856 = vmatpush1.msra.mxu0 %v500
        %857 = vmatprep.subr.mxu0 %v509
        %858 = vmatpush1.msra.mxu0 %v508
        %859 = vmatprep.subr.mxu0 %v517
        %860 = vmatpush1.msra.mxu0 %v516
        %861 = vmatprep.subr.mxu0 %v525
        %862 = vmatpush1.msra.mxu0 %v524
        %863 = vmatprep.subr.mxu0 %v533
        %864 = vmatpush1.msra.mxu0 %v532
        %865 = vmatprep.subr.mxu0 %v541
        %866 = vmatpush1.msra.mxu0 %v540
        %867 = vmatprep.subr.mxu0 %v549
        %868 = vmatpush1.msra.mxu0 %v548
        %869 = vmatprep.subr.mxu0 %v557
        %870 = vmatpush1.msra.mxu0 %v556
        %871 = vmatprep.subr.mxu0 %v565
        %872 = vmatpush1.msra.mxu0 %v564
        %873 = vmatprep.subr.mxu0 %v573
        %874 = vmatpush1.msra.mxu0 %v572
        %875 = vmatprep.subr.mxu0 %v581
        %876 = vmatpush1.msra.mxu0 %v580
        %877 = vmatprep.subr.mxu0 %v589
        %878 = vmatpush1.msra.mxu0 %v588
        %879 = vmatprep.subr.mxu0 %v597
        %880 = vmatpush1.msra.mxu0 %v596
        %881 = vmatprep.subr.mxu0 %v605
        %882 = vmatpush1.msra.mxu0 %v604
        %883 = vmatprep.mubr.f32.mxu0 %v349
        %884 = vmatmul.mubr.f32.gmra.mrb[0].mxu0 %v348
        %v885 = vpop.f32.mrb[0].mxu0
        %v886 = vadd.f32 0.0, %v885
        %v887 = vpop.f32.mrb[0].mxu0
        %v888 = vadd.f32 0.0, %v887
        %889 = vdwg.mxu0
        %890 = vrot.lane.b32.xlu0 %v673, 33
        %v891 = vpop.permute.xlu0 %890
        %892 = vrot.lane.b32.xlu0 %v675, 33
        %v893 = vpop.permute.xlu0 %892
        %894 = vrot.lane.b32.xlu0 %v744, 33
        %v895 = vpop.permute.xlu0 %894
        %896 = vrot.lane.b32.xlu0 %v746, 33
        %v897 = vpop.permute.xlu0 %896
        %898 = vrot.lane.b32.xlu0 %v815, 33
        %v899 = vpop.permute.xlu0 %898
        %900 = vrot.lane.b32.xlu0 %v817, 33
        %v901 = vpop.permute.xlu0 %900
        %902 = vrot.lane.b32.xlu0 %v886, 33
        %v903 = vpop.permute.xlu0 %902
        %904 = vrot.lane.b32.xlu0 %v888, 33
        %v905 = vpop.permute.xlu0 %904
        %vm906 = vcmp.lt.s32.totalorder %v268, 33
        %v907 = vsel %vm906, %v903, %v905
        %v908 = vsel %vm906, %v901, %v903
        %v909 = vsel %vm906, %v899, %v901
        %v910 = vsel %vm906, %v897, %v899
        %v911 = vsel %vm906, %v895, %v897
        %v912 = vsel %vm906, %v893, %v895
        %v913 = vsel %vm906, %v891, %v893
        %v914 = vsel %vm906, %v905, %v891
        %v915 = vsel %vm316, %v914, 0.0
        %v916 = vsel %vm317, %v913, 0.0
        %v917 = vsel %vm318, %v912, 0.0
        %v918 = vsel %vm319, %v911, 0.0
        %v919 = vsel %vm320, %v910, 0.0
        %v920 = vsel %vm321, %v909, 0.0
        %v921 = vsel %vm322, %v908, 0.0
        %v922 = vsel %vm323, %v907, 0.0
        %v923 = vld [vmem:[%s2] sm:$0xff]
        %924 = vrot.lane.b32.xlu0 %v673, 32
        %v925 = vpop.permute.xlu0 %924
        %926 = vrot.lane.b32.xlu0 %v675, 32
        %v927 = vpop.permute.xlu0 %926
        %928 = vrot.lane.b32.xlu0 %v744, 32
        %v929 = vpop.permute.xlu0 %928
        %930 = vrot.lane.b32.xlu0 %v746, 32
        %v931 = vpop.permute.xlu0 %930
        %932 = vrot.lane.b32.xlu0 %v815, 32
        %v933 = vpop.permute.xlu0 %932
        %934 = vrot.lane.b32.xlu0 %v817, 32
        %v935 = vpop.permute.xlu0 %934
        %936 = vrot.lane.b32.xlu0 %v886, 32
        %v937 = vpop.permute.xlu0 %936
        %938 = vrot.lane.b32.xlu0 %v888, 32
        %v939 = vpop.permute.xlu0 %938
        %vm940 = vcmp.lt.s32.totalorder %v268, 32
        %v941 = vsel %vm940, %v937, %v939
        %v942 = vsel %vm940, %v935, %v937
        %v943 = vsel %vm940, %v933, %v935
        %v944 = vsel %vm940, %v931, %v933
        %v945 = vsel %vm940, %v929, %v931
        %v946 = vsel %vm940, %v927, %v929
        %v947 = vsel %vm940, %v925, %v927
        %v948 = vsel %vm940, %v939, %v925
        %v949 = vsel %vm284, %v948, 0.0
        %v950 = vsel %vm285, %v947, 0.0
        %v951 = vsel %vm286, %v946, 0.0
        %v952 = vsel %vm287, %v945, 0.0
        %v953 = vsel %vm288, %v944, 0.0
        %v954 = vsel %vm289, %v943, 0.0
        %v955 = vsel %vm290, %v942, 0.0
        %v956 = vsel %vm291, %v941, 0.0
        %s957 = scalar_lea.vmem %s2, 8
        %v958 = vld [vmem:[%s957] sm:$0xff]
        %vm959 = vcmask 64512
        %v961 = vsel %vm959, %v958, 0
        %963 = vmatprep.subr.mxu0 %v950
        %964 = vmatpush1.msra.mxu0 %v949
        %965 = vmatprep.subr.mxu0 0.0
        %966 = vmatpush1.msra.mxu0 0.0
        %967 = vmatprep.subr.mxu0 0.0
        %968 = vmatpush1.msra.mxu0 0.0
        %969 = vmatprep.subr.mxu0 0.0
        %970 = vmatpush1.msra.mxu0 0.0
        %971 = vmatprep.subr.mxu0 0.0
        %972 = vmatpush1.msra.mxu0 0.0
        %973 = vmatprep.subr.mxu0 0.0
        %974 = vmatpush1.msra.mxu0 0.0
        %975 = vmatprep.subr.mxu0 0.0
        %976 = vmatpush1.msra.mxu0 0.0
        %977 = vmatprep.subr.mxu0 0.0
        %978 = vmatpush1.msra.mxu0 0.0
        %979 = vmatprep.subr.mxu0 0.0
        %980 = vmatpush1.msra.mxu0 0.0
        %981 = vmatprep.subr.mxu0 0.0
        %982 = vmatpush1.msra.mxu0 0.0
        %983 = vmatprep.subr.mxu0 0.0
        %984 = vmatpush1.msra.mxu0 0.0
        %985 = vmatprep.subr.mxu0 0.0
        %986 = vmatpush1.msra.mxu0 0.0
        %987 = vmatprep.subr.mxu0 0.0
        %988 = vmatpush1.msra.mxu0 0.0
        %989 = vmatprep.subr.mxu0 0.0
        %990 = vmatpush1.msra.mxu0 0.0
        %991 = vmatprep.subr.mxu0 0.0
        %992 = vmatpush1.msra.mxu0 0.0
        %993 = vmatprep.subr.mxu0 0.0
        %994 = vmatpush1.msra.mxu0 0.0
        %995 = vmatprep.subr.mxu0 0.0
        %996 = vmatpush1.msra.mxu0 0.0
        %997 = vmatprep.subr.mxu0 0.0
        %998 = vmatpush1.msra.mxu0 0.0
        %999 = vmatprep.subr.mxu0 0.0
        %1000 = vmatpush1.msra.mxu0 0.0
        %1001 = vmatprep.subr.mxu0 0.0
        %1002 = vmatpush1.msra.mxu0 0.0
        %1003 = vmatprep.subr.mxu0 0.0
        %1004 = vmatpush1.msra.mxu0 0.0
        %1005 = vmatprep.subr.mxu0 0.0
        %1006 = vmatpush1.msra.mxu0 0.0
        %1007 = vmatprep.subr.mxu0 0.0
        %1008 = vmatpush1.msra.mxu0 0.0
        %1009 = vmatprep.subr.mxu0 0.0
        %1010 = vmatpush1.msra.mxu0 0.0
        %1011 = vmatprep.subr.mxu0 0.0
        %1012 = vmatpush1.msra.mxu0 0.0
        %1013 = vmatprep.subr.mxu0 0.0
        %1014 = vmatpush1.msra.mxu0 0.0
        %1015 = vmatprep.subr.mxu0 0.0
        %1016 = vmatpush1.msra.mxu0 0.0
        %1017 = vmatprep.subr.mxu0 0.0
        %1018 = vmatpush1.msra.mxu0 0.0
        %1019 = vmatprep.subr.mxu0 0.0
        %1020 = vmatpush1.msra.mxu0 0.0
        %1021 = vmatprep.subr.mxu0 0.0
        %1022 = vmatpush1.msra.mxu0 0.0
        %1023 = vmatprep.subr.mxu0 0.0
        %1024 = vmatpush1.msra.mxu0 0.0
        %1025 = vmatprep.subr.mxu0 0.0
        %1026 = vmatpush1.msra.mxu0 0.0
        %1027 = vmatprep.mubr.f32.mxu0 0.0
        %1028 = vmatmul.mubr.f32.gmra.mrb[0].mxu0 %v961
        %v1029 = vpop.f32.mrb[0].mxu0
        %v1030 = vadd.f32 0.0, %v1029
        %v1031 = vpop.f32.mrb[0].mxu0
        %v1032 = vadd.f32 0.0, %v1031
        %1033 = vdwg.mxu0
        %1034 = vmatprep.subr.mxu0 %v952
        %1035 = vmatpush1.msra.mxu0 %v951
        %1036 = vmatprep.subr.mxu0 0.0
        %1037 = vmatpush1.msra.mxu0 0.0
        %1038 = vmatprep.subr.mxu0 0.0
        %1039 = vmatpush1.msra.mxu0 0.0
        %1040 = vmatprep.subr.mxu0 0.0
        %1041 = vmatpush1.msra.mxu0 0.0
        %1042 = vmatprep.subr.mxu0 0.0
        %1043 = vmatpush1.msra.mxu0 0.0
        %1044 = vmatprep.subr.mxu0 0.0
        %1045 = vmatpush1.msra.mxu0 0.0
        %1046 = vmatprep.subr.mxu0 0.0
        %1047 = vmatpush1.msra.mxu0 0.0
        %1048 = vmatprep.subr.mxu0 0.0
        %1049 = vmatpush1.msra.mxu0 0.0
        %1050 = vmatprep.subr.mxu0 0.0
        %1051 = vmatpush1.msra.mxu0 0.0
        %1052 = vmatprep.subr.mxu0 0.0
        %1053 = vmatpush1.msra.mxu0 0.0
        %1054 = vmatprep.subr.mxu0 0.0
        %1055 = vmatpush1.msra.mxu0 0.0
        %1056 = vmatprep.subr.mxu0 0.0
        %1057 = vmatpush1.msra.mxu0 0.0
        %1058 = vmatprep.subr.mxu0 0.0
        %1059 = vmatpush1.msra.mxu0 0.0
        %1060 = vmatprep.subr.mxu0 0.0
        %1061 = vmatpush1.msra.mxu0 0.0
        %1062 = vmatprep.subr.mxu0 0.0
        %1063 = vmatpush1.msra.mxu0 0.0
        %1064 = vmatprep.subr.mxu0 0.0
        %1065 = vmatpush1.msra.mxu0 0.0
        %1066 = vmatprep.subr.mxu0 0.0
        %1067 = vmatpush1.msra.mxu0 0.0
        %1068 = vmatprep.subr.mxu0 0.0
        %1069 = vmatpush1.msra.mxu0 0.0
        %1070 = vmatprep.subr.mxu0 0.0
        %1071 = vmatpush1.msra.mxu0 0.0
        %1072 = vmatprep.subr.mxu0 0.0
        %1073 = vmatpush1.msra.mxu0 0.0
        %1074 = vmatprep.subr.mxu0 0.0
        %1075 = vmatpush1.msra.mxu0 0.0
        %1076 = vmatprep.subr.mxu0 0.0
        %1077 = vmatpush1.msra.mxu0 0.0
        %1078 = vmatprep.subr.mxu0 0.0
        %1079 = vmatpush1.msra.mxu0 0.0
        %1080 = vmatprep.subr.mxu0 0.0
        %1081 = vmatpush1.msra.mxu0 0.0
        %1082 = vmatprep.subr.mxu0 0.0
        %1083 = vmatpush1.msra.mxu0 0.0
        %1084 = vmatprep.subr.mxu0 0.0
        %1085 = vmatpush1.msra.mxu0 0.0
        %1086 = vmatprep.subr.mxu0 0.0
        %1087 = vmatpush1.msra.mxu0 0.0
        %1088 = vmatprep.subr.mxu0 0.0
        %1089 = vmatpush1.msra.mxu0 0.0
        %1090 = vmatprep.subr.mxu0 0.0
        %1091 = vmatpush1.msra.mxu0 0.0
        %1092 = vmatprep.subr.mxu0 0.0
        %1093 = vmatpush1.msra.mxu0 0.0
        %1094 = vmatprep.subr.mxu0 0.0
        %1095 = vmatpush1.msra.mxu0 0.0
        %1096 = vmatprep.subr.mxu0 0.0
        %1097 = vmatpush1.msra.mxu0 0.0
        %1098 = vmatprep.mubr.f32.mxu0 0.0
        %1099 = vmatmul.mubr.f32.gmra.mrb[0].mxu0 %v961
        %v1100 = vpop.f32.mrb[0].mxu0
        %v1101 = vadd.f32 0.0, %v1100
        %v1102 = vpop.f32.mrb[0].mxu0
        %v1103 = vadd.f32 0.0, %v1102
        %1104 = vdwg.mxu0
        %1105 = vmatprep.subr.mxu0 %v954
        %1106 = vmatpush1.msra.mxu0 %v953
        %1107 = vmatprep.subr.mxu0 0.0
        %1108 = vmatpush1.msra.mxu0 0.0
        %1109 = vmatprep.subr.mxu0 0.0
        %1110 = vmatpush1.msra.mxu0 0.0
        %1111 = vmatprep.subr.mxu0 0.0
        %1112 = vmatpush1.msra.mxu0 0.0
        %1113 = vmatprep.subr.mxu0 0.0
        %1114 = vmatpush1.msra.mxu0 0.0
        %1115 = vmatprep.subr.mxu0 0.0
        %1116 = vmatpush1.msra.mxu0 0.0
        %1117 = vmatprep.subr.mxu0 0.0
        %1118 = vmatpush1.msra.mxu0 0.0
        %1119 = vmatprep.subr.mxu0 0.0
        %1120 = vmatpush1.msra.mxu0 0.0
        %1121 = vmatprep.subr.mxu0 0.0
        %1122 = vmatpush1.msra.mxu0 0.0
        %1123 = vmatprep.subr.mxu0 0.0
        %1124 = vmatpush1.msra.mxu0 0.0
        %1125 = vmatprep.subr.mxu0 0.0
        %1126 = vmatpush1.msra.mxu0 0.0
        %1127 = vmatprep.subr.mxu0 0.0
        %1128 = vmatpush1.msra.mxu0 0.0
        %1129 = vmatprep.subr.mxu0 0.0
        %1130 = vmatpush1.msra.mxu0 0.0
        %1131 = vmatprep.subr.mxu0 0.0
        %1132 = vmatpush1.msra.mxu0 0.0
        %1133 = vmatprep.subr.mxu0 0.0
        %1134 = vmatpush1.msra.mxu0 0.0
        %1135 = vmatprep.subr.mxu0 0.0
        %1136 = vmatpush1.msra.mxu0 0.0
        %1137 = vmatprep.subr.mxu0 0.0
        %1138 = vmatpush1.msra.mxu0 0.0
        %1139 = vmatprep.subr.mxu0 0.0
        %1140 = vmatpush1.msra.mxu0 0.0
        %1141 = vmatprep.subr.mxu0 0.0
        %1142 = vmatpush1.msra.mxu0 0.0
        %1143 = vmatprep.subr.mxu0 0.0
        %1144 = vmatpush1.msra.mxu0 0.0
        %1145 = vmatprep.subr.mxu0 0.0
        %1146 = vmatpush1.msra.mxu0 0.0
        %1147 = vmatprep.subr.mxu0 0.0
        %1148 = vmatpush1.msra.mxu0 0.0
        %1149 = vmatprep.subr.mxu0 0.0
        %1150 = vmatpush1.msra.mxu0 0.0
        %1151 = vmatprep.subr.mxu0 0.0
        %1152 = vmatpush1.msra.mxu0 0.0
        %1153 = vmatprep.subr.mxu0 0.0
        %1154 = vmatpush1.msra.mxu0 0.0
        %1155 = vmatprep.subr.mxu0 0.0
        %1156 = vmatpush1.msra.mxu0 0.0
        %1157 = vmatprep.subr.mxu0 0.0
        %1158 = vmatpush1.msra.mxu0 0.0
        %1159 = vmatprep.subr.mxu0 0.0
        %1160 = vmatpush1.msra.mxu0 0.0
        %1161 = vmatprep.subr.mxu0 0.0
        %1162 = vmatpush1.msra.mxu0 0.0
        %1163 = vmatprep.subr.mxu0 0.0
        %1164 = vmatpush1.msra.mxu0 0.0
        %1165 = vmatprep.subr.mxu0 0.0
        %1166 = vmatpush1.msra.mxu0 0.0
        %1167 = vmatprep.subr.mxu0 0.0
        %1168 = vmatpush1.msra.mxu0 0.0
        %1169 = vmatprep.mubr.f32.mxu0 0.0
        %1170 = vmatmul.mubr.f32.gmra.mrb[0].mxu0 %v961
        %v1171 = vpop.f32.mrb[0].mxu0
        %v1172 = vadd.f32 0.0, %v1171
        %v1173 = vpop.f32.mrb[0].mxu0
        %v1174 = vadd.f32 0.0, %v1173
        %1175 = vdwg.mxu0
        %1176 = vmatprep.subr.mxu0 %v956
        %1177 = vmatpush1.msra.mxu0 %v955
        %1178 = vmatprep.subr.mxu0 0.0
        %1179 = vmatpush1.msra.mxu0 0.0
        %1180 = vmatprep.subr.mxu0 0.0
        %1181 = vmatpush1.msra.mxu0 0.0
        %1182 = vmatprep.subr.mxu0 0.0
        %1183 = vmatpush1.msra.mxu0 0.0
        %1184 = vmatprep.subr.mxu0 0.0
        %1185 = vmatpush1.msra.mxu0 0.0
        %1186 = vmatprep.subr.mxu0 0.0
        %1187 = vmatpush1.msra.mxu0 0.0
        %1188 = vmatprep.subr.mxu0 0.0
        %1189 = vmatpush1.msra.mxu0 0.0
        %1190 = vmatprep.subr.mxu0 0.0
        %1191 = vmatpush1.msra.mxu0 0.0
        %1192 = vmatprep.subr.mxu0 0.0
        %1193 = vmatpush1.msra.mxu0 0.0
        %1194 = vmatprep.subr.mxu0 0.0
        %1195 = vmatpush1.msra.mxu0 0.0
        %1196 = vmatprep.subr.mxu0 0.0
        %1197 = vmatpush1.msra.mxu0 0.0
        %1198 = vmatprep.subr.mxu0 0.0
        %1199 = vmatpush1.msra.mxu0 0.0
        %1200 = vmatprep.subr.mxu0 0.0
        %1201 = vmatpush1.msra.mxu0 0.0
        %1202 = vmatprep.subr.mxu0 0.0
        %1203 = vmatpush1.msra.mxu0 0.0
        %1204 = vmatprep.subr.mxu0 0.0
        %1205 = vmatpush1.msra.mxu0 0.0
        %1206 = vmatprep.subr.mxu0 0.0
        %1207 = vmatpush1.msra.mxu0 0.0
        %1208 = vmatprep.subr.mxu0 0.0
        %1209 = vmatpush1.msra.mxu0 0.0
        %1210 = vmatprep.subr.mxu0 0.0
        %1211 = vmatpush1.msra.mxu0 0.0
        %1212 = vmatprep.subr.mxu0 0.0
        %1213 = vmatpush1.msra.mxu0 0.0
        %1214 = vmatprep.subr.mxu0 0.0
        %1215 = vmatpush1.msra.mxu0 0.0
        %1216 = vmatprep.subr.mxu0 0.0
        %1217 = vmatpush1.msra.mxu0 0.0
        %1218 = vmatprep.subr.mxu0 0.0
        %1219 = vmatpush1.msra.mxu0 0.0
        %1220 = vmatprep.subr.mxu0 0.0
        %1221 = vmatpush1.msra.mxu0 0.0
        %1222 = vmatprep.subr.mxu0 0.0
        %1223 = vmatpush1.msra.mxu0 0.0
        %1224 = vmatprep.subr.mxu0 0.0
        %1225 = vmatpush1.msra.mxu0 0.0
        %1226 = vmatprep.subr.mxu0 0.0
        %1227 = vmatpush1.msra.mxu0 0.0
        %1228 = vmatprep.subr.mxu0 0.0
        %1229 = vmatpush1.msra.mxu0 0.0
        %1230 = vmatprep.subr.mxu0 0.0
        %1231 = vmatpush1.msra.mxu0 0.0
        %1232 = vmatprep.subr.mxu0 0.0
        %1233 = vmatpush1.msra.mxu0 0.0
        %1234 = vmatprep.subr.mxu0 0.0
        %1235 = vmatpush1.msra.mxu0 0.0
        %1236 = vmatprep.subr.mxu0 0.0
        %1237 = vmatpush1.msra.mxu0 0.0
        %1238 = vmatprep.subr.mxu0 0.0
        %1239 = vmatpush1.msra.mxu0 0.0
        %1240 = vmatprep.mubr.f32.mxu0 0.0
        %1241 = vmatmul.mubr.f32.gmra.mrb[0].mxu0 %v961
        %v1242 = vpop.f32.mrb[0].mxu0
        %v1243 = vadd.f32 0.0, %v1242
        %v1244 = vpop.f32.mrb[0].mxu0
        %v1245 = vadd.f32 0.0, %v1244
        %1246 = vdwg.mxu0
        %v1248 = vsel %vm959, %v923, 0
        %1250 = vmatprep.subr.mxu0 %v916
        %1251 = vmatpush1.msra.mxu0 %v915
        %1252 = vmatprep.subr.mxu0 0.0
        %1253 = vmatpush1.msra.mxu0 0.0
        %1254 = vmatprep.subr.mxu0 0.0
        %1255 = vmatpush1.msra.mxu0 0.0
        %1256 = vmatprep.subr.mxu0 0.0
        %1257 = vmatpush1.msra.mxu0 0.0
        %1258 = vmatprep.subr.mxu0 0.0
        %1259 = vmatpush1.msra.mxu0 0.0
        %1260 = vmatprep.subr.mxu0 0.0
        %1261 = vmatpush1.msra.mxu0 0.0
        %1262 = vmatprep.subr.mxu0 0.0
        %1263 = vmatpush1.msra.mxu0 0.0
        %1264 = vmatprep.subr.mxu0 0.0
        %1265 = vmatpush1.msra.mxu0 0.0
        %1266 = vmatprep.subr.mxu0 0.0
        %1267 = vmatpush1.msra.mxu0 0.0
        %1268 = vmatprep.subr.mxu0 0.0
        %1269 = vmatpush1.msra.mxu0 0.0
        %1270 = vmatprep.subr.mxu0 0.0
        %1271 = vmatpush1.msra.mxu0 0.0
        %1272 = vmatprep.subr.mxu0 0.0
        %1273 = vmatpush1.msra.mxu0 0.0
        %1274 = vmatprep.subr.mxu0 0.0
        %1275 = vmatpush1.msra.mxu0 0.0
        %1276 = vmatprep.subr.mxu0 0.0
        %1277 = vmatpush1.msra.mxu0 0.0
        %1278 = vmatprep.subr.mxu0 0.0
        %1279 = vmatpush1.msra.mxu0 0.0
        %1280 = vmatprep.subr.mxu0 0.0
        %1281 = vmatpush1.msra.mxu0 0.0
        %1282 = vmatprep.subr.mxu0 0.0
        %1283 = vmatpush1.msra.mxu0 0.0
        %1284 = vmatprep.subr.mxu0 0.0
        %1285 = vmatpush1.msra.mxu0 0.0
        %1286 = vmatprep.subr.mxu0 0.0
        %1287 = vmatpush1.msra.mxu0 0.0
        %1288 = vmatprep.subr.mxu0 0.0
        %1289 = vmatpush1.msra.mxu0 0.0
        %1290 = vmatprep.subr.mxu0 0.0
        %1291 = vmatpush1.msra.mxu0 0.0
        %1292 = vmatprep.subr.mxu0 0.0
        %1293 = vmatpush1.msra.mxu0 0.0
        %1294 = vmatprep.subr.mxu0 0.0
        %1295 = vmatpush1.msra.mxu0 0.0
        %1296 = vmatprep.subr.mxu0 0.0
        %1297 = vmatpush1.msra.mxu0 0.0
        %1298 = vmatprep.subr.mxu0 0.0
        %1299 = vmatpush1.msra.mxu0 0.0
        %1300 = vmatprep.subr.mxu0 0.0
        %1301 = vmatpush1.msra.mxu0 0.0
        %1302 = vmatprep.subr.mxu0 0.0
        %1303 = vmatpush1.msra.mxu0 0.0
        %1304 = vmatprep.subr.mxu0 0.0
        %1305 = vmatpush1.msra.mxu0 0.0
        %1306 = vmatprep.subr.mxu0 0.0
        %1307 = vmatpush1.msra.mxu0 0.0
        %1308 = vmatprep.subr.mxu0 0.0
        %1309 = vmatpush1.msra.mxu0 0.0
        %1310 = vmatprep.subr.mxu0 0.0
        %1311 = vmatpush1.msra.mxu0 0.0
        %1312 = vmatprep.subr.mxu0 0.0
        %1313 = vmatpush1.msra.mxu0 0.0
        %1314 = vmatprep.mubr.f32.mxu0 0.0
        %1315 = vmatmul.mubr.f32.gmra.mrb[0].mxu0 %v1248
        %v1316 = vpop.f32.mrb[0].mxu0
        %v1317 = vadd.f32 %v1030, %v1316
        %v1318 = vpop.f32.mrb[0].mxu0
        %v1319 = vadd.f32 %v1032, %v1318
        %1320 = vdwg.mxu0
        %1321 = vmatprep.subr.mxu0 %v918
        %1322 = vmatpush1.msra.mxu0 %v917
        %1323 = vmatprep.subr.mxu0 0.0
        %1324 = vmatpush1.msra.mxu0 0.0
        %1325 = vmatprep.subr.mxu0 0.0
        %1326 = vmatpush1.msra.mxu0 0.0
        %1327 = vmatprep.subr.mxu0 0.0
        %1328 = vmatpush1.msra.mxu0 0.0
        %1329 = vmatprep.subr.mxu0 0.0
        %1330 = vmatpush1.msra.mxu0 0.0
        %1331 = vmatprep.subr.mxu0 0.0
        %1332 = vmatpush1.msra.mxu0 0.0
        %1333 = vmatprep.subr.mxu0 0.0
        %1334 = vmatpush1.msra.mxu0 0.0
        %1335 = vmatprep.subr.mxu0 0.0
        %1336 = vmatpush1.msra.mxu0 0.0
        %1337 = vmatprep.subr.mxu0 0.0
        %1338 = vmatpush1.msra.mxu0 0.0
        %1339 = vmatprep.subr.mxu0 0.0
        %1340 = vmatpush1.msra.mxu0 0.0
        %1341 = vmatprep.subr.mxu0 0.0
        %1342 = vmatpush1.msra.mxu0 0.0
        %1343 = vmatprep.subr.mxu0 0.0
        %1344 = vmatpush1.msra.mxu0 0.0
        %1345 = vmatprep.subr.mxu0 0.0
        %1346 = vmatpush1.msra.mxu0 0.0
        %1347 = vmatprep.subr.mxu0 0.0
        %1348 = vmatpush1.msra.mxu0 0.0
        %1349 = vmatprep.subr.mxu0 0.0
        %1350 = vmatpush1.msra.mxu0 0.0
        %1351 = vmatprep.subr.mxu0 0.0
        %1352 = vmatpush1.msra.mxu0 0.0
        %1353 = vmatprep.subr.mxu0 0.0
        %1354 = vmatpush1.msra.mxu0 0.0
        %1355 = vmatprep.subr.mxu0 0.0
        %1356 = vmatpush1.msra.mxu0 0.0
        %1357 = vmatprep.subr.mxu0 0.0
        %1358 = vmatpush1.msra.mxu0 0.0
        %1359 = vmatprep.subr.mxu0 0.0
        %1360 = vmatpush1.msra.mxu0 0.0
        %1361 = vmatprep.subr.mxu0 0.0
        %1362 = vmatpush1.msra.mxu0 0.0
        %1363 = vmatprep.subr.mxu0 0.0
        %1364 = vmatpush1.msra.mxu0 0.0
        %1365 = vmatprep.subr.mxu0 0.0
        %1366 = vmatpush1.msra.mxu0 0.0
        %1367 = vmatprep.subr.mxu0 0.0
        %1368 = vmatpush1.msra.mxu0 0.0
        %1369 = vmatprep.subr.mxu0 0.0
        %1370 = vmatpush1.msra.mxu0 0.0
        %1371 = vmatprep.subr.mxu0 0.0
        %1372 = vmatpush1.msra.mxu0 0.0
        %1373 = vmatprep.subr.mxu0 0.0
        %1374 = vmatpush1.msra.mxu0 0.0
        %1375 = vmatprep.subr.mxu0 0.0
        %1376 = vmatpush1.msra.mxu0 0.0
        %1377 = vmatprep.subr.mxu0 0.0
        %1378 = vmatpush1.msra.mxu0 0.0
        %1379 = vmatprep.subr.mxu0 0.0
        %1380 = vmatpush1.msra.mxu0 0.0
        %1381 = vmatprep.subr.mxu0 0.0
        %1382 = vmatpush1.msra.mxu0 0.0
        %1383 = vmatprep.subr.mxu0 0.0
        %1384 = vmatpush1.msra.mxu0 0.0
        %1385 = vmatprep.mubr.f32.mxu0 0.0
        %1386 = vmatmul.mubr.f32.gmra.mrb[0].mxu0 %v1248
        %v1387 = vpop.f32.mrb[0].mxu0
        %v1388 = vadd.f32 %v1101, %v1387
        %v1389 = vpop.f32.mrb[0].mxu0
        %v1390 = vadd.f32 %v1103, %v1389
        %1391 = vdwg.mxu0
        %1392 = vmatprep.subr.mxu0 %v920
        %1393 = vmatpush1.msra.mxu0 %v919
        %1394 = vmatprep.subr.mxu0 0.0
        %1395 = vmatpush1.msra.mxu0 0.0
        %1396 = vmatprep.subr.mxu0 0.0
        %1397 = vmatpush1.msra.mxu0 0.0
        %1398 = vmatprep.subr.mxu0 0.0
        %1399 = vmatpush1.msra.mxu0 0.0
        %1400 = vmatprep.subr.mxu0 0.0
        %1401 = vmatpush1.msra.mxu0 0.0
        %1402 = vmatprep.subr.mxu0 0.0
        %1403 = vmatpush1.msra.mxu0 0.0
        %1404 = vmatprep.subr.mxu0 0.0
        %1405 = vmatpush1.msra.mxu0 0.0
        %1406 = vmatprep.subr.mxu0 0.0
        %1407 = vmatpush1.msra.mxu0 0.0
        %1408 = vmatprep.subr.mxu0 0.0
        %1409 = vmatpush1.msra.mxu0 0.0
        %1410 = vmatprep.subr.mxu0 0.0
        %1411 = vmatpush1.msra.mxu0 0.0
        %1412 = vmatprep.subr.mxu0 0.0
        %1413 = vmatpush1.msra.mxu0 0.0
        %1414 = vmatprep.subr.mxu0 0.0
        %1415 = vmatpush1.msra.mxu0 0.0
        %1416 = vmatprep.subr.mxu0 0.0
        %1417 = vmatpush1.msra.mxu0 0.0
        %1418 = vmatprep.subr.mxu0 0.0
        %1419 = vmatpush1.msra.mxu0 0.0
        %1420 = vmatprep.subr.mxu0 0.0
        %1421 = vmatpush1.msra.mxu0 0.0
        %1422 = vmatprep.subr.mxu0 0.0
        %1423 = vmatpush1.msra.mxu0 0.0
        %1424 = vmatprep.subr.mxu0 0.0
        %1425 = vmatpush1.msra.mxu0 0.0
        %1426 = vmatprep.subr.mxu0 0.0
        %1427 = vmatpush1.msra.mxu0 0.0
        %1428 = vmatprep.subr.mxu0 0.0
        %1429 = vmatpush1.msra.mxu0 0.0
        %1430 = vmatprep.subr.mxu0 0.0
        %1431 = vmatpush1.msra.mxu0 0.0
        %1432 = vmatprep.subr.mxu0 0.0
        %1433 = vmatpush1.msra.mxu0 0.0
        %1434 = vmatprep.subr.mxu0 0.0
        %1435 = vmatpush1.msra.mxu0 0.0
        %1436 = vmatprep.subr.mxu0 0.0
        %1437 = vmatpush1.msra.mxu0 0.0
        %1438 = vmatprep.subr.mxu0 0.0
        %1439 = vmatpush1.msra.mxu0 0.0
        %1440 = vmatprep.subr.mxu0 0.0
        %1441 = vmatpush1.msra.mxu0 0.0
        %1442 = vmatprep.subr.mxu0 0.0
        %1443 = vmatpush1.msra.mxu0 0.0
        %1444 = vmatprep.subr.mxu0 0.0
        %1445 = vmatpush1.msra.mxu0 0.0
        %1446 = vmatprep.subr.mxu0 0.0
        %1447 = vmatpush1.msra.mxu0 0.0
        %1448 = vmatprep.subr.mxu0 0.0
        %1449 = vmatpush1.msra.mxu0 0.0
        %1450 = vmatprep.subr.mxu0 0.0
        %1451 = vmatpush1.msra.mxu0 0.0
        %1452 = vmatprep.subr.mxu0 0.0
        %1453 = vmatpush1.msra.mxu0 0.0
        %1454 = vmatprep.subr.mxu0 0.0
        %1455 = vmatpush1.msra.mxu0 0.0
        %1456 = vmatprep.mubr.f32.mxu0 0.0
        %1457 = vmatmul.mubr.f32.gmra.mrb[0].mxu0 %v1248
        %v1458 = vpop.f32.mrb[0].mxu0
        %v1459 = vadd.f32 %v1172, %v1458
        %v1460 = vpop.f32.mrb[0].mxu0
        %v1461 = vadd.f32 %v1174, %v1460
        %1462 = vdwg.mxu0
        %1463 = vmatprep.subr.mxu0 %v922
        %1464 = vmatpush1.msra.mxu0 %v921
        %1465 = vmatprep.subr.mxu0 0.0
        %1466 = vmatpush1.msra.mxu0 0.0
        %1467 = vmatprep.subr.mxu0 0.0
        %1468 = vmatpush1.msra.mxu0 0.0
        %1469 = vmatprep.subr.mxu0 0.0
        %1470 = vmatpush1.msra.mxu0 0.0
        %1471 = vmatprep.subr.mxu0 0.0
        %1472 = vmatpush1.msra.mxu0 0.0
        %1473 = vmatprep.subr.mxu0 0.0
        %1474 = vmatpush1.msra.mxu0 0.0
        %1475 = vmatprep.subr.mxu0 0.0
        %1476 = vmatpush1.msra.mxu0 0.0
        %1477 = vmatprep.subr.mxu0 0.0
        %1478 = vmatpush1.msra.mxu0 0.0
        %1479 = vmatprep.subr.mxu0 0.0
        %1480 = vmatpush1.msra.mxu0 0.0
        %1481 = vmatprep.subr.mxu0 0.0
        %1482 = vmatpush1.msra.mxu0 0.0
        %1483 = vmatprep.subr.mxu0 0.0
        %1484 = vmatpush1.msra.mxu0 0.0
        %1485 = vmatprep.subr.mxu0 0.0
        %1486 = vmatpush1.msra.mxu0 0.0
        %1487 = vmatprep.subr.mxu0 0.0
        %1488 = vmatpush1.msra.mxu0 0.0
        %1489 = vmatprep.subr.mxu0 0.0
        %1490 = vmatpush1.msra.mxu0 0.0
        %1491 = vmatprep.subr.mxu0 0.0
        %1492 = vmatpush1.msra.mxu0 0.0
        %1493 = vmatprep.subr.mxu0 0.0
        %1494 = vmatpush1.msra.mxu0 0.0
        %1495 = vmatprep.subr.mxu0 0.0
        %1496 = vmatpush1.msra.mxu0 0.0
        %1497 = vmatprep.subr.mxu0 0.0
        %1498 = vmatpush1.msra.mxu0 0.0
        %1499 = vmatprep.subr.mxu0 0.0
        %1500 = vmatpush1.msra.mxu0 0.0
        %1501 = vmatprep.subr.mxu0 0.0
        %1502 = vmatpush1.msra.mxu0 0.0
        %1503 = vmatprep.subr.mxu0 0.0
        %1504 = vmatpush1.msra.mxu0 0.0
        %1505 = vmatprep.subr.mxu0 0.0
        %1506 = vmatpush1.msra.mxu0 0.0
        %1507 = vmatprep.subr.mxu0 0.0
        %1508 = vmatpush1.msra.mxu0 0.0
        %1509 = vmatprep.subr.mxu0 0.0
        %1510 = vmatpush1.msra.mxu0 0.0
        %1511 = vmatprep.subr.mxu0 0.0
        %1512 = vmatpush1.msra.mxu0 0.0
        %1513 = vmatprep.subr.mxu0 0.0
        %1514 = vmatpush1.msra.mxu0 0.0
        %1515 = vmatprep.subr.mxu0 0.0
        %1516 = vmatpush1.msra.mxu0 0.0
        %1517 = vmatprep.subr.mxu0 0.0
        %1518 = vmatpush1.msra.mxu0 0.0
        %1519 = vmatprep.subr.mxu0 0.0
        %1520 = vmatpush1.msra.mxu0 0.0
        %1521 = vmatprep.subr.mxu0 0.0
        %1522 = vmatpush1.msra.mxu0 0.0
        %1523 = vmatprep.subr.mxu0 0.0
        %1524 = vmatpush1.msra.mxu0 0.0
        %1525 = vmatprep.subr.mxu0 0.0
        %1526 = vmatpush1.msra.mxu0 0.0
        %1527 = vmatprep.mubr.f32.mxu0 0.0
        %1528 = vmatmul.mubr.f32.gmra.mrb[0].mxu0 %v1248
        %v1529 = vpop.f32.mrb[0].mxu0
        %v1530 = vadd.f32 %v1243, %v1529
        %v1531 = vpop.f32.mrb[0].mxu0
        %v1532 = vadd.f32 %v1245, %v1531
        %1533 = vdwg.mxu0
        %1534 = vrot.lane.b32.xlu0 %v673, 31
        %v1535 = vpop.permute.xlu0 %1534
        %1536 = vrot.lane.b32.xlu0 %v675, 31
        %v1537 = vpop.permute.xlu0 %1536
        %1538 = vrot.lane.b32.xlu0 %v744, 31
        %v1539 = vpop.permute.xlu0 %1538
        %1540 = vrot.lane.b32.xlu0 %v746, 31
        %v1541 = vpop.permute.xlu0 %1540
        %1542 = vrot.lane.b32.xlu0 %v815, 31
        %v1543 = vpop.permute.xlu0 %1542
        %1544 = vrot.lane.b32.xlu0 %v817, 31
        %v1545 = vpop.permute.xlu0 %1544
        %1546 = vrot.lane.b32.xlu0 %v886, 31
        %v1547 = vpop.permute.xlu0 %1546
        %1548 = vrot.lane.b32.xlu0 %v888, 31
        %v1549 = vpop.permute.xlu0 %1548
        %vm1550 = vcmp.lt.s32.totalorder %v268, 31
        %v1551 = vsel %vm1550, %v1547, %v1549
        %v1552 = vsel %vm1550, %v1545, %v1547
        %v1553 = vsel %vm1550, %v1543, %v1545
        %v1554 = vsel %vm1550, %v1541, %v1543
        %v1555 = vsel %vm1550, %v1539, %v1541
        %v1556 = vsel %vm1550, %v1537, %v1539
        %v1557 = vsel %vm1550, %v1535, %v1537
        %v1558 = vsel %vm1550, %v1549, %v1535
        %v1559 = vsel %vm324, %v1558, 0.0
        %v1560 = vsel %vm325, %v1557, 0.0
        %v1561 = vsel %vm326, %v1556, 0.0
        %v1562 = vsel %vm327, %v1555, 0.0
        %v1563 = vsel %vm328, %v1554, 0.0
        %v1564 = vsel %vm329, %v1553, 0.0
        %v1565 = vsel %vm330, %v1552, 0.0
        %v1566 = vsel %vm331, %v1551, 0.0
        %s1567 = scalar_lea.vmem %s2, 16
        %v1568 = vld [vmem:[%s1567] sm:$0xff]
        %v1570 = vsel %vm959, %v1568, 0
        %1572 = vmatprep.subr.mxu0 %v1560
        %1573 = vmatpush1.msra.mxu0 %v1559
        %1574 = vmatprep.subr.mxu0 0.0
        %1575 = vmatpush1.msra.mxu0 0.0
        %1576 = vmatprep.subr.mxu0 0.0
        %1577 = vmatpush1.msra.mxu0 0.0
        %1578 = vmatprep.subr.mxu0 0.0
        %1579 = vmatpush1.msra.mxu0 0.0
        %1580 = vmatprep.subr.mxu0 0.0
        %1581 = vmatpush1.msra.mxu0 0.0
        %1582 = vmatprep.subr.mxu0 0.0
        %1583 = vmatpush1.msra.mxu0 0.0
        %1584 = vmatprep.subr.mxu0 0.0
        %1585 = vmatpush1.msra.mxu0 0.0
        %1586 = vmatprep.subr.mxu0 0.0
        %1587 = vmatpush1.msra.mxu0 0.0
        %1588 = vmatprep.subr.mxu0 0.0
        %1589 = vmatpush1.msra.mxu0 0.0
        %1590 = vmatprep.subr.mxu0 0.0
        %1591 = vmatpush1.msra.mxu0 0.0
        %1592 = vmatprep.subr.mxu0 0.0
        %1593 = vmatpush1.msra.mxu0 0.0
        %1594 = vmatprep.subr.mxu0 0.0
        %1595 = vmatpush1.msra.mxu0 0.0
        %1596 = vmatprep.subr.mxu0 0.0
        %1597 = vmatpush1.msra.mxu0 0.0
        %1598 = vmatprep.subr.mxu0 0.0
        %1599 = vmatpush1.msra.mxu0 0.0
        %1600 = vmatprep.subr.mxu0 0.0
        %1601 = vmatpush1.msra.mxu0 0.0
        %1602 = vmatprep.subr.mxu0 0.0
        %1603 = vmatpush1.msra.mxu0 0.0
        %1604 = vmatprep.subr.mxu0 0.0
        %1605 = vmatpush1.msra.mxu0 0.0
        %1606 = vmatprep.subr.mxu0 0.0
        %1607 = vmatpush1.msra.mxu0 0.0
        %1608 = vmatprep.subr.mxu0 0.0
        %1609 = vmatpush1.msra.mxu0 0.0
        %1610 = vmatprep.subr.mxu0 0.0
        %1611 = vmatpush1.msra.mxu0 0.0
        %1612 = vmatprep.subr.mxu0 0.0
        %1613 = vmatpush1.msra.mxu0 0.0
        %1614 = vmatprep.subr.mxu0 0.0
        %1615 = vmatpush1.msra.mxu0 0.0
        %1616 = vmatprep.subr.mxu0 0.0
        %1617 = vmatpush1.msra.mxu0 0.0
        %1618 = vmatprep.subr.mxu0 0.0
        %1619 = vmatpush1.msra.mxu0 0.0
        %1620 = vmatprep.subr.mxu0 0.0
        %1621 = vmatpush1.msra.mxu0 0.0
        %1622 = vmatprep.subr.mxu0 0.0
        %1623 = vmatpush1.msra.mxu0 0.0
        %1624 = vmatprep.subr.mxu0 0.0
        %1625 = vmatpush1.msra.mxu0 0.0
        %1626 = vmatprep.subr.mxu0 0.0
        %1627 = vmatpush1.msra.mxu0 0.0
        %1628 = vmatprep.subr.mxu0 0.0
        %1629 = vmatpush1.msra.mxu0 0.0
        %1630 = vmatprep.subr.mxu0 0.0
        %1631 = vmatpush1.msra.mxu0 0.0
        %1632 = vmatprep.subr.mxu0 0.0
        %1633 = vmatpush1.msra.mxu0 0.0
        %1634 = vmatprep.subr.mxu0 0.0
        %1635 = vmatpush1.msra.mxu0 0.0
        %1636 = vmatprep.mubr.f32.mxu0 0.0
        %1637 = vmatmul.mubr.f32.gmra.mrb[0].mxu0 %v1570
        %v1638 = vpop.f32.mrb[0].mxu0
        %v1639 = vadd.f32 0.0, %v1638
        %v1640 = vpop.f32.mrb[0].mxu0
        %v1641 = vadd.f32 0.0, %v1640
        %1642 = vdwg.mxu0
        %1643 = vmatprep.subr.mxu0 %v1562
        %1644 = vmatpush1.msra.mxu0 %v1561
        %1645 = vmatprep.subr.mxu0 0.0
        %1646 = vmatpush1.msra.mxu0 0.0
        %1647 = vmatprep.subr.mxu0 0.0
        %1648 = vmatpush1.msra.mxu0 0.0
        %1649 = vmatprep.subr.mxu0 0.0
        %1650 = vmatpush1.msra.mxu0 0.0
        %1651 = vmatprep.subr.mxu0 0.0
        %1652 = vmatpush1.msra.mxu0 0.0
        %1653 = vmatprep.subr.mxu0 0.0
        %1654 = vmatpush1.msra.mxu0 0.0
        %1655 = vmatprep.subr.mxu0 0.0
        %1656 = vmatpush1.msra.mxu0 0.0
        %1657 = vmatprep.subr.mxu0 0.0
        %1658 = vmatpush1.msra.mxu0 0.0
        %1659 = vmatprep.subr.mxu0 0.0
        %1660 = vmatpush1.msra.mxu0 0.0
        %1661 = vmatprep.subr.mxu0 0.0
        %1662 = vmatpush1.msra.mxu0 0.0
        %1663 = vmatprep.subr.mxu0 0.0
        %1664 = vmatpush1.msra.mxu0 0.0
        %1665 = vmatprep.subr.mxu0 0.0
        %1666 = vmatpush1.msra.mxu0 0.0
        %1667 = vmatprep.subr.mxu0 0.0
        %1668 = vmatpush1.msra.mxu0 0.0
        %1669 = vmatprep.subr.mxu0 0.0
        %1670 = vmatpush1.msra.mxu0 0.0
        %1671 = vmatprep.subr.mxu0 0.0
        %1672 = vmatpush1.msra.mxu0 0.0
        %1673 = vmatprep.subr.mxu0 0.0
        %1674 = vmatpush1.msra.mxu0 0.0
        %1675 = vmatprep.subr.mxu0 0.0
        %1676 = vmatpush1.msra.mxu0 0.0
        %1677 = vmatprep.subr.mxu0 0.0
        %1678 = vmatpush1.msra.mxu0 0.0
        %1679 = vmatprep.subr.mxu0 0.0
        %1680 = vmatpush1.msra.mxu0 0.0
        %1681 = vmatprep.subr.mxu0 0.0
        %1682 = vmatpush1.msra.mxu0 0.0
        %1683 = vmatprep.subr.mxu0 0.0
        %1684 = vmatpush1.msra.mxu0 0.0
        %1685 = vmatprep.subr.mxu0 0.0
        %1686 = vmatpush1.msra.mxu0 0.0
        %1687 = vmatprep.subr.mxu0 0.0
        %1688 = vmatpush1.msra.mxu0 0.0
        %1689 = vmatprep.subr.mxu0 0.0
        %1690 = vmatpush1.msra.mxu0 0.0
        %1691 = vmatprep.subr.mxu0 0.0
        %1692 = vmatpush1.msra.mxu0 0.0
        %1693 = vmatprep.subr.mxu0 0.0
        %1694 = vmatpush1.msra.mxu0 0.0
        %1695 = vmatprep.subr.mxu0 0.0
        %1696 = vmatpush1.msra.mxu0 0.0
        %1697 = vmatprep.subr.mxu0 0.0
        %1698 = vmatpush1.msra.mxu0 0.0
        %1699 = vmatprep.subr.mxu0 0.0
        %1700 = vmatpush1.msra.mxu0 0.0
        %1701 = vmatprep.subr.mxu0 0.0
        %1702 = vmatpush1.msra.mxu0 0.0
        %1703 = vmatprep.subr.mxu0 0.0
        %1704 = vmatpush1.msra.mxu0 0.0
        %1705 = vmatprep.subr.mxu0 0.0
        %1706 = vmatpush1.msra.mxu0 0.0
        %1707 = vmatprep.mubr.f32.mxu0 0.0
        %1708 = vmatmul.mubr.f32.gmra.mrb[0].mxu0 %v1570
        %v1709 = vpop.f32.mrb[0].mxu0
        %v1710 = vadd.f32 0.0, %v1709
        %v1711 = vpop.f32.mrb[0].mxu0
        %v1712 = vadd.f32 0.0, %v1711
        %1713 = vdwg.mxu0
        %1714 = vmatprep.subr.mxu0 %v1564
        %1715 = vmatpush1.msra.mxu0 %v1563
        %1716 = vmatprep.subr.mxu0 0.0
        %1717 = vmatpush1.msra.mxu0 0.0
        %1718 = vmatprep.subr.mxu0 0.0
        %1719 = vmatpush1.msra.mxu0 0.0
        %1720 = vmatprep.subr.mxu0 0.0
        %1721 = vmatpush1.msra.mxu0 0.0
        %1722 = vmatprep.subr.mxu0 0.0
        %1723 = vmatpush1.msra.mxu0 0.0
        %1724 = vmatprep.subr.mxu0 0.0
        %1725 = vmatpush1.msra.mxu0 0.0
        %1726 = vmatprep.subr.mxu0 0.0
        %1727 = vmatpush1.msra.mxu0 0.0
        %1728 = vmatprep.subr.mxu0 0.0
        %1729 = vmatpush1.msra.mxu0 0.0
        %1730 = vmatprep.subr.mxu0 0.0
        %1731 = vmatpush1.msra.mxu0 0.0
        %1732 = vmatprep.subr.mxu0 0.0
        %1733 = vmatpush1.msra.mxu0 0.0
        %1734 = vmatprep.subr.mxu0 0.0
        %1735 = vmatpush1.msra.mxu0 0.0
        %1736 = vmatprep.subr.mxu0 0.0
        %1737 = vmatpush1.msra.mxu0 0.0
        %1738 = vmatprep.subr.mxu0 0.0
        %1739 = vmatpush1.msra.mxu0 0.0
        %1740 = vmatprep.subr.mxu0 0.0
        %1741 = vmatpush1.msra.mxu0 0.0
        %1742 = vmatprep.subr.mxu0 0.0
        %1743 = vmatpush1.msra.mxu0 0.0
        %1744 = vmatprep.subr.mxu0 0.0
        %1745 = vmatpush1.msra.mxu0 0.0
        %1746 = vmatprep.subr.mxu0 0.0
        %1747 = vmatpush1.msra.mxu0 0.0
        %1748 = vmatprep.subr.mxu0 0.0
        %1749 = vmatpush1.msra.mxu0 0.0
        %1750 = vmatprep.subr.mxu0 0.0
        %1751 = vmatpush1.msra.mxu0 0.0
        %1752 = vmatprep.subr.mxu0 0.0
        %1753 = vmatpush1.msra.mxu0 0.0
        %1754 = vmatprep.subr.mxu0 0.0
        %1755 = vmatpush1.msra.mxu0 0.0
        %1756 = vmatprep.subr.mxu0 0.0
        %1757 = vmatpush1.msra.mxu0 0.0
        %1758 = vmatprep.subr.mxu0 0.0
        %1759 = vmatpush1.msra.mxu0 0.0
        %1760 = vmatprep.subr.mxu0 0.0
        %1761 = vmatpush1.msra.mxu0 0.0
        %1762 = vmatprep.subr.mxu0 0.0
        %1763 = vmatpush1.msra.mxu0 0.0
        %1764 = vmatprep.subr.mxu0 0.0
        %1765 = vmatpush1.msra.mxu0 0.0
        %1766 = vmatprep.subr.mxu0 0.0
        %1767 = vmatpush1.msra.mxu0 0.0
        %1768 = vmatprep.subr.mxu0 0.0
        %1769 = vmatpush1.msra.mxu0 0.0
        %1770 = vmatprep.subr.mxu0 0.0
        %1771 = vmatpush1.msra.mxu0 0.0
        %1772 = vmatprep.subr.mxu0 0.0
        %1773 = vmatpush1.msra.mxu0 0.0
        %1774 = vmatprep.subr.mxu0 0.0
        %1775 = vmatpush1.msra.mxu0 0.0
        %1776 = vmatprep.subr.mxu0 0.0
        %1777 = vmatpush1.msra.mxu0 0.0
        %1778 = vmatprep.mubr.f32.mxu0 0.0
        %1779 = vmatmul.mubr.f32.gmra.mrb[0].mxu0 %v1570
        %v1780 = vpop.f32.mrb[0].mxu0
        %v1781 = vadd.f32 0.0, %v1780
        %v1782 = vpop.f32.mrb[0].mxu0
        %v1783 = vadd.f32 0.0, %v1782
        %1784 = vdwg.mxu0
        %1785 = vmatprep.subr.mxu0 %v1566
        %1786 = vmatpush1.msra.mxu0 %v1565
        %1787 = vmatprep.subr.mxu0 0.0
        %1788 = vmatpush1.msra.mxu0 0.0
        %1789 = vmatprep.subr.mxu0 0.0
        %1790 = vmatpush1.msra.mxu0 0.0
        %1791 = vmatprep.subr.mxu0 0.0
        %1792 = vmatpush1.msra.mxu0 0.0
        %1793 = vmatprep.subr.mxu0 0.0
        %1794 = vmatpush1.msra.mxu0 0.0
        %1795 = vmatprep.subr.mxu0 0.0
        %1796 = vmatpush1.msra.mxu0 0.0
        %1797 = vmatprep.subr.mxu0 0.0
        %1798 = vmatpush1.msra.mxu0 0.0
        %1799 = vmatprep.subr.mxu0 0.0
        %1800 = vmatpush1.msra.mxu0 0.0
        %1801 = vmatprep.subr.mxu0 0.0
        %1802 = vmatpush1.msra.mxu0 0.0
        %1803 = vmatprep.subr.mxu0 0.0
        %1804 = vmatpush1.msra.mxu0 0.0
        %1805 = vmatprep.subr.mxu0 0.0
        %1806 = vmatpush1.msra.mxu0 0.0
        %1807 = vmatprep.subr.mxu0 0.0
        %1808 = vmatpush1.msra.mxu0 0.0
        %1809 = vmatprep.subr.mxu0 0.0
        %1810 = vmatpush1.msra.mxu0 0.0
        %1811 = vmatprep.subr.mxu0 0.0
        %1812 = vmatpush1.msra.mxu0 0.0
        %1813 = vmatprep.subr.mxu0 0.0
        %1814 = vmatpush1.msra.mxu0 0.0
        %1815 = vmatprep.subr.mxu0 0.0
        %1816 = vmatpush1.msra.mxu0 0.0
        %1817 = vmatprep.subr.mxu0 0.0
        %1818 = vmatpush1.msra.mxu0 0.0
        %1819 = vmatprep.subr.mxu0 0.0
        %1820 = vmatpush1.msra.mxu0 0.0
        %1821 = vmatprep.subr.mxu0 0.0
        %1822 = vmatpush1.msra.mxu0 0.0
        %1823 = vmatprep.subr.mxu0 0.0
        %1824 = vmatpush1.msra.mxu0 0.0
        %1825 = vmatprep.subr.mxu0 0.0
        %1826 = vmatpush1.msra.mxu0 0.0
        %1827 = vmatprep.subr.mxu0 0.0
        %1828 = vmatpush1.msra.mxu0 0.0
        %1829 = vmatprep.subr.mxu0 0.0
        %1830 = vmatpush1.msra.mxu0 0.0
        %1831 = vmatprep.subr.mxu0 0.0
        %1832 = vmatpush1.msra.mxu0 0.0
        %1833 = vmatprep.subr.mxu0 0.0
        %1834 = vmatpush1.msra.mxu0 0.0
        %1835 = vmatprep.subr.mxu0 0.0
        %1836 = vmatpush1.msra.mxu0 0.0
        %1837 = vmatprep.subr.mxu0 0.0
        %1838 = vmatpush1.msra.mxu0 0.0
        %1839 = vmatprep.subr.mxu0 0.0
        %1840 = vmatpush1.msra.mxu0 0.0
        %1841 = vmatprep.subr.mxu0 0.0
        %1842 = vmatpush1.msra.mxu0 0.0
        %1843 = vmatprep.subr.mxu0 0.0
        %1844 = vmatpush1.msra.mxu0 0.0
        %1845 = vmatprep.subr.mxu0 0.0
        %1846 = vmatpush1.msra.mxu0 0.0
        %1847 = vmatprep.subr.mxu0 0.0
        %1848 = vmatpush1.msra.mxu0 0.0
        %1849 = vmatprep.mubr.f32.mxu0 0.0
        %1850 = vmatmul.mubr.f32.gmra.mrb[0].mxu0 %v1570
        %v1851 = vpop.f32.mrb[0].mxu0
        %v1852 = vadd.f32 0.0, %v1851
        %v1853 = vpop.f32.mrb[0].mxu0
        %v1854 = vadd.f32 0.0, %v1853
        %1855 = vdwg.mxu0
        %v1856 = vadd.f32 %v1317, %v1639
        %v1857 = vadd.f32 %v1319, %v1641
        %v1858 = vadd.f32 %v1388, %v1710
        %v1859 = vadd.f32 %v1390, %v1712
        %v1860 = vadd.f32 %v1459, %v1781
        %v1861 = vadd.f32 %v1461, %v1783
        %v1862 = vadd.f32 %v1530, %v1852
        %v1863 = vadd.f32 %v1532, %v1854
        %1864 = vrot.lane.b32.xlu0 %v673, 1
        %v1865 = vpop.permute.xlu0 %1864
        %1866 = vrot.lane.b32.xlu0 %v675, 1
        %v1867 = vpop.permute.xlu0 %1866
        %1868 = vrot.lane.b32.xlu0 %v744, 1
        %v1869 = vpop.permute.xlu0 %1868
        %1870 = vrot.lane.b32.xlu0 %v746, 1
        %v1871 = vpop.permute.xlu0 %1870
        %1872 = vrot.lane.b32.xlu0 %v815, 1
        %v1873 = vpop.permute.xlu0 %1872
        %1874 = vrot.lane.b32.xlu0 %v817, 1
        %v1875 = vpop.permute.xlu0 %1874
        %1876 = vrot.lane.b32.xlu0 %v886, 1
        %v1877 = vpop.permute.xlu0 %1876
        %1878 = vrot.lane.b32.xlu0 %v888, 1
        %v1879 = vpop.permute.xlu0 %1878
        %vm1880 = vcmp.lt.s32.totalorder %v268, 1
        %v1881 = vsel %vm1880, %v1877, %v1879
        %v1882 = vsel %vm1880, %v1875, %v1877
        %v1883 = vsel %vm1880, %v1873, %v1875
        %v1884 = vsel %vm1880, %v1871, %v1873
        %v1885 = vsel %vm1880, %v1869, %v1871
        %v1886 = vsel %vm1880, %v1867, %v1869
        %v1887 = vsel %vm1880, %v1865, %v1867
        %v1888 = vsel %vm1880, %v1879, %v1865
        %v1889 = vsel %vm300, %v1888, 0.0
        %v1890 = vsel %vm301, %v1887, 0.0
        %v1891 = vsel %vm302, %v1886, 0.0
        %v1892 = vsel %vm303, %v1885, 0.0
        %v1893 = vsel %vm304, %v1884, 0.0
        %v1894 = vsel %vm305, %v1883, 0.0
        %v1895 = vsel %vm306, %v1882, 0.0
        %v1896 = vsel %vm307, %v1881, 0.0
        %s1897 = scalar_lea.vmem %s2, 24
        %v1898 = vld [vmem:[%s1897] sm:$0xff]
        %v1900 = vsel %vm959, %v1898, 0
        %1902 = vmatprep.subr.mxu0 %v1890
        %1903 = vmatpush1.msra.mxu0 %v1889
        %1904 = vmatprep.subr.mxu0 0.0
        %1905 = vmatpush1.msra.mxu0 0.0
        %1906 = vmatprep.subr.mxu0 0.0
        %1907 = vmatpush1.msra.mxu0 0.0
        %1908 = vmatprep.subr.mxu0 0.0
        %1909 = vmatpush1.msra.mxu0 0.0
        %1910 = vmatprep.subr.mxu0 0.0
        %1911 = vmatpush1.msra.mxu0 0.0
        %1912 = vmatprep.subr.mxu0 0.0
        %1913 = vmatpush1.msra.mxu0 0.0
        %1914 = vmatprep.subr.mxu0 0.0
        %1915 = vmatpush1.msra.mxu0 0.0
        %1916 = vmatprep.subr.mxu0 0.0
        %1917 = vmatpush1.msra.mxu0 0.0
        %1918 = vmatprep.subr.mxu0 0.0
        %1919 = vmatpush1.msra.mxu0 0.0
        %1920 = vmatprep.subr.mxu0 0.0
        %1921 = vmatpush1.msra.mxu0 0.0
        %1922 = vmatprep.subr.mxu0 0.0
        %1923 = vmatpush1.msra.mxu0 0.0
        %1924 = vmatprep.subr.mxu0 0.0
        %1925 = vmatpush1.msra.mxu0 0.0
        %1926 = vmatprep.subr.mxu0 0.0
        %1927 = vmatpush1.msra.mxu0 0.0
        %1928 = vmatprep.subr.mxu0 0.0
        %1929 = vmatpush1.msra.mxu0 0.0
        %1930 = vmatprep.subr.mxu0 0.0
        %1931 = vmatpush1.msra.mxu0 0.0
        %1932 = vmatprep.subr.mxu0 0.0
        %1933 = vmatpush1.msra.mxu0 0.0
        %1934 = vmatprep.subr.mxu0 0.0
        %1935 = vmatpush1.msra.mxu0 0.0
        %1936 = vmatprep.subr.mxu0 0.0
        %1937 = vmatpush1.msra.mxu0 0.0
        %1938 = vmatprep.subr.mxu0 0.0
        %1939 = vmatpush1.msra.mxu0 0.0
        %1940 = vmatprep.subr.mxu0 0.0
        %1941 = vmatpush1.msra.mxu0 0.0
        %1942 = vmatprep.subr.mxu0 0.0
        %1943 = vmatpush1.msra.mxu0 0.0
        %1944 = vmatprep.subr.mxu0 0.0
        %1945 = vmatpush1.msra.mxu0 0.0
        %1946 = vmatprep.subr.mxu0 0.0
        %1947 = vmatpush1.msra.mxu0 0.0
        %1948 = vmatprep.subr.mxu0 0.0
        %1949 = vmatpush1.msra.mxu0 0.0
        %1950 = vmatprep.subr.mxu0 0.0
        %1951 = vmatpush1.msra.mxu0 0.0
        %1952 = vmatprep.subr.mxu0 0.0
        %1953 = vmatpush1.msra.mxu0 0.0
        %1954 = vmatprep.subr.mxu0 0.0
        %1955 = vmatpush1.msra.mxu0 0.0
        %1956 = vmatprep.subr.mxu0 0.0
        %1957 = vmatpush1.msra.mxu0 0.0
        %1958 = vmatprep.subr.mxu0 0.0
        %1959 = vmatpush1.msra.mxu0 0.0
        %1960 = vmatprep.subr.mxu0 0.0
        %1961 = vmatpush1.msra.mxu0 0.0
        %1962 = vmatprep.subr.mxu0 0.0
        %1963 = vmatpush1.msra.mxu0 0.0
        %1964 = vmatprep.subr.mxu0 0.0
        %1965 = vmatpush1.msra.mxu0 0.0
        %1966 = vmatprep.mubr.f32.mxu0 0.0
        %1967 = vmatmul.mubr.f32.gmra.mrb[0].mxu0 %v1900
        %v1968 = vpop.f32.mrb[0].mxu0
        %v1969 = vadd.f32 0.0, %v1968
        %v1970 = vpop.f32.mrb[0].mxu0
        %v1971 = vadd.f32 0.0, %v1970
        %1972 = vdwg.mxu0
        %1973 = vmatprep.subr.mxu0 %v1892
        %1974 = vmatpush1.msra.mxu0 %v1891
        %1975 = vmatprep.subr.mxu0 0.0
        %1976 = vmatpush1.msra.mxu0 0.0
        %1977 = vmatprep.subr.mxu0 0.0
        %1978 = vmatpush1.msra.mxu0 0.0
        %1979 = vmatprep.subr.mxu0 0.0
        %1980 = vmatpush1.msra.mxu0 0.0
        %1981 = vmatprep.subr.mxu0 0.0
        %1982 = vmatpush1.msra.mxu0 0.0
        %1983 = vmatprep.subr.mxu0 0.0
        %1984 = vmatpush1.msra.mxu0 0.0
        %1985 = vmatprep.subr.mxu0 0.0
        %1986 = vmatpush1.msra.mxu0 0.0
        %1987 = vmatprep.subr.mxu0 0.0
        %1988 = vmatpush1.msra.mxu0 0.0
        %1989 = vmatprep.subr.mxu0 0.0
        %1990 = vmatpush1.msra.mxu0 0.0
        %1991 = vmatprep.subr.mxu0 0.0
        %1992 = vmatpush1.msra.mxu0 0.0
        %1993 = vmatprep.subr.mxu0 0.0
        %1994 = vmatpush1.msra.mxu0 0.0
        %1995 = vmatprep.subr.mxu0 0.0
        %1996 = vmatpush1.msra.mxu0 0.0
        %1997 = vmatprep.subr.mxu0 0.0
        %1998 = vmatpush1.msra.mxu0 0.0
        %1999 = vmatprep.subr.mxu0 0.0
        %2000 = vmatpush1.msra.mxu0 0.0
        %2001 = vmatprep.subr.mxu0 0.0
        %2002 = vmatpush1.msra.mxu0 0.0
        %2003 = vmatprep.subr.mxu0 0.0
        %2004 = vmatpush1.msra.mxu0 0.0
        %2005 = vmatprep.subr.mxu0 0.0
        %2006 = vmatpush1.msra.mxu0 0.0
        %2007 = vmatprep.subr.mxu0 0.0
        %2008 = vmatpush1.msra.mxu0 0.0
        %2009 = vmatprep.subr.mxu0 0.0
        %2010 = vmatpush1.msra.mxu0 0.0
        %2011 = vmatprep.subr.mxu0 0.0
        %2012 = vmatpush1.msra.mxu0 0.0
        %2013 = vmatprep.subr.mxu0 0.0
        %2014 = vmatpush1.msra.mxu0 0.0
        %2015 = vmatprep.subr.mxu0 0.0
        %2016 = vmatpush1.msra.mxu0 0.0
        %2017 = vmatprep.subr.mxu0 0.0
        %2018 = vmatpush1.msra.mxu0 0.0
        %2019 = vmatprep.subr.mxu0 0.0
        %2020 = vmatpush1.msra.mxu0 0.0
        %2021 = vmatprep.subr.mxu0 0.0
        %2022 = vmatpush1.msra.mxu0 0.0
        %2023 = vmatprep.subr.mxu0 0.0
        %2024 = vmatpush1.msra.mxu0 0.0
        %2025 = vmatprep.subr.mxu0 0.0
        %2026 = vmatpush1.msra.mxu0 0.0
        %2027 = vmatprep.subr.mxu0 0.0
        %2028 = vmatpush1.msra.mxu0 0.0
        %2029 = vmatprep.subr.mxu0 0.0
        %2030 = vmatpush1.msra.mxu0 0.0
        %2031 = vmatprep.subr.mxu0 0.0
        %2032 = vmatpush1.msra.mxu0 0.0
        %2033 = vmatprep.subr.mxu0 0.0
        %2034 = vmatpush1.msra.mxu0 0.0
        %2035 = vmatprep.subr.mxu0 0.0
        %2036 = vmatpush1.msra.mxu0 0.0
        %2037 = vmatprep.mubr.f32.mxu0 0.0
        %2038 = vmatmul.mubr.f32.gmra.mrb[0].mxu0 %v1900
        %v2039 = vpop.f32.mrb[0].mxu0
        %v2040 = vadd.f32 0.0, %v2039
        %v2041 = vpop.f32.mrb[0].mxu0
        %v2042 = vadd.f32 0.0, %v2041
        %2043 = vdwg.mxu0
        %2044 = vmatprep.subr.mxu0 %v1894
        %2045 = vmatpush1.msra.mxu0 %v1893
        %2046 = vmatprep.subr.mxu0 0.0
        %2047 = vmatpush1.msra.mxu0 0.0
        %2048 = vmatprep.subr.mxu0 0.0
        %2049 = vmatpush1.msra.mxu0 0.0
        %2050 = vmatprep.subr.mxu0 0.0
        %2051 = vmatpush1.msra.mxu0 0.0
        %2052 = vmatprep.subr.mxu0 0.0
        %2053 = vmatpush1.msra.mxu0 0.0
        %2054 = vmatprep.subr.mxu0 0.0
        %2055 = vmatpush1.msra.mxu0 0.0
        %2056 = vmatprep.subr.mxu0 0.0
        %2057 = vmatpush1.msra.mxu0 0.0
        %2058 = vmatprep.subr.mxu0 0.0
        %2059 = vmatpush1.msra.mxu0 0.0
        %2060 = vmatprep.subr.mxu0 0.0
        %2061 = vmatpush1.msra.mxu0 0.0
        %2062 = vmatprep.subr.mxu0 0.0
        %2063 = vmatpush1.msra.mxu0 0.0
        %2064 = vmatprep.subr.mxu0 0.0
        %2065 = vmatpush1.msra.mxu0 0.0
        %2066 = vmatprep.subr.mxu0 0.0
        %2067 = vmatpush1.msra.mxu0 0.0
        %2068 = vmatprep.subr.mxu0 0.0
        %2069 = vmatpush1.msra.mxu0 0.0
        %2070 = vmatprep.subr.mxu0 0.0
        %2071 = vmatpush1.msra.mxu0 0.0
        %2072 = vmatprep.subr.mxu0 0.0
        %2073 = vmatpush1.msra.mxu0 0.0
        %2074 = vmatprep.subr.mxu0 0.0
        %2075 = vmatpush1.msra.mxu0 0.0
        %2076 = vmatprep.subr.mxu0 0.0
        %2077 = vmatpush1.msra.mxu0 0.0
        %2078 = vmatprep.subr.mxu0 0.0
        %2079 = vmatpush1.msra.mxu0 0.0
        %2080 = vmatprep.subr.mxu0 0.0
        %2081 = vmatpush1.msra.mxu0 0.0
        %2082 = vmatprep.subr.mxu0 0.0
        %2083 = vmatpush1.msra.mxu0 0.0
        %2084 = vmatprep.subr.mxu0 0.0
        %2085 = vmatpush1.msra.mxu0 0.0
        %2086 = vmatprep.subr.mxu0 0.0
        %2087 = vmatpush1.msra.mxu0 0.0
        %2088 = vmatprep.subr.mxu0 0.0
        %2089 = vmatpush1.msra.mxu0 0.0
        %2090 = vmatprep.subr.mxu0 0.0
        %2091 = vmatpush1.msra.mxu0 0.0
        %2092 = vmatprep.subr.mxu0 0.0
        %2093 = vmatpush1.msra.mxu0 0.0
        %2094 = vmatprep.subr.mxu0 0.0
        %2095 = vmatpush1.msra.mxu0 0.0
        %2096 = vmatprep.subr.mxu0 0.0
        %2097 = vmatpush1.msra.mxu0 0.0
        %2098 = vmatprep.subr.mxu0 0.0
        %2099 = vmatpush1.msra.mxu0 0.0
        %2100 = vmatprep.subr.mxu0 0.0
        %2101 = vmatpush1.msra.mxu0 0.0
        %2102 = vmatprep.subr.mxu0 0.0
        %2103 = vmatpush1.msra.mxu0 0.0
        %2104 = vmatprep.subr.mxu0 0.0
        %2105 = vmatpush1.msra.mxu0 0.0
        %2106 = vmatprep.subr.mxu0 0.0
        %2107 = vmatpush1.msra.mxu0 0.0
        %2108 = vmatprep.mubr.f32.mxu0 0.0
        %2109 = vmatmul.mubr.f32.gmra.mrb[0].mxu0 %v1900
        %v2110 = vpop.f32.mrb[0].mxu0
        %v2111 = vadd.f32 0.0, %v2110
        %v2112 = vpop.f32.mrb[0].mxu0
        %v2113 = vadd.f32 0.0, %v2112
        %2114 = vdwg.mxu0
        %2115 = vmatprep.subr.mxu0 %v1896
        %2116 = vmatpush1.msra.mxu0 %v1895
        %2117 = vmatprep.subr.mxu0 0.0
        %2118 = vmatpush1.msra.mxu0 0.0
        %2119 = vmatprep.subr.mxu0 0.0
        %2120 = vmatpush1.msra.mxu0 0.0
        %2121 = vmatprep.subr.mxu0 0.0
        %2122 = vmatpush1.msra.mxu0 0.0
        %2123 = vmatprep.subr.mxu0 0.0
        %2124 = vmatpush1.msra.mxu0 0.0
        %2125 = vmatprep.subr.mxu0 0.0
        %2126 = vmatpush1.msra.mxu0 0.0
        %2127 = vmatprep.subr.mxu0 0.0
        %2128 = vmatpush1.msra.mxu0 0.0
        %2129 = vmatprep.subr.mxu0 0.0
        %2130 = vmatpush1.msra.mxu0 0.0
        %2131 = vmatprep.subr.mxu0 0.0
        %2132 = vmatpush1.msra.mxu0 0.0
        %2133 = vmatprep.subr.mxu0 0.0
        %2134 = vmatpush1.msra.mxu0 0.0
        %2135 = vmatprep.subr.mxu0 0.0
        %2136 = vmatpush1.msra.mxu0 0.0
        %2137 = vmatprep.subr.mxu0 0.0
        %2138 = vmatpush1.msra.mxu0 0.0
        %2139 = vmatprep.subr.mxu0 0.0
        %2140 = vmatpush1.msra.mxu0 0.0
        %2141 = vmatprep.subr.mxu0 0.0
        %2142 = vmatpush1.msra.mxu0 0.0
        %2143 = vmatprep.subr.mxu0 0.0
        %2144 = vmatpush1.msra.mxu0 0.0
        %2145 = vmatprep.subr.mxu0 0.0
        %2146 = vmatpush1.msra.mxu0 0.0
        %2147 = vmatprep.subr.mxu0 0.0
        %2148 = vmatpush1.msra.mxu0 0.0
        %2149 = vmatprep.subr.mxu0 0.0
        %2150 = vmatpush1.msra.mxu0 0.0
        %2151 = vmatprep.subr.mxu0 0.0
        %2152 = vmatpush1.msra.mxu0 0.0
        %2153 = vmatprep.subr.mxu0 0.0
        %2154 = vmatpush1.msra.mxu0 0.0
        %2155 = vmatprep.subr.mxu0 0.0
        %2156 = vmatpush1.msra.mxu0 0.0
        %2157 = vmatprep.subr.mxu0 0.0
        %2158 = vmatpush1.msra.mxu0 0.0
        %2159 = vmatprep.subr.mxu0 0.0
        %2160 = vmatpush1.msra.mxu0 0.0
        %2161 = vmatprep.subr.mxu0 0.0
        %2162 = vmatpush1.msra.mxu0 0.0
        %2163 = vmatprep.subr.mxu0 0.0
        %2164 = vmatpush1.msra.mxu0 0.0
        %2165 = vmatprep.subr.mxu0 0.0
        %2166 = vmatpush1.msra.mxu0 0.0
        %2167 = vmatprep.subr.mxu0 0.0
        %2168 = vmatpush1.msra.mxu0 0.0
        %2169 = vmatprep.subr.mxu0 0.0
        %2170 = vmatpush1.msra.mxu0 0.0
        %2171 = vmatprep.subr.mxu0 0.0
        %2172 = vmatpush1.msra.mxu0 0.0
        %2173 = vmatprep.subr.mxu0 0.0
        %2174 = vmatpush1.msra.mxu0 0.0
        %2175 = vmatprep.subr.mxu0 0.0
        %2176 = vmatpush1.msra.mxu0 0.0
        %2177 = vmatprep.subr.mxu0 0.0
        %2178 = vmatpush1.msra.mxu0 0.0
        %2179 = vmatprep.mubr.f32.mxu0 0.0
        %2180 = vmatmul.mubr.f32.gmra.mrb[0].mxu0 %v1900
        %v2181 = vpop.f32.mrb[0].mxu0
        %v2182 = vadd.f32 0.0, %v2181
        %v2183 = vpop.f32.mrb[0].mxu0
        %v2184 = vadd.f32 0.0, %v2183
        %2185 = vdwg.mxu0
        %v2186 = vadd.f32 %v1856, %v1969
        %v2187 = vadd.f32 %v1857, %v1971
        %v2188 = vadd.f32 %v1858, %v2040
        %v2189 = vadd.f32 %v1859, %v2042
        %v2190 = vadd.f32 %v1860, %v2111
        %v2191 = vadd.f32 %v1861, %v2113
        %v2192 = vadd.f32 %v1862, %v2182
        %v2193 = vadd.f32 %v1863, %v2184
        %s2194 = scalar_lea.vmem %s2, 32
        %v2195 = vld [vmem:[%s2194] sm:$0xff]
        %v2197 = vsel %vm959, %v2195, 0
        %2199 = vmatprep.subr.mxu0 %v675
        %2200 = vmatpush1.msra.mxu0 %v673
        %2201 = vmatprep.subr.mxu0 0.0
        %2202 = vmatpush1.msra.mxu0 0.0
        %2203 = vmatprep.subr.mxu0 0.0
        %2204 = vmatpush1.msra.mxu0 0.0
        %2205 = vmatprep.subr.mxu0 0.0
        %2206 = vmatpush1.msra.mxu0 0.0
        %2207 = vmatprep.subr.mxu0 0.0
        %2208 = vmatpush1.msra.mxu0 0.0
        %2209 = vmatprep.subr.mxu0 0.0
        %2210 = vmatpush1.msra.mxu0 0.0
        %2211 = vmatprep.subr.mxu0 0.0
        %2212 = vmatpush1.msra.mxu0 0.0
        %2213 = vmatprep.subr.mxu0 0.0
        %2214 = vmatpush1.msra.mxu0 0.0
        %2215 = vmatprep.subr.mxu0 0.0
        %2216 = vmatpush1.msra.mxu0 0.0
        %2217 = vmatprep.subr.mxu0 0.0
        %2218 = vmatpush1.msra.mxu0 0.0
        %2219 = vmatprep.subr.mxu0 0.0
        %2220 = vmatpush1.msra.mxu0 0.0
        %2221 = vmatprep.subr.mxu0 0.0
        %2222 = vmatpush1.msra.mxu0 0.0
        %2223 = vmatprep.subr.mxu0 0.0
        %2224 = vmatpush1.msra.mxu0 0.0
        %2225 = vmatprep.subr.mxu0 0.0
        %2226 = vmatpush1.msra.mxu0 0.0
        %2227 = vmatprep.subr.mxu0 0.0
        %2228 = vmatpush1.msra.mxu0 0.0
        %2229 = vmatprep.subr.mxu0 0.0
        %2230 = vmatpush1.msra.mxu0 0.0
        %2231 = vmatprep.subr.mxu0 0.0
        %2232 = vmatpush1.msra.mxu0 0.0
        %2233 = vmatprep.subr.mxu0 0.0
        %2234 = vmatpush1.msra.mxu0 0.0
        %2235 = vmatprep.subr.mxu0 0.0
        %2236 = vmatpush1.msra.mxu0 0.0
        %2237 = vmatprep.subr.mxu0 0.0
        %2238 = vmatpush1.msra.mxu0 0.0
        %2239 = vmatprep.subr.mxu0 0.0
        %2240 = vmatpush1.msra.mxu0 0.0
        %2241 = vmatprep.subr.mxu0 0.0
        %2242 = vmatpush1.msra.mxu0 0.0
        %2243 = vmatprep.subr.mxu0 0.0
        %2244 = vmatpush1.msra.mxu0 0.0
        %2245 = vmatprep.subr.mxu0 0.0
        %2246 = vmatpush1.msra.mxu0 0.0
        %2247 = vmatprep.subr.mxu0 0.0
        %2248 = vmatpush1.msra.mxu0 0.0
        %2249 = vmatprep.subr.mxu0 0.0
        %2250 = vmatpush1.msra.mxu0 0.0
        %2251 = vmatprep.subr.mxu0 0.0
        %2252 = vmatpush1.msra.mxu0 0.0
        %2253 = vmatprep.subr.mxu0 0.0
        %2254 = vmatpush1.msra.mxu0 0.0
        %2255 = vmatprep.subr.mxu0 0.0
        %2256 = vmatpush1.msra.mxu0 0.0
        %2257 = vmatprep.subr.mxu0 0.0
        %2258 = vmatpush1.msra.mxu0 0.0
        %2259 = vmatprep.subr.mxu0 0.0
        %2260 = vmatpush1.msra.mxu0 0.0
        %2261 = vmatprep.subr.mxu0 0.0
        %2262 = vmatpush1.msra.mxu0 0.0
        %2263 = vmatprep.mubr.f32.mxu0 0.0
        %2264 = vmatmul.mubr.f32.gmra.mrb[0].mxu0 %v2197
        %v2265 = vpop.f32.mrb[0].mxu0
        %v2266 = vadd.f32 0.0, %v2265
        %v2267 = vpop.f32.mrb[0].mxu0
        %v2268 = vadd.f32 0.0, %v2267
        %2269 = vdwg.mxu0
        %2270 = vmatprep.subr.mxu0 %v746
        %2271 = vmatpush1.msra.mxu0 %v744
        %2272 = vmatprep.subr.mxu0 0.0
        %2273 = vmatpush1.msra.mxu0 0.0
        %2274 = vmatprep.subr.mxu0 0.0
        %2275 = vmatpush1.msra.mxu0 0.0
        %2276 = vmatprep.subr.mxu0 0.0
        %2277 = vmatpush1.msra.mxu0 0.0
        %2278 = vmatprep.subr.mxu0 0.0
        %2279 = vmatpush1.msra.mxu0 0.0
        %2280 = vmatprep.subr.mxu0 0.0
        %2281 = vmatpush1.msra.mxu0 0.0
        %2282 = vmatprep.subr.mxu0 0.0
        %2283 = vmatpush1.msra.mxu0 0.0
        %2284 = vmatprep.subr.mxu0 0.0
        %2285 = vmatpush1.msra.mxu0 0.0
        %2286 = vmatprep.subr.mxu0 0.0
        %2287 = vmatpush1.msra.mxu0 0.0
        %2288 = vmatprep.subr.mxu0 0.0
        %2289 = vmatpush1.msra.mxu0 0.0
        %2290 = vmatprep.subr.mxu0 0.0
        %2291 = vmatpush1.msra.mxu0 0.0
        %2292 = vmatprep.subr.mxu0 0.0
        %2293 = vmatpush1.msra.mxu0 0.0
        %2294 = vmatprep.subr.mxu0 0.0
        %2295 = vmatpush1.msra.mxu0 0.0
        %2296 = vmatprep.subr.mxu0 0.0
        %2297 = vmatpush1.msra.mxu0 0.0
        %2298 = vmatprep.subr.mxu0 0.0
        %2299 = vmatpush1.msra.mxu0 0.0
        %2300 = vmatprep.subr.mxu0 0.0
        %2301 = vmatpush1.msra.mxu0 0.0
        %2302 = vmatprep.subr.mxu0 0.0
        %2303 = vmatpush1.msra.mxu0 0.0
        %2304 = vmatprep.subr.mxu0 0.0
        %2305 = vmatpush1.msra.mxu0 0.0
        %2306 = vmatprep.subr.mxu0 0.0
        %2307 = vmatpush1.msra.mxu0 0.0
        %2308 = vmatprep.subr.mxu0 0.0
        %2309 = vmatpush1.msra.mxu0 0.0
        %2310 = vmatprep.subr.mxu0 0.0
        %2311 = vmatpush1.msra.mxu0 0.0
        %2312 = vmatprep.subr.mxu0 0.0
        %2313 = vmatpush1.msra.mxu0 0.0
        %2314 = vmatprep.subr.mxu0 0.0
        %2315 = vmatpush1.msra.mxu0 0.0
        %2316 = vmatprep.subr.mxu0 0.0
        %2317 = vmatpush1.msra.mxu0 0.0
        %2318 = vmatprep.subr.mxu0 0.0
        %2319 = vmatpush1.msra.mxu0 0.0
        %2320 = vmatprep.subr.mxu0 0.0
        %2321 = vmatpush1.msra.mxu0 0.0
        %2322 = vmatprep.subr.mxu0 0.0
        %2323 = vmatpush1.msra.mxu0 0.0
        %2324 = vmatprep.subr.mxu0 0.0
        %2325 = vmatpush1.msra.mxu0 0.0
        %2326 = vmatprep.subr.mxu0 0.0
        %2327 = vmatpush1.msra.mxu0 0.0
        %2328 = vmatprep.subr.mxu0 0.0
        %2329 = vmatpush1.msra.mxu0 0.0
        %2330 = vmatprep.subr.mxu0 0.0
        %2331 = vmatpush1.msra.mxu0 0.0
        %2332 = vmatprep.subr.mxu0 0.0
        %2333 = vmatpush1.msra.mxu0 0.0
        %2334 = vmatprep.mubr.f32.mxu0 0.0
        %2335 = vmatmul.mubr.f32.gmra.mrb[0].mxu0 %v2197
        %v2336 = vpop.f32.mrb[0].mxu0
        %v2337 = vadd.f32 0.0, %v2336
        %v2338 = vpop.f32.mrb[0].mxu0
        %v2339 = vadd.f32 0.0, %v2338
        %2340 = vdwg.mxu0
        %2341 = vmatprep.subr.mxu0 %v817
        %2342 = vmatpush1.msra.mxu0 %v815
        %2343 = vmatprep.subr.mxu0 0.0
        %2344 = vmatpush1.msra.mxu0 0.0
        %2345 = vmatprep.subr.mxu0 0.0
        %2346 = vmatpush1.msra.mxu0 0.0
        %2347 = vmatprep.subr.mxu0 0.0
        %2348 = vmatpush1.msra.mxu0 0.0
        %2349 = vmatprep.subr.mxu0 0.0
        %2350 = vmatpush1.msra.mxu0 0.0
        %2351 = vmatprep.subr.mxu0 0.0
        %2352 = vmatpush1.msra.mxu0 0.0
        %2353 = vmatprep.subr.mxu0 0.0
        %2354 = vmatpush1.msra.mxu0 0.0
        %2355 = vmatprep.subr.mxu0 0.0
        %2356 = vmatpush1.msra.mxu0 0.0
        %2357 = vmatprep.subr.mxu0 0.0
        %2358 = vmatpush1.msra.mxu0 0.0
        %2359 = vmatprep.subr.mxu0 0.0
        %2360 = vmatpush1.msra.mxu0 0.0
        %2361 = vmatprep.subr.mxu0 0.0
        %2362 = vmatpush1.msra.mxu0 0.0
        %2363 = vmatprep.subr.mxu0 0.0
        %2364 = vmatpush1.msra.mxu0 0.0
        %2365 = vmatprep.subr.mxu0 0.0
        %2366 = vmatpush1.msra.mxu0 0.0
        %2367 = vmatprep.subr.mxu0 0.0
        %2368 = vmatpush1.msra.mxu0 0.0
        %2369 = vmatprep.subr.mxu0 0.0
        %2370 = vmatpush1.msra.mxu0 0.0
        %2371 = vmatprep.subr.mxu0 0.0
        %2372 = vmatpush1.msra.mxu0 0.0
        %2373 = vmatprep.subr.mxu0 0.0
        %2374 = vmatpush1.msra.mxu0 0.0
        %2375 = vmatprep.subr.mxu0 0.0
        %2376 = vmatpush1.msra.mxu0 0.0
        %2377 = vmatprep.subr.mxu0 0.0
        %2378 = vmatpush1.msra.mxu0 0.0
        %2379 = vmatprep.subr.mxu0 0.0
        %2380 = vmatpush1.msra.mxu0 0.0
        %2381 = vmatprep.subr.mxu0 0.0
        %2382 = vmatpush1.msra.mxu0 0.0
        %2383 = vmatprep.subr.mxu0 0.0
        %2384 = vmatpush1.msra.mxu0 0.0
        %2385 = vmatprep.subr.mxu0 0.0
        %2386 = vmatpush1.msra.mxu0 0.0
        %2387 = vmatprep.subr.mxu0 0.0
        %2388 = vmatpush1.msra.mxu0 0.0
        %2389 = vmatprep.subr.mxu0 0.0
        %2390 = vmatpush1.msra.mxu0 0.0
        %2391 = vmatprep.subr.mxu0 0.0
        %2392 = vmatpush1.msra.mxu0 0.0
        %2393 = vmatprep.subr.mxu0 0.0
        %2394 = vmatpush1.msra.mxu0 0.0
        %2395 = vmatprep.subr.mxu0 0.0
        %2396 = vmatpush1.msra.mxu0 0.0
        %2397 = vmatprep.subr.mxu0 0.0
        %2398 = vmatpush1.msra.mxu0 0.0
        %2399 = vmatprep.subr.mxu0 0.0
        %2400 = vmatpush1.msra.mxu0 0.0
        %2401 = vmatprep.subr.mxu0 0.0
        %2402 = vmatpush1.msra.mxu0 0.0
        %2403 = vmatprep.subr.mxu0 0.0
        %2404 = vmatpush1.msra.mxu0 0.0
        %2405 = vmatprep.mubr.f32.mxu0 0.0
        %2406 = vmatmul.mubr.f32.gmra.mrb[0].mxu0 %v2197
        %v2407 = vpop.f32.mrb[0].mxu0
        %v2408 = vadd.f32 0.0, %v2407
        %v2409 = vpop.f32.mrb[0].mxu0
        %v2410 = vadd.f32 0.0, %v2409
        %2411 = vdwg.mxu0
        %2412 = vmatprep.subr.mxu0 %v888
        %2413 = vmatpush1.msra.mxu0 %v886
        %2414 = vmatprep.subr.mxu0 0.0
        %2415 = vmatpush1.msra.mxu0 0.0
        %2416 = vmatprep.subr.mxu0 0.0
        %2417 = vmatpush1.msra.mxu0 0.0
        %2418 = vmatprep.subr.mxu0 0.0
        %2419 = vmatpush1.msra.mxu0 0.0
        %2420 = vmatprep.subr.mxu0 0.0
        %2421 = vmatpush1.msra.mxu0 0.0
        %2422 = vmatprep.subr.mxu0 0.0
        %2423 = vmatpush1.msra.mxu0 0.0
        %2424 = vmatprep.subr.mxu0 0.0
        %2425 = vmatpush1.msra.mxu0 0.0
        %2426 = vmatprep.subr.mxu0 0.0
        %2427 = vmatpush1.msra.mxu0 0.0
        %2428 = vmatprep.subr.mxu0 0.0
        %2429 = vmatpush1.msra.mxu0 0.0
        %2430 = vmatprep.subr.mxu0 0.0
        %2431 = vmatpush1.msra.mxu0 0.0
        %2432 = vmatprep.subr.mxu0 0.0
        %2433 = vmatpush1.msra.mxu0 0.0
        %2434 = vmatprep.subr.mxu0 0.0
        %2435 = vmatpush1.msra.mxu0 0.0
        %2436 = vmatprep.subr.mxu0 0.0
        %2437 = vmatpush1.msra.mxu0 0.0
        %2438 = vmatprep.subr.mxu0 0.0
        %2439 = vmatpush1.msra.mxu0 0.0
        %2440 = vmatprep.subr.mxu0 0.0
        %2441 = vmatpush1.msra.mxu0 0.0
        %2442 = vmatprep.subr.mxu0 0.0
        %2443 = vmatpush1.msra.mxu0 0.0
        %2444 = vmatprep.subr.mxu0 0.0
        %2445 = vmatpush1.msra.mxu0 0.0
        %2446 = vmatprep.subr.mxu0 0.0
        %2447 = vmatpush1.msra.mxu0 0.0
        %2448 = vmatprep.subr.mxu0 0.0
        %2449 = vmatpush1.msra.mxu0 0.0
        %2450 = vmatprep.subr.mxu0 0.0
        %2451 = vmatpush1.msra.mxu0 0.0
        %2452 = vmatprep.subr.mxu0 0.0
        %2453 = vmatpush1.msra.mxu0 0.0
        %2454 = vmatprep.subr.mxu0 0.0
        %2455 = vmatpush1.msra.mxu0 0.0
        %2456 = vmatprep.subr.mxu0 0.0
        %2457 = vmatpush1.msra.mxu0 0.0
        %2458 = vmatprep.subr.mxu0 0.0
        %2459 = vmatpush1.msra.mxu0 0.0
        %2460 = vmatprep.subr.mxu0 0.0
        %2461 = vmatpush1.msra.mxu0 0.0
        %2462 = vmatprep.subr.mxu0 0.0
        %2463 = vmatpush1.msra.mxu0 0.0
        %2464 = vmatprep.subr.mxu0 0.0
        %2465 = vmatpush1.msra.mxu0 0.0
        %2466 = vmatprep.subr.mxu0 0.0
        %2467 = vmatpush1.msra.mxu0 0.0
        %2468 = vmatprep.subr.mxu0 0.0
        %2469 = vmatpush1.msra.mxu0 0.0
        %2470 = vmatprep.subr.mxu0 0.0
        %2471 = vmatpush1.msra.mxu0 0.0
        %2472 = vmatprep.subr.mxu0 0.0
        %2473 = vmatpush1.msra.mxu0 0.0
        %2474 = vmatprep.subr.mxu0 0.0
        %2475 = vmatpush1.msra.mxu0 0.0
        %2476 = vmatprep.mubr.f32.mxu0 0.0
        %2477 = vmatmul.mubr.f32.gmra.mrb[0].mxu0 %v2197
        %v2478 = vpop.f32.mrb[0].mxu0
        %v2479 = vadd.f32 0.0, %v2478
        %v2480 = vpop.f32.mrb[0].mxu0
        %v2481 = vadd.f32 0.0, %v2480
        %2482 = vdwg.mxu0
        %v2483 = vadd.f32 %v2186, %v2266
        %v2484 = vadd.f32 %v2187, %v2268
        %v2485 = vadd.f32 %v2188, %v2337
        %v2486 = vadd.f32 %v2189, %v2339
        %v2487 = vadd.f32 %v2190, %v2408
        %v2488 = vadd.f32 %v2191, %v2410
        %v2489 = vadd.f32 %v2192, %v2479
        %v2490 = vadd.f32 %v2193, %v2481
        %2491 = vrot.lane.b32.xlu0 %v673, 127
        %v2492 = vpop.permute.xlu0 %2491
        %2493 = vrot.lane.b32.xlu0 %v675, 127
        %v2494 = vpop.permute.xlu0 %2493
        %2495 = vrot.lane.b32.xlu0 %v744, 127
        %v2496 = vpop.permute.xlu0 %2495
        %2497 = vrot.lane.b32.xlu0 %v746, 127
        %v2498 = vpop.permute.xlu0 %2497
        %2499 = vrot.lane.b32.xlu0 %v815, 127
        %v2500 = vpop.permute.xlu0 %2499
        %2501 = vrot.lane.b32.xlu0 %v817, 127
        %v2502 = vpop.permute.xlu0 %2501
        %2503 = vrot.lane.b32.xlu0 %v886, 127
        %v2504 = vpop.permute.xlu0 %2503
        %2505 = vrot.lane.b32.xlu0 %v888, 127
        %v2506 = vpop.permute.xlu0 %2505
        %vm2507 = vcmp.lt.s32.totalorder %v268, 127
        %v2508 = vsel %vm2507, %v2504, %v2506
        %v2509 = vsel %vm2507, %v2502, %v2504
        %v2510 = vsel %vm2507, %v2500, %v2502
        %v2511 = vsel %vm2507, %v2498, %v2500
        %v2512 = vsel %vm2507, %v2496, %v2498
        %v2513 = vsel %vm2507, %v2494, %v2496
        %v2514 = vsel %vm2507, %v2492, %v2494
        %v2515 = vsel %vm2507, %v2506, %v2492
        %v2516 = vsel %vm308, %v2514, 0.0
        %v2517 = vsel %vm309, %v2513, 0.0
        %v2518 = vsel %vm310, %v2512, 0.0
        %v2519 = vsel %vm311, %v2511, 0.0
        %v2520 = vsel %vm312, %v2510, 0.0
        %v2521 = vsel %vm313, %v2509, 0.0
        %v2522 = vsel %vm314, %v2508, 0.0
        %v2523 = vsel %vm315, %v2515, 0.0
        %s2524 = scalar_lea.vmem %s2, 40
        %v2525 = vld [vmem:[%s2524] sm:$0xff]
        %v2527 = vsel %vm959, %v2525, 0
        %2529 = vmatprep.subr.mxu0 %v2517
        %2530 = vmatpush1.msra.mxu0 %v2516
        %2531 = vmatprep.subr.mxu0 0.0
        %2532 = vmatpush1.msra.mxu0 0.0
        %2533 = vmatprep.subr.mxu0 0.0
        %2534 = vmatpush1.msra.mxu0 0.0
        %2535 = vmatprep.subr.mxu0 0.0
        %2536 = vmatpush1.msra.mxu0 0.0
        %2537 = vmatprep.subr.mxu0 0.0
        %2538 = vmatpush1.msra.mxu0 0.0
        %2539 = vmatprep.subr.mxu0 0.0
        %2540 = vmatpush1.msra.mxu0 0.0
        %2541 = vmatprep.subr.mxu0 0.0
        %2542 = vmatpush1.msra.mxu0 0.0
        %2543 = vmatprep.subr.mxu0 0.0
        %2544 = vmatpush1.msra.mxu0 0.0
        %2545 = vmatprep.subr.mxu0 0.0
        %2546 = vmatpush1.msra.mxu0 0.0
        %2547 = vmatprep.subr.mxu0 0.0
        %2548 = vmatpush1.msra.mxu0 0.0
        %2549 = vmatprep.subr.mxu0 0.0
        %2550 = vmatpush1.msra.mxu0 0.0
        %2551 = vmatprep.subr.mxu0 0.0
        %2552 = vmatpush1.msra.mxu0 0.0
        %2553 = vmatprep.subr.mxu0 0.0
        %2554 = vmatpush1.msra.mxu0 0.0
        %2555 = vmatprep.subr.mxu0 0.0
        %2556 = vmatpush1.msra.mxu0 0.0
        %2557 = vmatprep.subr.mxu0 0.0
        %2558 = vmatpush1.msra.mxu0 0.0
        %2559 = vmatprep.subr.mxu0 0.0
        %2560 = vmatpush1.msra.mxu0 0.0
        %2561 = vmatprep.subr.mxu0 0.0
        %2562 = vmatpush1.msra.mxu0 0.0
        %2563 = vmatprep.subr.mxu0 0.0
        %2564 = vmatpush1.msra.mxu0 0.0
        %2565 = vmatprep.subr.mxu0 0.0
        %2566 = vmatpush1.msra.mxu0 0.0
        %2567 = vmatprep.subr.mxu0 0.0
        %2568 = vmatpush1.msra.mxu0 0.0
        %2569 = vmatprep.subr.mxu0 0.0
        %2570 = vmatpush1.msra.mxu0 0.0
        %2571 = vmatprep.subr.mxu0 0.0
        %2572 = vmatpush1.msra.mxu0 0.0
        %2573 = vmatprep.subr.mxu0 0.0
        %2574 = vmatpush1.msra.mxu0 0.0
        %2575 = vmatprep.subr.mxu0 0.0
        %2576 = vmatpush1.msra.mxu0 0.0
        %2577 = vmatprep.subr.mxu0 0.0
        %2578 = vmatpush1.msra.mxu0 0.0
        %2579 = vmatprep.subr.mxu0 0.0
        %2580 = vmatpush1.msra.mxu0 0.0
        %2581 = vmatprep.subr.mxu0 0.0
        %2582 = vmatpush1.msra.mxu0 0.0
        %2583 = vmatprep.subr.mxu0 0.0
        %2584 = vmatpush1.msra.mxu0 0.0
        %2585 = vmatprep.subr.mxu0 0.0
        %2586 = vmatpush1.msra.mxu0 0.0
        %2587 = vmatprep.subr.mxu0 0.0
        %2588 = vmatpush1.msra.mxu0 0.0
        %2589 = vmatprep.subr.mxu0 0.0
        %2590 = vmatpush1.msra.mxu0 0.0
        %2591 = vmatprep.subr.mxu0 0.0
        %2592 = vmatpush1.msra.mxu0 0.0
        %2593 = vmatprep.mubr.f32.mxu0 0.0
        %2594 = vmatmul.mubr.f32.gmra.mrb[0].mxu0 %v2527
        %v2595 = vpop.f32.mrb[0].mxu0
        %v2596 = vadd.f32 0.0, %v2595
        %v2597 = vpop.f32.mrb[0].mxu0
        %v2598 = vadd.f32 0.0, %v2597
        %2599 = vdwg.mxu0
        %2600 = vmatprep.subr.mxu0 %v2519
        %2601 = vmatpush1.msra.mxu0 %v2518
        %2602 = vmatprep.subr.mxu0 0.0
        %2603 = vmatpush1.msra.mxu0 0.0
        %2604 = vmatprep.subr.mxu0 0.0
        %2605 = vmatpush1.msra.mxu0 0.0
        %2606 = vmatprep.subr.mxu0 0.0
        %2607 = vmatpush1.msra.mxu0 0.0
        %2608 = vmatprep.subr.mxu0 0.0
        %2609 = vmatpush1.msra.mxu0 0.0
        %2610 = vmatprep.subr.mxu0 0.0
        %2611 = vmatpush1.msra.mxu0 0.0
        %2612 = vmatprep.subr.mxu0 0.0
        %2613 = vmatpush1.msra.mxu0 0.0
        %2614 = vmatprep.subr.mxu0 0.0
        %2615 = vmatpush1.msra.mxu0 0.0
        %2616 = vmatprep.subr.mxu0 0.0
        %2617 = vmatpush1.msra.mxu0 0.0
        %2618 = vmatprep.subr.mxu0 0.0
        %2619 = vmatpush1.msra.mxu0 0.0
        %2620 = vmatprep.subr.mxu0 0.0
        %2621 = vmatpush1.msra.mxu0 0.0
        %2622 = vmatprep.subr.mxu0 0.0
        %2623 = vmatpush1.msra.mxu0 0.0
        %2624 = vmatprep.subr.mxu0 0.0
        %2625 = vmatpush1.msra.mxu0 0.0
        %2626 = vmatprep.subr.mxu0 0.0
        %2627 = vmatpush1.msra.mxu0 0.0
        %2628 = vmatprep.subr.mxu0 0.0
        %2629 = vmatpush1.msra.mxu0 0.0
        %2630 = vmatprep.subr.mxu0 0.0
        %2631 = vmatpush1.msra.mxu0 0.0
        %2632 = vmatprep.subr.mxu0 0.0
        %2633 = vmatpush1.msra.mxu0 0.0
        %2634 = vmatprep.subr.mxu0 0.0
        %2635 = vmatpush1.msra.mxu0 0.0
        %2636 = vmatprep.subr.mxu0 0.0
        %2637 = vmatpush1.msra.mxu0 0.0
        %2638 = vmatprep.subr.mxu0 0.0
        %2639 = vmatpush1.msra.mxu0 0.0
        %2640 = vmatprep.subr.mxu0 0.0
        %2641 = vmatpush1.msra.mxu0 0.0
        %2642 = vmatprep.subr.mxu0 0.0
        %2643 = vmatpush1.msra.mxu0 0.0
        %2644 = vmatprep.subr.mxu0 0.0
        %2645 = vmatpush1.msra.mxu0 0.0
        %2646 = vmatprep.subr.mxu0 0.0
        %2647 = vmatpush1.msra.mxu0 0.0
        %2648 = vmatprep.subr.mxu0 0.0
        %2649 = vmatpush1.msra.mxu0 0.0
        %2650 = vmatprep.subr.mxu0 0.0
        %2651 = vmatpush1.msra.mxu0 0.0
        %2652 = vmatprep.subr.mxu0 0.0
        %2653 = vmatpush1.msra.mxu0 0.0
        %2654 = vmatprep.subr.mxu0 0.0
        %2655 = vmatpush1.msra.mxu0 0.0
        %2656 = vmatprep.subr.mxu0 0.0
        %2657 = vmatpush1.msra.mxu0 0.0
        %2658 = vmatprep.subr.mxu0 0.0
        %2659 = vmatpush1.msra.mxu0 0.0
        %2660 = vmatprep.subr.mxu0 0.0
        %2661 = vmatpush1.msra.mxu0 0.0
        %2662 = vmatprep.subr.mxu0 0.0
        %2663 = vmatpush1.msra.mxu0 0.0
        %2664 = vmatprep.mubr.f32.mxu0 0.0
        %2665 = vmatmul.mubr.f32.gmra.mrb[0].mxu0 %v2527
        %v2666 = vpop.f32.mrb[0].mxu0
        %v2667 = vadd.f32 0.0, %v2666
        %v2668 = vpop.f32.mrb[0].mxu0
        %v2669 = vadd.f32 0.0, %v2668
        %2670 = vdwg.mxu0
        %2671 = vmatprep.subr.mxu0 %v2521
        %2672 = vmatpush1.msra.mxu0 %v2520
        %2673 = vmatprep.subr.mxu0 0.0
        %2674 = vmatpush1.msra.mxu0 0.0
        %2675 = vmatprep.subr.mxu0 0.0
        %2676 = vmatpush1.msra.mxu0 0.0
        %2677 = vmatprep.subr.mxu0 0.0
        %2678 = vmatpush1.msra.mxu0 0.0
        %2679 = vmatprep.subr.mxu0 0.0
        %2680 = vmatpush1.msra.mxu0 0.0
        %2681 = vmatprep.subr.mxu0 0.0
        %2682 = vmatpush1.msra.mxu0 0.0
        %2683 = vmatprep.subr.mxu0 0.0
        %2684 = vmatpush1.msra.mxu0 0.0
        %2685 = vmatprep.subr.mxu0 0.0
        %2686 = vmatpush1.msra.mxu0 0.0
        %2687 = vmatprep.subr.mxu0 0.0
        %2688 = vmatpush1.msra.mxu0 0.0
        %2689 = vmatprep.subr.mxu0 0.0
        %2690 = vmatpush1.msra.mxu0 0.0
        %2691 = vmatprep.subr.mxu0 0.0
        %2692 = vmatpush1.msra.mxu0 0.0
        %2693 = vmatprep.subr.mxu0 0.0
        %2694 = vmatpush1.msra.mxu0 0.0
        %2695 = vmatprep.subr.mxu0 0.0
        %2696 = vmatpush1.msra.mxu0 0.0
        %2697 = vmatprep.subr.mxu0 0.0
        %2698 = vmatpush1.msra.mxu0 0.0
        %2699 = vmatprep.subr.mxu0 0.0
        %2700 = vmatpush1.msra.mxu0 0.0
        %2701 = vmatprep.subr.mxu0 0.0
        %2702 = vmatpush1.msra.mxu0 0.0
        %2703 = vmatprep.subr.mxu0 0.0
        %2704 = vmatpush1.msra.mxu0 0.0
        %2705 = vmatprep.subr.mxu0 0.0
        %2706 = vmatpush1.msra.mxu0 0.0
        %2707 = vmatprep.subr.mxu0 0.0
        %2708 = vmatpush1.msra.mxu0 0.0
        %2709 = vmatprep.subr.mxu0 0.0
        %2710 = vmatpush1.msra.mxu0 0.0
        %2711 = vmatprep.subr.mxu0 0.0
        %2712 = vmatpush1.msra.mxu0 0.0
        %2713 = vmatprep.subr.mxu0 0.0
        %2714 = vmatpush1.msra.mxu0 0.0
        %2715 = vmatprep.subr.mxu0 0.0
        %2716 = vmatpush1.msra.mxu0 0.0
        %2717 = vmatprep.subr.mxu0 0.0
        %2718 = vmatpush1.msra.mxu0 0.0
        %2719 = vmatprep.subr.mxu0 0.0
        %2720 = vmatpush1.msra.mxu0 0.0
        %2721 = vmatprep.subr.mxu0 0.0
        %2722 = vmatpush1.msra.mxu0 0.0
        %2723 = vmatprep.subr.mxu0 0.0
        %2724 = vmatpush1.msra.mxu0 0.0
        %2725 = vmatprep.subr.mxu0 0.0
        %2726 = vmatpush1.msra.mxu0 0.0
        %2727 = vmatprep.subr.mxu0 0.0
        %2728 = vmatpush1.msra.mxu0 0.0
        %2729 = vmatprep.subr.mxu0 0.0
        %2730 = vmatpush1.msra.mxu0 0.0
        %2731 = vmatprep.subr.mxu0 0.0
        %2732 = vmatpush1.msra.mxu0 0.0
        %2733 = vmatprep.subr.mxu0 0.0
        %2734 = vmatpush1.msra.mxu0 0.0
        %2735 = vmatprep.mubr.f32.mxu0 0.0
        %2736 = vmatmul.mubr.f32.gmra.mrb[0].mxu0 %v2527
        %v2737 = vpop.f32.mrb[0].mxu0
        %v2738 = vadd.f32 0.0, %v2737
        %v2739 = vpop.f32.mrb[0].mxu0
        %v2740 = vadd.f32 0.0, %v2739
        %2741 = vdwg.mxu0
        %2742 = vmatprep.subr.mxu0 %v2523
        %2743 = vmatpush1.msra.mxu0 %v2522
        %2744 = vmatprep.subr.mxu0 0.0
        %2745 = vmatpush1.msra.mxu0 0.0
        %2746 = vmatprep.subr.mxu0 0.0
        %2747 = vmatpush1.msra.mxu0 0.0
        %2748 = vmatprep.subr.mxu0 0.0
        %2749 = vmatpush1.msra.mxu0 0.0
        %2750 = vmatprep.subr.mxu0 0.0
        %2751 = vmatpush1.msra.mxu0 0.0
        %2752 = vmatprep.subr.mxu0 0.0
        %2753 = vmatpush1.msra.mxu0 0.0
        %2754 = vmatprep.subr.mxu0 0.0
        %2755 = vmatpush1.msra.mxu0 0.0
        %2756 = vmatprep.subr.mxu0 0.0
        %2757 = vmatpush1.msra.mxu0 0.0
        %2758 = vmatprep.subr.mxu0 0.0
        %2759 = vmatpush1.msra.mxu0 0.0
        %2760 = vmatprep.subr.mxu0 0.0
        %2761 = vmatpush1.msra.mxu0 0.0
        %2762 = vmatprep.subr.mxu0 0.0
        %2763 = vmatpush1.msra.mxu0 0.0
        %2764 = vmatprep.subr.mxu0 0.0
        %2765 = vmatpush1.msra.mxu0 0.0
        %2766 = vmatprep.subr.mxu0 0.0
        %2767 = vmatpush1.msra.mxu0 0.0
        %2768 = vmatprep.subr.mxu0 0.0
        %2769 = vmatpush1.msra.mxu0 0.0
        %2770 = vmatprep.subr.mxu0 0.0
        %2771 = vmatpush1.msra.mxu0 0.0
        %2772 = vmatprep.subr.mxu0 0.0
        %2773 = vmatpush1.msra.mxu0 0.0
        %2774 = vmatprep.subr.mxu0 0.0
        %2775 = vmatpush1.msra.mxu0 0.0
        %2776 = vmatprep.subr.mxu0 0.0
        %2777 = vmatpush1.msra.mxu0 0.0
        %2778 = vmatprep.subr.mxu0 0.0
        %2779 = vmatpush1.msra.mxu0 0.0
        %2780 = vmatprep.subr.mxu0 0.0
        %2781 = vmatpush1.msra.mxu0 0.0
        %2782 = vmatprep.subr.mxu0 0.0
        %2783 = vmatpush1.msra.mxu0 0.0
        %2784 = vmatprep.subr.mxu0 0.0
        %2785 = vmatpush1.msra.mxu0 0.0
        %2786 = vmatprep.subr.mxu0 0.0
        %2787 = vmatpush1.msra.mxu0 0.0
        %2788 = vmatprep.subr.mxu0 0.0
        %2789 = vmatpush1.msra.mxu0 0.0
        %2790 = vmatprep.subr.mxu0 0.0
        %2791 = vmatpush1.msra.mxu0 0.0
        %2792 = vmatprep.subr.mxu0 0.0
        %2793 = vmatpush1.msra.mxu0 0.0
        %2794 = vmatprep.subr.mxu0 0.0
        %2795 = vmatpush1.msra.mxu0 0.0
        %2796 = vmatprep.subr.mxu0 0.0
        %2797 = vmatpush1.msra.mxu0 0.0
        %2798 = vmatprep.subr.mxu0 0.0
        %2799 = vmatpush1.msra.mxu0 0.0
        %2800 = vmatprep.subr.mxu0 0.0
        %2801 = vmatpush1.msra.mxu0 0.0
        %2802 = vmatprep.subr.mxu0 0.0
        %2803 = vmatpush1.msra.mxu0 0.0
        %2804 = vmatprep.subr.mxu0 0.0
        %2805 = vmatpush1.msra.mxu0 0.0
        %2806 = vmatprep.mubr.f32.mxu0 0.0
        %2807 = vmatmul.mubr.f32.gmra.mrb[0].mxu0 %v2527
        %v2808 = vpop.f32.mrb[0].mxu0
        %v2809 = vadd.f32 0.0, %v2808
        %v2810 = vpop.f32.mrb[0].mxu0
        %v2811 = vadd.f32 0.0, %v2810
        %2812 = vdwg.mxu0
        %v2813 = vadd.f32 %v2483, %v2596
        %v2814 = vadd.f32 %v2484, %v2598
        %v2815 = vadd.f32 %v2485, %v2667
        %v2816 = vadd.f32 %v2486, %v2669
        %v2817 = vadd.f32 %v2487, %v2738
        %v2818 = vadd.f32 %v2488, %v2740
        %v2819 = vadd.f32 %v2489, %v2809
        %v2820 = vadd.f32 %v2490, %v2811
        %2821 = vrot.lane.b32.xlu0 %v673, 97
        %v2822 = vpop.permute.xlu0 %2821
        %2823 = vrot.lane.b32.xlu0 %v675, 97
        %v2824 = vpop.permute.xlu0 %2823
        %2825 = vrot.lane.b32.xlu0 %v744, 97
        %v2826 = vpop.permute.xlu0 %2825
        %2827 = vrot.lane.b32.xlu0 %v746, 97
        %v2828 = vpop.permute.xlu0 %2827
        %2829 = vrot.lane.b32.xlu0 %v815, 97
        %v2830 = vpop.permute.xlu0 %2829
        %2831 = vrot.lane.b32.xlu0 %v817, 97
        %v2832 = vpop.permute.xlu0 %2831
        %2833 = vrot.lane.b32.xlu0 %v886, 97
        %v2834 = vpop.permute.xlu0 %2833
        %2835 = vrot.lane.b32.xlu0 %v888, 97
        %v2836 = vpop.permute.xlu0 %2835
        %vm2837 = vcmp.lt.s32.totalorder %v268, 97
        %v2838 = vsel %vm2837, %v2834, %v2836
        %v2839 = vsel %vm2837, %v2832, %v2834
        %v2840 = vsel %vm2837, %v2830, %v2832
        %v2841 = vsel %vm2837, %v2828, %v2830
        %v2842 = vsel %vm2837, %v2826, %v2828
        %v2843 = vsel %vm2837, %v2824, %v2826
        %v2844 = vsel %vm2837, %v2822, %v2824
        %v2845 = vsel %vm2837, %v2836, %v2822
        %v2846 = vsel %vm332, %v2844, 0.0
        %v2847 = vsel %vm333, %v2843, 0.0
        %v2848 = vsel %vm334, %v2842, 0.0
        %v2849 = vsel %vm335, %v2841, 0.0
        %v2850 = vsel %vm336, %v2840, 0.0
        %v2851 = vsel %vm337, %v2839, 0.0
        %v2852 = vsel %vm338, %v2838, 0.0
        %v2853 = vsel %vm339, %v2845, 0.0
        %s2854 = scalar_lea.vmem %s2, 48
        %v2855 = vld [vmem:[%s2854] sm:$0xff]
        %v2857 = vsel %vm959, %v2855, 0
        %2859 = vmatprep.subr.mxu0 %v2847
        %2860 = vmatpush1.msra.mxu0 %v2846
        %2861 = vmatprep.subr.mxu0 0.0
        %2862 = vmatpush1.msra.mxu0 0.0
        %2863 = vmatprep.subr.mxu0 0.0
        %2864 = vmatpush1.msra.mxu0 0.0
        %2865 = vmatprep.subr.mxu0 0.0
        %2866 = vmatpush1.msra.mxu0 0.0
        %2867 = vmatprep.subr.mxu0 0.0
        %2868 = vmatpush1.msra.mxu0 0.0
        %2869 = vmatprep.subr.mxu0 0.0
        %2870 = vmatpush1.msra.mxu0 0.0
        %2871 = vmatprep.subr.mxu0 0.0
        %2872 = vmatpush1.msra.mxu0 0.0
        %2873 = vmatprep.subr.mxu0 0.0
        %2874 = vmatpush1.msra.mxu0 0.0
        %2875 = vmatprep.subr.mxu0 0.0
        %2876 = vmatpush1.msra.mxu0 0.0
        %2877 = vmatprep.subr.mxu0 0.0
        %2878 = vmatpush1.msra.mxu0 0.0
        %2879 = vmatprep.subr.mxu0 0.0
        %2880 = vmatpush1.msra.mxu0 0.0
        %2881 = vmatprep.subr.mxu0 0.0
        %2882 = vmatpush1.msra.mxu0 0.0
        %2883 = vmatprep.subr.mxu0 0.0
        %2884 = vmatpush1.msra.mxu0 0.0
        %2885 = vmatprep.subr.mxu0 0.0
        %2886 = vmatpush1.msra.mxu0 0.0
        %2887 = vmatprep.subr.mxu0 0.0
        %2888 = vmatpush1.msra.mxu0 0.0
        %2889 = vmatprep.subr.mxu0 0.0
        %2890 = vmatpush1.msra.mxu0 0.0
        %2891 = vmatprep.subr.mxu0 0.0
        %2892 = vmatpush1.msra.mxu0 0.0
        %2893 = vmatprep.subr.mxu0 0.0
        %2894 = vmatpush1.msra.mxu0 0.0
        %2895 = vmatprep.subr.mxu0 0.0
        %2896 = vmatpush1.msra.mxu0 0.0
        %2897 = vmatprep.subr.mxu0 0.0
        %2898 = vmatpush1.msra.mxu0 0.0
        %2899 = vmatprep.subr.mxu0 0.0
        %2900 = vmatpush1.msra.mxu0 0.0
        %2901 = vmatprep.subr.mxu0 0.0
        %2902 = vmatpush1.msra.mxu0 0.0
        %2903 = vmatprep.subr.mxu0 0.0
        %2904 = vmatpush1.msra.mxu0 0.0
        %2905 = vmatprep.subr.mxu0 0.0
        %2906 = vmatpush1.msra.mxu0 0.0
        %2907 = vmatprep.subr.mxu0 0.0
        %2908 = vmatpush1.msra.mxu0 0.0
        %2909 = vmatprep.subr.mxu0 0.0
        %2910 = vmatpush1.msra.mxu0 0.0
        %2911 = vmatprep.subr.mxu0 0.0
        %2912 = vmatpush1.msra.mxu0 0.0
        %2913 = vmatprep.subr.mxu0 0.0
        %2914 = vmatpush1.msra.mxu0 0.0
        %2915 = vmatprep.subr.mxu0 0.0
        %2916 = vmatpush1.msra.mxu0 0.0
        %2917 = vmatprep.subr.mxu0 0.0
        %2918 = vmatpush1.msra.mxu0 0.0
        %2919 = vmatprep.subr.mxu0 0.0
        %2920 = vmatpush1.msra.mxu0 0.0
        %2921 = vmatprep.subr.mxu0 0.0
        %2922 = vmatpush1.msra.mxu0 0.0
        %2923 = vmatprep.mubr.f32.mxu0 0.0
        %2924 = vmatmul.mubr.f32.gmra.mrb[0].mxu0 %v2857
        %v2925 = vpop.f32.mrb[0].mxu0
        %v2926 = vadd.f32 0.0, %v2925
        %v2927 = vpop.f32.mrb[0].mxu0
        %v2928 = vadd.f32 0.0, %v2927
        %2929 = vdwg.mxu0
        %2930 = vmatprep.subr.mxu0 %v2849
        %2931 = vmatpush1.msra.mxu0 %v2848
        %2932 = vmatprep.subr.mxu0 0.0
        %2933 = vmatpush1.msra.mxu0 0.0
        %2934 = vmatprep.subr.mxu0 0.0
        %2935 = vmatpush1.msra.mxu0 0.0
        %2936 = vmatprep.subr.mxu0 0.0
        %2937 = vmatpush1.msra.mxu0 0.0
        %2938 = vmatprep.subr.mxu0 0.0
        %2939 = vmatpush1.msra.mxu0 0.0
        %2940 = vmatprep.subr.mxu0 0.0
        %2941 = vmatpush1.msra.mxu0 0.0
        %2942 = vmatprep.subr.mxu0 0.0
        %2943 = vmatpush1.msra.mxu0 0.0
        %2944 = vmatprep.subr.mxu0 0.0
        %2945 = vmatpush1.msra.mxu0 0.0
        %2946 = vmatprep.subr.mxu0 0.0
        %2947 = vmatpush1.msra.mxu0 0.0
        %2948 = vmatprep.subr.mxu0 0.0
        %2949 = vmatpush1.msra.mxu0 0.0
        %2950 = vmatprep.subr.mxu0 0.0
        %2951 = vmatpush1.msra.mxu0 0.0
        %2952 = vmatprep.subr.mxu0 0.0
        %2953 = vmatpush1.msra.mxu0 0.0
        %2954 = vmatprep.subr.mxu0 0.0
        %2955 = vmatpush1.msra.mxu0 0.0
        %2956 = vmatprep.subr.mxu0 0.0
        %2957 = vmatpush1.msra.mxu0 0.0
        %2958 = vmatprep.subr.mxu0 0.0
        %2959 = vmatpush1.msra.mxu0 0.0
        %2960 = vmatprep.subr.mxu0 0.0
        %2961 = vmatpush1.msra.mxu0 0.0
        %2962 = vmatprep.subr.mxu0 0.0
        %2963 = vmatpush1.msra.mxu0 0.0
        %2964 = vmatprep.subr.mxu0 0.0
        %2965 = vmatpush1.msra.mxu0 0.0
        %2966 = vmatprep.subr.mxu0 0.0
        %2967 = vmatpush1.msra.mxu0 0.0
        %2968 = vmatprep.subr.mxu0 0.0
        %2969 = vmatpush1.msra.mxu0 0.0
        %2970 = vmatprep.subr.mxu0 0.0
        %2971 = vmatpush1.msra.mxu0 0.0
        %2972 = vmatprep.subr.mxu0 0.0
        %2973 = vmatpush1.msra.mxu0 0.0
        %2974 = vmatprep.subr.mxu0 0.0
        %2975 = vmatpush1.msra.mxu0 0.0
        %2976 = vmatprep.subr.mxu0 0.0
        %2977 = vmatpush1.msra.mxu0 0.0
        %2978 = vmatprep.subr.mxu0 0.0
        %2979 = vmatpush1.msra.mxu0 0.0
        %2980 = vmatprep.subr.mxu0 0.0
        %2981 = vmatpush1.msra.mxu0 0.0
        %2982 = vmatprep.subr.mxu0 0.0
        %2983 = vmatpush1.msra.mxu0 0.0
        %2984 = vmatprep.subr.mxu0 0.0
        %2985 = vmatpush1.msra.mxu0 0.0
        %2986 = vmatprep.subr.mxu0 0.0
        %2987 = vmatpush1.msra.mxu0 0.0
        %2988 = vmatprep.subr.mxu0 0.0
        %2989 = vmatpush1.msra.mxu0 0.0
        %2990 = vmatprep.subr.mxu0 0.0
        %2991 = vmatpush1.msra.mxu0 0.0
        %2992 = vmatprep.subr.mxu0 0.0
        %2993 = vmatpush1.msra.mxu0 0.0
        %2994 = vmatprep.mubr.f32.mxu0 0.0
        %2995 = vmatmul.mubr.f32.gmra.mrb[0].mxu0 %v2857
        %v2996 = vpop.f32.mrb[0].mxu0
        %v2997 = vadd.f32 0.0, %v2996
        %v2998 = vpop.f32.mrb[0].mxu0
        %v2999 = vadd.f32 0.0, %v2998
        %3000 = vdwg.mxu0
        %3001 = vmatprep.subr.mxu0 %v2851
        %3002 = vmatpush1.msra.mxu0 %v2850
        %3003 = vmatprep.subr.mxu0 0.0
        %3004 = vmatpush1.msra.mxu0 0.0
        %3005 = vmatprep.subr.mxu0 0.0
        %3006 = vmatpush1.msra.mxu0 0.0
        %3007 = vmatprep.subr.mxu0 0.0
        %3008 = vmatpush1.msra.mxu0 0.0
        %3009 = vmatprep.subr.mxu0 0.0
        %3010 = vmatpush1.msra.mxu0 0.0
        %3011 = vmatprep.subr.mxu0 0.0
        %3012 = vmatpush1.msra.mxu0 0.0
        %3013 = vmatprep.subr.mxu0 0.0
        %3014 = vmatpush1.msra.mxu0 0.0
        %3015 = vmatprep.subr.mxu0 0.0
        %3016 = vmatpush1.msra.mxu0 0.0
        %3017 = vmatprep.subr.mxu0 0.0
        %3018 = vmatpush1.msra.mxu0 0.0
        %3019 = vmatprep.subr.mxu0 0.0
        %3020 = vmatpush1.msra.mxu0 0.0
        %3021 = vmatprep.subr.mxu0 0.0
        %3022 = vmatpush1.msra.mxu0 0.0
        %3023 = vmatprep.subr.mxu0 0.0
        %3024 = vmatpush1.msra.mxu0 0.0
        %3025 = vmatprep.subr.mxu0 0.0
        %3026 = vmatpush1.msra.mxu0 0.0
        %3027 = vmatprep.subr.mxu0 0.0
        %3028 = vmatpush1.msra.mxu0 0.0
        %3029 = vmatprep.subr.mxu0 0.0
        %3030 = vmatpush1.msra.mxu0 0.0
        %3031 = vmatprep.subr.mxu0 0.0
        %3032 = vmatpush1.msra.mxu0 0.0
        %3033 = vmatprep.subr.mxu0 0.0
        %3034 = vmatpush1.msra.mxu0 0.0
        %3035 = vmatprep.subr.mxu0 0.0
        %3036 = vmatpush1.msra.mxu0 0.0
        %3037 = vmatprep.subr.mxu0 0.0
        %3038 = vmatpush1.msra.mxu0 0.0
        %3039 = vmatprep.subr.mxu0 0.0
        %3040 = vmatpush1.msra.mxu0 0.0
        %3041 = vmatprep.subr.mxu0 0.0
        %3042 = vmatpush1.msra.mxu0 0.0
        %3043 = vmatprep.subr.mxu0 0.0
        %3044 = vmatpush1.msra.mxu0 0.0
        %3045 = vmatprep.subr.mxu0 0.0
        %3046 = vmatpush1.msra.mxu0 0.0
        %3047 = vmatprep.subr.mxu0 0.0
        %3048 = vmatpush1.msra.mxu0 0.0
        %3049 = vmatprep.subr.mxu0 0.0
        %3050 = vmatpush1.msra.mxu0 0.0
        %3051 = vmatprep.subr.mxu0 0.0
        %3052 = vmatpush1.msra.mxu0 0.0
        %3053 = vmatprep.subr.mxu0 0.0
        %3054 = vmatpush1.msra.mxu0 0.0
        %3055 = vmatprep.subr.mxu0 0.0
        %3056 = vmatpush1.msra.mxu0 0.0
        %3057 = vmatprep.subr.mxu0 0.0
        %3058 = vmatpush1.msra.mxu0 0.0
        %3059 = vmatprep.subr.mxu0 0.0
        %3060 = vmatpush1.msra.mxu0 0.0
        %3061 = vmatprep.subr.mxu0 0.0
        %3062 = vmatpush1.msra.mxu0 0.0
        %3063 = vmatprep.subr.mxu0 0.0
        %3064 = vmatpush1.msra.mxu0 0.0
        %3065 = vmatprep.mubr.f32.mxu0 0.0
        %3066 = vmatmul.mubr.f32.gmra.mrb[0].mxu0 %v2857
        %v3067 = vpop.f32.mrb[0].mxu0
        %v3068 = vadd.f32 0.0, %v3067
        %v3069 = vpop.f32.mrb[0].mxu0
        %v3070 = vadd.f32 0.0, %v3069
        %3071 = vdwg.mxu0
        %3072 = vmatprep.subr.mxu0 %v2853
        %3073 = vmatpush1.msra.mxu0 %v2852
        %3074 = vmatprep.subr.mxu0 0.0
        %3075 = vmatpush1.msra.mxu0 0.0
        %3076 = vmatprep.subr.mxu0 0.0
        %3077 = vmatpush1.msra.mxu0 0.0
        %3078 = vmatprep.subr.mxu0 0.0
        %3079 = vmatpush1.msra.mxu0 0.0
        %3080 = vmatprep.subr.mxu0 0.0
        %3081 = vmatpush1.msra.mxu0 0.0
        %3082 = vmatprep.subr.mxu0 0.0
        %3083 = vmatpush1.msra.mxu0 0.0
        %3084 = vmatprep.subr.mxu0 0.0
        %3085 = vmatpush1.msra.mxu0 0.0
        %3086 = vmatprep.subr.mxu0 0.0
        %3087 = vmatpush1.msra.mxu0 0.0
        %3088 = vmatprep.subr.mxu0 0.0
        %3089 = vmatpush1.msra.mxu0 0.0
        %3090 = vmatprep.subr.mxu0 0.0
        %3091 = vmatpush1.msra.mxu0 0.0
        %3092 = vmatprep.subr.mxu0 0.0
        %3093 = vmatpush1.msra.mxu0 0.0
        %3094 = vmatprep.subr.mxu0 0.0
        %3095 = vmatpush1.msra.mxu0 0.0
        %3096 = vmatprep.subr.mxu0 0.0
        %3097 = vmatpush1.msra.mxu0 0.0
        %3098 = vmatprep.subr.mxu0 0.0
        %3099 = vmatpush1.msra.mxu0 0.0
        %3100 = vmatprep.subr.mxu0 0.0
        %3101 = vmatpush1.msra.mxu0 0.0
        %3102 = vmatprep.subr.mxu0 0.0
        %3103 = vmatpush1.msra.mxu0 0.0
        %3104 = vmatprep.subr.mxu0 0.0
        %3105 = vmatpush1.msra.mxu0 0.0
        %3106 = vmatprep.subr.mxu0 0.0
        %3107 = vmatpush1.msra.mxu0 0.0
        %3108 = vmatprep.subr.mxu0 0.0
        %3109 = vmatpush1.msra.mxu0 0.0
        %3110 = vmatprep.subr.mxu0 0.0
        %3111 = vmatpush1.msra.mxu0 0.0
        %3112 = vmatprep.subr.mxu0 0.0
        %3113 = vmatpush1.msra.mxu0 0.0
        %3114 = vmatprep.subr.mxu0 0.0
        %3115 = vmatpush1.msra.mxu0 0.0
        %3116 = vmatprep.subr.mxu0 0.0
        %3117 = vmatpush1.msra.mxu0 0.0
        %3118 = vmatprep.subr.mxu0 0.0
        %3119 = vmatpush1.msra.mxu0 0.0
        %3120 = vmatprep.subr.mxu0 0.0
        %3121 = vmatpush1.msra.mxu0 0.0
        %3122 = vmatprep.subr.mxu0 0.0
        %3123 = vmatpush1.msra.mxu0 0.0
        %3124 = vmatprep.subr.mxu0 0.0
        %3125 = vmatpush1.msra.mxu0 0.0
        %3126 = vmatprep.subr.mxu0 0.0
        %3127 = vmatpush1.msra.mxu0 0.0
        %3128 = vmatprep.subr.mxu0 0.0
        %3129 = vmatpush1.msra.mxu0 0.0
        %3130 = vmatprep.subr.mxu0 0.0
        %3131 = vmatpush1.msra.mxu0 0.0
        %3132 = vmatprep.subr.mxu0 0.0
        %3133 = vmatpush1.msra.mxu0 0.0
        %3134 = vmatprep.subr.mxu0 0.0
        %3135 = vmatpush1.msra.mxu0 0.0
        %3136 = vmatprep.mubr.f32.mxu0 0.0
        %3137 = vmatmul.mubr.f32.gmra.mrb[0].mxu0 %v2857
        %v3138 = vpop.f32.mrb[0].mxu0
        %v3139 = vadd.f32 0.0, %v3138
        %v3140 = vpop.f32.mrb[0].mxu0
        %v3141 = vadd.f32 0.0, %v3140
        %3142 = vdwg.mxu0
        %v3143 = vadd.f32 %v2813, %v2926
        %v3144 = vadd.f32 %v2814, %v2928
        %v3145 = vadd.f32 %v2815, %v2997
        %v3146 = vadd.f32 %v2816, %v2999
        %v3147 = vadd.f32 %v2817, %v3068
        %v3148 = vadd.f32 %v2818, %v3070
        %v3149 = vadd.f32 %v2819, %v3139
        %v3150 = vadd.f32 %v2820, %v3141
        %3151 = vrot.lane.b32.xlu0 %v673, 96
        %v3152 = vpop.permute.xlu0 %3151
        %3153 = vrot.lane.b32.xlu0 %v675, 96
        %v3154 = vpop.permute.xlu0 %3153
        %3155 = vrot.lane.b32.xlu0 %v744, 96
        %v3156 = vpop.permute.xlu0 %3155
        %3157 = vrot.lane.b32.xlu0 %v746, 96
        %v3158 = vpop.permute.xlu0 %3157
        %3159 = vrot.lane.b32.xlu0 %v815, 96
        %v3160 = vpop.permute.xlu0 %3159
        %3161 = vrot.lane.b32.xlu0 %v817, 96
        %v3162 = vpop.permute.xlu0 %3161
        %3163 = vrot.lane.b32.xlu0 %v886, 96
        %v3164 = vpop.permute.xlu0 %3163
        %3165 = vrot.lane.b32.xlu0 %v888, 96
        %v3166 = vpop.permute.xlu0 %3165
        %vm3167 = vcmp.lt.s32.totalorder %v268, 96
        %v3168 = vsel %vm3167, %v3164, %v3166
        %v3169 = vsel %vm3167, %v3162, %v3164
        %v3170 = vsel %vm3167, %v3160, %v3162
        %v3171 = vsel %vm3167, %v3158, %v3160
        %v3172 = vsel %vm3167, %v3156, %v3158
        %v3173 = vsel %vm3167, %v3154, %v3156
        %v3174 = vsel %vm3167, %v3152, %v3154
        %v3175 = vsel %vm3167, %v3166, %v3152
        %v3176 = vsel %vm292, %v3174, 0.0
        %v3177 = vsel %vm293, %v3173, 0.0
        %v3178 = vsel %vm294, %v3172, 0.0
        %v3179 = vsel %vm295, %v3171, 0.0
        %v3180 = vsel %vm296, %v3170, 0.0
        %v3181 = vsel %vm297, %v3169, 0.0
        %v3182 = vsel %vm298, %v3168, 0.0
        %v3183 = vsel %vm299, %v3175, 0.0
        %s3184 = scalar_lea.vmem %s2, 56
        %v3185 = vld [vmem:[%s3184] sm:$0xff]
        %v3187 = vsel %vm959, %v3185, 0
        %3189 = vmatprep.subr.mxu0 %v3177
        %3190 = vmatpush1.msra.mxu0 %v3176
        %3191 = vmatprep.subr.mxu0 0.0
        %3192 = vmatpush1.msra.mxu0 0.0
        %3193 = vmatprep.subr.mxu0 0.0
        %3194 = vmatpush1.msra.mxu0 0.0
        %3195 = vmatprep.subr.mxu0 0.0
        %3196 = vmatpush1.msra.mxu0 0.0
        %3197 = vmatprep.subr.mxu0 0.0
        %3198 = vmatpush1.msra.mxu0 0.0
        %3199 = vmatprep.subr.mxu0 0.0
        %3200 = vmatpush1.msra.mxu0 0.0
        %3201 = vmatprep.subr.mxu0 0.0
        %3202 = vmatpush1.msra.mxu0 0.0
        %3203 = vmatprep.subr.mxu0 0.0
        %3204 = vmatpush1.msra.mxu0 0.0
        %3205 = vmatprep.subr.mxu0 0.0
        %3206 = vmatpush1.msra.mxu0 0.0
        %3207 = vmatprep.subr.mxu0 0.0
        %3208 = vmatpush1.msra.mxu0 0.0
        %3209 = vmatprep.subr.mxu0 0.0
        %3210 = vmatpush1.msra.mxu0 0.0
        %3211 = vmatprep.subr.mxu0 0.0
        %3212 = vmatpush1.msra.mxu0 0.0
        %3213 = vmatprep.subr.mxu0 0.0
        %3214 = vmatpush1.msra.mxu0 0.0
        %3215 = vmatprep.subr.mxu0 0.0
        %3216 = vmatpush1.msra.mxu0 0.0
        %3217 = vmatprep.subr.mxu0 0.0
        %3218 = vmatpush1.msra.mxu0 0.0
        %3219 = vmatprep.subr.mxu0 0.0
        %3220 = vmatpush1.msra.mxu0 0.0
        %3221 = vmatprep.subr.mxu0 0.0
        %3222 = vmatpush1.msra.mxu0 0.0
        %3223 = vmatprep.subr.mxu0 0.0
        %3224 = vmatpush1.msra.mxu0 0.0
        %3225 = vmatprep.subr.mxu0 0.0
        %3226 = vmatpush1.msra.mxu0 0.0
        %3227 = vmatprep.subr.mxu0 0.0
        %3228 = vmatpush1.msra.mxu0 0.0
        %3229 = vmatprep.subr.mxu0 0.0
        %3230 = vmatpush1.msra.mxu0 0.0
        %3231 = vmatprep.subr.mxu0 0.0
        %3232 = vmatpush1.msra.mxu0 0.0
        %3233 = vmatprep.subr.mxu0 0.0
        %3234 = vmatpush1.msra.mxu0 0.0
        %3235 = vmatprep.subr.mxu0 0.0
        %3236 = vmatpush1.msra.mxu0 0.0
        %3237 = vmatprep.subr.mxu0 0.0
        %3238 = vmatpush1.msra.mxu0 0.0
        %3239 = vmatprep.subr.mxu0 0.0
        %3240 = vmatpush1.msra.mxu0 0.0
        %3241 = vmatprep.subr.mxu0 0.0
        %3242 = vmatpush1.msra.mxu0 0.0
        %3243 = vmatprep.subr.mxu0 0.0
        %3244 = vmatpush1.msra.mxu0 0.0
        %3245 = vmatprep.subr.mxu0 0.0
        %3246 = vmatpush1.msra.mxu0 0.0
        %3247 = vmatprep.subr.mxu0 0.0
        %3248 = vmatpush1.msra.mxu0 0.0
        %3249 = vmatprep.subr.mxu0 0.0
        %3250 = vmatpush1.msra.mxu0 0.0
        %3251 = vmatprep.subr.mxu0 0.0
        %3252 = vmatpush1.msra.mxu0 0.0
        %3253 = vmatprep.mubr.f32.mxu0 0.0
        %3254 = vmatmul.mubr.f32.gmra.mrb[0].mxu0 %v3187
        %v3255 = vpop.f32.mrb[0].mxu0
        %v3256 = vadd.f32 0.0, %v3255
        %v3257 = vpop.f32.mrb[0].mxu0
        %v3258 = vadd.f32 0.0, %v3257
        %3259 = vdwg.mxu0
        %3260 = vmatprep.subr.mxu0 %v3179
        %3261 = vmatpush1.msra.mxu0 %v3178
        %3262 = vmatprep.subr.mxu0 0.0
        %3263 = vmatpush1.msra.mxu0 0.0
        %3264 = vmatprep.subr.mxu0 0.0
        %3265 = vmatpush1.msra.mxu0 0.0
        %3266 = vmatprep.subr.mxu0 0.0
        %3267 = vmatpush1.msra.mxu0 0.0
        %3268 = vmatprep.subr.mxu0 0.0
        %3269 = vmatpush1.msra.mxu0 0.0
        %3270 = vmatprep.subr.mxu0 0.0
        %3271 = vmatpush1.msra.mxu0 0.0
        %3272 = vmatprep.subr.mxu0 0.0
        %3273 = vmatpush1.msra.mxu0 0.0
        %3274 = vmatprep.subr.mxu0 0.0
        %3275 = vmatpush1.msra.mxu0 0.0
        %3276 = vmatprep.subr.mxu0 0.0
        %3277 = vmatpush1.msra.mxu0 0.0
        %3278 = vmatprep.subr.mxu0 0.0
        %3279 = vmatpush1.msra.mxu0 0.0
        %3280 = vmatprep.subr.mxu0 0.0
        %3281 = vmatpush1.msra.mxu0 0.0
        %3282 = vmatprep.subr.mxu0 0.0
        %3283 = vmatpush1.msra.mxu0 0.0
        %3284 = vmatprep.subr.mxu0 0.0
        %3285 = vmatpush1.msra.mxu0 0.0
        %3286 = vmatprep.subr.mxu0 0.0
        %3287 = vmatpush1.msra.mxu0 0.0
        %3288 = vmatprep.subr.mxu0 0.0
        %3289 = vmatpush1.msra.mxu0 0.0
        %3290 = vmatprep.subr.mxu0 0.0
        %3291 = vmatpush1.msra.mxu0 0.0
        %3292 = vmatprep.subr.mxu0 0.0
        %3293 = vmatpush1.msra.mxu0 0.0
        %3294 = vmatprep.subr.mxu0 0.0
        %3295 = vmatpush1.msra.mxu0 0.0
        %3296 = vmatprep.subr.mxu0 0.0
        %3297 = vmatpush1.msra.mxu0 0.0
        %3298 = vmatprep.subr.mxu0 0.0
        %3299 = vmatpush1.msra.mxu0 0.0
        %3300 = vmatprep.subr.mxu0 0.0
        %3301 = vmatpush1.msra.mxu0 0.0
        %3302 = vmatprep.subr.mxu0 0.0
        %3303 = vmatpush1.msra.mxu0 0.0
        %3304 = vmatprep.subr.mxu0 0.0
        %3305 = vmatpush1.msra.mxu0 0.0
        %3306 = vmatprep.subr.mxu0 0.0
        %3307 = vmatpush1.msra.mxu0 0.0
        %3308 = vmatprep.subr.mxu0 0.0
        %3309 = vmatpush1.msra.mxu0 0.0
        %3310 = vmatprep.subr.mxu0 0.0
        %3311 = vmatpush1.msra.mxu0 0.0
        %3312 = vmatprep.subr.mxu0 0.0
        %3313 = vmatpush1.msra.mxu0 0.0
        %3314 = vmatprep.subr.mxu0 0.0
        %3315 = vmatpush1.msra.mxu0 0.0
        %3316 = vmatprep.subr.mxu0 0.0
        %3317 = vmatpush1.msra.mxu0 0.0
        %3318 = vmatprep.subr.mxu0 0.0
        %3319 = vmatpush1.msra.mxu0 0.0
        %3320 = vmatprep.subr.mxu0 0.0
        %3321 = vmatpush1.msra.mxu0 0.0
        %3322 = vmatprep.subr.mxu0 0.0
        %3323 = vmatpush1.msra.mxu0 0.0
        %3324 = vmatprep.mubr.f32.mxu0 0.0
        %3325 = vmatmul.mubr.f32.gmra.mrb[0].mxu0 %v3187
        %v3326 = vpop.f32.mrb[0].mxu0
        %v3327 = vadd.f32 0.0, %v3326
        %v3328 = vpop.f32.mrb[0].mxu0
        %v3329 = vadd.f32 0.0, %v3328
        %3330 = vdwg.mxu0
        %3331 = vmatprep.subr.mxu0 %v3181
        %3332 = vmatpush1.msra.mxu0 %v3180
        %3333 = vmatprep.subr.mxu0 0.0
        %3334 = vmatpush1.msra.mxu0 0.0
        %3335 = vmatprep.subr.mxu0 0.0
        %3336 = vmatpush1.msra.mxu0 0.0
        %3337 = vmatprep.subr.mxu0 0.0
        %3338 = vmatpush1.msra.mxu0 0.0
        %3339 = vmatprep.subr.mxu0 0.0
        %3340 = vmatpush1.msra.mxu0 0.0
        %3341 = vmatprep.subr.mxu0 0.0
        %3342 = vmatpush1.msra.mxu0 0.0
        %3343 = vmatprep.subr.mxu0 0.0
        %3344 = vmatpush1.msra.mxu0 0.0
        %3345 = vmatprep.subr.mxu0 0.0
        %3346 = vmatpush1.msra.mxu0 0.0
        %3347 = vmatprep.subr.mxu0 0.0
        %3348 = vmatpush1.msra.mxu0 0.0
        %3349 = vmatprep.subr.mxu0 0.0
        %3350 = vmatpush1.msra.mxu0 0.0
        %3351 = vmatprep.subr.mxu0 0.0
        %3352 = vmatpush1.msra.mxu0 0.0
        %3353 = vmatprep.subr.mxu0 0.0
        %3354 = vmatpush1.msra.mxu0 0.0
        %3355 = vmatprep.subr.mxu0 0.0
        %3356 = vmatpush1.msra.mxu0 0.0
        %3357 = vmatprep.subr.mxu0 0.0
        %3358 = vmatpush1.msra.mxu0 0.0
        %3359 = vmatprep.subr.mxu0 0.0
        %3360 = vmatpush1.msra.mxu0 0.0
        %3361 = vmatprep.subr.mxu0 0.0
        %3362 = vmatpush1.msra.mxu0 0.0
        %3363 = vmatprep.subr.mxu0 0.0
        %3364 = vmatpush1.msra.mxu0 0.0
        %3365 = vmatprep.subr.mxu0 0.0
        %3366 = vmatpush1.msra.mxu0 0.0
        %3367 = vmatprep.subr.mxu0 0.0
        %3368 = vmatpush1.msra.mxu0 0.0
        %3369 = vmatprep.subr.mxu0 0.0
        %3370 = vmatpush1.msra.mxu0 0.0
        %3371 = vmatprep.subr.mxu0 0.0
        %3372 = vmatpush1.msra.mxu0 0.0
        %3373 = vmatprep.subr.mxu0 0.0
        %3374 = vmatpush1.msra.mxu0 0.0
        %3375 = vmatprep.subr.mxu0 0.0
        %3376 = vmatpush1.msra.mxu0 0.0
        %3377 = vmatprep.subr.mxu0 0.0
        %3378 = vmatpush1.msra.mxu0 0.0
        %3379 = vmatprep.subr.mxu0 0.0
        %3380 = vmatpush1.msra.mxu0 0.0
        %3381 = vmatprep.subr.mxu0 0.0
        %3382 = vmatpush1.msra.mxu0 0.0
        %3383 = vmatprep.subr.mxu0 0.0
        %3384 = vmatpush1.msra.mxu0 0.0
        %3385 = vmatprep.subr.mxu0 0.0
        %3386 = vmatpush1.msra.mxu0 0.0
        %3387 = vmatprep.subr.mxu0 0.0
        %3388 = vmatpush1.msra.mxu0 0.0
        %3389 = vmatprep.subr.mxu0 0.0
        %3390 = vmatpush1.msra.mxu0 0.0
        %3391 = vmatprep.subr.mxu0 0.0
        %3392 = vmatpush1.msra.mxu0 0.0
        %3393 = vmatprep.subr.mxu0 0.0
        %3394 = vmatpush1.msra.mxu0 0.0
        %3395 = vmatprep.mubr.f32.mxu0 0.0
        %3396 = vmatmul.mubr.f32.gmra.mrb[0].mxu0 %v3187
        %v3397 = vpop.f32.mrb[0].mxu0
        %v3398 = vadd.f32 0.0, %v3397
        %v3399 = vpop.f32.mrb[0].mxu0
        %v3400 = vadd.f32 0.0, %v3399
        %3401 = vdwg.mxu0
        %3402 = vmatprep.subr.mxu0 %v3183
        %3403 = vmatpush1.msra.mxu0 %v3182
        %3404 = vmatprep.subr.mxu0 0.0
        %3405 = vmatpush1.msra.mxu0 0.0
        %3406 = vmatprep.subr.mxu0 0.0
        %3407 = vmatpush1.msra.mxu0 0.0
        %3408 = vmatprep.subr.mxu0 0.0
        %3409 = vmatpush1.msra.mxu0 0.0
        %3410 = vmatprep.subr.mxu0 0.0
        %3411 = vmatpush1.msra.mxu0 0.0
        %3412 = vmatprep.subr.mxu0 0.0
        %3413 = vmatpush1.msra.mxu0 0.0
        %3414 = vmatprep.subr.mxu0 0.0
        %3415 = vmatpush1.msra.mxu0 0.0
        %3416 = vmatprep.subr.mxu0 0.0
        %3417 = vmatpush1.msra.mxu0 0.0
        %3418 = vmatprep.subr.mxu0 0.0
        %3419 = vmatpush1.msra.mxu0 0.0
        %3420 = vmatprep.subr.mxu0 0.0
        %3421 = vmatpush1.msra.mxu0 0.0
        %3422 = vmatprep.subr.mxu0 0.0
        %3423 = vmatpush1.msra.mxu0 0.0
        %3424 = vmatprep.subr.mxu0 0.0
        %3425 = vmatpush1.msra.mxu0 0.0
        %3426 = vmatprep.subr.mxu0 0.0
        %3427 = vmatpush1.msra.mxu0 0.0
        %3428 = vmatprep.subr.mxu0 0.0
        %3429 = vmatpush1.msra.mxu0 0.0
        %3430 = vmatprep.subr.mxu0 0.0
        %3431 = vmatpush1.msra.mxu0 0.0
        %3432 = vmatprep.subr.mxu0 0.0
        %3433 = vmatpush1.msra.mxu0 0.0
        %3434 = vmatprep.subr.mxu0 0.0
        %3435 = vmatpush1.msra.mxu0 0.0
        %3436 = vmatprep.subr.mxu0 0.0
        %3437 = vmatpush1.msra.mxu0 0.0
        %3438 = vmatprep.subr.mxu0 0.0
        %3439 = vmatpush1.msra.mxu0 0.0
        %3440 = vmatprep.subr.mxu0 0.0
        %3441 = vmatpush1.msra.mxu0 0.0
        %3442 = vmatprep.subr.mxu0 0.0
        %3443 = vmatpush1.msra.mxu0 0.0
        %3444 = vmatprep.subr.mxu0 0.0
        %3445 = vmatpush1.msra.mxu0 0.0
        %3446 = vmatprep.subr.mxu0 0.0
        %3447 = vmatpush1.msra.mxu0 0.0
        %3448 = vmatprep.subr.mxu0 0.0
        %3449 = vmatpush1.msra.mxu0 0.0
        %3450 = vmatprep.subr.mxu0 0.0
        %3451 = vmatpush1.msra.mxu0 0.0
        %3452 = vmatprep.subr.mxu0 0.0
        %3453 = vmatpush1.msra.mxu0 0.0
        %3454 = vmatprep.subr.mxu0 0.0
        %3455 = vmatpush1.msra.mxu0 0.0
        %3456 = vmatprep.subr.mxu0 0.0
        %3457 = vmatpush1.msra.mxu0 0.0
        %3458 = vmatprep.subr.mxu0 0.0
        %3459 = vmatpush1.msra.mxu0 0.0
        %3460 = vmatprep.subr.mxu0 0.0
        %3461 = vmatpush1.msra.mxu0 0.0
        %3462 = vmatprep.subr.mxu0 0.0
        %3463 = vmatpush1.msra.mxu0 0.0
        %3464 = vmatprep.subr.mxu0 0.0
        %3465 = vmatpush1.msra.mxu0 0.0
        %3466 = vmatprep.mubr.f32.mxu0 0.0
        %3467 = vmatmul.mubr.f32.gmra.mrb[0].mxu0 %v3187
        %v3468 = vpop.f32.mrb[0].mxu0
        %v3469 = vadd.f32 0.0, %v3468
        %v3470 = vpop.f32.mrb[0].mxu0
        %v3471 = vadd.f32 0.0, %v3470
        %3472 = vdwg.mxu0
        %v3473 = vadd.f32 %v3143, %v3256
        %v3474 = vadd.f32 %v3144, %v3258
        %v3475 = vadd.f32 %v3145, %v3327
        %v3476 = vadd.f32 %v3146, %v3329
        %v3477 = vadd.f32 %v3147, %v3398
        %v3478 = vadd.f32 %v3148, %v3400
        %v3479 = vadd.f32 %v3149, %v3469
        %v3480 = vadd.f32 %v3150, %v3471
        %3481 = vrot.lane.b32.xlu0 %v673, 95
        %v3482 = vpop.permute.xlu0 %3481
        %3483 = vrot.lane.b32.xlu0 %v675, 95
        %v3484 = vpop.permute.xlu0 %3483
        %3485 = vrot.lane.b32.xlu0 %v744, 95
        %v3486 = vpop.permute.xlu0 %3485
        %3487 = vrot.lane.b32.xlu0 %v746, 95
        %v3488 = vpop.permute.xlu0 %3487
        %3489 = vrot.lane.b32.xlu0 %v815, 95
        %v3490 = vpop.permute.xlu0 %3489
        %3491 = vrot.lane.b32.xlu0 %v817, 95
        %v3492 = vpop.permute.xlu0 %3491
        %3493 = vrot.lane.b32.xlu0 %v886, 95
        %v3494 = vpop.permute.xlu0 %3493
        %3495 = vrot.lane.b32.xlu0 %v888, 95
        %v3496 = vpop.permute.xlu0 %3495
        %vm3497 = vcmp.lt.s32.totalorder %v268, 95
        %v3498 = vsel %vm3497, %v3494, %v3496
        %v3499 = vsel %vm3497, %v3492, %v3494
        %v3500 = vsel %vm3497, %v3490, %v3492
        %v3501 = vsel %vm3497, %v3488, %v3490
        %v3502 = vsel %vm3497, %v3486, %v3488
        %v3503 = vsel %vm3497, %v3484, %v3486
        %v3504 = vsel %vm3497, %v3482, %v3484
        %v3505 = vsel %vm3497, %v3496, %v3482
        %v3506 = vsel %vm340, %v3504, 0.0
        %v3507 = vsel %vm341, %v3503, 0.0
        %v3508 = vsel %vm342, %v3502, 0.0
        %v3509 = vsel %vm343, %v3501, 0.0
        %v3510 = vsel %vm344, %v3500, 0.0
        %v3511 = vsel %vm345, %v3499, 0.0
        %v3512 = vsel %vm346, %v3498, 0.0
        %v3513 = vsel %vm347, %v3505, 0.0
        %s3514 = scalar_lea.vmem %s2, 64
        %v3515 = vld [vmem:[%s3514] sm:$0xff]
        %v3517 = vsel %vm959, %v3515, 0
        %3519 = vmatprep.subr.mxu0 %v3507
        %3520 = vmatpush1.msra.mxu0 %v3506
        %3521 = vmatprep.subr.mxu0 0.0
        %3522 = vmatpush1.msra.mxu0 0.0
        %3523 = vmatprep.subr.mxu0 0.0
        %3524 = vmatpush1.msra.mxu0 0.0
        %3525 = vmatprep.subr.mxu0 0.0
        %3526 = vmatpush1.msra.mxu0 0.0
        %3527 = vmatprep.subr.mxu0 0.0
        %3528 = vmatpush1.msra.mxu0 0.0
        %3529 = vmatprep.subr.mxu0 0.0
        %3530 = vmatpush1.msra.mxu0 0.0
        %3531 = vmatprep.subr.mxu0 0.0
        %3532 = vmatpush1.msra.mxu0 0.0
        %3533 = vmatprep.subr.mxu0 0.0
        %3534 = vmatpush1.msra.mxu0 0.0
        %3535 = vmatprep.subr.mxu0 0.0
        %3536 = vmatpush1.msra.mxu0 0.0
        %3537 = vmatprep.subr.mxu0 0.0
        %3538 = vmatpush1.msra.mxu0 0.0
        %3539 = vmatprep.subr.mxu0 0.0
        %3540 = vmatpush1.msra.mxu0 0.0
        %3541 = vmatprep.subr.mxu0 0.0
        %3542 = vmatpush1.msra.mxu0 0.0
        %3543 = vmatprep.subr.mxu0 0.0
        %3544 = vmatpush1.msra.mxu0 0.0
        %3545 = vmatprep.subr.mxu0 0.0
        %3546 = vmatpush1.msra.mxu0 0.0
        %3547 = vmatprep.subr.mxu0 0.0
        %3548 = vmatpush1.msra.mxu0 0.0
        %3549 = vmatprep.subr.mxu0 0.0
        %3550 = vmatpush1.msra.mxu0 0.0
        %3551 = vmatprep.subr.mxu0 0.0
        %3552 = vmatpush1.msra.mxu0 0.0
        %3553 = vmatprep.subr.mxu0 0.0
        %3554 = vmatpush1.msra.mxu0 0.0
        %3555 = vmatprep.subr.mxu0 0.0
        %3556 = vmatpush1.msra.mxu0 0.0
        %3557 = vmatprep.subr.mxu0 0.0
        %3558 = vmatpush1.msra.mxu0 0.0
        %3559 = vmatprep.subr.mxu0 0.0
        %3560 = vmatpush1.msra.mxu0 0.0
        %3561 = vmatprep.subr.mxu0 0.0
        %3562 = vmatpush1.msra.mxu0 0.0
        %3563 = vmatprep.subr.mxu0 0.0
        %3564 = vmatpush1.msra.mxu0 0.0
        %3565 = vmatprep.subr.mxu0 0.0
        %3566 = vmatpush1.msra.mxu0 0.0
        %3567 = vmatprep.subr.mxu0 0.0
        %3568 = vmatpush1.msra.mxu0 0.0
        %3569 = vmatprep.subr.mxu0 0.0
        %3570 = vmatpush1.msra.mxu0 0.0
        %3571 = vmatprep.subr.mxu0 0.0
        %3572 = vmatpush1.msra.mxu0 0.0
        %3573 = vmatprep.subr.mxu0 0.0
        %3574 = vmatpush1.msra.mxu0 0.0
        %3575 = vmatprep.subr.mxu0 0.0
        %3576 = vmatpush1.msra.mxu0 0.0
        %3577 = vmatprep.subr.mxu0 0.0
        %3578 = vmatpush1.msra.mxu0 0.0
        %3579 = vmatprep.subr.mxu0 0.0
        %3580 = vmatpush1.msra.mxu0 0.0
        %3581 = vmatprep.subr.mxu0 0.0
        %3582 = vmatpush1.msra.mxu0 0.0
        %3583 = vmatprep.mubr.f32.mxu0 0.0
        %3584 = vmatmul.mubr.f32.gmra.mrb[0].mxu0 %v3517
        %v3585 = vpop.f32.mrb[0].mxu0
        %v3586 = vadd.f32 0.0, %v3585
        %v3587 = vpop.f32.mrb[0].mxu0
        %v3588 = vadd.f32 0.0, %v3587
        %3589 = vdwg.mxu0
        %3590 = vmatprep.subr.mxu0 %v3509
        %3591 = vmatpush1.msra.mxu0 %v3508
        %3592 = vmatprep.subr.mxu0 0.0
        %3593 = vmatpush1.msra.mxu0 0.0
        %3594 = vmatprep.subr.mxu0 0.0
        %3595 = vmatpush1.msra.mxu0 0.0
        %3596 = vmatprep.subr.mxu0 0.0
        %3597 = vmatpush1.msra.mxu0 0.0
        %3598 = vmatprep.subr.mxu0 0.0
        %3599 = vmatpush1.msra.mxu0 0.0
        %3600 = vmatprep.subr.mxu0 0.0
        %3601 = vmatpush1.msra.mxu0 0.0
        %3602 = vmatprep.subr.mxu0 0.0
        %3603 = vmatpush1.msra.mxu0 0.0
        %3604 = vmatprep.subr.mxu0 0.0
        %3605 = vmatpush1.msra.mxu0 0.0
        %3606 = vmatprep.subr.mxu0 0.0
        %3607 = vmatpush1.msra.mxu0 0.0
        %3608 = vmatprep.subr.mxu0 0.0
        %3609 = vmatpush1.msra.mxu0 0.0
        %3610 = vmatprep.subr.mxu0 0.0
        %3611 = vmatpush1.msra.mxu0 0.0
        %3612 = vmatprep.subr.mxu0 0.0
        %3613 = vmatpush1.msra.mxu0 0.0
        %3614 = vmatprep.subr.mxu0 0.0
        %3615 = vmatpush1.msra.mxu0 0.0
        %3616 = vmatprep.subr.mxu0 0.0
        %3617 = vmatpush1.msra.mxu0 0.0
        %3618 = vmatprep.subr.mxu0 0.0
        %3619 = vmatpush1.msra.mxu0 0.0
        %3620 = vmatprep.subr.mxu0 0.0
        %3621 = vmatpush1.msra.mxu0 0.0
        %3622 = vmatprep.subr.mxu0 0.0
        %3623 = vmatpush1.msra.mxu0 0.0
        %3624 = vmatprep.subr.mxu0 0.0
        %3625 = vmatpush1.msra.mxu0 0.0
        %3626 = vmatprep.subr.mxu0 0.0
        %3627 = vmatpush1.msra.mxu0 0.0
        %3628 = vmatprep.subr.mxu0 0.0
        %3629 = vmatpush1.msra.mxu0 0.0
        %3630 = vmatprep.subr.mxu0 0.0
        %3631 = vmatpush1.msra.mxu0 0.0
        %3632 = vmatprep.subr.mxu0 0.0
        %3633 = vmatpush1.msra.mxu0 0.0
        %3634 = vmatprep.subr.mxu0 0.0
        %3635 = vmatpush1.msra.mxu0 0.0
        %3636 = vmatprep.subr.mxu0 0.0
        %3637 = vmatpush1.msra.mxu0 0.0
        %3638 = vmatprep.subr.mxu0 0.0
        %3639 = vmatpush1.msra.mxu0 0.0
        %3640 = vmatprep.subr.mxu0 0.0
        %3641 = vmatpush1.msra.mxu0 0.0
        %3642 = vmatprep.subr.mxu0 0.0
        %3643 = vmatpush1.msra.mxu0 0.0
        %3644 = vmatprep.subr.mxu0 0.0
        %3645 = vmatpush1.msra.mxu0 0.0
        %3646 = vmatprep.subr.mxu0 0.0
        %3647 = vmatpush1.msra.mxu0 0.0
        %3648 = vmatprep.subr.mxu0 0.0
        %3649 = vmatpush1.msra.mxu0 0.0
        %3650 = vmatprep.subr.mxu0 0.0
        %3651 = vmatpush1.msra.mxu0 0.0
        %3652 = vmatprep.subr.mxu0 0.0
        %3653 = vmatpush1.msra.mxu0 0.0
        %3654 = vmatprep.mubr.f32.mxu0 0.0
        %3655 = vmatmul.mubr.f32.gmra.mrb[0].mxu0 %v3517
        %v3656 = vpop.f32.mrb[0].mxu0
        %v3657 = vadd.f32 0.0, %v3656
        %v3658 = vpop.f32.mrb[0].mxu0
        %v3659 = vadd.f32 0.0, %v3658
        %3660 = vdwg.mxu0
        %3661 = vmatprep.subr.mxu0 %v3511
        %3662 = vmatpush1.msra.mxu0 %v3510
        %3663 = vmatprep.subr.mxu0 0.0
        %3664 = vmatpush1.msra.mxu0 0.0
        %3665 = vmatprep.subr.mxu0 0.0
        %3666 = vmatpush1.msra.mxu0 0.0
        %3667 = vmatprep.subr.mxu0 0.0
        %3668 = vmatpush1.msra.mxu0 0.0
        %3669 = vmatprep.subr.mxu0 0.0
        %3670 = vmatpush1.msra.mxu0 0.0
        %3671 = vmatprep.subr.mxu0 0.0
        %3672 = vmatpush1.msra.mxu0 0.0
        %3673 = vmatprep.subr.mxu0 0.0
        %3674 = vmatpush1.msra.mxu0 0.0
        %3675 = vmatprep.subr.mxu0 0.0
        %3676 = vmatpush1.msra.mxu0 0.0
        %3677 = vmatprep.subr.mxu0 0.0
        %3678 = vmatpush1.msra.mxu0 0.0
        %3679 = vmatprep.subr.mxu0 0.0
        %3680 = vmatpush1.msra.mxu0 0.0
        %3681 = vmatprep.subr.mxu0 0.0
        %3682 = vmatpush1.msra.mxu0 0.0
        %3683 = vmatprep.subr.mxu0 0.0
        %3684 = vmatpush1.msra.mxu0 0.0
        %3685 = vmatprep.subr.mxu0 0.0
        %3686 = vmatpush1.msra.mxu0 0.0
        %3687 = vmatprep.subr.mxu0 0.0
        %3688 = vmatpush1.msra.mxu0 0.0
        %3689 = vmatprep.subr.mxu0 0.0
        %3690 = vmatpush1.msra.mxu0 0.0
        %3691 = vmatprep.subr.mxu0 0.0
        %3692 = vmatpush1.msra.mxu0 0.0
        %3693 = vmatprep.subr.mxu0 0.0
        %3694 = vmatpush1.msra.mxu0 0.0
        %3695 = vmatprep.subr.mxu0 0.0
        %3696 = vmatpush1.msra.mxu0 0.0
        %3697 = vmatprep.subr.mxu0 0.0
        %3698 = vmatpush1.msra.mxu0 0.0
        %3699 = vmatprep.subr.mxu0 0.0
        %3700 = vmatpush1.msra.mxu0 0.0
        %3701 = vmatprep.subr.mxu0 0.0
        %3702 = vmatpush1.msra.mxu0 0.0
        %3703 = vmatprep.subr.mxu0 0.0
        %3704 = vmatpush1.msra.mxu0 0.0
        %3705 = vmatprep.subr.mxu0 0.0
        %3706 = vmatpush1.msra.mxu0 0.0
        %3707 = vmatprep.subr.mxu0 0.0
        %3708 = vmatpush1.msra.mxu0 0.0
        %3709 = vmatprep.subr.mxu0 0.0
        %3710 = vmatpush1.msra.mxu0 0.0
        %3711 = vmatprep.subr.mxu0 0.0
        %3712 = vmatpush1.msra.mxu0 0.0
        %3713 = vmatprep.subr.mxu0 0.0
        %3714 = vmatpush1.msra.mxu0 0.0
        %3715 = vmatprep.subr.mxu0 0.0
        %3716 = vmatpush1.msra.mxu0 0.0
        %3717 = vmatprep.subr.mxu0 0.0
        %3718 = vmatpush1.msra.mxu0 0.0
        %3719 = vmatprep.subr.mxu0 0.0
        %3720 = vmatpush1.msra.mxu0 0.0
        %3721 = vmatprep.subr.mxu0 0.0
        %3722 = vmatpush1.msra.mxu0 0.0
        %3723 = vmatprep.subr.mxu0 0.0
        %3724 = vmatpush1.msra.mxu0 0.0
        %3725 = vmatprep.mubr.f32.mxu0 0.0
        %3726 = vmatmul.mubr.f32.gmra.mrb[0].mxu0 %v3517
        %v3727 = vpop.f32.mrb[0].mxu0
        %v3728 = vadd.f32 0.0, %v3727
        %v3729 = vpop.f32.mrb[0].mxu0
        %v3730 = vadd.f32 0.0, %v3729
        %3731 = vdwg.mxu0
        %3732 = vmatprep.subr.mxu0 %v3513
        %3733 = vmatpush1.msra.mxu0 %v3512
        %3734 = vmatprep.subr.mxu0 0.0
        %3735 = vmatpush1.msra.mxu0 0.0
        %3736 = vmatprep.subr.mxu0 0.0
        %3737 = vmatpush1.msra.mxu0 0.0
        %3738 = vmatprep.subr.mxu0 0.0
        %3739 = vmatpush1.msra.mxu0 0.0
        %3740 = vmatprep.subr.mxu0 0.0
        %3741 = vmatpush1.msra.mxu0 0.0
        %3742 = vmatprep.subr.mxu0 0.0
        %3743 = vmatpush1.msra.mxu0 0.0
        %3744 = vmatprep.subr.mxu0 0.0
        %3745 = vmatpush1.msra.mxu0 0.0
        %3746 = vmatprep.subr.mxu0 0.0
        %3747 = vmatpush1.msra.mxu0 0.0
        %3748 = vmatprep.subr.mxu0 0.0
        %3749 = vmatpush1.msra.mxu0 0.0
        %3750 = vmatprep.subr.mxu0 0.0
        %3751 = vmatpush1.msra.mxu0 0.0
        %3752 = vmatprep.subr.mxu0 0.0
        %3753 = vmatpush1.msra.mxu0 0.0
        %3754 = vmatprep.subr.mxu0 0.0
        %3755 = vmatpush1.msra.mxu0 0.0
        %3756 = vmatprep.subr.mxu0 0.0
        %3757 = vmatpush1.msra.mxu0 0.0
        %3758 = vmatprep.subr.mxu0 0.0
        %3759 = vmatpush1.msra.mxu0 0.0
        %3760 = vmatprep.subr.mxu0 0.0
        %3761 = vmatpush1.msra.mxu0 0.0
        %3762 = vmatprep.subr.mxu0 0.0
        %3763 = vmatpush1.msra.mxu0 0.0
        %3764 = vmatprep.subr.mxu0 0.0
        %3765 = vmatpush1.msra.mxu0 0.0
        %3766 = vmatprep.subr.mxu0 0.0
        %3767 = vmatpush1.msra.mxu0 0.0
        %3768 = vmatprep.subr.mxu0 0.0
        %3769 = vmatpush1.msra.mxu0 0.0
        %3770 = vmatprep.subr.mxu0 0.0
        %3771 = vmatpush1.msra.mxu0 0.0
        %3772 = vmatprep.subr.mxu0 0.0
        %3773 = vmatpush1.msra.mxu0 0.0
        %3774 = vmatprep.subr.mxu0 0.0
        %3775 = vmatpush1.msra.mxu0 0.0
        %3776 = vmatprep.subr.mxu0 0.0
        %3777 = vmatpush1.msra.mxu0 0.0
        %3778 = vmatprep.subr.mxu0 0.0
        %3779 = vmatpush1.msra.mxu0 0.0
        %3780 = vmatprep.subr.mxu0 0.0
        %3781 = vmatpush1.msra.mxu0 0.0
        %3782 = vmatprep.subr.mxu0 0.0
        %3783 = vmatpush1.msra.mxu0 0.0
        %3784 = vmatprep.subr.mxu0 0.0
        %3785 = vmatpush1.msra.mxu0 0.0
        %3786 = vmatprep.subr.mxu0 0.0
        %3787 = vmatpush1.msra.mxu0 0.0
        %3788 = vmatprep.subr.mxu0 0.0
        %3789 = vmatpush1.msra.mxu0 0.0
        %3790 = vmatprep.subr.mxu0 0.0
        %3791 = vmatpush1.msra.mxu0 0.0
        %3792 = vmatprep.subr.mxu0 0.0
        %3793 = vmatpush1.msra.mxu0 0.0
        %3794 = vmatprep.subr.mxu0 0.0
        %3795 = vmatpush1.msra.mxu0 0.0
        %3796 = vmatprep.mubr.f32.mxu0 0.0
        %3797 = vmatmul.mubr.f32.gmra.mrb[0].mxu0 %v3517
        %v3798 = vpop.f32.mrb[0].mxu0
        %v3799 = vadd.f32 0.0, %v3798
        %v3800 = vpop.f32.mrb[0].mxu0
        %v3801 = vadd.f32 0.0, %v3800
        %3802 = vdwg.mxu0
        %v3803 = vadd.f32 %v3473, %v3586
        %v3804 = vadd.f32 %v3474, %v3588
        %v3805 = vadd.f32 %v3475, %v3657
        %v3806 = vadd.f32 %v3476, %v3659
        %v3807 = vadd.f32 %v3477, %v3728
        %v3808 = vadd.f32 %v3478, %v3730
        %v3809 = vadd.f32 %v3479, %v3799
        %v3810 = vadd.f32 %v3480, %v3801
        %v3811 = vld [vmem:[%s3] sm:$0xff]
        %3813 = vset.pattern.permute.xlu0 0
        %3814 = vperm.xlu0 %3813, %v3811
        %v3815 = vpop.permute.xlu0 %3814
        %v3817 = vadd.f32 %v3803, %v3815
        %v3818 = vadd.f32 %v3804, %v3815
        %v3819 = vadd.f32 %v3805, %v3815
        %v3820 = vadd.f32 %v3806, %v3815
        %v3821 = vadd.f32 %v3807, %v3815
        %v3822 = vadd.f32 %v3808, %v3815
        %v3823 = vadd.f32 %v3809, %v3815
        %v3824 = vadd.f32 %v3810, %v3815
        %v3825 = vadd.f32 %v3817, %v3818
        %v3826 = vadd.f32 %v3825, %v3819
        %v3827 = vadd.f32 %v3826, %v3820
        %v3828 = vadd.f32 %v3827, %v3821
        %v3829 = vadd.f32 %v3828, %v3822
        %v3830 = vadd.f32 %v3829, %v3823
        %v3831 = vadd.f32 %v3830, %v3824
        %3832 = vadd.xlane.f32.xlu0 %v3831
        %v3833 = vpop.xlane.xlu0 %3832
        %v3834 = vmul.f32 %v3833, 0.0009765625
        %v3835 = vsub.f32 %v3817, %v3834
        %v3836 = vsub.f32 %v3818, %v3834
        %v3837 = vsub.f32 %v3819, %v3834
        %v3838 = vsub.f32 %v3820, %v3834
        %v3839 = vsub.f32 %v3821, %v3834
        %v3840 = vsub.f32 %v3822, %v3834
        %v3841 = vsub.f32 %v3823, %v3834
        %v3842 = vsub.f32 %v3824, %v3834
        %v3843 = vmul.f32 %v3835, %v3835
        %v3844 = vmul.f32 %v3836, %v3836
        %v3845 = vmul.f32 %v3837, %v3837
        %v3846 = vmul.f32 %v3838, %v3838
        %v3847 = vmul.f32 %v3839, %v3839
        %v3848 = vmul.f32 %v3840, %v3840
        %v3849 = vmul.f32 %v3841, %v3841
        %v3850 = vmul.f32 %v3842, %v3842
        %v3851 = vadd.f32 %v3843, %v3844
        %v3852 = vadd.f32 %v3851, %v3845
        %v3853 = vadd.f32 %v3852, %v3846
        %v3854 = vadd.f32 %v3853, %v3847
        %v3855 = vadd.f32 %v3854, %v3848
        %v3856 = vadd.f32 %v3855, %v3849
        %v3857 = vadd.f32 %v3856, %v3850
        %3858 = vadd.xlane.f32.xlu0 %v3857
        %v3859 = vpop.xlane.xlu0 %3858
        %v3860 = vmul.f32 %v3859, 0.0009765625
        %v3861 = vadd.f32 %v3860, 1e-05
        %v3862 = vrsqrt.pop %v3861
        %v3863 = vmul.f32 %v3835, %v3862
        %v3864 = vmul.f32 %v3836, %v3862
        %v3865 = vmul.f32 %v3837, %v3862
        %v3866 = vmul.f32 %v3838, %v3862
        %v3867 = vmul.f32 %v3839, %v3862
        %v3868 = vmul.f32 %v3840, %v3862
        %v3869 = vmul.f32 %v3841, %v3862
        %v3870 = vmul.f32 %v3842, %v3862
        %v3871 = vmul.f32 %v3863, 0.70710677
        %v3872 = vmul.f32 %v3864, 0.70710677
        %v3873 = vmul.f32 %v3865, 0.70710677
        %v3874 = vmul.f32 %v3866, 0.70710677
        %v3875 = vmul.f32 %v3867, 0.70710677
        %v3876 = vmul.f32 %v3868, 0.70710677
        %v3877 = vmul.f32 %v3869, 0.70710677
        %v3878 = vmul.f32 %v3870, 0.70710677
        %v3879 = vand.u32 2147483647, %v3871
        %v3880 = vand.u32 2147483647, %v3872
        %v3881 = vand.u32 2147483647, %v3873
        %v3882 = vand.u32 2147483647, %v3874
        %v3883 = vand.u32 2147483647, %v3875
        %v3884 = vand.u32 2147483647, %v3876
        %v3885 = vand.u32 2147483647, %v3877
        %v3886 = vand.u32 2147483647, %v3878
        %v3887 = vmul.f32 %v3879, 0.5
        %v3888 = vmul.f32 %v3880, 0.5
        %v3889 = vmul.f32 %v3881, 0.5
        %v3890 = vmul.f32 %v3882, 0.5
        %v3891 = vmul.f32 %v3883, 0.5
        %v3892 = vmul.f32 %v3884, 0.5
        %v3893 = vmul.f32 %v3885, 0.5
        %v3894 = vmul.f32 %v3886, 0.5
        %v3895 = vadd.f32 %v3887, 1.0
        %v3896 = vadd.f32 %v3888, 1.0
        %v3897 = vadd.f32 %v3889, 1.0
        %v3898 = vadd.f32 %v3890, 1.0
        %v3899 = vadd.f32 %v3891, 1.0
        %v3900 = vadd.f32 %v3892, 1.0
        %v3901 = vadd.f32 %v3893, 1.0
        %v3902 = vadd.f32 %v3894, 1.0
        %v3903 = vrcp.pop %v3895
        %v3904 = vrcp.pop %v3896
        %v3905 = vrcp.pop %v3897
        %v3906 = vrcp.pop %v3898
        %v3907 = vrcp.pop %v3899
        %v3908 = vrcp.pop %v3900
        %v3909 = vrcp.pop %v3901
        %v3910 = vrcp.pop %v3902
        %v3911 = vmul.f32 %v3903, 0.17087276
        %v3912 = vmul.f32 %v3904, 0.17087276
        %v3913 = vmul.f32 %v3905, 0.17087276
        %v3914 = vmul.f32 %v3906, 0.17087276
        %v3915 = vmul.f32 %v3907, 0.17087276
        %v3916 = vmul.f32 %v3908, 0.17087276
        %v3917 = vmul.f32 %v3909, 0.17087276
        %v3918 = vmul.f32 %v3910, 0.17087276
        %v3919 = vadd.f32 %v3911, -0.82215226
        %v3920 = vadd.f32 %v3912, -0.82215226
        %v3921 = vadd.f32 %v3913, -0.82215226
        %v3922 = vadd.f32 %v3914, -0.82215226
        %v3923 = vadd.f32 %v3915, -0.82215226
        %v3924 = vadd.f32 %v3916, -0.82215226
        %v3925 = vadd.f32 %v3917, -0.82215226
        %v3926 = vadd.f32 %v3918, -0.82215226
        %v3927 = vmul.f32 %v3903, %v3919
        %v3928 = vmul.f32 %v3904, %v3920
        %v3929 = vmul.f32 %v3905, %v3921
        %v3930 = vmul.f32 %v3906, %v3922
        %v3931 = vmul.f32 %v3907, %v3923
        %v3932 = vmul.f32 %v3908, %v3924
        %v3933 = vmul.f32 %v3909, %v3925
        %v3934 = vmul.f32 %v3910, %v3926
        %v3935 = vadd.f32 %v3927, 1.4885159
        %v3936 = vadd.f32 %v3928, 1.4885159
        %v3937 = vadd.f32 %v3929, 1.4885159
        %v3938 = vadd.f32 %v3930, 1.4885159
        %v3939 = vadd.f32 %v3931, 1.4885159
        %v3940 = vadd.f32 %v3932, 1.4885159
        %v3941 = vadd.f32 %v3933, 1.4885159
        %v3942 = vadd.f32 %v3934, 1.4885159
        %v3943 = vmul.f32 %v3903, %v3935
        %v3944 = vmul.f32 %v3904, %v3936
        %v3945 = vmul.f32 %v3905, %v3937
        %v3946 = vmul.f32 %v3906, %v3938
        %v3947 = vmul.f32 %v3907, %v3939
        %v3948 = vmul.f32 %v3908, %v3940
        %v3949 = vmul.f32 %v3909, %v3941
        %v3950 = vmul.f32 %v3910, %v3942
        %v3951 = vadd.f32 %v3943, -1.135204
        %v3952 = vadd.f32 %v3944, -1.135204
        %v3953 = vadd.f32 %v3945, -1.135204
        %v3954 = vadd.f32 %v3946, -1.135204
        %v3955 = vadd.f32 %v3947, -1.135204
        %v3956 = vadd.f32 %v3948, -1.135204
        %v3957 = vadd.f32 %v3949, -1.135204
        %v3958 = vadd.f32 %v3950, -1.135204
        %v3959 = vmul.f32 %v3903, %v3951
        %v3960 = vmul.f32 %v3904, %v3952
        %v3961 = vmul.f32 %v3905, %v3953
        %v3962 = vmul.f32 %v3906, %v3954
        %v3963 = vmul.f32 %v3907, %v3955
        %v3964 = vmul.f32 %v3908, %v3956
        %v3965 = vmul.f32 %v3909, %v3957
        %v3966 = vmul.f32 %v3910, %v3958
        %v3967 = vadd.f32 %v3959, 0.27886808
        %v3968 = vadd.f32 %v3960, 0.27886808
        %v3969 = vadd.f32 %v3961, 0.27886808
        %v3970 = vadd.f32 %v3962, 0.27886808
        %v3971 = vadd.f32 %v3963, 0.27886808
        %v3972 = vadd.f32 %v3964, 0.27886808
        %v3973 = vadd.f32 %v3965, 0.27886808
        %v3974 = vadd.f32 %v3966, 0.27886808
        %v3975 = vmul.f32 %v3903, %v3967
        %v3976 = vmul.f32 %v3904, %v3968
        %v3977 = vmul.f32 %v3905, %v3969
        %v3978 = vmul.f32 %v3906, %v3970
        %v3979 = vmul.f32 %v3907, %v3971
        %v3980 = vmul.f32 %v3908, %v3972
        %v3981 = vmul.f32 %v3909, %v3973
        %v3982 = vmul.f32 %v3910, %v3974
        %v3983 = vadd.f32 %v3975, -0.18628806
        %v3984 = vadd.f32 %v3976, -0.18628806
        %v3985 = vadd.f32 %v3977, -0.18628806
        %v3986 = vadd.f32 %v3978, -0.18628806
        %v3987 = vadd.f32 %v3979, -0.18628806
        %v3988 = vadd.f32 %v3980, -0.18628806
        %v3989 = vadd.f32 %v3981, -0.18628806
        %v3990 = vadd.f32 %v3982, -0.18628806
        %v3991 = vmul.f32 %v3903, %v3983
        %v3992 = vmul.f32 %v3904, %v3984
        %v3993 = vmul.f32 %v3905, %v3985
        %v3994 = vmul.f32 %v3906, %v3986
        %v3995 = vmul.f32 %v3907, %v3987
        %v3996 = vmul.f32 %v3908, %v3988
        %v3997 = vmul.f32 %v3909, %v3989
        %v3998 = vmul.f32 %v3910, %v3990
        %v3999 = vadd.f32 %v3991, 0.09678418
        %v4000 = vadd.f32 %v3992, 0.09678418
        %v4001 = vadd.f32 %v3993, 0.09678418
        %v4002 = vadd.f32 %v3994, 0.09678418
        %v4003 = vadd.f32 %v3995, 0.09678418
        %v4004 = vadd.f32 %v3996, 0.09678418
        %v4005 = vadd.f32 %v3997, 0.09678418
        %v4006 = vadd.f32 %v3998, 0.09678418
        %v4007 = vmul.f32 %v3903, %v3999
        %v4008 = vmul.f32 %v3904, %v4000
        %v4009 = vmul.f32 %v3905, %v4001
        %v4010 = vmul.f32 %v3906, %v4002
        %v4011 = vmul.f32 %v3907, %v4003
        %v4012 = vmul.f32 %v3908, %v4004
        %v4013 = vmul.f32 %v3909, %v4005
        %v4014 = vmul.f32 %v3910, %v4006
        %v4015 = vadd.f32 %v4007, 0.37409195
        %v4016 = vadd.f32 %v4008, 0.37409195
        %v4017 = vadd.f32 %v4009, 0.37409195
        %v4018 = vadd.f32 %v4010, 0.37409195
        %v4019 = vadd.f32 %v4011, 0.37409195
        %v4020 = vadd.f32 %v4012, 0.37409195
        %v4021 = vadd.f32 %v4013, 0.37409195
        %v4022 = vadd.f32 %v4014, 0.37409195
        %v4023 = vmul.f32 %v3903, %v4015
        %v4024 = vmul.f32 %v3904, %v4016
        %v4025 = vmul.f32 %v3905, %v4017
        %v4026 = vmul.f32 %v3906, %v4018
        %v4027 = vmul.f32 %v3907, %v4019
        %v4028 = vmul.f32 %v3908, %v4020
        %v4029 = vmul.f32 %v3909, %v4021
        %v4030 = vmul.f32 %v3910, %v4022
        %v4031 = vadd.f32 %v4023, 1.0000237
        %v4032 = vadd.f32 %v4024, 1.0000237
        %v4033 = vadd.f32 %v4025, 1.0000237
        %v4034 = vadd.f32 %v4026, 1.0000237
        %v4035 = vadd.f32 %v4027, 1.0000237
        %v4036 = vadd.f32 %v4028, 1.0000237
        %v4037 = vadd.f32 %v4029, 1.0000237
        %v4038 = vadd.f32 %v4030, 1.0000237
        %v4039 = vmul.f32 %v3903, %v4031
        %v4040 = vmul.f32 %v3904, %v4032
        %v4041 = vmul.f32 %v3905, %v4033
        %v4042 = vmul.f32 %v3906, %v4034
        %v4043 = vmul.f32 %v3907, %v4035
        %v4044 = vmul.f32 %v3908, %v4036
        %v4045 = vmul.f32 %v3909, %v4037
        %v4046 = vmul.f32 %v3910, %v4038
        %v4047 = vadd.f32 %v4039, -1.2655122
        %v4048 = vadd.f32 %v4040, -1.2655122
        %v4049 = vadd.f32 %v4041, -1.2655122
        %v4050 = vadd.f32 %v4042, -1.2655122
        %v4051 = vadd.f32 %v4043, -1.2655122
        %v4052 = vadd.f32 %v4044, -1.2655122
        %v4053 = vadd.f32 %v4045, -1.2655122
        %v4054 = vadd.f32 %v4046, -1.2655122
        %v4055 = vsub.f32 0.0, %v3879
        %v4056 = vsub.f32 0.0, %v3880
        %v4057 = vsub.f32 0.0, %v3881
        %v4058 = vsub.f32 0.0, %v3882
        %v4059 = vsub.f32 0.0, %v3883
        %v4060 = vsub.f32 0.0, %v3884
        %v4061 = vsub.f32 0.0, %v3885
        %v4062 = vsub.f32 0.0, %v3886
        %v4063 = vmul.f32 %v4055, %v3879
        %v4064 = vmul.f32 %v4056, %v3880
        %v4065 = vmul.f32 %v4057, %v3881
        %v4066 = vmul.f32 %v4058, %v3882
        %v4067 = vmul.f32 %v4059, %v3883
        %v4068 = vmul.f32 %v4060, %v3884
        %v4069 = vmul.f32 %v4061, %v3885
        %v4070 = vmul.f32 %v4062, %v3886
        %v4071 = vadd.f32 %v4063, %v4047
        %v4072 = vadd.f32 %v4064, %v4048
        %v4073 = vadd.f32 %v4065, %v4049
        %v4074 = vadd.f32 %v4066, %v4050
        %v4075 = vadd.f32 %v4067, %v4051
        %v4076 = vadd.f32 %v4068, %v4052
        %v4077 = vadd.f32 %v4069, %v4053
        %v4078 = vadd.f32 %v4070, %v4054
        %v4079 = vmul.f32 %v4071, 1.442695
        %v4080 = vpow.pop %v4079
        %v4081 = vmul.f32 %v4072, 1.442695
        %v4082 = vpow.pop %v4081
        %v4083 = vmul.f32 %v4073, 1.442695
        %v4084 = vpow.pop %v4083
        %v4085 = vmul.f32 %v4074, 1.442695
        %v4086 = vpow.pop %v4085
        %v4087 = vmul.f32 %v4075, 1.442695
        %v4088 = vpow.pop %v4087
        %v4089 = vmul.f32 %v4076, 1.442695
        %v4090 = vpow.pop %v4089
        %v4091 = vmul.f32 %v4077, 1.442695
        %v4092 = vpow.pop %v4091
        %v4093 = vmul.f32 %v4078, 1.442695
        %v4094 = vpow.pop %v4093
        %v4095 = vmul.f32 %v3903, %v4080
        %v4096 = vmul.f32 %v3904, %v4082
        %v4097 = vmul.f32 %v3905, %v4084
        %v4098 = vmul.f32 %v3906, %v4086
        %v4099 = vmul.f32 %v3907, %v4088
        %v4100 = vmul.f32 %v3908, %v4090
        %v4101 = vmul.f32 %v3909, %v4092
        %v4102 = vmul.f32 %v3910, %v4094
        %vm4103 = vcmp.ge.f32.partialorder %v3871, 0.0
        %vm4104 = vcmp.ge.f32.partialorder %v3872, 0.0
        %vm4105 = vcmp.ge.f32.partialorder %v3873, 0.0
        %vm4106 = vcmp.ge.f32.partialorder %v3874, 0.0
        %vm4107 = vcmp.ge.f32.partialorder %v3875, 0.0
        %vm4108 = vcmp.ge.f32.partialorder %v3876, 0.0
        %vm4109 = vcmp.ge.f32.partialorder %v3877, 0.0
        %vm4110 = vcmp.ge.f32.partialorder %v3878, 0.0
        %v4111 = vsub.f32 1.0, %v4095
        %v4112 = vsub.f32 1.0, %v4096
        %v4113 = vsub.f32 1.0, %v4097
        %v4114 = vsub.f32 1.0, %v4098
        %v4115 = vsub.f32 1.0, %v4099
        %v4116 = vsub.f32 1.0, %v4100
        %v4117 = vsub.f32 1.0, %v4101
        %v4118 = vsub.f32 1.0, %v4102
        %v4119 = vsub.f32 %v4095, 1.0
        %v4120 = vsub.f32 %v4096, 1.0
        %v4121 = vsub.f32 %v4097, 1.0
        %v4122 = vsub.f32 %v4098, 1.0
        %v4123 = vsub.f32 %v4099, 1.0
        %v4124 = vsub.f32 %v4100, 1.0
        %v4125 = vsub.f32 %v4101, 1.0
        %v4126 = vsub.f32 %v4102, 1.0
        %v4127 = vsel %vm4103, %v4111, %v4119
        %v4128 = vsel %vm4104, %v4112, %v4120
        %v4129 = vsel %vm4105, %v4113, %v4121
        %v4130 = vsel %vm4106, %v4114, %v4122
        %v4131 = vsel %vm4107, %v4115, %v4123
        %v4132 = vsel %vm4108, %v4116, %v4124
        %v4133 = vsel %vm4109, %v4117, %v4125
        %v4134 = vsel %vm4110, %v4118, %v4126
        %v4135 = vmul.f32 %v3863, 0.5
        %v4136 = vmul.f32 %v3864, 0.5
        %v4137 = vmul.f32 %v3865, 0.5
        %v4138 = vmul.f32 %v3866, 0.5
        %v4139 = vmul.f32 %v3867, 0.5
        %v4140 = vmul.f32 %v3868, 0.5
        %v4141 = vmul.f32 %v3869, 0.5
        %v4142 = vmul.f32 %v3870, 0.5
        %v4143 = vadd.f32 %v4127, 1.0
        %v4144 = vadd.f32 %v4128, 1.0
        %v4145 = vadd.f32 %v4129, 1.0
        %v4146 = vadd.f32 %v4130, 1.0
        %v4147 = vadd.f32 %v4131, 1.0
        %v4148 = vadd.f32 %v4132, 1.0
        %v4149 = vadd.f32 %v4133, 1.0
        %v4150 = vadd.f32 %v4134, 1.0
        %v4151 = vmul.f32 %v4135, %v4143
        %v4152 = vmul.f32 %v4136, %v4144
        %v4153 = vmul.f32 %v4137, %v4145
        %v4154 = vmul.f32 %v4138, %v4146
        %v4155 = vmul.f32 %v4139, %v4147
        %v4156 = vmul.f32 %v4140, %v4148
        %v4157 = vmul.f32 %v4141, %v4149
        %v4158 = vmul.f32 %v4142, %v4150
        %4159 = vrot.lane.b32.xlu0 %v4151, 33
        %v4160 = vpop.permute.xlu0 %4159
        %4161 = vrot.lane.b32.xlu0 %v4152, 33
        %v4162 = vpop.permute.xlu0 %4161
        %4163 = vrot.lane.b32.xlu0 %v4153, 33
        %v4164 = vpop.permute.xlu0 %4163
        %4165 = vrot.lane.b32.xlu0 %v4154, 33
        %v4166 = vpop.permute.xlu0 %4165
        %4167 = vrot.lane.b32.xlu0 %v4155, 33
        %v4168 = vpop.permute.xlu0 %4167
        %4169 = vrot.lane.b32.xlu0 %v4156, 33
        %v4170 = vpop.permute.xlu0 %4169
        %4171 = vrot.lane.b32.xlu0 %v4157, 33
        %v4172 = vpop.permute.xlu0 %4171
        %4173 = vrot.lane.b32.xlu0 %v4158, 33
        %v4174 = vpop.permute.xlu0 %4173
        %v4175 = vsel %vm906, %v4172, %v4174
        %v4176 = vsel %vm906, %v4170, %v4172
        %v4177 = vsel %vm906, %v4168, %v4170
        %v4178 = vsel %vm906, %v4166, %v4168
        %v4179 = vsel %vm906, %v4164, %v4166
        %v4180 = vsel %vm906, %v4162, %v4164
        %v4181 = vsel %vm906, %v4160, %v4162
        %v4182 = vsel %vm906, %v4174, %v4160
        %v4183 = vsel %vm316, %v4182, 0.0
        %v4184 = vsel %vm317, %v4181, 0.0
        %v4185 = vsel %vm318, %v4180, 0.0
        %v4186 = vsel %vm319, %v4179, 0.0
        %v4187 = vsel %vm320, %v4178, 0.0
        %v4188 = vsel %vm321, %v4177, 0.0
        %v4189 = vsel %vm322, %v4176, 0.0
        %v4190 = vsel %vm323, %v4175, 0.0
        %v4191 = vld [vmem:[%s4] sm:$0xff]
        %4192 = vrot.lane.b32.xlu0 %v4151, 32
        %v4193 = vpop.permute.xlu0 %4192
        %4194 = vrot.lane.b32.xlu0 %v4152, 32
        %v4195 = vpop.permute.xlu0 %4194
        %4196 = vrot.lane.b32.xlu0 %v4153, 32
        %v4197 = vpop.permute.xlu0 %4196
        %4198 = vrot.lane.b32.xlu0 %v4154, 32
        %v4199 = vpop.permute.xlu0 %4198
        %4200 = vrot.lane.b32.xlu0 %v4155, 32
        %v4201 = vpop.permute.xlu0 %4200
        %4202 = vrot.lane.b32.xlu0 %v4156, 32
        %v4203 = vpop.permute.xlu0 %4202
        %4204 = vrot.lane.b32.xlu0 %v4157, 32
        %v4205 = vpop.permute.xlu0 %4204
        %4206 = vrot.lane.b32.xlu0 %v4158, 32
        %v4207 = vpop.permute.xlu0 %4206
        %v4208 = vsel %vm940, %v4205, %v4207
        %v4209 = vsel %vm940, %v4203, %v4205
        %v4210 = vsel %vm940, %v4201, %v4203
        %v4211 = vsel %vm940, %v4199, %v4201
        %v4212 = vsel %vm940, %v4197, %v4199
        %v4213 = vsel %vm940, %v4195, %v4197
        %v4214 = vsel %vm940, %v4193, %v4195
        %v4215 = vsel %vm940, %v4207, %v4193
        %v4216 = vsel %vm284, %v4215, 0.0
        %v4217 = vsel %vm285, %v4214, 0.0
        %v4218 = vsel %vm286, %v4213, 0.0
        %v4219 = vsel %vm287, %v4212, 0.0
        %v4220 = vsel %vm288, %v4211, 0.0
        %v4221 = vsel %vm289, %v4210, 0.0
        %v4222 = vsel %vm290, %v4209, 0.0
        %v4223 = vsel %vm291, %v4208, 0.0
        %s4224 = scalar_lea.vmem %s4, 8
        %v4225 = vld [vmem:[%s4224] sm:$0xff]
        %v4227 = vsel %vm959, %v4225, 0
        %4229 = vmatprep.subr.mxu0 %v4217
        %4230 = vmatpush1.msra.mxu0 %v4216
        %4231 = vmatprep.subr.mxu0 0.0
        %4232 = vmatpush1.msra.mxu0 0.0
        %4233 = vmatprep.subr.mxu0 0.0
        %4234 = vmatpush1.msra.mxu0 0.0
        %4235 = vmatprep.subr.mxu0 0.0
        %4236 = vmatpush1.msra.mxu0 0.0
        %4237 = vmatprep.subr.mxu0 0.0
        %4238 = vmatpush1.msra.mxu0 0.0
        %4239 = vmatprep.subr.mxu0 0.0
        %4240 = vmatpush1.msra.mxu0 0.0
        %4241 = vmatprep.subr.mxu0 0.0
        %4242 = vmatpush1.msra.mxu0 0.0
        %4243 = vmatprep.subr.mxu0 0.0
        %4244 = vmatpush1.msra.mxu0 0.0
        %4245 = vmatprep.subr.mxu0 0.0
        %4246 = vmatpush1.msra.mxu0 0.0
        %4247 = vmatprep.subr.mxu0 0.0
        %4248 = vmatpush1.msra.mxu0 0.0
        %4249 = vmatprep.subr.mxu0 0.0
        %4250 = vmatpush1.msra.mxu0 0.0
        %4251 = vmatprep.subr.mxu0 0.0
        %4252 = vmatpush1.msra.mxu0 0.0
        %4253 = vmatprep.subr.mxu0 0.0
        %4254 = vmatpush1.msra.mxu0 0.0
        %4255 = vmatprep.subr.mxu0 0.0
        %4256 = vmatpush1.msra.mxu0 0.0
        %4257 = vmatprep.subr.mxu0 0.0
        %4258 = vmatpush1.msra.mxu0 0.0
        %4259 = vmatprep.subr.mxu0 0.0
        %4260 = vmatpush1.msra.mxu0 0.0
        %4261 = vmatprep.subr.mxu0 0.0
        %4262 = vmatpush1.msra.mxu0 0.0
        %4263 = vmatprep.subr.mxu0 0.0
        %4264 = vmatpush1.msra.mxu0 0.0
        %4265 = vmatprep.subr.mxu0 0.0
        %4266 = vmatpush1.msra.mxu0 0.0
        %4267 = vmatprep.subr.mxu0 0.0
        %4268 = vmatpush1.msra.mxu0 0.0
        %4269 = vmatprep.subr.mxu0 0.0
        %4270 = vmatpush1.msra.mxu0 0.0
        %4271 = vmatprep.subr.mxu0 0.0
        %4272 = vmatpush1.msra.mxu0 0.0
        %4273 = vmatprep.subr.mxu0 0.0
        %4274 = vmatpush1.msra.mxu0 0.0
        %4275 = vmatprep.subr.mxu0 0.0
        %4276 = vmatpush1.msra.mxu0 0.0
        %4277 = vmatprep.subr.mxu0 0.0
        %4278 = vmatpush1.msra.mxu0 0.0
        %4279 = vmatprep.subr.mxu0 0.0
        %4280 = vmatpush1.msra.mxu0 0.0
        %4281 = vmatprep.subr.mxu0 0.0
        %4282 = vmatpush1.msra.mxu0 0.0
        %4283 = vmatprep.subr.mxu0 0.0
        %4284 = vmatpush1.msra.mxu0 0.0
        %4285 = vmatprep.subr.mxu0 0.0
        %4286 = vmatpush1.msra.mxu0 0.0
        %4287 = vmatprep.subr.mxu0 0.0
        %4288 = vmatpush1.msra.mxu0 0.0
        %4289 = vmatprep.subr.mxu0 0.0
        %4290 = vmatpush1.msra.mxu0 0.0
        %4291 = vmatprep.subr.mxu0 0.0
        %4292 = vmatpush1.msra.mxu0 0.0
        %4293 = vmatprep.mubr.f32.mxu0 0.0
        %4294 = vmatmul.mubr.f32.gmra.mrb[0].mxu0 %v4227
        %v4295 = vpop.f32.mrb[0].mxu0
        %v4296 = vadd.f32 0.0, %v4295
        %v4297 = vpop.f32.mrb[0].mxu0
        %v4298 = vadd.f32 0.0, %v4297
        %4299 = vdwg.mxu0
        %4300 = vmatprep.subr.mxu0 %v4219
        %4301 = vmatpush1.msra.mxu0 %v4218
        %4302 = vmatprep.subr.mxu0 0.0
        %4303 = vmatpush1.msra.mxu0 0.0
        %4304 = vmatprep.subr.mxu0 0.0
        %4305 = vmatpush1.msra.mxu0 0.0
        %4306 = vmatprep.subr.mxu0 0.0
        %4307 = vmatpush1.msra.mxu0 0.0
        %4308 = vmatprep.subr.mxu0 0.0
        %4309 = vmatpush1.msra.mxu0 0.0
        %4310 = vmatprep.subr.mxu0 0.0
        %4311 = vmatpush1.msra.mxu0 0.0
        %4312 = vmatprep.subr.mxu0 0.0
        %4313 = vmatpush1.msra.mxu0 0.0
        %4314 = vmatprep.subr.mxu0 0.0
        %4315 = vmatpush1.msra.mxu0 0.0
        %4316 = vmatprep.subr.mxu0 0.0
        %4317 = vmatpush1.msra.mxu0 0.0
        %4318 = vmatprep.subr.mxu0 0.0
        %4319 = vmatpush1.msra.mxu0 0.0
        %4320 = vmatprep.subr.mxu0 0.0
        %4321 = vmatpush1.msra.mxu0 0.0
        %4322 = vmatprep.subr.mxu0 0.0
        %4323 = vmatpush1.msra.mxu0 0.0
        %4324 = vmatprep.subr.mxu0 0.0
        %4325 = vmatpush1.msra.mxu0 0.0
        %4326 = vmatprep.subr.mxu0 0.0
        %4327 = vmatpush1.msra.mxu0 0.0
        %4328 = vmatprep.subr.mxu0 0.0
        %4329 = vmatpush1.msra.mxu0 0.0
        %4330 = vmatprep.subr.mxu0 0.0
        %4331 = vmatpush1.msra.mxu0 0.0
        %4332 = vmatprep.subr.mxu0 0.0
        %4333 = vmatpush1.msra.mxu0 0.0
        %4334 = vmatprep.subr.mxu0 0.0
        %4335 = vmatpush1.msra.mxu0 0.0
        %4336 = vmatprep.subr.mxu0 0.0
        %4337 = vmatpush1.msra.mxu0 0.0
        %4338 = vmatprep.subr.mxu0 0.0
        %4339 = vmatpush1.msra.mxu0 0.0
        %4340 = vmatprep.subr.mxu0 0.0
        %4341 = vmatpush1.msra.mxu0 0.0
        %4342 = vmatprep.subr.mxu0 0.0
        %4343 = vmatpush1.msra.mxu0 0.0
        %4344 = vmatprep.subr.mxu0 0.0
        %4345 = vmatpush1.msra.mxu0 0.0
        %4346 = vmatprep.subr.mxu0 0.0
        %4347 = vmatpush1.msra.mxu0 0.0
        %4348 = vmatprep.subr.mxu0 0.0
        %4349 = vmatpush1.msra.mxu0 0.0
        %4350 = vmatprep.subr.mxu0 0.0
        %4351 = vmatpush1.msra.mxu0 0.0
        %4352 = vmatprep.subr.mxu0 0.0
        %4353 = vmatpush1.msra.mxu0 0.0
        %4354 = vmatprep.subr.mxu0 0.0
        %4355 = vmatpush1.msra.mxu0 0.0
        %4356 = vmatprep.subr.mxu0 0.0
        %4357 = vmatpush1.msra.mxu0 0.0
        %4358 = vmatprep.subr.mxu0 0.0
        %4359 = vmatpush1.msra.mxu0 0.0
        %4360 = vmatprep.subr.mxu0 0.0
        %4361 = vmatpush1.msra.mxu0 0.0
        %4362 = vmatprep.subr.mxu0 0.0
        %4363 = vmatpush1.msra.mxu0 0.0
        %4364 = vmatprep.mubr.f32.mxu0 0.0
        %4365 = vmatmul.mubr.f32.gmra.mrb[0].mxu0 %v4227
        %v4366 = vpop.f32.mrb[0].mxu0
        %v4367 = vadd.f32 0.0, %v4366
        %v4368 = vpop.f32.mrb[0].mxu0
        %v4369 = vadd.f32 0.0, %v4368
        %4370 = vdwg.mxu0
        %4371 = vmatprep.subr.mxu0 %v4221
        %4372 = vmatpush1.msra.mxu0 %v4220
        %4373 = vmatprep.subr.mxu0 0.0
        %4374 = vmatpush1.msra.mxu0 0.0
        %4375 = vmatprep.subr.mxu0 0.0
        %4376 = vmatpush1.msra.mxu0 0.0
        %4377 = vmatprep.subr.mxu0 0.0
        %4378 = vmatpush1.msra.mxu0 0.0
        %4379 = vmatprep.subr.mxu0 0.0
        %4380 = vmatpush1.msra.mxu0 0.0
        %4381 = vmatprep.subr.mxu0 0.0
        %4382 = vmatpush1.msra.mxu0 0.0
        %4383 = vmatprep.subr.mxu0 0.0
        %4384 = vmatpush1.msra.mxu0 0.0
        %4385 = vmatprep.subr.mxu0 0.0
        %4386 = vmatpush1.msra.mxu0 0.0
        %4387 = vmatprep.subr.mxu0 0.0
        %4388 = vmatpush1.msra.mxu0 0.0
        %4389 = vmatprep.subr.mxu0 0.0
        %4390 = vmatpush1.msra.mxu0 0.0
        %4391 = vmatprep.subr.mxu0 0.0
        %4392 = vmatpush1.msra.mxu0 0.0
        %4393 = vmatprep.subr.mxu0 0.0
        %4394 = vmatpush1.msra.mxu0 0.0
        %4395 = vmatprep.subr.mxu0 0.0
        %4396 = vmatpush1.msra.mxu0 0.0
        %4397 = vmatprep.subr.mxu0 0.0
        %4398 = vmatpush1.msra.mxu0 0.0
        %4399 = vmatprep.subr.mxu0 0.0
        %4400 = vmatpush1.msra.mxu0 0.0
        %4401 = vmatprep.subr.mxu0 0.0
        %4402 = vmatpush1.msra.mxu0 0.0
        %4403 = vmatprep.subr.mxu0 0.0
        %4404 = vmatpush1.msra.mxu0 0.0
        %4405 = vmatprep.subr.mxu0 0.0
        %4406 = vmatpush1.msra.mxu0 0.0
        %4407 = vmatprep.subr.mxu0 0.0
        %4408 = vmatpush1.msra.mxu0 0.0
        %4409 = vmatprep.subr.mxu0 0.0
        %4410 = vmatpush1.msra.mxu0 0.0
        %4411 = vmatprep.subr.mxu0 0.0
        %4412 = vmatpush1.msra.mxu0 0.0
        %4413 = vmatprep.subr.mxu0 0.0
        %4414 = vmatpush1.msra.mxu0 0.0
        %4415 = vmatprep.subr.mxu0 0.0
        %4416 = vmatpush1.msra.mxu0 0.0
        %4417 = vmatprep.subr.mxu0 0.0
        %4418 = vmatpush1.msra.mxu0 0.0
        %4419 = vmatprep.subr.mxu0 0.0
        %4420 = vmatpush1.msra.mxu0 0.0
        %4421 = vmatprep.subr.mxu0 0.0
        %4422 = vmatpush1.msra.mxu0 0.0
        %4423 = vmatprep.subr.mxu0 0.0
        %4424 = vmatpush1.msra.mxu0 0.0
        %4425 = vmatprep.subr.mxu0 0.0
        %4426 = vmatpush1.msra.mxu0 0.0
        %4427 = vmatprep.subr.mxu0 0.0
        %4428 = vmatpush1.msra.mxu0 0.0
        %4429 = vmatprep.subr.mxu0 0.0
        %4430 = vmatpush1.msra.mxu0 0.0
        %4431 = vmatprep.subr.mxu0 0.0
        %4432 = vmatpush1.msra.mxu0 0.0
        %4433 = vmatprep.subr.mxu0 0.0
        %4434 = vmatpush1.msra.mxu0 0.0
        %4435 = vmatprep.mubr.f32.mxu0 0.0
        %4436 = vmatmul.mubr.f32.gmra.mrb[0].mxu0 %v4227
        %v4437 = vpop.f32.mrb[0].mxu0
        %v4438 = vadd.f32 0.0, %v4437
        %v4439 = vpop.f32.mrb[0].mxu0
        %v4440 = vadd.f32 0.0, %v4439
        %4441 = vdwg.mxu0
        %4442 = vmatprep.subr.mxu0 %v4223
        %4443 = vmatpush1.msra.mxu0 %v4222
        %4444 = vmatprep.subr.mxu0 0.0
        %4445 = vmatpush1.msra.mxu0 0.0
        %4446 = vmatprep.subr.mxu0 0.0
        %4447 = vmatpush1.msra.mxu0 0.0
        %4448 = vmatprep.subr.mxu0 0.0
        %4449 = vmatpush1.msra.mxu0 0.0
        %4450 = vmatprep.subr.mxu0 0.0
        %4451 = vmatpush1.msra.mxu0 0.0
        %4452 = vmatprep.subr.mxu0 0.0
        %4453 = vmatpush1.msra.mxu0 0.0
        %4454 = vmatprep.subr.mxu0 0.0
        %4455 = vmatpush1.msra.mxu0 0.0
        %4456 = vmatprep.subr.mxu0 0.0
        %4457 = vmatpush1.msra.mxu0 0.0
        %4458 = vmatprep.subr.mxu0 0.0
        %4459 = vmatpush1.msra.mxu0 0.0
        %4460 = vmatprep.subr.mxu0 0.0
        %4461 = vmatpush1.msra.mxu0 0.0
        %4462 = vmatprep.subr.mxu0 0.0
        %4463 = vmatpush1.msra.mxu0 0.0
        %4464 = vmatprep.subr.mxu0 0.0
        %4465 = vmatpush1.msra.mxu0 0.0
        %4466 = vmatprep.subr.mxu0 0.0
        %4467 = vmatpush1.msra.mxu0 0.0
        %4468 = vmatprep.subr.mxu0 0.0
        %4469 = vmatpush1.msra.mxu0 0.0
        %4470 = vmatprep.subr.mxu0 0.0
        %4471 = vmatpush1.msra.mxu0 0.0
        %4472 = vmatprep.subr.mxu0 0.0
        %4473 = vmatpush1.msra.mxu0 0.0
        %4474 = vmatprep.subr.mxu0 0.0
        %4475 = vmatpush1.msra.mxu0 0.0
        %4476 = vmatprep.subr.mxu0 0.0
        %4477 = vmatpush1.msra.mxu0 0.0
        %4478 = vmatprep.subr.mxu0 0.0
        %4479 = vmatpush1.msra.mxu0 0.0
        %4480 = vmatprep.subr.mxu0 0.0
        %4481 = vmatpush1.msra.mxu0 0.0
        %4482 = vmatprep.subr.mxu0 0.0
        %4483 = vmatpush1.msra.mxu0 0.0
        %4484 = vmatprep.subr.mxu0 0.0
        %4485 = vmatpush1.msra.mxu0 0.0
        %4486 = vmatprep.subr.mxu0 0.0
        %4487 = vmatpush1.msra.mxu0 0.0
        %4488 = vmatprep.subr.mxu0 0.0
        %4489 = vmatpush1.msra.mxu0 0.0
        %4490 = vmatprep.subr.mxu0 0.0
        %4491 = vmatpush1.msra.mxu0 0.0
        %4492 = vmatprep.subr.mxu0 0.0
        %4493 = vmatpush1.msra.mxu0 0.0
        %4494 = vmatprep.subr.mxu0 0.0
        %4495 = vmatpush1.msra.mxu0 0.0
        %4496 = vmatprep.subr.mxu0 0.0
        %4497 = vmatpush1.msra.mxu0 0.0
        %4498 = vmatprep.subr.mxu0 0.0
        %4499 = vmatpush1.msra.mxu0 0.0
        %4500 = vmatprep.subr.mxu0 0.0
        %4501 = vmatpush1.msra.mxu0 0.0
        %4502 = vmatprep.subr.mxu0 0.0
        %4503 = vmatpush1.msra.mxu0 0.0
        %4504 = vmatprep.subr.mxu0 0.0
        %4505 = vmatpush1.msra.mxu0 0.0
        %4506 = vmatprep.mubr.f32.mxu0 0.0
        %4507 = vmatmul.mubr.f32.gmra.mrb[0].mxu0 %v4227
        %v4508 = vpop.f32.mrb[0].mxu0
        %v4509 = vadd.f32 0.0, %v4508
        %v4510 = vpop.f32.mrb[0].mxu0
        %v4511 = vadd.f32 0.0, %v4510
        %4512 = vdwg.mxu0
        %v4514 = vsel %vm959, %v4191, 0
        %4516 = vmatprep.subr.mxu0 %v4184
        %4517 = vmatpush1.msra.mxu0 %v4183
        %4518 = vmatprep.subr.mxu0 0.0
        %4519 = vmatpush1.msra.mxu0 0.0
        %4520 = vmatprep.subr.mxu0 0.0
        %4521 = vmatpush1.msra.mxu0 0.0
        %4522 = vmatprep.subr.mxu0 0.0
        %4523 = vmatpush1.msra.mxu0 0.0
        %4524 = vmatprep.subr.mxu0 0.0
        %4525 = vmatpush1.msra.mxu0 0.0
        %4526 = vmatprep.subr.mxu0 0.0
        %4527 = vmatpush1.msra.mxu0 0.0
        %4528 = vmatprep.subr.mxu0 0.0
        %4529 = vmatpush1.msra.mxu0 0.0
        %4530 = vmatprep.subr.mxu0 0.0
        %4531 = vmatpush1.msra.mxu0 0.0
        %4532 = vmatprep.subr.mxu0 0.0
        %4533 = vmatpush1.msra.mxu0 0.0
        %4534 = vmatprep.subr.mxu0 0.0
        %4535 = vmatpush1.msra.mxu0 0.0
        %4536 = vmatprep.subr.mxu0 0.0
        %4537 = vmatpush1.msra.mxu0 0.0
        %4538 = vmatprep.subr.mxu0 0.0
        %4539 = vmatpush1.msra.mxu0 0.0
        %4540 = vmatprep.subr.mxu0 0.0
        %4541 = vmatpush1.msra.mxu0 0.0
        %4542 = vmatprep.subr.mxu0 0.0
        %4543 = vmatpush1.msra.mxu0 0.0
        %4544 = vmatprep.subr.mxu0 0.0
        %4545 = vmatpush1.msra.mxu0 0.0
        %4546 = vmatprep.subr.mxu0 0.0
        %4547 = vmatpush1.msra.mxu0 0.0
        %4548 = vmatprep.subr.mxu0 0.0
        %4549 = vmatpush1.msra.mxu0 0.0
        %4550 = vmatprep.subr.mxu0 0.0
        %4551 = vmatpush1.msra.mxu0 0.0
        %4552 = vmatprep.subr.mxu0 0.0
        %4553 = vmatpush1.msra.mxu0 0.0
        %4554 = vmatprep.subr.mxu0 0.0
        %4555 = vmatpush1.msra.mxu0 0.0
        %4556 = vmatprep.subr.mxu0 0.0
        %4557 = vmatpush1.msra.mxu0 0.0
        %4558 = vmatprep.subr.mxu0 0.0
        %4559 = vmatpush1.msra.mxu0 0.0
        %4560 = vmatprep.subr.mxu0 0.0
        %4561 = vmatpush1.msra.mxu0 0.0
        %4562 = vmatprep.subr.mxu0 0.0
        %4563 = vmatpush1.msra.mxu0 0.0
        %4564 = vmatprep.subr.mxu0 0.0
        %4565 = vmatpush1.msra.mxu0 0.0
        %4566 = vmatprep.subr.mxu0 0.0
        %4567 = vmatpush1.msra.mxu0 0.0
        %4568 = vmatprep.subr.mxu0 0.0
        %4569 = vmatpush1.msra.mxu0 0.0
        %4570 = vmatprep.subr.mxu0 0.0
        %4571 = vmatpush1.msra.mxu0 0.0
        %4572 = vmatprep.subr.mxu0 0.0
        %4573 = vmatpush1.msra.mxu0 0.0
        %4574 = vmatprep.subr.mxu0 0.0
        %4575 = vmatpush1.msra.mxu0 0.0
        %4576 = vmatprep.subr.mxu0 0.0
        %4577 = vmatpush1.msra.mxu0 0.0
        %4578 = vmatprep.subr.mxu0 0.0
        %4579 = vmatpush1.msra.mxu0 0.0
        %4580 = vmatprep.mubr.f32.mxu0 0.0
        %4581 = vmatmul.mubr.f32.gmra.mrb[0].mxu0 %v4514
        %v4582 = vpop.f32.mrb[0].mxu0
        %v4583 = vadd.f32 %v4296, %v4582
        %v4584 = vpop.f32.mrb[0].mxu0
        %v4585 = vadd.f32 %v4298, %v4584
        %4586 = vdwg.mxu0
        %4587 = vmatprep.subr.mxu0 %v4186
        %4588 = vmatpush1.msra.mxu0 %v4185
        %4589 = vmatprep.subr.mxu0 0.0
        %4590 = vmatpush1.msra.mxu0 0.0
        %4591 = vmatprep.subr.mxu0 0.0
        %4592 = vmatpush1.msra.mxu0 0.0
        %4593 = vmatprep.subr.mxu0 0.0
        %4594 = vmatpush1.msra.mxu0 0.0
        %4595 = vmatprep.subr.mxu0 0.0
        %4596 = vmatpush1.msra.mxu0 0.0
        %4597 = vmatprep.subr.mxu0 0.0
        %4598 = vmatpush1.msra.mxu0 0.0
        %4599 = vmatprep.subr.mxu0 0.0
        %4600 = vmatpush1.msra.mxu0 0.0
        %4601 = vmatprep.subr.mxu0 0.0
        %4602 = vmatpush1.msra.mxu0 0.0
        %4603 = vmatprep.subr.mxu0 0.0
        %4604 = vmatpush1.msra.mxu0 0.0
        %4605 = vmatprep.subr.mxu0 0.0
        %4606 = vmatpush1.msra.mxu0 0.0
        %4607 = vmatprep.subr.mxu0 0.0
        %4608 = vmatpush1.msra.mxu0 0.0
        %4609 = vmatprep.subr.mxu0 0.0
        %4610 = vmatpush1.msra.mxu0 0.0
        %4611 = vmatprep.subr.mxu0 0.0
        %4612 = vmatpush1.msra.mxu0 0.0
        %4613 = vmatprep.subr.mxu0 0.0
        %4614 = vmatpush1.msra.mxu0 0.0
        %4615 = vmatprep.subr.mxu0 0.0
        %4616 = vmatpush1.msra.mxu0 0.0
        %4617 = vmatprep.subr.mxu0 0.0
        %4618 = vmatpush1.msra.mxu0 0.0
        %4619 = vmatprep.subr.mxu0 0.0
        %4620 = vmatpush1.msra.mxu0 0.0
        %4621 = vmatprep.subr.mxu0 0.0
        %4622 = vmatpush1.msra.mxu0 0.0
        %4623 = vmatprep.subr.mxu0 0.0
        %4624 = vmatpush1.msra.mxu0 0.0
        %4625 = vmatprep.subr.mxu0 0.0
        %4626 = vmatpush1.msra.mxu0 0.0
        %4627 = vmatprep.subr.mxu0 0.0
        %4628 = vmatpush1.msra.mxu0 0.0
        %4629 = vmatprep.subr.mxu0 0.0
        %4630 = vmatpush1.msra.mxu0 0.0
        %4631 = vmatprep.subr.mxu0 0.0
        %4632 = vmatpush1.msra.mxu0 0.0
        %4633 = vmatprep.subr.mxu0 0.0
        %4634 = vmatpush1.msra.mxu0 0.0
        %4635 = vmatprep.subr.mxu0 0.0
        %4636 = vmatpush1.msra.mxu0 0.0
        %4637 = vmatprep.subr.mxu0 0.0
        %4638 = vmatpush1.msra.mxu0 0.0
        %4639 = vmatprep.subr.mxu0 0.0
        %4640 = vmatpush1.msra.mxu0 0.0
        %4641 = vmatprep.subr.mxu0 0.0
        %4642 = vmatpush1.msra.mxu0 0.0
        %4643 = vmatprep.subr.mxu0 0.0
        %4644 = vmatpush1.msra.mxu0 0.0
        %4645 = vmatprep.subr.mxu0 0.0
        %4646 = vmatpush1.msra.mxu0 0.0
        %4647 = vmatprep.subr.mxu0 0.0
        %4648 = vmatpush1.msra.mxu0 0.0
        %4649 = vmatprep.subr.mxu0 0.0
        %4650 = vmatpush1.msra.mxu0 0.0
        %4651 = vmatprep.mubr.f32.mxu0 0.0
        %4652 = vmatmul.mubr.f32.gmra.mrb[0].mxu0 %v4514
        %v4653 = vpop.f32.mrb[0].mxu0
        %v4654 = vadd.f32 %v4367, %v4653
        %v4655 = vpop.f32.mrb[0].mxu0
        %v4656 = vadd.f32 %v4369, %v4655
        %4657 = vdwg.mxu0
        %4658 = vmatprep.subr.mxu0 %v4188
        %4659 = vmatpush1.msra.mxu0 %v4187
        %4660 = vmatprep.subr.mxu0 0.0
        %4661 = vmatpush1.msra.mxu0 0.0
        %4662 = vmatprep.subr.mxu0 0.0
        %4663 = vmatpush1.msra.mxu0 0.0
        %4664 = vmatprep.subr.mxu0 0.0
        %4665 = vmatpush1.msra.mxu0 0.0
        %4666 = vmatprep.subr.mxu0 0.0
        %4667 = vmatpush1.msra.mxu0 0.0
        %4668 = vmatprep.subr.mxu0 0.0
        %4669 = vmatpush1.msra.mxu0 0.0
        %4670 = vmatprep.subr.mxu0 0.0
        %4671 = vmatpush1.msra.mxu0 0.0
        %4672 = vmatprep.subr.mxu0 0.0
        %4673 = vmatpush1.msra.mxu0 0.0
        %4674 = vmatprep.subr.mxu0 0.0
        %4675 = vmatpush1.msra.mxu0 0.0
        %4676 = vmatprep.subr.mxu0 0.0
        %4677 = vmatpush1.msra.mxu0 0.0
        %4678 = vmatprep.subr.mxu0 0.0
        %4679 = vmatpush1.msra.mxu0 0.0
        %4680 = vmatprep.subr.mxu0 0.0
        %4681 = vmatpush1.msra.mxu0 0.0
        %4682 = vmatprep.subr.mxu0 0.0
        %4683 = vmatpush1.msra.mxu0 0.0
        %4684 = vmatprep.subr.mxu0 0.0
        %4685 = vmatpush1.msra.mxu0 0.0
        %4686 = vmatprep.subr.mxu0 0.0
        %4687 = vmatpush1.msra.mxu0 0.0
        %4688 = vmatprep.subr.mxu0 0.0
        %4689 = vmatpush1.msra.mxu0 0.0
        %4690 = vmatprep.subr.mxu0 0.0
        %4691 = vmatpush1.msra.mxu0 0.0
        %4692 = vmatprep.subr.mxu0 0.0
        %4693 = vmatpush1.msra.mxu0 0.0
        %4694 = vmatprep.subr.mxu0 0.0
        %4695 = vmatpush1.msra.mxu0 0.0
        %4696 = vmatprep.subr.mxu0 0.0
        %4697 = vmatpush1.msra.mxu0 0.0
        %4698 = vmatprep.subr.mxu0 0.0
        %4699 = vmatpush1.msra.mxu0 0.0
        %4700 = vmatprep.subr.mxu0 0.0
        %4701 = vmatpush1.msra.mxu0 0.0
        %4702 = vmatprep.subr.mxu0 0.0
        %4703 = vmatpush1.msra.mxu0 0.0
        %4704 = vmatprep.subr.mxu0 0.0
        %4705 = vmatpush1.msra.mxu0 0.0
        %4706 = vmatprep.subr.mxu0 0.0
        %4707 = vmatpush1.msra.mxu0 0.0
        %4708 = vmatprep.subr.mxu0 0.0
        %4709 = vmatpush1.msra.mxu0 0.0
        %4710 = vmatprep.subr.mxu0 0.0
        %4711 = vmatpush1.msra.mxu0 0.0
        %4712 = vmatprep.subr.mxu0 0.0
        %4713 = vmatpush1.msra.mxu0 0.0
        %4714 = vmatprep.subr.mxu0 0.0
        %4715 = vmatpush1.msra.mxu0 0.0
        %4716 = vmatprep.subr.mxu0 0.0
        %4717 = vmatpush1.msra.mxu0 0.0
        %4718 = vmatprep.subr.mxu0 0.0
        %4719 = vmatpush1.msra.mxu0 0.0
        %4720 = vmatprep.subr.mxu0 0.0
        %4721 = vmatpush1.msra.mxu0 0.0
        %4722 = vmatprep.mubr.f32.mxu0 0.0
        %4723 = vmatmul.mubr.f32.gmra.mrb[0].mxu0 %v4514
        %v4724 = vpop.f32.mrb[0].mxu0
        %v4725 = vadd.f32 %v4438, %v4724
        %v4726 = vpop.f32.mrb[0].mxu0
        %v4727 = vadd.f32 %v4440, %v4726
        %4728 = vdwg.mxu0
        %4729 = vmatprep.subr.mxu0 %v4190
        %4730 = vmatpush1.msra.mxu0 %v4189
        %4731 = vmatprep.subr.mxu0 0.0
        %4732 = vmatpush1.msra.mxu0 0.0
        %4733 = vmatprep.subr.mxu0 0.0
        %4734 = vmatpush1.msra.mxu0 0.0
        %4735 = vmatprep.subr.mxu0 0.0
        %4736 = vmatpush1.msra.mxu0 0.0
        %4737 = vmatprep.subr.mxu0 0.0
        %4738 = vmatpush1.msra.mxu0 0.0
        %4739 = vmatprep.subr.mxu0 0.0
        %4740 = vmatpush1.msra.mxu0 0.0
        %4741 = vmatprep.subr.mxu0 0.0
        %4742 = vmatpush1.msra.mxu0 0.0
        %4743 = vmatprep.subr.mxu0 0.0
        %4744 = vmatpush1.msra.mxu0 0.0
        %4745 = vmatprep.subr.mxu0 0.0
        %4746 = vmatpush1.msra.mxu0 0.0
        %4747 = vmatprep.subr.mxu0 0.0
        %4748 = vmatpush1.msra.mxu0 0.0
        %4749 = vmatprep.subr.mxu0 0.0
        %4750 = vmatpush1.msra.mxu0 0.0
        %4751 = vmatprep.subr.mxu0 0.0
        %4752 = vmatpush1.msra.mxu0 0.0
        %4753 = vmatprep.subr.mxu0 0.0
        %4754 = vmatpush1.msra.mxu0 0.0
        %4755 = vmatprep.subr.mxu0 0.0
        %4756 = vmatpush1.msra.mxu0 0.0
        %4757 = vmatprep.subr.mxu0 0.0
        %4758 = vmatpush1.msra.mxu0 0.0
        %4759 = vmatprep.subr.mxu0 0.0
        %4760 = vmatpush1.msra.mxu0 0.0
        %4761 = vmatprep.subr.mxu0 0.0
        %4762 = vmatpush1.msra.mxu0 0.0
        %4763 = vmatprep.subr.mxu0 0.0
        %4764 = vmatpush1.msra.mxu0 0.0
        %4765 = vmatprep.subr.mxu0 0.0
        %4766 = vmatpush1.msra.mxu0 0.0
        %4767 = vmatprep.subr.mxu0 0.0
        %4768 = vmatpush1.msra.mxu0 0.0
        %4769 = vmatprep.subr.mxu0 0.0
        %4770 = vmatpush1.msra.mxu0 0.0
        %4771 = vmatprep.subr.mxu0 0.0
        %4772 = vmatpush1.msra.mxu0 0.0
        %4773 = vmatprep.subr.mxu0 0.0
        %4774 = vmatpush1.msra.mxu0 0.0
        %4775 = vmatprep.subr.mxu0 0.0
        %4776 = vmatpush1.msra.mxu0 0.0
        %4777 = vmatprep.subr.mxu0 0.0
        %4778 = vmatpush1.msra.mxu0 0.0
        %4779 = vmatprep.subr.mxu0 0.0
        %4780 = vmatpush1.msra.mxu0 0.0
        %4781 = vmatprep.subr.mxu0 0.0
        %4782 = vmatpush1.msra.mxu0 0.0
        %4783 = vmatprep.subr.mxu0 0.0
        %4784 = vmatpush1.msra.mxu0 0.0
        %4785 = vmatprep.subr.mxu0 0.0
        %4786 = vmatpush1.msra.mxu0 0.0
        %4787 = vmatprep.subr.mxu0 0.0
        %4788 = vmatpush1.msra.mxu0 0.0
        %4789 = vmatprep.subr.mxu0 0.0
        %4790 = vmatpush1.msra.mxu0 0.0
        %4791 = vmatprep.subr.mxu0 0.0
        %4792 = vmatpush1.msra.mxu0 0.0
        %4793 = vmatprep.mubr.f32.mxu0 0.0
        %4794 = vmatmul.mubr.f32.gmra.mrb[0].mxu0 %v4514
        %v4795 = vpop.f32.mrb[0].mxu0
        %v4796 = vadd.f32 %v4509, %v4795
        %v4797 = vpop.f32.mrb[0].mxu0
        %v4798 = vadd.f32 %v4511, %v4797
        %4799 = vdwg.mxu0
        %4800 = vrot.lane.b32.xlu0 %v4151, 31
        %v4801 = vpop.permute.xlu0 %4800
        %4802 = vrot.lane.b32.xlu0 %v4152, 31
        %v4803 = vpop.permute.xlu0 %4802
        %4804 = vrot.lane.b32.xlu0 %v4153, 31
        %v4805 = vpop.permute.xlu0 %4804
        %4806 = vrot.lane.b32.xlu0 %v4154, 31
        %v4807 = vpop.permute.xlu0 %4806
        %4808 = vrot.lane.b32.xlu0 %v4155, 31
        %v4809 = vpop.permute.xlu0 %4808
        %4810 = vrot.lane.b32.xlu0 %v4156, 31
        %v4811 = vpop.permute.xlu0 %4810
        %4812 = vrot.lane.b32.xlu0 %v4157, 31
        %v4813 = vpop.permute.xlu0 %4812
        %4814 = vrot.lane.b32.xlu0 %v4158, 31
        %v4815 = vpop.permute.xlu0 %4814
        %v4816 = vsel %vm1550, %v4813, %v4815
        %v4817 = vsel %vm1550, %v4811, %v4813
        %v4818 = vsel %vm1550, %v4809, %v4811
        %v4819 = vsel %vm1550, %v4807, %v4809
        %v4820 = vsel %vm1550, %v4805, %v4807
        %v4821 = vsel %vm1550, %v4803, %v4805
        %v4822 = vsel %vm1550, %v4801, %v4803
        %v4823 = vsel %vm1550, %v4815, %v4801
        %v4824 = vsel %vm324, %v4823, 0.0
        %v4825 = vsel %vm325, %v4822, 0.0
        %v4826 = vsel %vm326, %v4821, 0.0
        %v4827 = vsel %vm327, %v4820, 0.0
        %v4828 = vsel %vm328, %v4819, 0.0
        %v4829 = vsel %vm329, %v4818, 0.0
        %v4830 = vsel %vm330, %v4817, 0.0
        %v4831 = vsel %vm331, %v4816, 0.0
        %s4832 = scalar_lea.vmem %s4, 16
        %v4833 = vld [vmem:[%s4832] sm:$0xff]
        %v4835 = vsel %vm959, %v4833, 0
        %4837 = vmatprep.subr.mxu0 %v4825
        %4838 = vmatpush1.msra.mxu0 %v4824
        %4839 = vmatprep.subr.mxu0 0.0
        %4840 = vmatpush1.msra.mxu0 0.0
        %4841 = vmatprep.subr.mxu0 0.0
        %4842 = vmatpush1.msra.mxu0 0.0
        %4843 = vmatprep.subr.mxu0 0.0
        %4844 = vmatpush1.msra.mxu0 0.0
        %4845 = vmatprep.subr.mxu0 0.0
        %4846 = vmatpush1.msra.mxu0 0.0
        %4847 = vmatprep.subr.mxu0 0.0
        %4848 = vmatpush1.msra.mxu0 0.0
        %4849 = vmatprep.subr.mxu0 0.0
        %4850 = vmatpush1.msra.mxu0 0.0
        %4851 = vmatprep.subr.mxu0 0.0
        %4852 = vmatpush1.msra.mxu0 0.0
        %4853 = vmatprep.subr.mxu0 0.0
        %4854 = vmatpush1.msra.mxu0 0.0
        %4855 = vmatprep.subr.mxu0 0.0
        %4856 = vmatpush1.msra.mxu0 0.0
        %4857 = vmatprep.subr.mxu0 0.0
        %4858 = vmatpush1.msra.mxu0 0.0
        %4859 = vmatprep.subr.mxu0 0.0
        %4860 = vmatpush1.msra.mxu0 0.0
        %4861 = vmatprep.subr.mxu0 0.0
        %4862 = vmatpush1.msra.mxu0 0.0
        %4863 = vmatprep.subr.mxu0 0.0
        %4864 = vmatpush1.msra.mxu0 0.0
        %4865 = vmatprep.subr.mxu0 0.0
        %4866 = vmatpush1.msra.mxu0 0.0
        %4867 = vmatprep.subr.mxu0 0.0
        %4868 = vmatpush1.msra.mxu0 0.0
        %4869 = vmatprep.subr.mxu0 0.0
        %4870 = vmatpush1.msra.mxu0 0.0
        %4871 = vmatprep.subr.mxu0 0.0
        %4872 = vmatpush1.msra.mxu0 0.0
        %4873 = vmatprep.subr.mxu0 0.0
        %4874 = vmatpush1.msra.mxu0 0.0
        %4875 = vmatprep.subr.mxu0 0.0
        %4876 = vmatpush1.msra.mxu0 0.0
        %4877 = vmatprep.subr.mxu0 0.0
        %4878 = vmatpush1.msra.mxu0 0.0
        %4879 = vmatprep.subr.mxu0 0.0
        %4880 = vmatpush1.msra.mxu0 0.0
        %4881 = vmatprep.subr.mxu0 0.0
        %4882 = vmatpush1.msra.mxu0 0.0
        %4883 = vmatprep.subr.mxu0 0.0
        %4884 = vmatpush1.msra.mxu0 0.0
        %4885 = vmatprep.subr.mxu0 0.0
        %4886 = vmatpush1.msra.mxu0 0.0
        %4887 = vmatprep.subr.mxu0 0.0
        %4888 = vmatpush1.msra.mxu0 0.0
        %4889 = vmatprep.subr.mxu0 0.0
        %4890 = vmatpush1.msra.mxu0 0.0
        %4891 = vmatprep.subr.mxu0 0.0
        %4892 = vmatpush1.msra.mxu0 0.0
        %4893 = vmatprep.subr.mxu0 0.0
        %4894 = vmatpush1.msra.mxu0 0.0
        %4895 = vmatprep.subr.mxu0 0.0
        %4896 = vmatpush1.msra.mxu0 0.0
        %4897 = vmatprep.subr.mxu0 0.0
        %4898 = vmatpush1.msra.mxu0 0.0
        %4899 = vmatprep.subr.mxu0 0.0
        %4900 = vmatpush1.msra.mxu0 0.0
        %4901 = vmatprep.mubr.f32.mxu0 0.0
        %4902 = vmatmul.mubr.f32.gmra.mrb[0].mxu0 %v4835
        %v4903 = vpop.f32.mrb[0].mxu0
        %v4904 = vadd.f32 0.0, %v4903
        %v4905 = vpop.f32.mrb[0].mxu0
        %v4906 = vadd.f32 0.0, %v4905
        %4907 = vdwg.mxu0
        %4908 = vmatprep.subr.mxu0 %v4827
        %4909 = vmatpush1.msra.mxu0 %v4826
        %4910 = vmatprep.subr.mxu0 0.0
        %4911 = vmatpush1.msra.mxu0 0.0
        %4912 = vmatprep.subr.mxu0 0.0
        %4913 = vmatpush1.msra.mxu0 0.0
        %4914 = vmatprep.subr.mxu0 0.0
        %4915 = vmatpush1.msra.mxu0 0.0
        %4916 = vmatprep.subr.mxu0 0.0
        %4917 = vmatpush1.msra.mxu0 0.0
        %4918 = vmatprep.subr.mxu0 0.0
        %4919 = vmatpush1.msra.mxu0 0.0
        %4920 = vmatprep.subr.mxu0 0.0
        %4921 = vmatpush1.msra.mxu0 0.0
        %4922 = vmatprep.subr.mxu0 0.0
        %4923 = vmatpush1.msra.mxu0 0.0
        %4924 = vmatprep.subr.mxu0 0.0
        %4925 = vmatpush1.msra.mxu0 0.0
        %4926 = vmatprep.subr.mxu0 0.0
        %4927 = vmatpush1.msra.mxu0 0.0
        %4928 = vmatprep.subr.mxu0 0.0
        %4929 = vmatpush1.msra.mxu0 0.0
        %4930 = vmatprep.subr.mxu0 0.0
        %4931 = vmatpush1.msra.mxu0 0.0
        %4932 = vmatprep.subr.mxu0 0.0
        %4933 = vmatpush1.msra.mxu0 0.0
        %4934 = vmatprep.subr.mxu0 0.0
        %4935 = vmatpush1.msra.mxu0 0.0
        %4936 = vmatprep.subr.mxu0 0.0
        %4937 = vmatpush1.msra.mxu0 0.0
        %4938 = vmatprep.subr.mxu0 0.0
        %4939 = vmatpush1.msra.mxu0 0.0
        %4940 = vmatprep.subr.mxu0 0.0
        %4941 = vmatpush1.msra.mxu0 0.0
        %4942 = vmatprep.subr.mxu0 0.0
        %4943 = vmatpush1.msra.mxu0 0.0
        %4944 = vmatprep.subr.mxu0 0.0
        %4945 = vmatpush1.msra.mxu0 0.0
        %4946 = vmatprep.subr.mxu0 0.0
        %4947 = vmatpush1.msra.mxu0 0.0
        %4948 = vmatprep.subr.mxu0 0.0
        %4949 = vmatpush1.msra.mxu0 0.0
        %4950 = vmatprep.subr.mxu0 0.0
        %4951 = vmatpush1.msra.mxu0 0.0
        %4952 = vmatprep.subr.mxu0 0.0
        %4953 = vmatpush1.msra.mxu0 0.0
        %4954 = vmatprep.subr.mxu0 0.0
        %4955 = vmatpush1.msra.mxu0 0.0
        %4956 = vmatprep.subr.mxu0 0.0
        %4957 = vmatpush1.msra.mxu0 0.0
        %4958 = vmatprep.subr.mxu0 0.0
        %4959 = vmatpush1.msra.mxu0 0.0
        %4960 = vmatprep.subr.mxu0 0.0
        %4961 = vmatpush1.msra.mxu0 0.0
        %4962 = vmatprep.subr.mxu0 0.0
        %4963 = vmatpush1.msra.mxu0 0.0
        %4964 = vmatprep.subr.mxu0 0.0
        %4965 = vmatpush1.msra.mxu0 0.0
        %4966 = vmatprep.subr.mxu0 0.0
        %4967 = vmatpush1.msra.mxu0 0.0
        %4968 = vmatprep.subr.mxu0 0.0
        %4969 = vmatpush1.msra.mxu0 0.0
        %4970 = vmatprep.subr.mxu0 0.0
        %4971 = vmatpush1.msra.mxu0 0.0
        %4972 = vmatprep.mubr.f32.mxu0 0.0
        %4973 = vmatmul.mubr.f32.gmra.mrb[0].mxu0 %v4835
        %v4974 = vpop.f32.mrb[0].mxu0
        %v4975 = vadd.f32 0.0, %v4974
        %v4976 = vpop.f32.mrb[0].mxu0
        %v4977 = vadd.f32 0.0, %v4976
        %4978 = vdwg.mxu0
        %4979 = vmatprep.subr.mxu0 %v4829
        %4980 = vmatpush1.msra.mxu0 %v4828
        %4981 = vmatprep.subr.mxu0 0.0
        %4982 = vmatpush1.msra.mxu0 0.0
        %4983 = vmatprep.subr.mxu0 0.0
        %4984 = vmatpush1.msra.mxu0 0.0
        %4985 = vmatprep.subr.mxu0 0.0
        %4986 = vmatpush1.msra.mxu0 0.0
        %4987 = vmatprep.subr.mxu0 0.0
        %4988 = vmatpush1.msra.mxu0 0.0
        %4989 = vmatprep.subr.mxu0 0.0
        %4990 = vmatpush1.msra.mxu0 0.0
        %4991 = vmatprep.subr.mxu0 0.0
        %4992 = vmatpush1.msra.mxu0 0.0
        %4993 = vmatprep.subr.mxu0 0.0
        %4994 = vmatpush1.msra.mxu0 0.0
        %4995 = vmatprep.subr.mxu0 0.0
        %4996 = vmatpush1.msra.mxu0 0.0
        %4997 = vmatprep.subr.mxu0 0.0
        %4998 = vmatpush1.msra.mxu0 0.0
        %4999 = vmatprep.subr.mxu0 0.0
        %5000 = vmatpush1.msra.mxu0 0.0
        %5001 = vmatprep.subr.mxu0 0.0
        %5002 = vmatpush1.msra.mxu0 0.0
        %5003 = vmatprep.subr.mxu0 0.0
        %5004 = vmatpush1.msra.mxu0 0.0
        %5005 = vmatprep.subr.mxu0 0.0
        %5006 = vmatpush1.msra.mxu0 0.0
        %5007 = vmatprep.subr.mxu0 0.0
        %5008 = vmatpush1.msra.mxu0 0.0
        %5009 = vmatprep.subr.mxu0 0.0
        %5010 = vmatpush1.msra.mxu0 0.0
        %5011 = vmatprep.subr.mxu0 0.0
        %5012 = vmatpush1.msra.mxu0 0.0
        %5013 = vmatprep.subr.mxu0 0.0
        %5014 = vmatpush1.msra.mxu0 0.0
        %5015 = vmatprep.subr.mxu0 0.0
        %5016 = vmatpush1.msra.mxu0 0.0
        %5017 = vmatprep.subr.mxu0 0.0
        %5018 = vmatpush1.msra.mxu0 0.0
        %5019 = vmatprep.subr.mxu0 0.0
        %5020 = vmatpush1.msra.mxu0 0.0
        %5021 = vmatprep.subr.mxu0 0.0
        %5022 = vmatpush1.msra.mxu0 0.0
        %5023 = vmatprep.subr.mxu0 0.0
        %5024 = vmatpush1.msra.mxu0 0.0
        %5025 = vmatprep.subr.mxu0 0.0
        %5026 = vmatpush1.msra.mxu0 0.0
        %5027 = vmatprep.subr.mxu0 0.0
        %5028 = vmatpush1.msra.mxu0 0.0
        %5029 = vmatprep.subr.mxu0 0.0
        %5030 = vmatpush1.msra.mxu0 0.0
        %5031 = vmatprep.subr.mxu0 0.0
        %5032 = vmatpush1.msra.mxu0 0.0
        %5033 = vmatprep.subr.mxu0 0.0
        %5034 = vmatpush1.msra.mxu0 0.0
        %5035 = vmatprep.subr.mxu0 0.0
        %5036 = vmatpush1.msra.mxu0 0.0
        %5037 = vmatprep.subr.mxu0 0.0
        %5038 = vmatpush1.msra.mxu0 0.0
        %5039 = vmatprep.subr.mxu0 0.0
        %5040 = vmatpush1.msra.mxu0 0.0
        %5041 = vmatprep.subr.mxu0 0.0
        %5042 = vmatpush1.msra.mxu0 0.0
        %5043 = vmatprep.mubr.f32.mxu0 0.0
        %5044 = vmatmul.mubr.f32.gmra.mrb[0].mxu0 %v4835
        %v5045 = vpop.f32.mrb[0].mxu0
        %v5046 = vadd.f32 0.0, %v5045
        %v5047 = vpop.f32.mrb[0].mxu0
        %v5048 = vadd.f32 0.0, %v5047
        %5049 = vdwg.mxu0
        %5050 = vmatprep.subr.mxu0 %v4831
        %5051 = vmatpush1.msra.mxu0 %v4830
        %5052 = vmatprep.subr.mxu0 0.0
        %5053 = vmatpush1.msra.mxu0 0.0
        %5054 = vmatprep.subr.mxu0 0.0
        %5055 = vmatpush1.msra.mxu0 0.0
        %5056 = vmatprep.subr.mxu0 0.0
        %5057 = vmatpush1.msra.mxu0 0.0
        %5058 = vmatprep.subr.mxu0 0.0
        %5059 = vmatpush1.msra.mxu0 0.0
        %5060 = vmatprep.subr.mxu0 0.0
        %5061 = vmatpush1.msra.mxu0 0.0
        %5062 = vmatprep.subr.mxu0 0.0
        %5063 = vmatpush1.msra.mxu0 0.0
        %5064 = vmatprep.subr.mxu0 0.0
        %5065 = vmatpush1.msra.mxu0 0.0
        %5066 = vmatprep.subr.mxu0 0.0
        %5067 = vmatpush1.msra.mxu0 0.0
        %5068 = vmatprep.subr.mxu0 0.0
        %5069 = vmatpush1.msra.mxu0 0.0
        %5070 = vmatprep.subr.mxu0 0.0
        %5071 = vmatpush1.msra.mxu0 0.0
        %5072 = vmatprep.subr.mxu0 0.0
        %5073 = vmatpush1.msra.mxu0 0.0
        %5074 = vmatprep.subr.mxu0 0.0
        %5075 = vmatpush1.msra.mxu0 0.0
        %5076 = vmatprep.subr.mxu0 0.0
        %5077 = vmatpush1.msra.mxu0 0.0
        %5078 = vmatprep.subr.mxu0 0.0
        %5079 = vmatpush1.msra.mxu0 0.0
        %5080 = vmatprep.subr.mxu0 0.0
        %5081 = vmatpush1.msra.mxu0 0.0
        %5082 = vmatprep.subr.mxu0 0.0
        %5083 = vmatpush1.msra.mxu0 0.0
        %5084 = vmatprep.subr.mxu0 0.0
        %5085 = vmatpush1.msra.mxu0 0.0
        %5086 = vmatprep.subr.mxu0 0.0
        %5087 = vmatpush1.msra.mxu0 0.0
        %5088 = vmatprep.subr.mxu0 0.0
        %5089 = vmatpush1.msra.mxu0 0.0
        %5090 = vmatprep.subr.mxu0 0.0
        %5091 = vmatpush1.msra.mxu0 0.0
        %5092 = vmatprep.subr.mxu0 0.0
        %5093 = vmatpush1.msra.mxu0 0.0
        %5094 = vmatprep.subr.mxu0 0.0
        %5095 = vmatpush1.msra.mxu0 0.0
        %5096 = vmatprep.subr.mxu0 0.0
        %5097 = vmatpush1.msra.mxu0 0.0
        %5098 = vmatprep.subr.mxu0 0.0
        %5099 = vmatpush1.msra.mxu0 0.0
        %5100 = vmatprep.subr.mxu0 0.0
        %5101 = vmatpush1.msra.mxu0 0.0
        %5102 = vmatprep.subr.mxu0 0.0
        %5103 = vmatpush1.msra.mxu0 0.0
        %5104 = vmatprep.subr.mxu0 0.0
        %5105 = vmatpush1.msra.mxu0 0.0
        %5106 = vmatprep.subr.mxu0 0.0
        %5107 = vmatpush1.msra.mxu0 0.0
        %5108 = vmatprep.subr.mxu0 0.0
        %5109 = vmatpush1.msra.mxu0 0.0
        %5110 = vmatprep.subr.mxu0 0.0
        %5111 = vmatpush1.msra.mxu0 0.0
        %5112 = vmatprep.subr.mxu0 0.0
        %5113 = vmatpush1.msra.mxu0 0.0
        %5114 = vmatprep.mubr.f32.mxu0 0.0
        %5115 = vmatmul.mubr.f32.gmra.mrb[0].mxu0 %v4835
        %v5116 = vpop.f32.mrb[0].mxu0
        %v5117 = vadd.f32 0.0, %v5116
        %v5118 = vpop.f32.mrb[0].mxu0
        %v5119 = vadd.f32 0.0, %v5118
        %5120 = vdwg.mxu0
        %v5121 = vadd.f32 %v4583, %v4904
        %v5122 = vadd.f32 %v4585, %v4906
        %v5123 = vadd.f32 %v4654, %v4975
        %v5124 = vadd.f32 %v4656, %v4977
        %v5125 = vadd.f32 %v4725, %v5046
        %v5126 = vadd.f32 %v4727, %v5048
        %v5127 = vadd.f32 %v4796, %v5117
        %v5128 = vadd.f32 %v4798, %v5119
        %5129 = vrot.lane.b32.xlu0 %v4151, 1
        %v5130 = vpop.permute.xlu0 %5129
        %5131 = vrot.lane.b32.xlu0 %v4152, 1
        %v5132 = vpop.permute.xlu0 %5131
        %5133 = vrot.lane.b32.xlu0 %v4153, 1
        %v5134 = vpop.permute.xlu0 %5133
        %5135 = vrot.lane.b32.xlu0 %v4154, 1
        %v5136 = vpop.permute.xlu0 %5135
        %5137 = vrot.lane.b32.xlu0 %v4155, 1
        %v5138 = vpop.permute.xlu0 %5137
        %5139 = vrot.lane.b32.xlu0 %v4156, 1
        %v5140 = vpop.permute.xlu0 %5139
        %5141 = vrot.lane.b32.xlu0 %v4157, 1
        %v5142 = vpop.permute.xlu0 %5141
        %5143 = vrot.lane.b32.xlu0 %v4158, 1
        %v5144 = vpop.permute.xlu0 %5143
        %v5145 = vsel %vm1880, %v5142, %v5144
        %v5146 = vsel %vm1880, %v5140, %v5142
        %v5147 = vsel %vm1880, %v5138, %v5140
        %v5148 = vsel %vm1880, %v5136, %v5138
        %v5149 = vsel %vm1880, %v5134, %v5136
        %v5150 = vsel %vm1880, %v5132, %v5134
        %v5151 = vsel %vm1880, %v5130, %v5132
        %v5152 = vsel %vm1880, %v5144, %v5130
        %v5153 = vsel %vm300, %v5152, 0.0
        %v5154 = vsel %vm301, %v5151, 0.0
        %v5155 = vsel %vm302, %v5150, 0.0
        %v5156 = vsel %vm303, %v5149, 0.0
        %v5157 = vsel %vm304, %v5148, 0.0
        %v5158 = vsel %vm305, %v5147, 0.0
        %v5159 = vsel %vm306, %v5146, 0.0
        %v5160 = vsel %vm307, %v5145, 0.0
        %s5161 = scalar_lea.vmem %s4, 24
        %v5162 = vld [vmem:[%s5161] sm:$0xff]
        %v5164 = vsel %vm959, %v5162, 0
        %5166 = vmatprep.subr.mxu0 %v5154
        %5167 = vmatpush1.msra.mxu0 %v5153
        %5168 = vmatprep.subr.mxu0 0.0
        %5169 = vmatpush1.msra.mxu0 0.0
        %5170 = vmatprep.subr.mxu0 0.0
        %5171 = vmatpush1.msra.mxu0 0.0
        %5172 = vmatprep.subr.mxu0 0.0
        %5173 = vmatpush1.msra.mxu0 0.0
        %5174 = vmatprep.subr.mxu0 0.0
        %5175 = vmatpush1.msra.mxu0 0.0
        %5176 = vmatprep.subr.mxu0 0.0
        %5177 = vmatpush1.msra.mxu0 0.0
        %5178 = vmatprep.subr.mxu0 0.0
        %5179 = vmatpush1.msra.mxu0 0.0
        %5180 = vmatprep.subr.mxu0 0.0
        %5181 = vmatpush1.msra.mxu0 0.0
        %5182 = vmatprep.subr.mxu0 0.0
        %5183 = vmatpush1.msra.mxu0 0.0
        %5184 = vmatprep.subr.mxu0 0.0
        %5185 = vmatpush1.msra.mxu0 0.0
        %5186 = vmatprep.subr.mxu0 0.0
        %5187 = vmatpush1.msra.mxu0 0.0
        %5188 = vmatprep.subr.mxu0 0.0
        %5189 = vmatpush1.msra.mxu0 0.0
        %5190 = vmatprep.subr.mxu0 0.0
        %5191 = vmatpush1.msra.mxu0 0.0
        %5192 = vmatprep.subr.mxu0 0.0
        %5193 = vmatpush1.msra.mxu0 0.0
        %5194 = vmatprep.subr.mxu0 0.0
        %5195 = vmatpush1.msra.mxu0 0.0
        %5196 = vmatprep.subr.mxu0 0.0
        %5197 = vmatpush1.msra.mxu0 0.0
        %5198 = vmatprep.subr.mxu0 0.0
        %5199 = vmatpush1.msra.mxu0 0.0
        %5200 = vmatprep.subr.mxu0 0.0
        %5201 = vmatpush1.msra.mxu0 0.0
        %5202 = vmatprep.subr.mxu0 0.0
        %5203 = vmatpush1.msra.mxu0 0.0
        %5204 = vmatprep.subr.mxu0 0.0
        %5205 = vmatpush1.msra.mxu0 0.0
        %5206 = vmatprep.subr.mxu0 0.0
        %5207 = vmatpush1.msra.mxu0 0.0
        %5208 = vmatprep.subr.mxu0 0.0
        %5209 = vmatpush1.msra.mxu0 0.0
        %5210 = vmatprep.subr.mxu0 0.0
        %5211 = vmatpush1.msra.mxu0 0.0
        %5212 = vmatprep.subr.mxu0 0.0
        %5213 = vmatpush1.msra.mxu0 0.0
        %5214 = vmatprep.subr.mxu0 0.0
        %5215 = vmatpush1.msra.mxu0 0.0
        %5216 = vmatprep.subr.mxu0 0.0
        %5217 = vmatpush1.msra.mxu0 0.0
        %5218 = vmatprep.subr.mxu0 0.0
        %5219 = vmatpush1.msra.mxu0 0.0
        %5220 = vmatprep.subr.mxu0 0.0
        %5221 = vmatpush1.msra.mxu0 0.0
        %5222 = vmatprep.subr.mxu0 0.0
        %5223 = vmatpush1.msra.mxu0 0.0
        %5224 = vmatprep.subr.mxu0 0.0
        %5225 = vmatpush1.msra.mxu0 0.0
        %5226 = vmatprep.subr.mxu0 0.0
        %5227 = vmatpush1.msra.mxu0 0.0
        %5228 = vmatprep.subr.mxu0 0.0
        %5229 = vmatpush1.msra.mxu0 0.0
        %5230 = vmatprep.mubr.f32.mxu0 0.0
        %5231 = vmatmul.mubr.f32.gmra.mrb[0].mxu0 %v5164
        %v5232 = vpop.f32.mrb[0].mxu0
        %v5233 = vadd.f32 0.0, %v5232
        %v5234 = vpop.f32.mrb[0].mxu0
        %v5235 = vadd.f32 0.0, %v5234
        %5236 = vdwg.mxu0
        %5237 = vmatprep.subr.mxu0 %v5156
        %5238 = vmatpush1.msra.mxu0 %v5155
        %5239 = vmatprep.subr.mxu0 0.0
        %5240 = vmatpush1.msra.mxu0 0.0
        %5241 = vmatprep.subr.mxu0 0.0
        %5242 = vmatpush1.msra.mxu0 0.0
        %5243 = vmatprep.subr.mxu0 0.0
        %5244 = vmatpush1.msra.mxu0 0.0
        %5245 = vmatprep.subr.mxu0 0.0
        %5246 = vmatpush1.msra.mxu0 0.0
        %5247 = vmatprep.subr.mxu0 0.0
        %5248 = vmatpush1.msra.mxu0 0.0
        %5249 = vmatprep.subr.mxu0 0.0
        %5250 = vmatpush1.msra.mxu0 0.0
        %5251 = vmatprep.subr.mxu0 0.0
        %5252 = vmatpush1.msra.mxu0 0.0
        %5253 = vmatprep.subr.mxu0 0.0
        %5254 = vmatpush1.msra.mxu0 0.0
        %5255 = vmatprep.subr.mxu0 0.0
        %5256 = vmatpush1.msra.mxu0 0.0
        %5257 = vmatprep.subr.mxu0 0.0
        %5258 = vmatpush1.msra.mxu0 0.0
        %5259 = vmatprep.subr.mxu0 0.0
        %5260 = vmatpush1.msra.mxu0 0.0
        %5261 = vmatprep.subr.mxu0 0.0
        %5262 = vmatpush1.msra.mxu0 0.0
        %5263 = vmatprep.subr.mxu0 0.0
        %5264 = vmatpush1.msra.mxu0 0.0
        %5265 = vmatprep.subr.mxu0 0.0
        %5266 = vmatpush1.msra.mxu0 0.0
        %5267 = vmatprep.subr.mxu0 0.0
        %5268 = vmatpush1.msra.mxu0 0.0
        %5269 = vmatprep.subr.mxu0 0.0
        %5270 = vmatpush1.msra.mxu0 0.0
        %5271 = vmatprep.subr.mxu0 0.0
        %5272 = vmatpush1.msra.mxu0 0.0
        %5273 = vmatprep.subr.mxu0 0.0
        %5274 = vmatpush1.msra.mxu0 0.0
        %5275 = vmatprep.subr.mxu0 0.0
        %5276 = vmatpush1.msra.mxu0 0.0
        %5277 = vmatprep.subr.mxu0 0.0
        %5278 = vmatpush1.msra.mxu0 0.0
        %5279 = vmatprep.subr.mxu0 0.0
        %5280 = vmatpush1.msra.mxu0 0.0
        %5281 = vmatprep.subr.mxu0 0.0
        %5282 = vmatpush1.msra.mxu0 0.0
        %5283 = vmatprep.subr.mxu0 0.0
        %5284 = vmatpush1.msra.mxu0 0.0
        %5285 = vmatprep.subr.mxu0 0.0
        %5286 = vmatpush1.msra.mxu0 0.0
        %5287 = vmatprep.subr.mxu0 0.0
        %5288 = vmatpush1.msra.mxu0 0.0
        %5289 = vmatprep.subr.mxu0 0.0
        %5290 = vmatpush1.msra.mxu0 0.0
        %5291 = vmatprep.subr.mxu0 0.0
        %5292 = vmatpush1.msra.mxu0 0.0
        %5293 = vmatprep.subr.mxu0 0.0
        %5294 = vmatpush1.msra.mxu0 0.0
        %5295 = vmatprep.subr.mxu0 0.0
        %5296 = vmatpush1.msra.mxu0 0.0
        %5297 = vmatprep.subr.mxu0 0.0
        %5298 = vmatpush1.msra.mxu0 0.0
        %5299 = vmatprep.subr.mxu0 0.0
        %5300 = vmatpush1.msra.mxu0 0.0
        %5301 = vmatprep.mubr.f32.mxu0 0.0
        %5302 = vmatmul.mubr.f32.gmra.mrb[0].mxu0 %v5164
        %v5303 = vpop.f32.mrb[0].mxu0
        %v5304 = vadd.f32 0.0, %v5303
        %v5305 = vpop.f32.mrb[0].mxu0
        %v5306 = vadd.f32 0.0, %v5305
        %5307 = vdwg.mxu0
        %5308 = vmatprep.subr.mxu0 %v5158
        %5309 = vmatpush1.msra.mxu0 %v5157
        %5310 = vmatprep.subr.mxu0 0.0
        %5311 = vmatpush1.msra.mxu0 0.0
        %5312 = vmatprep.subr.mxu0 0.0
        %5313 = vmatpush1.msra.mxu0 0.0
        %5314 = vmatprep.subr.mxu0 0.0
        %5315 = vmatpush1.msra.mxu0 0.0
        %5316 = vmatprep.subr.mxu0 0.0
        %5317 = vmatpush1.msra.mxu0 0.0
        %5318 = vmatprep.subr.mxu0 0.0
        %5319 = vmatpush1.msra.mxu0 0.0
        %5320 = vmatprep.subr.mxu0 0.0
        %5321 = vmatpush1.msra.mxu0 0.0
        %5322 = vmatprep.subr.mxu0 0.0
        %5323 = vmatpush1.msra.mxu0 0.0
        %5324 = vmatprep.subr.mxu0 0.0
        %5325 = vmatpush1.msra.mxu0 0.0
        %5326 = vmatprep.subr.mxu0 0.0
        %5327 = vmatpush1.msra.mxu0 0.0
        %5328 = vmatprep.subr.mxu0 0.0
        %5329 = vmatpush1.msra.mxu0 0.0
        %5330 = vmatprep.subr.mxu0 0.0
        %5331 = vmatpush1.msra.mxu0 0.0
        %5332 = vmatprep.subr.mxu0 0.0
        %5333 = vmatpush1.msra.mxu0 0.0
        %5334 = vmatprep.subr.mxu0 0.0
        %5335 = vmatpush1.msra.mxu0 0.0
        %5336 = vmatprep.subr.mxu0 0.0
        %5337 = vmatpush1.msra.mxu0 0.0
        %5338 = vmatprep.subr.mxu0 0.0
        %5339 = vmatpush1.msra.mxu0 0.0
        %5340 = vmatprep.subr.mxu0 0.0
        %5341 = vmatpush1.msra.mxu0 0.0
        %5342 = vmatprep.subr.mxu0 0.0
        %5343 = vmatpush1.msra.mxu0 0.0
        %5344 = vmatprep.subr.mxu0 0.0
        %5345 = vmatpush1.msra.mxu0 0.0
        %5346 = vmatprep.subr.mxu0 0.0
        %5347 = vmatpush1.msra.mxu0 0.0
        %5348 = vmatprep.subr.mxu0 0.0
        %5349 = vmatpush1.msra.mxu0 0.0
        %5350 = vmatprep.subr.mxu0 0.0
        %5351 = vmatpush1.msra.mxu0 0.0
        %5352 = vmatprep.subr.mxu0 0.0
        %5353 = vmatpush1.msra.mxu0 0.0
        %5354 = vmatprep.subr.mxu0 0.0
        %5355 = vmatpush1.msra.mxu0 0.0
        %5356 = vmatprep.subr.mxu0 0.0
        %5357 = vmatpush1.msra.mxu0 0.0
        %5358 = vmatprep.subr.mxu0 0.0
        %5359 = vmatpush1.msra.mxu0 0.0
        %5360 = vmatprep.subr.mxu0 0.0
        %5361 = vmatpush1.msra.mxu0 0.0
        %5362 = vmatprep.subr.mxu0 0.0
        %5363 = vmatpush1.msra.mxu0 0.0
        %5364 = vmatprep.subr.mxu0 0.0
        %5365 = vmatpush1.msra.mxu0 0.0
        %5366 = vmatprep.subr.mxu0 0.0
        %5367 = vmatpush1.msra.mxu0 0.0
        %5368 = vmatprep.subr.mxu0 0.0
        %5369 = vmatpush1.msra.mxu0 0.0
        %5370 = vmatprep.subr.mxu0 0.0
        %5371 = vmatpush1.msra.mxu0 0.0
        %5372 = vmatprep.mubr.f32.mxu0 0.0
        %5373 = vmatmul.mubr.f32.gmra.mrb[0].mxu0 %v5164
        %v5374 = vpop.f32.mrb[0].mxu0
        %v5375 = vadd.f32 0.0, %v5374
        %v5376 = vpop.f32.mrb[0].mxu0
        %v5377 = vadd.f32 0.0, %v5376
        %5378 = vdwg.mxu0
        %5379 = vmatprep.subr.mxu0 %v5160
        %5380 = vmatpush1.msra.mxu0 %v5159
        %5381 = vmatprep.subr.mxu0 0.0
        %5382 = vmatpush1.msra.mxu0 0.0
        %5383 = vmatprep.subr.mxu0 0.0
        %5384 = vmatpush1.msra.mxu0 0.0
        %5385 = vmatprep.subr.mxu0 0.0
        %5386 = vmatpush1.msra.mxu0 0.0
        %5387 = vmatprep.subr.mxu0 0.0
        %5388 = vmatpush1.msra.mxu0 0.0
        %5389 = vmatprep.subr.mxu0 0.0
        %5390 = vmatpush1.msra.mxu0 0.0
        %5391 = vmatprep.subr.mxu0 0.0
        %5392 = vmatpush1.msra.mxu0 0.0
        %5393 = vmatprep.subr.mxu0 0.0
        %5394 = vmatpush1.msra.mxu0 0.0
        %5395 = vmatprep.subr.mxu0 0.0
        %5396 = vmatpush1.msra.mxu0 0.0
        %5397 = vmatprep.subr.mxu0 0.0
        %5398 = vmatpush1.msra.mxu0 0.0
        %5399 = vmatprep.subr.mxu0 0.0
        %5400 = vmatpush1.msra.mxu0 0.0
        %5401 = vmatprep.subr.mxu0 0.0
        %5402 = vmatpush1.msra.mxu0 0.0
        %5403 = vmatprep.subr.mxu0 0.0
        %5404 = vmatpush1.msra.mxu0 0.0
        %5405 = vmatprep.subr.mxu0 0.0
        %5406 = vmatpush1.msra.mxu0 0.0
        %5407 = vmatprep.subr.mxu0 0.0
        %5408 = vmatpush1.msra.mxu0 0.0
        %5409 = vmatprep.subr.mxu0 0.0
        %5410 = vmatpush1.msra.mxu0 0.0
        %5411 = vmatprep.subr.mxu0 0.0
        %5412 = vmatpush1.msra.mxu0 0.0
        %5413 = vmatprep.subr.mxu0 0.0
        %5414 = vmatpush1.msra.mxu0 0.0
        %5415 = vmatprep.subr.mxu0 0.0
        %5416 = vmatpush1.msra.mxu0 0.0
        %5417 = vmatprep.subr.mxu0 0.0
        %5418 = vmatpush1.msra.mxu0 0.0
        %5419 = vmatprep.subr.mxu0 0.0
        %5420 = vmatpush1.msra.mxu0 0.0
        %5421 = vmatprep.subr.mxu0 0.0
        %5422 = vmatpush1.msra.mxu0 0.0
        %5423 = vmatprep.subr.mxu0 0.0
        %5424 = vmatpush1.msra.mxu0 0.0
        %5425 = vmatprep.subr.mxu0 0.0
        %5426 = vmatpush1.msra.mxu0 0.0
        %5427 = vmatprep.subr.mxu0 0.0
        %5428 = vmatpush1.msra.mxu0 0.0
        %5429 = vmatprep.subr.mxu0 0.0
        %5430 = vmatpush1.msra.mxu0 0.0
        %5431 = vmatprep.subr.mxu0 0.0
        %5432 = vmatpush1.msra.mxu0 0.0
        %5433 = vmatprep.subr.mxu0 0.0
        %5434 = vmatpush1.msra.mxu0 0.0
        %5435 = vmatprep.subr.mxu0 0.0
        %5436 = vmatpush1.msra.mxu0 0.0
        %5437 = vmatprep.subr.mxu0 0.0
        %5438 = vmatpush1.msra.mxu0 0.0
        %5439 = vmatprep.subr.mxu0 0.0
        %5440 = vmatpush1.msra.mxu0 0.0
        %5441 = vmatprep.subr.mxu0 0.0
        %5442 = vmatpush1.msra.mxu0 0.0
        %5443 = vmatprep.mubr.f32.mxu0 0.0
        %5444 = vmatmul.mubr.f32.gmra.mrb[0].mxu0 %v5164
        %v5445 = vpop.f32.mrb[0].mxu0
        %v5446 = vadd.f32 0.0, %v5445
        %v5447 = vpop.f32.mrb[0].mxu0
        %v5448 = vadd.f32 0.0, %v5447
        %5449 = vdwg.mxu0
        %v5450 = vadd.f32 %v5121, %v5233
        %v5451 = vadd.f32 %v5122, %v5235
        %v5452 = vadd.f32 %v5123, %v5304
        %v5453 = vadd.f32 %v5124, %v5306
        %v5454 = vadd.f32 %v5125, %v5375
        %v5455 = vadd.f32 %v5126, %v5377
        %v5456 = vadd.f32 %v5127, %v5446
        %v5457 = vadd.f32 %v5128, %v5448
        %s5458 = scalar_lea.vmem %s4, 32
        %v5459 = vld [vmem:[%s5458] sm:$0xff]
        %v5461 = vsel %vm959, %v5459, 0
        %5463 = vmatprep.subr.mxu0 %v4152
        %5464 = vmatpush1.msra.mxu0 %v4151
        %5465 = vmatprep.subr.mxu0 0.0
        %5466 = vmatpush1.msra.mxu0 0.0
        %5467 = vmatprep.subr.mxu0 0.0
        %5468 = vmatpush1.msra.mxu0 0.0
        %5469 = vmatprep.subr.mxu0 0.0
        %5470 = vmatpush1.msra.mxu0 0.0
        %5471 = vmatprep.subr.mxu0 0.0
        %5472 = vmatpush1.msra.mxu0 0.0
        %5473 = vmatprep.subr.mxu0 0.0
        %5474 = vmatpush1.msra.mxu0 0.0
        %5475 = vmatprep.subr.mxu0 0.0
        %5476 = vmatpush1.msra.mxu0 0.0
        %5477 = vmatprep.subr.mxu0 0.0
        %5478 = vmatpush1.msra.mxu0 0.0
        %5479 = vmatprep.subr.mxu0 0.0
        %5480 = vmatpush1.msra.mxu0 0.0
        %5481 = vmatprep.subr.mxu0 0.0
        %5482 = vmatpush1.msra.mxu0 0.0
        %5483 = vmatprep.subr.mxu0 0.0
        %5484 = vmatpush1.msra.mxu0 0.0
        %5485 = vmatprep.subr.mxu0 0.0
        %5486 = vmatpush1.msra.mxu0 0.0
        %5487 = vmatprep.subr.mxu0 0.0
        %5488 = vmatpush1.msra.mxu0 0.0
        %5489 = vmatprep.subr.mxu0 0.0
        %5490 = vmatpush1.msra.mxu0 0.0
        %5491 = vmatprep.subr.mxu0 0.0
        %5492 = vmatpush1.msra.mxu0 0.0
        %5493 = vmatprep.subr.mxu0 0.0
        %5494 = vmatpush1.msra.mxu0 0.0
        %5495 = vmatprep.subr.mxu0 0.0
        %5496 = vmatpush1.msra.mxu0 0.0
        %5497 = vmatprep.subr.mxu0 0.0
        %5498 = vmatpush1.msra.mxu0 0.0
        %5499 = vmatprep.subr.mxu0 0.0
        %5500 = vmatpush1.msra.mxu0 0.0
        %5501 = vmatprep.subr.mxu0 0.0
        %5502 = vmatpush1.msra.mxu0 0.0
        %5503 = vmatprep.subr.mxu0 0.0
        %5504 = vmatpush1.msra.mxu0 0.0
        %5505 = vmatprep.subr.mxu0 0.0
        %5506 = vmatpush1.msra.mxu0 0.0
        %5507 = vmatprep.subr.mxu0 0.0
        %5508 = vmatpush1.msra.mxu0 0.0
        %5509 = vmatprep.subr.mxu0 0.0
        %5510 = vmatpush1.msra.mxu0 0.0
        %5511 = vmatprep.subr.mxu0 0.0
        %5512 = vmatpush1.msra.mxu0 0.0
        %5513 = vmatprep.subr.mxu0 0.0
        %5514 = vmatpush1.msra.mxu0 0.0
        %5515 = vmatprep.subr.mxu0 0.0
        %5516 = vmatpush1.msra.mxu0 0.0
        %5517 = vmatprep.subr.mxu0 0.0
        %5518 = vmatpush1.msra.mxu0 0.0
        %5519 = vmatprep.subr.mxu0 0.0
        %5520 = vmatpush1.msra.mxu0 0.0
        %5521 = vmatprep.subr.mxu0 0.0
        %5522 = vmatpush1.msra.mxu0 0.0
        %5523 = vmatprep.subr.mxu0 0.0
        %5524 = vmatpush1.msra.mxu0 0.0
        %5525 = vmatprep.subr.mxu0 0.0
        %5526 = vmatpush1.msra.mxu0 0.0
        %5527 = vmatprep.mubr.f32.mxu0 0.0
        %5528 = vmatmul.mubr.f32.gmra.mrb[0].mxu0 %v5461
        %v5529 = vpop.f32.mrb[0].mxu0
        %v5530 = vadd.f32 0.0, %v5529
        %v5531 = vpop.f32.mrb[0].mxu0
        %v5532 = vadd.f32 0.0, %v5531
        %5533 = vdwg.mxu0
        %5534 = vmatprep.subr.mxu0 %v4154
        %5535 = vmatpush1.msra.mxu0 %v4153
        %5536 = vmatprep.subr.mxu0 0.0
        %5537 = vmatpush1.msra.mxu0 0.0
        %5538 = vmatprep.subr.mxu0 0.0
        %5539 = vmatpush1.msra.mxu0 0.0
        %5540 = vmatprep.subr.mxu0 0.0
        %5541 = vmatpush1.msra.mxu0 0.0
        %5542 = vmatprep.subr.mxu0 0.0
        %5543 = vmatpush1.msra.mxu0 0.0
        %5544 = vmatprep.subr.mxu0 0.0
        %5545 = vmatpush1.msra.mxu0 0.0
        %5546 = vmatprep.subr.mxu0 0.0
        %5547 = vmatpush1.msra.mxu0 0.0
        %5548 = vmatprep.subr.mxu0 0.0
        %5549 = vmatpush1.msra.mxu0 0.0
        %5550 = vmatprep.subr.mxu0 0.0
        %5551 = vmatpush1.msra.mxu0 0.0
        %5552 = vmatprep.subr.mxu0 0.0
        %5553 = vmatpush1.msra.mxu0 0.0
        %5554 = vmatprep.subr.mxu0 0.0
        %5555 = vmatpush1.msra.mxu0 0.0
        %5556 = vmatprep.subr.mxu0 0.0
        %5557 = vmatpush1.msra.mxu0 0.0
        %5558 = vmatprep.subr.mxu0 0.0
        %5559 = vmatpush1.msra.mxu0 0.0
        %5560 = vmatprep.subr.mxu0 0.0
        %5561 = vmatpush1.msra.mxu0 0.0
        %5562 = vmatprep.subr.mxu0 0.0
        %5563 = vmatpush1.msra.mxu0 0.0
        %5564 = vmatprep.subr.mxu0 0.0
        %5565 = vmatpush1.msra.mxu0 0.0
        %5566 = vmatprep.subr.mxu0 0.0
        %5567 = vmatpush1.msra.mxu0 0.0
        %5568 = vmatprep.subr.mxu0 0.0
        %5569 = vmatpush1.msra.mxu0 0.0
        %5570 = vmatprep.subr.mxu0 0.0
        %5571 = vmatpush1.msra.mxu0 0.0
        %5572 = vmatprep.subr.mxu0 0.0
        %5573 = vmatpush1.msra.mxu0 0.0
        %5574 = vmatprep.subr.mxu0 0.0
        %5575 = vmatpush1.msra.mxu0 0.0
        %5576 = vmatprep.subr.mxu0 0.0
        %5577 = vmatpush1.msra.mxu0 0.0
        %5578 = vmatprep.subr.mxu0 0.0
        %5579 = vmatpush1.msra.mxu0 0.0
        %5580 = vmatprep.subr.mxu0 0.0
        %5581 = vmatpush1.msra.mxu0 0.0
        %5582 = vmatprep.subr.mxu0 0.0
        %5583 = vmatpush1.msra.mxu0 0.0
        %5584 = vmatprep.subr.mxu0 0.0
        %5585 = vmatpush1.msra.mxu0 0.0
        %5586 = vmatprep.subr.mxu0 0.0
        %5587 = vmatpush1.msra.mxu0 0.0
        %5588 = vmatprep.subr.mxu0 0.0
        %5589 = vmatpush1.msra.mxu0 0.0
        %5590 = vmatprep.subr.mxu0 0.0
        %5591 = vmatpush1.msra.mxu0 0.0
        %5592 = vmatprep.subr.mxu0 0.0
        %5593 = vmatpush1.msra.mxu0 0.0
        %5594 = vmatprep.subr.mxu0 0.0
        %5595 = vmatpush1.msra.mxu0 0.0
        %5596 = vmatprep.subr.mxu0 0.0
        %5597 = vmatpush1.msra.mxu0 0.0
        %5598 = vmatprep.mubr.f32.mxu0 0.0
        %5599 = vmatmul.mubr.f32.gmra.mrb[0].mxu0 %v5461
        %v5600 = vpop.f32.mrb[0].mxu0
        %v5601 = vadd.f32 0.0, %v5600
        %v5602 = vpop.f32.mrb[0].mxu0
        %v5603 = vadd.f32 0.0, %v5602
        %5604 = vdwg.mxu0
        %5605 = vmatprep.subr.mxu0 %v4156
        %5606 = vmatpush1.msra.mxu0 %v4155
        %5607 = vmatprep.subr.mxu0 0.0
        %5608 = vmatpush1.msra.mxu0 0.0
        %5609 = vmatprep.subr.mxu0 0.0
        %5610 = vmatpush1.msra.mxu0 0.0
        %5611 = vmatprep.subr.mxu0 0.0
        %5612 = vmatpush1.msra.mxu0 0.0
        %5613 = vmatprep.subr.mxu0 0.0
        %5614 = vmatpush1.msra.mxu0 0.0
        %5615 = vmatprep.subr.mxu0 0.0
        %5616 = vmatpush1.msra.mxu0 0.0
        %5617 = vmatprep.subr.mxu0 0.0
        %5618 = vmatpush1.msra.mxu0 0.0
        %5619 = vmatprep.subr.mxu0 0.0
        %5620 = vmatpush1.msra.mxu0 0.0
        %5621 = vmatprep.subr.mxu0 0.0
        %5622 = vmatpush1.msra.mxu0 0.0
        %5623 = vmatprep.subr.mxu0 0.0
        %5624 = vmatpush1.msra.mxu0 0.0
        %5625 = vmatprep.subr.mxu0 0.0
        %5626 = vmatpush1.msra.mxu0 0.0
        %5627 = vmatprep.subr.mxu0 0.0
        %5628 = vmatpush1.msra.mxu0 0.0
        %5629 = vmatprep.subr.mxu0 0.0
        %5630 = vmatpush1.msra.mxu0 0.0
        %5631 = vmatprep.subr.mxu0 0.0
        %5632 = vmatpush1.msra.mxu0 0.0
        %5633 = vmatprep.subr.mxu0 0.0
        %5634 = vmatpush1.msra.mxu0 0.0
        %5635 = vmatprep.subr.mxu0 0.0
        %5636 = vmatpush1.msra.mxu0 0.0
        %5637 = vmatprep.subr.mxu0 0.0
        %5638 = vmatpush1.msra.mxu0 0.0
        %5639 = vmatprep.subr.mxu0 0.0
        %5640 = vmatpush1.msra.mxu0 0.0
        %5641 = vmatprep.subr.mxu0 0.0
        %5642 = vmatpush1.msra.mxu0 0.0
        %5643 = vmatprep.subr.mxu0 0.0
        %5644 = vmatpush1.msra.mxu0 0.0
        %5645 = vmatprep.subr.mxu0 0.0
        %5646 = vmatpush1.msra.mxu0 0.0
        %5647 = vmatprep.subr.mxu0 0.0
        %5648 = vmatpush1.msra.mxu0 0.0
        %5649 = vmatprep.subr.mxu0 0.0
        %5650 = vmatpush1.msra.mxu0 0.0
        %5651 = vmatprep.subr.mxu0 0.0
        %5652 = vmatpush1.msra.mxu0 0.0
        %5653 = vmatprep.subr.mxu0 0.0
        %5654 = vmatpush1.msra.mxu0 0.0
        %5655 = vmatprep.subr.mxu0 0.0
        %5656 = vmatpush1.msra.mxu0 0.0
        %5657 = vmatprep.subr.mxu0 0.0
        %5658 = vmatpush1.msra.mxu0 0.0
        %5659 = vmatprep.subr.mxu0 0.0
        %5660 = vmatpush1.msra.mxu0 0.0
        %5661 = vmatprep.subr.mxu0 0.0
        %5662 = vmatpush1.msra.mxu0 0.0
        %5663 = vmatprep.subr.mxu0 0.0
        %5664 = vmatpush1.msra.mxu0 0.0
        %5665 = vmatprep.subr.mxu0 0.0
        %5666 = vmatpush1.msra.mxu0 0.0
        %5667 = vmatprep.subr.mxu0 0.0
        %5668 = vmatpush1.msra.mxu0 0.0
        %5669 = vmatprep.mubr.f32.mxu0 0.0
        %5670 = vmatmul.mubr.f32.gmra.mrb[0].mxu0 %v5461
        %v5671 = vpop.f32.mrb[0].mxu0
        %v5672 = vadd.f32 0.0, %v5671
        %v5673 = vpop.f32.mrb[0].mxu0
        %v5674 = vadd.f32 0.0, %v5673
        %5675 = vdwg.mxu0
        %5676 = vmatprep.subr.mxu0 %v4158
        %5677 = vmatpush1.msra.mxu0 %v4157
        %5678 = vmatprep.subr.mxu0 0.0
        %5679 = vmatpush1.msra.mxu0 0.0
        %5680 = vmatprep.subr.mxu0 0.0
        %5681 = vmatpush1.msra.mxu0 0.0
        %5682 = vmatprep.subr.mxu0 0.0
        %5683 = vmatpush1.msra.mxu0 0.0
        %5684 = vmatprep.subr.mxu0 0.0
        %5685 = vmatpush1.msra.mxu0 0.0
        %5686 = vmatprep.subr.mxu0 0.0
        %5687 = vmatpush1.msra.mxu0 0.0
        %5688 = vmatprep.subr.mxu0 0.0
        %5689 = vmatpush1.msra.mxu0 0.0
        %5690 = vmatprep.subr.mxu0 0.0
        %5691 = vmatpush1.msra.mxu0 0.0
        %5692 = vmatprep.subr.mxu0 0.0
        %5693 = vmatpush1.msra.mxu0 0.0
        %5694 = vmatprep.subr.mxu0 0.0
        %5695 = vmatpush1.msra.mxu0 0.0
        %5696 = vmatprep.subr.mxu0 0.0
        %5697 = vmatpush1.msra.mxu0 0.0
        %5698 = vmatprep.subr.mxu0 0.0
        %5699 = vmatpush1.msra.mxu0 0.0
        %5700 = vmatprep.subr.mxu0 0.0
        %5701 = vmatpush1.msra.mxu0 0.0
        %5702 = vmatprep.subr.mxu0 0.0
        %5703 = vmatpush1.msra.mxu0 0.0
        %5704 = vmatprep.subr.mxu0 0.0
        %5705 = vmatpush1.msra.mxu0 0.0
        %5706 = vmatprep.subr.mxu0 0.0
        %5707 = vmatpush1.msra.mxu0 0.0
        %5708 = vmatprep.subr.mxu0 0.0
        %5709 = vmatpush1.msra.mxu0 0.0
        %5710 = vmatprep.subr.mxu0 0.0
        %5711 = vmatpush1.msra.mxu0 0.0
        %5712 = vmatprep.subr.mxu0 0.0
        %5713 = vmatpush1.msra.mxu0 0.0
        %5714 = vmatprep.subr.mxu0 0.0
        %5715 = vmatpush1.msra.mxu0 0.0
        %5716 = vmatprep.subr.mxu0 0.0
        %5717 = vmatpush1.msra.mxu0 0.0
        %5718 = vmatprep.subr.mxu0 0.0
        %5719 = vmatpush1.msra.mxu0 0.0
        %5720 = vmatprep.subr.mxu0 0.0
        %5721 = vmatpush1.msra.mxu0 0.0
        %5722 = vmatprep.subr.mxu0 0.0
        %5723 = vmatpush1.msra.mxu0 0.0
        %5724 = vmatprep.subr.mxu0 0.0
        %5725 = vmatpush1.msra.mxu0 0.0
        %5726 = vmatprep.subr.mxu0 0.0
        %5727 = vmatpush1.msra.mxu0 0.0
        %5728 = vmatprep.subr.mxu0 0.0
        %5729 = vmatpush1.msra.mxu0 0.0
        %5730 = vmatprep.subr.mxu0 0.0
        %5731 = vmatpush1.msra.mxu0 0.0
        %5732 = vmatprep.subr.mxu0 0.0
        %5733 = vmatpush1.msra.mxu0 0.0
        %5734 = vmatprep.subr.mxu0 0.0
        %5735 = vmatpush1.msra.mxu0 0.0
        %5736 = vmatprep.subr.mxu0 0.0
        %5737 = vmatpush1.msra.mxu0 0.0
        %5738 = vmatprep.subr.mxu0 0.0
        %5739 = vmatpush1.msra.mxu0 0.0
        %5740 = vmatprep.mubr.f32.mxu0 0.0
        %5741 = vmatmul.mubr.f32.gmra.mrb[0].mxu0 %v5461
        %v5742 = vpop.f32.mrb[0].mxu0
        %v5743 = vadd.f32 0.0, %v5742
        %v5744 = vpop.f32.mrb[0].mxu0
        %v5745 = vadd.f32 0.0, %v5744
        %5746 = vdwg.mxu0
        %v5747 = vadd.f32 %v5450, %v5530
        %v5748 = vadd.f32 %v5451, %v5532
        %v5749 = vadd.f32 %v5452, %v5601
        %v5750 = vadd.f32 %v5453, %v5603
        %v5751 = vadd.f32 %v5454, %v5672
        %v5752 = vadd.f32 %v5455, %v5674
        %v5753 = vadd.f32 %v5456, %v5743
        %v5754 = vadd.f32 %v5457, %v5745
        %5755 = vrot.lane.b32.xlu0 %v4151, 127
        %v5756 = vpop.permute.xlu0 %5755
        %5757 = vrot.lane.b32.xlu0 %v4152, 127
        %v5758 = vpop.permute.xlu0 %5757
        %5759 = vrot.lane.b32.xlu0 %v4153, 127
        %v5760 = vpop.permute.xlu0 %5759
        %5761 = vrot.lane.b32.xlu0 %v4154, 127
        %v5762 = vpop.permute.xlu0 %5761
        %5763 = vrot.lane.b32.xlu0 %v4155, 127
        %v5764 = vpop.permute.xlu0 %5763
        %5765 = vrot.lane.b32.xlu0 %v4156, 127
        %v5766 = vpop.permute.xlu0 %5765
        %5767 = vrot.lane.b32.xlu0 %v4157, 127
        %v5768 = vpop.permute.xlu0 %5767
        %5769 = vrot.lane.b32.xlu0 %v4158, 127
        %v5770 = vpop.permute.xlu0 %5769
        %v5771 = vsel %vm2507, %v5768, %v5770
        %v5772 = vsel %vm2507, %v5766, %v5768
        %v5773 = vsel %vm2507, %v5764, %v5766
        %v5774 = vsel %vm2507, %v5762, %v5764
        %v5775 = vsel %vm2507, %v5760, %v5762
        %v5776 = vsel %vm2507, %v5758, %v5760
        %v5777 = vsel %vm2507, %v5756, %v5758
        %v5778 = vsel %vm2507, %v5770, %v5756
        %v5779 = vsel %vm308, %v5777, 0.0
        %v5780 = vsel %vm309, %v5776, 0.0
        %v5781 = vsel %vm310, %v5775, 0.0
        %v5782 = vsel %vm311, %v5774, 0.0
        %v5783 = vsel %vm312, %v5773, 0.0
        %v5784 = vsel %vm313, %v5772, 0.0
        %v5785 = vsel %vm314, %v5771, 0.0
        %v5786 = vsel %vm315, %v5778, 0.0
        %s5787 = scalar_lea.vmem %s4, 40
        %v5788 = vld [vmem:[%s5787] sm:$0xff]
        %v5790 = vsel %vm959, %v5788, 0
        %5792 = vmatprep.subr.mxu0 %v5780
        %5793 = vmatpush1.msra.mxu0 %v5779
        %5794 = vmatprep.subr.mxu0 0.0
        %5795 = vmatpush1.msra.mxu0 0.0
        %5796 = vmatprep.subr.mxu0 0.0
        %5797 = vmatpush1.msra.mxu0 0.0
        %5798 = vmatprep.subr.mxu0 0.0
        %5799 = vmatpush1.msra.mxu0 0.0
        %5800 = vmatprep.subr.mxu0 0.0
        %5801 = vmatpush1.msra.mxu0 0.0
        %5802 = vmatprep.subr.mxu0 0.0
        %5803 = vmatpush1.msra.mxu0 0.0
        %5804 = vmatprep.subr.mxu0 0.0
        %5805 = vmatpush1.msra.mxu0 0.0
        %5806 = vmatprep.subr.mxu0 0.0
        %5807 = vmatpush1.msra.mxu0 0.0
        %5808 = vmatprep.subr.mxu0 0.0
        %5809 = vmatpush1.msra.mxu0 0.0
        %5810 = vmatprep.subr.mxu0 0.0
        %5811 = vmatpush1.msra.mxu0 0.0
        %5812 = vmatprep.subr.mxu0 0.0
        %5813 = vmatpush1.msra.mxu0 0.0
        %5814 = vmatprep.subr.mxu0 0.0
        %5815 = vmatpush1.msra.mxu0 0.0
        %5816 = vmatprep.subr.mxu0 0.0
        %5817 = vmatpush1.msra.mxu0 0.0
        %5818 = vmatprep.subr.mxu0 0.0
        %5819 = vmatpush1.msra.mxu0 0.0
        %5820 = vmatprep.subr.mxu0 0.0
        %5821 = vmatpush1.msra.mxu0 0.0
        %5822 = vmatprep.subr.mxu0 0.0
        %5823 = vmatpush1.msra.mxu0 0.0
        %5824 = vmatprep.subr.mxu0 0.0
        %5825 = vmatpush1.msra.mxu0 0.0
        %5826 = vmatprep.subr.mxu0 0.0
        %5827 = vmatpush1.msra.mxu0 0.0
        %5828 = vmatprep.subr.mxu0 0.0
        %5829 = vmatpush1.msra.mxu0 0.0
        %5830 = vmatprep.subr.mxu0 0.0
        %5831 = vmatpush1.msra.mxu0 0.0
        %5832 = vmatprep.subr.mxu0 0.0
        %5833 = vmatpush1.msra.mxu0 0.0
        %5834 = vmatprep.subr.mxu0 0.0
        %5835 = vmatpush1.msra.mxu0 0.0
        %5836 = vmatprep.subr.mxu0 0.0
        %5837 = vmatpush1.msra.mxu0 0.0
        %5838 = vmatprep.subr.mxu0 0.0
        %5839 = vmatpush1.msra.mxu0 0.0
        %5840 = vmatprep.subr.mxu0 0.0
        %5841 = vmatpush1.msra.mxu0 0.0
        %5842 = vmatprep.subr.mxu0 0.0
        %5843 = vmatpush1.msra.mxu0 0.0
        %5844 = vmatprep.subr.mxu0 0.0
        %5845 = vmatpush1.msra.mxu0 0.0
        %5846 = vmatprep.subr.mxu0 0.0
        %5847 = vmatpush1.msra.mxu0 0.0
        %5848 = vmatprep.subr.mxu0 0.0
        %5849 = vmatpush1.msra.mxu0 0.0
        %5850 = vmatprep.subr.mxu0 0.0
        %5851 = vmatpush1.msra.mxu0 0.0
        %5852 = vmatprep.subr.mxu0 0.0
        %5853 = vmatpush1.msra.mxu0 0.0
        %5854 = vmatprep.subr.mxu0 0.0
        %5855 = vmatpush1.msra.mxu0 0.0
        %5856 = vmatprep.mubr.f32.mxu0 0.0
        %5857 = vmatmul.mubr.f32.gmra.mrb[0].mxu0 %v5790
        %v5858 = vpop.f32.mrb[0].mxu0
        %v5859 = vadd.f32 0.0, %v5858
        %v5860 = vpop.f32.mrb[0].mxu0
        %v5861 = vadd.f32 0.0, %v5860
        %5862 = vdwg.mxu0
        %5863 = vmatprep.subr.mxu0 %v5782
        %5864 = vmatpush1.msra.mxu0 %v5781
        %5865 = vmatprep.subr.mxu0 0.0
        %5866 = vmatpush1.msra.mxu0 0.0
        %5867 = vmatprep.subr.mxu0 0.0
        %5868 = vmatpush1.msra.mxu0 0.0
        %5869 = vmatprep.subr.mxu0 0.0
        %5870 = vmatpush1.msra.mxu0 0.0
        %5871 = vmatprep.subr.mxu0 0.0
        %5872 = vmatpush1.msra.mxu0 0.0
        %5873 = vmatprep.subr.mxu0 0.0
        %5874 = vmatpush1.msra.mxu0 0.0
        %5875 = vmatprep.subr.mxu0 0.0
        %5876 = vmatpush1.msra.mxu0 0.0
        %5877 = vmatprep.subr.mxu0 0.0
        %5878 = vmatpush1.msra.mxu0 0.0
        %5879 = vmatprep.subr.mxu0 0.0
        %5880 = vmatpush1.msra.mxu0 0.0
        %5881 = vmatprep.subr.mxu0 0.0
        %5882 = vmatpush1.msra.mxu0 0.0
        %5883 = vmatprep.subr.mxu0 0.0
        %5884 = vmatpush1.msra.mxu0 0.0
        %5885 = vmatprep.subr.mxu0 0.0
        %5886 = vmatpush1.msra.mxu0 0.0
        %5887 = vmatprep.subr.mxu0 0.0
        %5888 = vmatpush1.msra.mxu0 0.0
        %5889 = vmatprep.subr.mxu0 0.0
        %5890 = vmatpush1.msra.mxu0 0.0
        %5891 = vmatprep.subr.mxu0 0.0
        %5892 = vmatpush1.msra.mxu0 0.0
        %5893 = vmatprep.subr.mxu0 0.0
        %5894 = vmatpush1.msra.mxu0 0.0
        %5895 = vmatprep.subr.mxu0 0.0
        %5896 = vmatpush1.msra.mxu0 0.0
        %5897 = vmatprep.subr.mxu0 0.0
        %5898 = vmatpush1.msra.mxu0 0.0
        %5899 = vmatprep.subr.mxu0 0.0
        %5900 = vmatpush1.msra.mxu0 0.0
        %5901 = vmatprep.subr.mxu0 0.0
        %5902 = vmatpush1.msra.mxu0 0.0
        %5903 = vmatprep.subr.mxu0 0.0
        %5904 = vmatpush1.msra.mxu0 0.0
        %5905 = vmatprep.subr.mxu0 0.0
        %5906 = vmatpush1.msra.mxu0 0.0
        %5907 = vmatprep.subr.mxu0 0.0
        %5908 = vmatpush1.msra.mxu0 0.0
        %5909 = vmatprep.subr.mxu0 0.0
        %5910 = vmatpush1.msra.mxu0 0.0
        %5911 = vmatprep.subr.mxu0 0.0
        %5912 = vmatpush1.msra.mxu0 0.0
        %5913 = vmatprep.subr.mxu0 0.0
        %5914 = vmatpush1.msra.mxu0 0.0
        %5915 = vmatprep.subr.mxu0 0.0
        %5916 = vmatpush1.msra.mxu0 0.0
        %5917 = vmatprep.subr.mxu0 0.0
        %5918 = vmatpush1.msra.mxu0 0.0
        %5919 = vmatprep.subr.mxu0 0.0
        %5920 = vmatpush1.msra.mxu0 0.0
        %5921 = vmatprep.subr.mxu0 0.0
        %5922 = vmatpush1.msra.mxu0 0.0
        %5923 = vmatprep.subr.mxu0 0.0
        %5924 = vmatpush1.msra.mxu0 0.0
        %5925 = vmatprep.subr.mxu0 0.0
        %5926 = vmatpush1.msra.mxu0 0.0
        %5927 = vmatprep.mubr.f32.mxu0 0.0
        %5928 = vmatmul.mubr.f32.gmra.mrb[0].mxu0 %v5790
        %v5929 = vpop.f32.mrb[0].mxu0
        %v5930 = vadd.f32 0.0, %v5929
        %v5931 = vpop.f32.mrb[0].mxu0
        %v5932 = vadd.f32 0.0, %v5931
        %5933 = vdwg.mxu0
        %5934 = vmatprep.subr.mxu0 %v5784
        %5935 = vmatpush1.msra.mxu0 %v5783
        %5936 = vmatprep.subr.mxu0 0.0
        %5937 = vmatpush1.msra.mxu0 0.0
        %5938 = vmatprep.subr.mxu0 0.0
        %5939 = vmatpush1.msra.mxu0 0.0
        %5940 = vmatprep.subr.mxu0 0.0
        %5941 = vmatpush1.msra.mxu0 0.0
        %5942 = vmatprep.subr.mxu0 0.0
        %5943 = vmatpush1.msra.mxu0 0.0
        %5944 = vmatprep.subr.mxu0 0.0
        %5945 = vmatpush1.msra.mxu0 0.0
        %5946 = vmatprep.subr.mxu0 0.0
        %5947 = vmatpush1.msra.mxu0 0.0
        %5948 = vmatprep.subr.mxu0 0.0
        %5949 = vmatpush1.msra.mxu0 0.0
        %5950 = vmatprep.subr.mxu0 0.0
        %5951 = vmatpush1.msra.mxu0 0.0
        %5952 = vmatprep.subr.mxu0 0.0
        %5953 = vmatpush1.msra.mxu0 0.0
        %5954 = vmatprep.subr.mxu0 0.0
        %5955 = vmatpush1.msra.mxu0 0.0
        %5956 = vmatprep.subr.mxu0 0.0
        %5957 = vmatpush1.msra.mxu0 0.0
        %5958 = vmatprep.subr.mxu0 0.0
        %5959 = vmatpush1.msra.mxu0 0.0
        %5960 = vmatprep.subr.mxu0 0.0
        %5961 = vmatpush1.msra.mxu0 0.0
        %5962 = vmatprep.subr.mxu0 0.0
        %5963 = vmatpush1.msra.mxu0 0.0
        %5964 = vmatprep.subr.mxu0 0.0
        %5965 = vmatpush1.msra.mxu0 0.0
        %5966 = vmatprep.subr.mxu0 0.0
        %5967 = vmatpush1.msra.mxu0 0.0
        %5968 = vmatprep.subr.mxu0 0.0
        %5969 = vmatpush1.msra.mxu0 0.0
        %5970 = vmatprep.subr.mxu0 0.0
        %5971 = vmatpush1.msra.mxu0 0.0
        %5972 = vmatprep.subr.mxu0 0.0
        %5973 = vmatpush1.msra.mxu0 0.0
        %5974 = vmatprep.subr.mxu0 0.0
        %5975 = vmatpush1.msra.mxu0 0.0
        %5976 = vmatprep.subr.mxu0 0.0
        %5977 = vmatpush1.msra.mxu0 0.0
        %5978 = vmatprep.subr.mxu0 0.0
        %5979 = vmatpush1.msra.mxu0 0.0
        %5980 = vmatprep.subr.mxu0 0.0
        %5981 = vmatpush1.msra.mxu0 0.0
        %5982 = vmatprep.subr.mxu0 0.0
        %5983 = vmatpush1.msra.mxu0 0.0
        %5984 = vmatprep.subr.mxu0 0.0
        %5985 = vmatpush1.msra.mxu0 0.0
        %5986 = vmatprep.subr.mxu0 0.0
        %5987 = vmatpush1.msra.mxu0 0.0
        %5988 = vmatprep.subr.mxu0 0.0
        %5989 = vmatpush1.msra.mxu0 0.0
        %5990 = vmatprep.subr.mxu0 0.0
        %5991 = vmatpush1.msra.mxu0 0.0
        %5992 = vmatprep.subr.mxu0 0.0
        %5993 = vmatpush1.msra.mxu0 0.0
        %5994 = vmatprep.subr.mxu0 0.0
        %5995 = vmatpush1.msra.mxu0 0.0
        %5996 = vmatprep.subr.mxu0 0.0
        %5997 = vmatpush1.msra.mxu0 0.0
        %5998 = vmatprep.mubr.f32.mxu0 0.0
        %5999 = vmatmul.mubr.f32.gmra.mrb[0].mxu0 %v5790
        %v6000 = vpop.f32.mrb[0].mxu0
        %v6001 = vadd.f32 0.0, %v6000
        %v6002 = vpop.f32.mrb[0].mxu0
        %v6003 = vadd.f32 0.0, %v6002
        %6004 = vdwg.mxu0
        %6005 = vmatprep.subr.mxu0 %v5786
        %6006 = vmatpush1.msra.mxu0 %v5785
        %6007 = vmatprep.subr.mxu0 0.0
        %6008 = vmatpush1.msra.mxu0 0.0
        %6009 = vmatprep.subr.mxu0 0.0
        %6010 = vmatpush1.msra.mxu0 0.0
        %6011 = vmatprep.subr.mxu0 0.0
        %6012 = vmatpush1.msra.mxu0 0.0
        %6013 = vmatprep.subr.mxu0 0.0
        %6014 = vmatpush1.msra.mxu0 0.0
        %6015 = vmatprep.subr.mxu0 0.0
        %6016 = vmatpush1.msra.mxu0 0.0
        %6017 = vmatprep.subr.mxu0 0.0
        %6018 = vmatpush1.msra.mxu0 0.0
        %6019 = vmatprep.subr.mxu0 0.0
        %6020 = vmatpush1.msra.mxu0 0.0
        %6021 = vmatprep.subr.mxu0 0.0
        %6022 = vmatpush1.msra.mxu0 0.0
        %6023 = vmatprep.subr.mxu0 0.0
        %6024 = vmatpush1.msra.mxu0 0.0
        %6025 = vmatprep.subr.mxu0 0.0
        %6026 = vmatpush1.msra.mxu0 0.0
        %6027 = vmatprep.subr.mxu0 0.0
        %6028 = vmatpush1.msra.mxu0 0.0
        %6029 = vmatprep.subr.mxu0 0.0
        %6030 = vmatpush1.msra.mxu0 0.0
        %6031 = vmatprep.subr.mxu0 0.0
        %6032 = vmatpush1.msra.mxu0 0.0
        %6033 = vmatprep.subr.mxu0 0.0
        %6034 = vmatpush1.msra.mxu0 0.0
        %6035 = vmatprep.subr.mxu0 0.0
        %6036 = vmatpush1.msra.mxu0 0.0
        %6037 = vmatprep.subr.mxu0 0.0
        %6038 = vmatpush1.msra.mxu0 0.0
        %6039 = vmatprep.subr.mxu0 0.0
        %6040 = vmatpush1.msra.mxu0 0.0
        %6041 = vmatprep.subr.mxu0 0.0
        %6042 = vmatpush1.msra.mxu0 0.0
        %6043 = vmatprep.subr.mxu0 0.0
        %6044 = vmatpush1.msra.mxu0 0.0
        %6045 = vmatprep.subr.mxu0 0.0
        %6046 = vmatpush1.msra.mxu0 0.0
        %6047 = vmatprep.subr.mxu0 0.0
        %6048 = vmatpush1.msra.mxu0 0.0
        %6049 = vmatprep.subr.mxu0 0.0
        %6050 = vmatpush1.msra.mxu0 0.0
        %6051 = vmatprep.subr.mxu0 0.0
        %6052 = vmatpush1.msra.mxu0 0.0
        %6053 = vmatprep.subr.mxu0 0.0
        %6054 = vmatpush1.msra.mxu0 0.0
        %6055 = vmatprep.subr.mxu0 0.0
        %6056 = vmatpush1.msra.mxu0 0.0
        %6057 = vmatprep.subr.mxu0 0.0
        %6058 = vmatpush1.msra.mxu0 0.0
        %6059 = vmatprep.subr.mxu0 0.0
        %6060 = vmatpush1.msra.mxu0 0.0
        %6061 = vmatprep.subr.mxu0 0.0
        %6062 = vmatpush1.msra.mxu0 0.0
        %6063 = vmatprep.subr.mxu0 0.0
        %6064 = vmatpush1.msra.mxu0 0.0
        %6065 = vmatprep.subr.mxu0 0.0
        %6066 = vmatpush1.msra.mxu0 0.0
        %6067 = vmatprep.subr.mxu0 0.0
        %6068 = vmatpush1.msra.mxu0 0.0
        %6069 = vmatprep.mubr.f32.mxu0 0.0
        %6070 = vmatmul.mubr.f32.gmra.mrb[0].mxu0 %v5790
        %v6071 = vpop.f32.mrb[0].mxu0
        %v6072 = vadd.f32 0.0, %v6071
        %v6073 = vpop.f32.mrb[0].mxu0
        %v6074 = vadd.f32 0.0, %v6073
        %6075 = vdwg.mxu0
        %v6076 = vadd.f32 %v5747, %v5859
        %v6077 = vadd.f32 %v5748, %v5861
        %v6078 = vadd.f32 %v5749, %v5930
        %v6079 = vadd.f32 %v5750, %v5932
        %v6080 = vadd.f32 %v5751, %v6001
        %v6081 = vadd.f32 %v5752, %v6003
        %v6082 = vadd.f32 %v5753, %v6072
        %v6083 = vadd.f32 %v5754, %v6074
        %6084 = vrot.lane.b32.xlu0 %v4151, 97
        %v6085 = vpop.permute.xlu0 %6084
        %6086 = vrot.lane.b32.xlu0 %v4152, 97
        %v6087 = vpop.permute.xlu0 %6086
        %6088 = vrot.lane.b32.xlu0 %v4153, 97
        %v6089 = vpop.permute.xlu0 %6088
        %6090 = vrot.lane.b32.xlu0 %v4154, 97
        %v6091 = vpop.permute.xlu0 %6090
        %6092 = vrot.lane.b32.xlu0 %v4155, 97
        %v6093 = vpop.permute.xlu0 %6092
        %6094 = vrot.lane.b32.xlu0 %v4156, 97
        %v6095 = vpop.permute.xlu0 %6094
        %6096 = vrot.lane.b32.xlu0 %v4157, 97
        %v6097 = vpop.permute.xlu0 %6096
        %6098 = vrot.lane.b32.xlu0 %v4158, 97
        %v6099 = vpop.permute.xlu0 %6098
        %v6100 = vsel %vm2837, %v6097, %v6099
        %v6101 = vsel %vm2837, %v6095, %v6097
        %v6102 = vsel %vm2837, %v6093, %v6095
        %v6103 = vsel %vm2837, %v6091, %v6093
        %v6104 = vsel %vm2837, %v6089, %v6091
        %v6105 = vsel %vm2837, %v6087, %v6089
        %v6106 = vsel %vm2837, %v6085, %v6087
        %v6107 = vsel %vm2837, %v6099, %v6085
        %v6108 = vsel %vm332, %v6106, 0.0
        %v6109 = vsel %vm333, %v6105, 0.0
        %v6110 = vsel %vm334, %v6104, 0.0
        %v6111 = vsel %vm335, %v6103, 0.0
        %v6112 = vsel %vm336, %v6102, 0.0
        %v6113 = vsel %vm337, %v6101, 0.0
        %v6114 = vsel %vm338, %v6100, 0.0
        %v6115 = vsel %vm339, %v6107, 0.0
        %s6116 = scalar_lea.vmem %s4, 48
        %v6117 = vld [vmem:[%s6116] sm:$0xff]
        %v6119 = vsel %vm959, %v6117, 0
        %6121 = vmatprep.subr.mxu0 %v6109
        %6122 = vmatpush1.msra.mxu0 %v6108
        %6123 = vmatprep.subr.mxu0 0.0
        %6124 = vmatpush1.msra.mxu0 0.0
        %6125 = vmatprep.subr.mxu0 0.0
        %6126 = vmatpush1.msra.mxu0 0.0
        %6127 = vmatprep.subr.mxu0 0.0
        %6128 = vmatpush1.msra.mxu0 0.0
        %6129 = vmatprep.subr.mxu0 0.0
        %6130 = vmatpush1.msra.mxu0 0.0
        %6131 = vmatprep.subr.mxu0 0.0
        %6132 = vmatpush1.msra.mxu0 0.0
        %6133 = vmatprep.subr.mxu0 0.0
        %6134 = vmatpush1.msra.mxu0 0.0
        %6135 = vmatprep.subr.mxu0 0.0
        %6136 = vmatpush1.msra.mxu0 0.0
        %6137 = vmatprep.subr.mxu0 0.0
        %6138 = vmatpush1.msra.mxu0 0.0
        %6139 = vmatprep.subr.mxu0 0.0
        %6140 = vmatpush1.msra.mxu0 0.0
        %6141 = vmatprep.subr.mxu0 0.0
        %6142 = vmatpush1.msra.mxu0 0.0
        %6143 = vmatprep.subr.mxu0 0.0
        %6144 = vmatpush1.msra.mxu0 0.0
        %6145 = vmatprep.subr.mxu0 0.0
        %6146 = vmatpush1.msra.mxu0 0.0
        %6147 = vmatprep.subr.mxu0 0.0
        %6148 = vmatpush1.msra.mxu0 0.0
        %6149 = vmatprep.subr.mxu0 0.0
        %6150 = vmatpush1.msra.mxu0 0.0
        %6151 = vmatprep.subr.mxu0 0.0
        %6152 = vmatpush1.msra.mxu0 0.0
        %6153 = vmatprep.subr.mxu0 0.0
        %6154 = vmatpush1.msra.mxu0 0.0
        %6155 = vmatprep.subr.mxu0 0.0
        %6156 = vmatpush1.msra.mxu0 0.0
        %6157 = vmatprep.subr.mxu0 0.0
        %6158 = vmatpush1.msra.mxu0 0.0
        %6159 = vmatprep.subr.mxu0 0.0
        %6160 = vmatpush1.msra.mxu0 0.0
        %6161 = vmatprep.subr.mxu0 0.0
        %6162 = vmatpush1.msra.mxu0 0.0
        %6163 = vmatprep.subr.mxu0 0.0
        %6164 = vmatpush1.msra.mxu0 0.0
        %6165 = vmatprep.subr.mxu0 0.0
        %6166 = vmatpush1.msra.mxu0 0.0
        %6167 = vmatprep.subr.mxu0 0.0
        %6168 = vmatpush1.msra.mxu0 0.0
        %6169 = vmatprep.subr.mxu0 0.0
        %6170 = vmatpush1.msra.mxu0 0.0
        %6171 = vmatprep.subr.mxu0 0.0
        %6172 = vmatpush1.msra.mxu0 0.0
        %6173 = vmatprep.subr.mxu0 0.0
        %6174 = vmatpush1.msra.mxu0 0.0
        %6175 = vmatprep.subr.mxu0 0.0
        %6176 = vmatpush1.msra.mxu0 0.0
        %6177 = vmatprep.subr.mxu0 0.0
        %6178 = vmatpush1.msra.mxu0 0.0
        %6179 = vmatprep.subr.mxu0 0.0
        %6180 = vmatpush1.msra.mxu0 0.0
        %6181 = vmatprep.subr.mxu0 0.0
        %6182 = vmatpush1.msra.mxu0 0.0
        %6183 = vmatprep.subr.mxu0 0.0
        %6184 = vmatpush1.msra.mxu0 0.0
        %6185 = vmatprep.mubr.f32.mxu0 0.0
        %6186 = vmatmul.mubr.f32.gmra.mrb[0].mxu0 %v6119
        %v6187 = vpop.f32.mrb[0].mxu0
        %v6188 = vadd.f32 0.0, %v6187
        %v6189 = vpop.f32.mrb[0].mxu0
        %v6190 = vadd.f32 0.0, %v6189
        %6191 = vdwg.mxu0
        %6192 = vmatprep.subr.mxu0 %v6111
        %6193 = vmatpush1.msra.mxu0 %v6110
        %6194 = vmatprep.subr.mxu0 0.0
        %6195 = vmatpush1.msra.mxu0 0.0
        %6196 = vmatprep.subr.mxu0 0.0
        %6197 = vmatpush1.msra.mxu0 0.0
        %6198 = vmatprep.subr.mxu0 0.0
        %6199 = vmatpush1.msra.mxu0 0.0
        %6200 = vmatprep.subr.mxu0 0.0
        %6201 = vmatpush1.msra.mxu0 0.0
        %6202 = vmatprep.subr.mxu0 0.0
        %6203 = vmatpush1.msra.mxu0 0.0
        %6204 = vmatprep.subr.mxu0 0.0
        %6205 = vmatpush1.msra.mxu0 0.0
        %6206 = vmatprep.subr.mxu0 0.0
        %6207 = vmatpush1.msra.mxu0 0.0
        %6208 = vmatprep.subr.mxu0 0.0
        %6209 = vmatpush1.msra.mxu0 0.0
        %6210 = vmatprep.subr.mxu0 0.0
        %6211 = vmatpush1.msra.mxu0 0.0
        %6212 = vmatprep.subr.mxu0 0.0
        %6213 = vmatpush1.msra.mxu0 0.0
        %6214 = vmatprep.subr.mxu0 0.0
        %6215 = vmatpush1.msra.mxu0 0.0
        %6216 = vmatprep.subr.mxu0 0.0
        %6217 = vmatpush1.msra.mxu0 0.0
        %6218 = vmatprep.subr.mxu0 0.0
        %6219 = vmatpush1.msra.mxu0 0.0
        %6220 = vmatprep.subr.mxu0 0.0
        %6221 = vmatpush1.msra.mxu0 0.0
        %6222 = vmatprep.subr.mxu0 0.0
        %6223 = vmatpush1.msra.mxu0 0.0
        %6224 = vmatprep.subr.mxu0 0.0
        %6225 = vmatpush1.msra.mxu0 0.0
        %6226 = vmatprep.subr.mxu0 0.0
        %6227 = vmatpush1.msra.mxu0 0.0
        %6228 = vmatprep.subr.mxu0 0.0
        %6229 = vmatpush1.msra.mxu0 0.0
        %6230 = vmatprep.subr.mxu0 0.0
        %6231 = vmatpush1.msra.mxu0 0.0
        %6232 = vmatprep.subr.mxu0 0.0
        %6233 = vmatpush1.msra.mxu0 0.0
        %6234 = vmatprep.subr.mxu0 0.0
        %6235 = vmatpush1.msra.mxu0 0.0
        %6236 = vmatprep.subr.mxu0 0.0
        %6237 = vmatpush1.msra.mxu0 0.0
        %6238 = vmatprep.subr.mxu0 0.0
        %6239 = vmatpush1.msra.mxu0 0.0
        %6240 = vmatprep.subr.mxu0 0.0
        %6241 = vmatpush1.msra.mxu0 0.0
        %6242 = vmatprep.subr.mxu0 0.0
        %6243 = vmatpush1.msra.mxu0 0.0
        %6244 = vmatprep.subr.mxu0 0.0
        %6245 = vmatpush1.msra.mxu0 0.0
        %6246 = vmatprep.subr.mxu0 0.0
        %6247 = vmatpush1.msra.mxu0 0.0
        %6248 = vmatprep.subr.mxu0 0.0
        %6249 = vmatpush1.msra.mxu0 0.0
        %6250 = vmatprep.subr.mxu0 0.0
        %6251 = vmatpush1.msra.mxu0 0.0
        %6252 = vmatprep.subr.mxu0 0.0
        %6253 = vmatpush1.msra.mxu0 0.0
        %6254 = vmatprep.subr.mxu0 0.0
        %6255 = vmatpush1.msra.mxu0 0.0
        %6256 = vmatprep.mubr.f32.mxu0 0.0
        %6257 = vmatmul.mubr.f32.gmra.mrb[0].mxu0 %v6119
        %v6258 = vpop.f32.mrb[0].mxu0
        %v6259 = vadd.f32 0.0, %v6258
        %v6260 = vpop.f32.mrb[0].mxu0
        %v6261 = vadd.f32 0.0, %v6260
        %6262 = vdwg.mxu0
        %6263 = vmatprep.subr.mxu0 %v6113
        %6264 = vmatpush1.msra.mxu0 %v6112
        %6265 = vmatprep.subr.mxu0 0.0
        %6266 = vmatpush1.msra.mxu0 0.0
        %6267 = vmatprep.subr.mxu0 0.0
        %6268 = vmatpush1.msra.mxu0 0.0
        %6269 = vmatprep.subr.mxu0 0.0
        %6270 = vmatpush1.msra.mxu0 0.0
        %6271 = vmatprep.subr.mxu0 0.0
        %6272 = vmatpush1.msra.mxu0 0.0
        %6273 = vmatprep.subr.mxu0 0.0
        %6274 = vmatpush1.msra.mxu0 0.0
        %6275 = vmatprep.subr.mxu0 0.0
        %6276 = vmatpush1.msra.mxu0 0.0
        %6277 = vmatprep.subr.mxu0 0.0
        %6278 = vmatpush1.msra.mxu0 0.0
        %6279 = vmatprep.subr.mxu0 0.0
        %6280 = vmatpush1.msra.mxu0 0.0
        %6281 = vmatprep.subr.mxu0 0.0
        %6282 = vmatpush1.msra.mxu0 0.0
        %6283 = vmatprep.subr.mxu0 0.0
        %6284 = vmatpush1.msra.mxu0 0.0
        %6285 = vmatprep.subr.mxu0 0.0
        %6286 = vmatpush1.msra.mxu0 0.0
        %6287 = vmatprep.subr.mxu0 0.0
        %6288 = vmatpush1.msra.mxu0 0.0
        %6289 = vmatprep.subr.mxu0 0.0
        %6290 = vmatpush1.msra.mxu0 0.0
        %6291 = vmatprep.subr.mxu0 0.0
        %6292 = vmatpush1.msra.mxu0 0.0
        %6293 = vmatprep.subr.mxu0 0.0
        %6294 = vmatpush1.msra.mxu0 0.0
        %6295 = vmatprep.subr.mxu0 0.0
        %6296 = vmatpush1.msra.mxu0 0.0
        %6297 = vmatprep.subr.mxu0 0.0
        %6298 = vmatpush1.msra.mxu0 0.0
        %6299 = vmatprep.subr.mxu0 0.0
        %6300 = vmatpush1.msra.mxu0 0.0
        %6301 = vmatprep.subr.mxu0 0.0
        %6302 = vmatpush1.msra.mxu0 0.0
        %6303 = vmatprep.subr.mxu0 0.0
        %6304 = vmatpush1.msra.mxu0 0.0
        %6305 = vmatprep.subr.mxu0 0.0
        %6306 = vmatpush1.msra.mxu0 0.0
        %6307 = vmatprep.subr.mxu0 0.0
        %6308 = vmatpush1.msra.mxu0 0.0
        %6309 = vmatprep.subr.mxu0 0.0
        %6310 = vmatpush1.msra.mxu0 0.0
        %6311 = vmatprep.subr.mxu0 0.0
        %6312 = vmatpush1.msra.mxu0 0.0
        %6313 = vmatprep.subr.mxu0 0.0
        %6314 = vmatpush1.msra.mxu0 0.0
        %6315 = vmatprep.subr.mxu0 0.0
        %6316 = vmatpush1.msra.mxu0 0.0
        %6317 = vmatprep.subr.mxu0 0.0
        %6318 = vmatpush1.msra.mxu0 0.0
        %6319 = vmatprep.subr.mxu0 0.0
        %6320 = vmatpush1.msra.mxu0 0.0
        %6321 = vmatprep.subr.mxu0 0.0
        %6322 = vmatpush1.msra.mxu0 0.0
        %6323 = vmatprep.subr.mxu0 0.0
        %6324 = vmatpush1.msra.mxu0 0.0
        %6325 = vmatprep.subr.mxu0 0.0
        %6326 = vmatpush1.msra.mxu0 0.0
        %6327 = vmatprep.mubr.f32.mxu0 0.0
        %6328 = vmatmul.mubr.f32.gmra.mrb[0].mxu0 %v6119
        %v6329 = vpop.f32.mrb[0].mxu0
        %v6330 = vadd.f32 0.0, %v6329
        %v6331 = vpop.f32.mrb[0].mxu0
        %v6332 = vadd.f32 0.0, %v6331
        %6333 = vdwg.mxu0
        %6334 = vmatprep.subr.mxu0 %v6115
        %6335 = vmatpush1.msra.mxu0 %v6114
        %6336 = vmatprep.subr.mxu0 0.0
        %6337 = vmatpush1.msra.mxu0 0.0
        %6338 = vmatprep.subr.mxu0 0.0
        %6339 = vmatpush1.msra.mxu0 0.0
        %6340 = vmatprep.subr.mxu0 0.0
        %6341 = vmatpush1.msra.mxu0 0.0
        %6342 = vmatprep.subr.mxu0 0.0
        %6343 = vmatpush1.msra.mxu0 0.0
        %6344 = vmatprep.subr.mxu0 0.0
        %6345 = vmatpush1.msra.mxu0 0.0
        %6346 = vmatprep.subr.mxu0 0.0
        %6347 = vmatpush1.msra.mxu0 0.0
        %6348 = vmatprep.subr.mxu0 0.0
        %6349 = vmatpush1.msra.mxu0 0.0
        %6350 = vmatprep.subr.mxu0 0.0
        %6351 = vmatpush1.msra.mxu0 0.0
        %6352 = vmatprep.subr.mxu0 0.0
        %6353 = vmatpush1.msra.mxu0 0.0
        %6354 = vmatprep.subr.mxu0 0.0
        %6355 = vmatpush1.msra.mxu0 0.0
        %6356 = vmatprep.subr.mxu0 0.0
        %6357 = vmatpush1.msra.mxu0 0.0
        %6358 = vmatprep.subr.mxu0 0.0
        %6359 = vmatpush1.msra.mxu0 0.0
        %6360 = vmatprep.subr.mxu0 0.0
        %6361 = vmatpush1.msra.mxu0 0.0
        %6362 = vmatprep.subr.mxu0 0.0
        %6363 = vmatpush1.msra.mxu0 0.0
        %6364 = vmatprep.subr.mxu0 0.0
        %6365 = vmatpush1.msra.mxu0 0.0
        %6366 = vmatprep.subr.mxu0 0.0
        %6367 = vmatpush1.msra.mxu0 0.0
        %6368 = vmatprep.subr.mxu0 0.0
        %6369 = vmatpush1.msra.mxu0 0.0
        %6370 = vmatprep.subr.mxu0 0.0
        %6371 = vmatpush1.msra.mxu0 0.0
        %6372 = vmatprep.subr.mxu0 0.0
        %6373 = vmatpush1.msra.mxu0 0.0
        %6374 = vmatprep.subr.mxu0 0.0
        %6375 = vmatpush1.msra.mxu0 0.0
        %6376 = vmatprep.subr.mxu0 0.0
        %6377 = vmatpush1.msra.mxu0 0.0
        %6378 = vmatprep.subr.mxu0 0.0
        %6379 = vmatpush1.msra.mxu0 0.0
        %6380 = vmatprep.subr.mxu0 0.0
        %6381 = vmatpush1.msra.mxu0 0.0
        %6382 = vmatprep.subr.mxu0 0.0
        %6383 = vmatpush1.msra.mxu0 0.0
        %6384 = vmatprep.subr.mxu0 0.0
        %6385 = vmatpush1.msra.mxu0 0.0
        %6386 = vmatprep.subr.mxu0 0.0
        %6387 = vmatpush1.msra.mxu0 0.0
        %6388 = vmatprep.subr.mxu0 0.0
        %6389 = vmatpush1.msra.mxu0 0.0
        %6390 = vmatprep.subr.mxu0 0.0
        %6391 = vmatpush1.msra.mxu0 0.0
        %6392 = vmatprep.subr.mxu0 0.0
        %6393 = vmatpush1.msra.mxu0 0.0
        %6394 = vmatprep.subr.mxu0 0.0
        %6395 = vmatpush1.msra.mxu0 0.0
        %6396 = vmatprep.subr.mxu0 0.0
        %6397 = vmatpush1.msra.mxu0 0.0
        %6398 = vmatprep.mubr.f32.mxu0 0.0
        %6399 = vmatmul.mubr.f32.gmra.mrb[0].mxu0 %v6119
        %v6400 = vpop.f32.mrb[0].mxu0
        %v6401 = vadd.f32 0.0, %v6400
        %v6402 = vpop.f32.mrb[0].mxu0
        %v6403 = vadd.f32 0.0, %v6402
        %6404 = vdwg.mxu0
        %v6405 = vadd.f32 %v6076, %v6188
        %v6406 = vadd.f32 %v6077, %v6190
        %v6407 = vadd.f32 %v6078, %v6259
        %v6408 = vadd.f32 %v6079, %v6261
        %v6409 = vadd.f32 %v6080, %v6330
        %v6410 = vadd.f32 %v6081, %v6332
        %v6411 = vadd.f32 %v6082, %v6401
        %v6412 = vadd.f32 %v6083, %v6403
        %6413 = vrot.lane.b32.xlu0 %v4151, 96
        %v6414 = vpop.permute.xlu0 %6413
        %6415 = vrot.lane.b32.xlu0 %v4152, 96
        %v6416 = vpop.permute.xlu0 %6415
        %6417 = vrot.lane.b32.xlu0 %v4153, 96
        %v6418 = vpop.permute.xlu0 %6417
        %6419 = vrot.lane.b32.xlu0 %v4154, 96
        %v6420 = vpop.permute.xlu0 %6419
        %6421 = vrot.lane.b32.xlu0 %v4155, 96
        %v6422 = vpop.permute.xlu0 %6421
        %6423 = vrot.lane.b32.xlu0 %v4156, 96
        %v6424 = vpop.permute.xlu0 %6423
        %6425 = vrot.lane.b32.xlu0 %v4157, 96
        %v6426 = vpop.permute.xlu0 %6425
        %6427 = vrot.lane.b32.xlu0 %v4158, 96
        %v6428 = vpop.permute.xlu0 %6427
        %v6429 = vsel %vm3167, %v6426, %v6428
        %v6430 = vsel %vm3167, %v6424, %v6426
        %v6431 = vsel %vm3167, %v6422, %v6424
        %v6432 = vsel %vm3167, %v6420, %v6422
        %v6433 = vsel %vm3167, %v6418, %v6420
        %v6434 = vsel %vm3167, %v6416, %v6418
        %v6435 = vsel %vm3167, %v6414, %v6416
        %v6436 = vsel %vm3167, %v6428, %v6414
        %v6437 = vsel %vm292, %v6435, 0.0
        %v6438 = vsel %vm293, %v6434, 0.0
        %v6439 = vsel %vm294, %v6433, 0.0
        %v6440 = vsel %vm295, %v6432, 0.0
        %v6441 = vsel %vm296, %v6431, 0.0
        %v6442 = vsel %vm297, %v6430, 0.0
        %v6443 = vsel %vm298, %v6429, 0.0
        %v6444 = vsel %vm299, %v6436, 0.0
        %s6445 = scalar_lea.vmem %s4, 56
        %v6446 = vld [vmem:[%s6445] sm:$0xff]
        %v6448 = vsel %vm959, %v6446, 0
        %6450 = vmatprep.subr.mxu0 %v6438
        %6451 = vmatpush1.msra.mxu0 %v6437
        %6452 = vmatprep.subr.mxu0 0.0
        %6453 = vmatpush1.msra.mxu0 0.0
        %6454 = vmatprep.subr.mxu0 0.0
        %6455 = vmatpush1.msra.mxu0 0.0
        %6456 = vmatprep.subr.mxu0 0.0
        %6457 = vmatpush1.msra.mxu0 0.0
        %6458 = vmatprep.subr.mxu0 0.0
        %6459 = vmatpush1.msra.mxu0 0.0
        %6460 = vmatprep.subr.mxu0 0.0
        %6461 = vmatpush1.msra.mxu0 0.0
        %6462 = vmatprep.subr.mxu0 0.0
        %6463 = vmatpush1.msra.mxu0 0.0
        %6464 = vmatprep.subr.mxu0 0.0
        %6465 = vmatpush1.msra.mxu0 0.0
        %6466 = vmatprep.subr.mxu0 0.0
        %6467 = vmatpush1.msra.mxu0 0.0
        %6468 = vmatprep.subr.mxu0 0.0
        %6469 = vmatpush1.msra.mxu0 0.0
        %6470 = vmatprep.subr.mxu0 0.0
        %6471 = vmatpush1.msra.mxu0 0.0
        %6472 = vmatprep.subr.mxu0 0.0
        %6473 = vmatpush1.msra.mxu0 0.0
        %6474 = vmatprep.subr.mxu0 0.0
        %6475 = vmatpush1.msra.mxu0 0.0
        %6476 = vmatprep.subr.mxu0 0.0
        %6477 = vmatpush1.msra.mxu0 0.0
        %6478 = vmatprep.subr.mxu0 0.0
        %6479 = vmatpush1.msra.mxu0 0.0
        %6480 = vmatprep.subr.mxu0 0.0
        %6481 = vmatpush1.msra.mxu0 0.0
        %6482 = vmatprep.subr.mxu0 0.0
        %6483 = vmatpush1.msra.mxu0 0.0
        %6484 = vmatprep.subr.mxu0 0.0
        %6485 = vmatpush1.msra.mxu0 0.0
        %6486 = vmatprep.subr.mxu0 0.0
        %6487 = vmatpush1.msra.mxu0 0.0
        %6488 = vmatprep.subr.mxu0 0.0
        %6489 = vmatpush1.msra.mxu0 0.0
        %6490 = vmatprep.subr.mxu0 0.0
        %6491 = vmatpush1.msra.mxu0 0.0
        %6492 = vmatprep.subr.mxu0 0.0
        %6493 = vmatpush1.msra.mxu0 0.0
        %6494 = vmatprep.subr.mxu0 0.0
        %6495 = vmatpush1.msra.mxu0 0.0
        %6496 = vmatprep.subr.mxu0 0.0
        %6497 = vmatpush1.msra.mxu0 0.0
        %6498 = vmatprep.subr.mxu0 0.0
        %6499 = vmatpush1.msra.mxu0 0.0
        %6500 = vmatprep.subr.mxu0 0.0
        %6501 = vmatpush1.msra.mxu0 0.0
        %6502 = vmatprep.subr.mxu0 0.0
        %6503 = vmatpush1.msra.mxu0 0.0
        %6504 = vmatprep.subr.mxu0 0.0
        %6505 = vmatpush1.msra.mxu0 0.0
        %6506 = vmatprep.subr.mxu0 0.0
        %6507 = vmatpush1.msra.mxu0 0.0
        %6508 = vmatprep.subr.mxu0 0.0
        %6509 = vmatpush1.msra.mxu0 0.0
        %6510 = vmatprep.subr.mxu0 0.0
        %6511 = vmatpush1.msra.mxu0 0.0
        %6512 = vmatprep.subr.mxu0 0.0
        %6513 = vmatpush1.msra.mxu0 0.0
        %6514 = vmatprep.mubr.f32.mxu0 0.0
        %6515 = vmatmul.mubr.f32.gmra.mrb[0].mxu0 %v6448
        %v6516 = vpop.f32.mrb[0].mxu0
        %v6517 = vadd.f32 0.0, %v6516
        %v6518 = vpop.f32.mrb[0].mxu0
        %v6519 = vadd.f32 0.0, %v6518
        %6520 = vdwg.mxu0
        %6521 = vmatprep.subr.mxu0 %v6440
        %6522 = vmatpush1.msra.mxu0 %v6439
        %6523 = vmatprep.subr.mxu0 0.0
        %6524 = vmatpush1.msra.mxu0 0.0
        %6525 = vmatprep.subr.mxu0 0.0
        %6526 = vmatpush1.msra.mxu0 0.0
        %6527 = vmatprep.subr.mxu0 0.0
        %6528 = vmatpush1.msra.mxu0 0.0
        %6529 = vmatprep.subr.mxu0 0.0
        %6530 = vmatpush1.msra.mxu0 0.0
        %6531 = vmatprep.subr.mxu0 0.0
        %6532 = vmatpush1.msra.mxu0 0.0
        %6533 = vmatprep.subr.mxu0 0.0
        %6534 = vmatpush1.msra.mxu0 0.0
        %6535 = vmatprep.subr.mxu0 0.0
        %6536 = vmatpush1.msra.mxu0 0.0
        %6537 = vmatprep.subr.mxu0 0.0
        %6538 = vmatpush1.msra.mxu0 0.0
        %6539 = vmatprep.subr.mxu0 0.0
        %6540 = vmatpush1.msra.mxu0 0.0
        %6541 = vmatprep.subr.mxu0 0.0
        %6542 = vmatpush1.msra.mxu0 0.0
        %6543 = vmatprep.subr.mxu0 0.0
        %6544 = vmatpush1.msra.mxu0 0.0
        %6545 = vmatprep.subr.mxu0 0.0
        %6546 = vmatpush1.msra.mxu0 0.0
        %6547 = vmatprep.subr.mxu0 0.0
        %6548 = vmatpush1.msra.mxu0 0.0
        %6549 = vmatprep.subr.mxu0 0.0
        %6550 = vmatpush1.msra.mxu0 0.0
        %6551 = vmatprep.subr.mxu0 0.0
        %6552 = vmatpush1.msra.mxu0 0.0
        %6553 = vmatprep.subr.mxu0 0.0
        %6554 = vmatpush1.msra.mxu0 0.0
        %6555 = vmatprep.subr.mxu0 0.0
        %6556 = vmatpush1.msra.mxu0 0.0
        %6557 = vmatprep.subr.mxu0 0.0
        %6558 = vmatpush1.msra.mxu0 0.0
        %6559 = vmatprep.subr.mxu0 0.0
        %6560 = vmatpush1.msra.mxu0 0.0
        %6561 = vmatprep.subr.mxu0 0.0
        %6562 = vmatpush1.msra.mxu0 0.0
        %6563 = vmatprep.subr.mxu0 0.0
        %6564 = vmatpush1.msra.mxu0 0.0
        %6565 = vmatprep.subr.mxu0 0.0
        %6566 = vmatpush1.msra.mxu0 0.0
        %6567 = vmatprep.subr.mxu0 0.0
        %6568 = vmatpush1.msra.mxu0 0.0
        %6569 = vmatprep.subr.mxu0 0.0
        %6570 = vmatpush1.msra.mxu0 0.0
        %6571 = vmatprep.subr.mxu0 0.0
        %6572 = vmatpush1.msra.mxu0 0.0
        %6573 = vmatprep.subr.mxu0 0.0
        %6574 = vmatpush1.msra.mxu0 0.0
        %6575 = vmatprep.subr.mxu0 0.0
        %6576 = vmatpush1.msra.mxu0 0.0
        %6577 = vmatprep.subr.mxu0 0.0
        %6578 = vmatpush1.msra.mxu0 0.0
        %6579 = vmatprep.subr.mxu0 0.0
        %6580 = vmatpush1.msra.mxu0 0.0
        %6581 = vmatprep.subr.mxu0 0.0
        %6582 = vmatpush1.msra.mxu0 0.0
        %6583 = vmatprep.subr.mxu0 0.0
        %6584 = vmatpush1.msra.mxu0 0.0
        %6585 = vmatprep.mubr.f32.mxu0 0.0
        %6586 = vmatmul.mubr.f32.gmra.mrb[0].mxu0 %v6448
        %v6587 = vpop.f32.mrb[0].mxu0
        %v6588 = vadd.f32 0.0, %v6587
        %v6589 = vpop.f32.mrb[0].mxu0
        %v6590 = vadd.f32 0.0, %v6589
        %6591 = vdwg.mxu0
        %6592 = vmatprep.subr.mxu0 %v6442
        %6593 = vmatpush1.msra.mxu0 %v6441
        %6594 = vmatprep.subr.mxu0 0.0
        %6595 = vmatpush1.msra.mxu0 0.0
        %6596 = vmatprep.subr.mxu0 0.0
        %6597 = vmatpush1.msra.mxu0 0.0
        %6598 = vmatprep.subr.mxu0 0.0
        %6599 = vmatpush1.msra.mxu0 0.0
        %6600 = vmatprep.subr.mxu0 0.0
        %6601 = vmatpush1.msra.mxu0 0.0
        %6602 = vmatprep.subr.mxu0 0.0
        %6603 = vmatpush1.msra.mxu0 0.0
        %6604 = vmatprep.subr.mxu0 0.0
        %6605 = vmatpush1.msra.mxu0 0.0
        %6606 = vmatprep.subr.mxu0 0.0
        %6607 = vmatpush1.msra.mxu0 0.0
        %6608 = vmatprep.subr.mxu0 0.0
        %6609 = vmatpush1.msra.mxu0 0.0
        %6610 = vmatprep.subr.mxu0 0.0
        %6611 = vmatpush1.msra.mxu0 0.0
        %6612 = vmatprep.subr.mxu0 0.0
        %6613 = vmatpush1.msra.mxu0 0.0
        %6614 = vmatprep.subr.mxu0 0.0
        %6615 = vmatpush1.msra.mxu0 0.0
        %6616 = vmatprep.subr.mxu0 0.0
        %6617 = vmatpush1.msra.mxu0 0.0
        %6618 = vmatprep.subr.mxu0 0.0
        %6619 = vmatpush1.msra.mxu0 0.0
        %6620 = vmatprep.subr.mxu0 0.0
        %6621 = vmatpush1.msra.mxu0 0.0
        %6622 = vmatprep.subr.mxu0 0.0
        %6623 = vmatpush1.msra.mxu0 0.0
        %6624 = vmatprep.subr.mxu0 0.0
        %6625 = vmatpush1.msra.mxu0 0.0
        %6626 = vmatprep.subr.mxu0 0.0
        %6627 = vmatpush1.msra.mxu0 0.0
        %6628 = vmatprep.subr.mxu0 0.0
        %6629 = vmatpush1.msra.mxu0 0.0
        %6630 = vmatprep.subr.mxu0 0.0
        %6631 = vmatpush1.msra.mxu0 0.0
        %6632 = vmatprep.subr.mxu0 0.0
        %6633 = vmatpush1.msra.mxu0 0.0
        %6634 = vmatprep.subr.mxu0 0.0
        %6635 = vmatpush1.msra.mxu0 0.0
        %6636 = vmatprep.subr.mxu0 0.0
        %6637 = vmatpush1.msra.mxu0 0.0
        %6638 = vmatprep.subr.mxu0 0.0
        %6639 = vmatpush1.msra.mxu0 0.0
        %6640 = vmatprep.subr.mxu0 0.0
        %6641 = vmatpush1.msra.mxu0 0.0
        %6642 = vmatprep.subr.mxu0 0.0
        %6643 = vmatpush1.msra.mxu0 0.0
        %6644 = vmatprep.subr.mxu0 0.0
        %6645 = vmatpush1.msra.mxu0 0.0
        %6646 = vmatprep.subr.mxu0 0.0
        %6647 = vmatpush1.msra.mxu0 0.0
        %6648 = vmatprep.subr.mxu0 0.0
        %6649 = vmatpush1.msra.mxu0 0.0
        %6650 = vmatprep.subr.mxu0 0.0
        %6651 = vmatpush1.msra.mxu0 0.0
        %6652 = vmatprep.subr.mxu0 0.0
        %6653 = vmatpush1.msra.mxu0 0.0
        %6654 = vmatprep.subr.mxu0 0.0
        %6655 = vmatpush1.msra.mxu0 0.0
        %6656 = vmatprep.mubr.f32.mxu0 0.0
        %6657 = vmatmul.mubr.f32.gmra.mrb[0].mxu0 %v6448
        %v6658 = vpop.f32.mrb[0].mxu0
        %v6659 = vadd.f32 0.0, %v6658
        %v6660 = vpop.f32.mrb[0].mxu0
        %v6661 = vadd.f32 0.0, %v6660
        %6662 = vdwg.mxu0
        %6663 = vmatprep.subr.mxu0 %v6444
        %6664 = vmatpush1.msra.mxu0 %v6443
        %6665 = vmatprep.subr.mxu0 0.0
        %6666 = vmatpush1.msra.mxu0 0.0
        %6667 = vmatprep.subr.mxu0 0.0
        %6668 = vmatpush1.msra.mxu0 0.0
        %6669 = vmatprep.subr.mxu0 0.0
        %6670 = vmatpush1.msra.mxu0 0.0
        %6671 = vmatprep.subr.mxu0 0.0
        %6672 = vmatpush1.msra.mxu0 0.0
        %6673 = vmatprep.subr.mxu0 0.0
        %6674 = vmatpush1.msra.mxu0 0.0
        %6675 = vmatprep.subr.mxu0 0.0
        %6676 = vmatpush1.msra.mxu0 0.0
        %6677 = vmatprep.subr.mxu0 0.0
        %6678 = vmatpush1.msra.mxu0 0.0
        %6679 = vmatprep.subr.mxu0 0.0
        %6680 = vmatpush1.msra.mxu0 0.0
        %6681 = vmatprep.subr.mxu0 0.0
        %6682 = vmatpush1.msra.mxu0 0.0
        %6683 = vmatprep.subr.mxu0 0.0
        %6684 = vmatpush1.msra.mxu0 0.0
        %6685 = vmatprep.subr.mxu0 0.0
        %6686 = vmatpush1.msra.mxu0 0.0
        %6687 = vmatprep.subr.mxu0 0.0
        %6688 = vmatpush1.msra.mxu0 0.0
        %6689 = vmatprep.subr.mxu0 0.0
        %6690 = vmatpush1.msra.mxu0 0.0
        %6691 = vmatprep.subr.mxu0 0.0
        %6692 = vmatpush1.msra.mxu0 0.0
        %6693 = vmatprep.subr.mxu0 0.0
        %6694 = vmatpush1.msra.mxu0 0.0
        %6695 = vmatprep.subr.mxu0 0.0
        %6696 = vmatpush1.msra.mxu0 0.0
        %6697 = vmatprep.subr.mxu0 0.0
        %6698 = vmatpush1.msra.mxu0 0.0
        %6699 = vmatprep.subr.mxu0 0.0
        %6700 = vmatpush1.msra.mxu0 0.0
        %6701 = vmatprep.subr.mxu0 0.0
        %6702 = vmatpush1.msra.mxu0 0.0
        %6703 = vmatprep.subr.mxu0 0.0
        %6704 = vmatpush1.msra.mxu0 0.0
        %6705 = vmatprep.subr.mxu0 0.0
        %6706 = vmatpush1.msra.mxu0 0.0
        %6707 = vmatprep.subr.mxu0 0.0
        %6708 = vmatpush1.msra.mxu0 0.0
        %6709 = vmatprep.subr.mxu0 0.0
        %6710 = vmatpush1.msra.mxu0 0.0
        %6711 = vmatprep.subr.mxu0 0.0
        %6712 = vmatpush1.msra.mxu0 0.0
        %6713 = vmatprep.subr.mxu0 0.0
        %6714 = vmatpush1.msra.mxu0 0.0
        %6715 = vmatprep.subr.mxu0 0.0
        %6716 = vmatpush1.msra.mxu0 0.0
        %6717 = vmatprep.subr.mxu0 0.0
        %6718 = vmatpush1.msra.mxu0 0.0
        %6719 = vmatprep.subr.mxu0 0.0
        %6720 = vmatpush1.msra.mxu0 0.0
        %6721 = vmatprep.subr.mxu0 0.0
        %6722 = vmatpush1.msra.mxu0 0.0
        %6723 = vmatprep.subr.mxu0 0.0
        %6724 = vmatpush1.msra.mxu0 0.0
        %6725 = vmatprep.subr.mxu0 0.0
        %6726 = vmatpush1.msra.mxu0 0.0
        %6727 = vmatprep.mubr.f32.mxu0 0.0
        %6728 = vmatmul.mubr.f32.gmra.mrb[0].mxu0 %v6448
        %v6729 = vpop.f32.mrb[0].mxu0
        %v6730 = vadd.f32 0.0, %v6729
        %v6731 = vpop.f32.mrb[0].mxu0
        %v6732 = vadd.f32 0.0, %v6731
        %6733 = vdwg.mxu0
        %v6734 = vadd.f32 %v6405, %v6517
        %v6735 = vadd.f32 %v6406, %v6519
        %v6736 = vadd.f32 %v6407, %v6588
        %v6737 = vadd.f32 %v6408, %v6590
        %v6738 = vadd.f32 %v6409, %v6659
        %v6739 = vadd.f32 %v6410, %v6661
        %v6740 = vadd.f32 %v6411, %v6730
        %v6741 = vadd.f32 %v6412, %v6732
        %6742 = vrot.lane.b32.xlu0 %v4151, 95
        %v6743 = vpop.permute.xlu0 %6742
        %6744 = vrot.lane.b32.xlu0 %v4152, 95
        %v6745 = vpop.permute.xlu0 %6744
        %6746 = vrot.lane.b32.xlu0 %v4153, 95
        %v6747 = vpop.permute.xlu0 %6746
        %6748 = vrot.lane.b32.xlu0 %v4154, 95
        %v6749 = vpop.permute.xlu0 %6748
        %6750 = vrot.lane.b32.xlu0 %v4155, 95
        %v6751 = vpop.permute.xlu0 %6750
        %6752 = vrot.lane.b32.xlu0 %v4156, 95
        %v6753 = vpop.permute.xlu0 %6752
        %6754 = vrot.lane.b32.xlu0 %v4157, 95
        %v6755 = vpop.permute.xlu0 %6754
        %6756 = vrot.lane.b32.xlu0 %v4158, 95
        %v6757 = vpop.permute.xlu0 %6756
        %v6758 = vsel %vm3497, %v6755, %v6757
        %v6759 = vsel %vm3497, %v6753, %v6755
        %v6760 = vsel %vm3497, %v6751, %v6753
        %v6761 = vsel %vm3497, %v6749, %v6751
        %v6762 = vsel %vm3497, %v6747, %v6749
        %v6763 = vsel %vm3497, %v6745, %v6747
        %v6764 = vsel %vm3497, %v6743, %v6745
        %v6765 = vsel %vm3497, %v6757, %v6743
        %v6766 = vsel %vm340, %v6764, 0.0
        %v6767 = vsel %vm341, %v6763, 0.0
        %v6768 = vsel %vm342, %v6762, 0.0
        %v6769 = vsel %vm343, %v6761, 0.0
        %v6770 = vsel %vm344, %v6760, 0.0
        %v6771 = vsel %vm345, %v6759, 0.0
        %v6772 = vsel %vm346, %v6758, 0.0
        %v6773 = vsel %vm347, %v6765, 0.0
        %s6774 = scalar_lea.vmem %s4, 64
        %v6775 = vld [vmem:[%s6774] sm:$0xff]
        %v6777 = vsel %vm959, %v6775, 0
        %6779 = vmatprep.subr.mxu0 %v6767
        %6780 = vmatpush1.msra.mxu0 %v6766
        %6781 = vmatprep.subr.mxu0 0.0
        %6782 = vmatpush1.msra.mxu0 0.0
        %6783 = vmatprep.subr.mxu0 0.0
        %6784 = vmatpush1.msra.mxu0 0.0
        %6785 = vmatprep.subr.mxu0 0.0
        %6786 = vmatpush1.msra.mxu0 0.0
        %6787 = vmatprep.subr.mxu0 0.0
        %6788 = vmatpush1.msra.mxu0 0.0
        %6789 = vmatprep.subr.mxu0 0.0
        %6790 = vmatpush1.msra.mxu0 0.0
        %6791 = vmatprep.subr.mxu0 0.0
        %6792 = vmatpush1.msra.mxu0 0.0
        %6793 = vmatprep.subr.mxu0 0.0
        %6794 = vmatpush1.msra.mxu0 0.0
        %6795 = vmatprep.subr.mxu0 0.0
        %6796 = vmatpush1.msra.mxu0 0.0
        %6797 = vmatprep.subr.mxu0 0.0
        %6798 = vmatpush1.msra.mxu0 0.0
        %6799 = vmatprep.subr.mxu0 0.0
        %6800 = vmatpush1.msra.mxu0 0.0
        %6801 = vmatprep.subr.mxu0 0.0
        %6802 = vmatpush1.msra.mxu0 0.0
        %6803 = vmatprep.subr.mxu0 0.0
        %6804 = vmatpush1.msra.mxu0 0.0
        %6805 = vmatprep.subr.mxu0 0.0
        %6806 = vmatpush1.msra.mxu0 0.0
        %6807 = vmatprep.subr.mxu0 0.0
        %6808 = vmatpush1.msra.mxu0 0.0
        %6809 = vmatprep.subr.mxu0 0.0
        %6810 = vmatpush1.msra.mxu0 0.0
        %6811 = vmatprep.subr.mxu0 0.0
        %6812 = vmatpush1.msra.mxu0 0.0
        %6813 = vmatprep.subr.mxu0 0.0
        %6814 = vmatpush1.msra.mxu0 0.0
        %6815 = vmatprep.subr.mxu0 0.0
        %6816 = vmatpush1.msra.mxu0 0.0
        %6817 = vmatprep.subr.mxu0 0.0
        %6818 = vmatpush1.msra.mxu0 0.0
        %6819 = vmatprep.subr.mxu0 0.0
        %6820 = vmatpush1.msra.mxu0 0.0
        %6821 = vmatprep.subr.mxu0 0.0
        %6822 = vmatpush1.msra.mxu0 0.0
        %6823 = vmatprep.subr.mxu0 0.0
        %6824 = vmatpush1.msra.mxu0 0.0
        %6825 = vmatprep.subr.mxu0 0.0
        %6826 = vmatpush1.msra.mxu0 0.0
        %6827 = vmatprep.subr.mxu0 0.0
        %6828 = vmatpush1.msra.mxu0 0.0
        %6829 = vmatprep.subr.mxu0 0.0
        %6830 = vmatpush1.msra.mxu0 0.0
        %6831 = vmatprep.subr.mxu0 0.0
        %6832 = vmatpush1.msra.mxu0 0.0
        %6833 = vmatprep.subr.mxu0 0.0
        %6834 = vmatpush1.msra.mxu0 0.0
        %6835 = vmatprep.subr.mxu0 0.0
        %6836 = vmatpush1.msra.mxu0 0.0
        %6837 = vmatprep.subr.mxu0 0.0
        %6838 = vmatpush1.msra.mxu0 0.0
        %6839 = vmatprep.subr.mxu0 0.0
        %6840 = vmatpush1.msra.mxu0 0.0
        %6841 = vmatprep.subr.mxu0 0.0
        %6842 = vmatpush1.msra.mxu0 0.0
        %6843 = vmatprep.mubr.f32.mxu0 0.0
        %6844 = vmatmul.mubr.f32.gmra.mrb[0].mxu0 %v6777
        %v6845 = vpop.f32.mrb[0].mxu0
        %v6846 = vadd.f32 0.0, %v6845
        %v6847 = vpop.f32.mrb[0].mxu0
        %v6848 = vadd.f32 0.0, %v6847
        %6849 = vdwg.mxu0
        %6850 = vmatprep.subr.mxu0 %v6769
        %6851 = vmatpush1.msra.mxu0 %v6768
        %6852 = vmatprep.subr.mxu0 0.0
        %6853 = vmatpush1.msra.mxu0 0.0
        %6854 = vmatprep.subr.mxu0 0.0
        %6855 = vmatpush1.msra.mxu0 0.0
        %6856 = vmatprep.subr.mxu0 0.0
        %6857 = vmatpush1.msra.mxu0 0.0
        %6858 = vmatprep.subr.mxu0 0.0
        %6859 = vmatpush1.msra.mxu0 0.0
        %6860 = vmatprep.subr.mxu0 0.0
        %6861 = vmatpush1.msra.mxu0 0.0
        %6862 = vmatprep.subr.mxu0 0.0
        %6863 = vmatpush1.msra.mxu0 0.0
        %6864 = vmatprep.subr.mxu0 0.0
        %6865 = vmatpush1.msra.mxu0 0.0
        %6866 = vmatprep.subr.mxu0 0.0
        %6867 = vmatpush1.msra.mxu0 0.0
        %6868 = vmatprep.subr.mxu0 0.0
        %6869 = vmatpush1.msra.mxu0 0.0
        %6870 = vmatprep.subr.mxu0 0.0
        %6871 = vmatpush1.msra.mxu0 0.0
        %6872 = vmatprep.subr.mxu0 0.0
        %6873 = vmatpush1.msra.mxu0 0.0
        %6874 = vmatprep.subr.mxu0 0.0
        %6875 = vmatpush1.msra.mxu0 0.0
        %6876 = vmatprep.subr.mxu0 0.0
        %6877 = vmatpush1.msra.mxu0 0.0
        %6878 = vmatprep.subr.mxu0 0.0
        %6879 = vmatpush1.msra.mxu0 0.0
        %6880 = vmatprep.subr.mxu0 0.0
        %6881 = vmatpush1.msra.mxu0 0.0
        %6882 = vmatprep.subr.mxu0 0.0
        %6883 = vmatpush1.msra.mxu0 0.0
        %6884 = vmatprep.subr.mxu0 0.0
        %6885 = vmatpush1.msra.mxu0 0.0
        %6886 = vmatprep.subr.mxu0 0.0
        %6887 = vmatpush1.msra.mxu0 0.0
        %6888 = vmatprep.subr.mxu0 0.0
        %6889 = vmatpush1.msra.mxu0 0.0
        %6890 = vmatprep.subr.mxu0 0.0
        %6891 = vmatpush1.msra.mxu0 0.0
        %6892 = vmatprep.subr.mxu0 0.0
        %6893 = vmatpush1.msra.mxu0 0.0
        %6894 = vmatprep.subr.mxu0 0.0
        %6895 = vmatpush1.msra.mxu0 0.0
        %6896 = vmatprep.subr.mxu0 0.0
        %6897 = vmatpush1.msra.mxu0 0.0
        %6898 = vmatprep.subr.mxu0 0.0
        %6899 = vmatpush1.msra.mxu0 0.0
        %6900 = vmatprep.subr.mxu0 0.0
        %6901 = vmatpush1.msra.mxu0 0.0
        %6902 = vmatprep.subr.mxu0 0.0
        %6903 = vmatpush1.msra.mxu0 0.0
        %6904 = vmatprep.subr.mxu0 0.0
        %6905 = vmatpush1.msra.mxu0 0.0
        %6906 = vmatprep.subr.mxu0 0.0
        %6907 = vmatpush1.msra.mxu0 0.0
        %6908 = vmatprep.subr.mxu0 0.0
        %6909 = vmatpush1.msra.mxu0 0.0
        %6910 = vmatprep.subr.mxu0 0.0
        %6911 = vmatpush1.msra.mxu0 0.0
        %6912 = vmatprep.subr.mxu0 0.0
        %6913 = vmatpush1.msra.mxu0 0.0
        %6914 = vmatprep.mubr.f32.mxu0 0.0
        %6915 = vmatmul.mubr.f32.gmra.mrb[0].mxu0 %v6777
        %v6916 = vpop.f32.mrb[0].mxu0
        %v6917 = vadd.f32 0.0, %v6916
        %v6918 = vpop.f32.mrb[0].mxu0
        %v6919 = vadd.f32 0.0, %v6918
        %6920 = vdwg.mxu0
        %6921 = vmatprep.subr.mxu0 %v6771
        %6922 = vmatpush1.msra.mxu0 %v6770
        %6923 = vmatprep.subr.mxu0 0.0
        %6924 = vmatpush1.msra.mxu0 0.0
        %6925 = vmatprep.subr.mxu0 0.0
        %6926 = vmatpush1.msra.mxu0 0.0
        %6927 = vmatprep.subr.mxu0 0.0
        %6928 = vmatpush1.msra.mxu0 0.0
        %6929 = vmatprep.subr.mxu0 0.0
        %6930 = vmatpush1.msra.mxu0 0.0
        %6931 = vmatprep.subr.mxu0 0.0
        %6932 = vmatpush1.msra.mxu0 0.0
        %6933 = vmatprep.subr.mxu0 0.0
        %6934 = vmatpush1.msra.mxu0 0.0
        %6935 = vmatprep.subr.mxu0 0.0
        %6936 = vmatpush1.msra.mxu0 0.0
        %6937 = vmatprep.subr.mxu0 0.0
        %6938 = vmatpush1.msra.mxu0 0.0
        %6939 = vmatprep.subr.mxu0 0.0
        %6940 = vmatpush1.msra.mxu0 0.0
        %6941 = vmatprep.subr.mxu0 0.0
        %6942 = vmatpush1.msra.mxu0 0.0
        %6943 = vmatprep.subr.mxu0 0.0
        %6944 = vmatpush1.msra.mxu0 0.0
        %6945 = vmatprep.subr.mxu0 0.0
        %6946 = vmatpush1.msra.mxu0 0.0
        %6947 = vmatprep.subr.mxu0 0.0
        %6948 = vmatpush1.msra.mxu0 0.0
        %6949 = vmatprep.subr.mxu0 0.0
        %6950 = vmatpush1.msra.mxu0 0.0
        %6951 = vmatprep.subr.mxu0 0.0
        %6952 = vmatpush1.msra.mxu0 0.0
        %6953 = vmatprep.subr.mxu0 0.0
        %6954 = vmatpush1.msra.mxu0 0.0
        %6955 = vmatprep.subr.mxu0 0.0
        %6956 = vmatpush1.msra.mxu0 0.0
        %6957 = vmatprep.subr.mxu0 0.0
        %6958 = vmatpush1.msra.mxu0 0.0
        %6959 = vmatprep.subr.mxu0 0.0
        %6960 = vmatpush1.msra.mxu0 0.0
        %6961 = vmatprep.subr.mxu0 0.0
        %6962 = vmatpush1.msra.mxu0 0.0
        %6963 = vmatprep.subr.mxu0 0.0
        %6964 = vmatpush1.msra.mxu0 0.0
        %6965 = vmatprep.subr.mxu0 0.0
        %6966 = vmatpush1.msra.mxu0 0.0
        %6967 = vmatprep.subr.mxu0 0.0
        %6968 = vmatpush1.msra.mxu0 0.0
        %6969 = vmatprep.subr.mxu0 0.0
        %6970 = vmatpush1.msra.mxu0 0.0
        %6971 = vmatprep.subr.mxu0 0.0
        %6972 = vmatpush1.msra.mxu0 0.0
        %6973 = vmatprep.subr.mxu0 0.0
        %6974 = vmatpush1.msra.mxu0 0.0
        %6975 = vmatprep.subr.mxu0 0.0
        %6976 = vmatpush1.msra.mxu0 0.0
        %6977 = vmatprep.subr.mxu0 0.0
        %6978 = vmatpush1.msra.mxu0 0.0
        %6979 = vmatprep.subr.mxu0 0.0
        %6980 = vmatpush1.msra.mxu0 0.0
        %6981 = vmatprep.subr.mxu0 0.0
        %6982 = vmatpush1.msra.mxu0 0.0
        %6983 = vmatprep.subr.mxu0 0.0
        %6984 = vmatpush1.msra.mxu0 0.0
        %6985 = vmatprep.mubr.f32.mxu0 0.0
        %6986 = vmatmul.mubr.f32.gmra.mrb[0].mxu0 %v6777
        %v6987 = vpop.f32.mrb[0].mxu0
        %v6988 = vadd.f32 0.0, %v6987
        %v6989 = vpop.f32.mrb[0].mxu0
        %v6990 = vadd.f32 0.0, %v6989
        %6991 = vdwg.mxu0
        %6992 = vmatprep.subr.mxu0 %v6773
        %6993 = vmatpush1.msra.mxu0 %v6772
        %6994 = vmatprep.subr.mxu0 0.0
        %6995 = vmatpush1.msra.mxu0 0.0
        %6996 = vmatprep.subr.mxu0 0.0
        %6997 = vmatpush1.msra.mxu0 0.0
        %6998 = vmatprep.subr.mxu0 0.0
        %6999 = vmatpush1.msra.mxu0 0.0
        %7000 = vmatprep.subr.mxu0 0.0
        %7001 = vmatpush1.msra.mxu0 0.0
        %7002 = vmatprep.subr.mxu0 0.0
        %7003 = vmatpush1.msra.mxu0 0.0
        %7004 = vmatprep.subr.mxu0 0.0
        %7005 = vmatpush1.msra.mxu0 0.0
        %7006 = vmatprep.subr.mxu0 0.0
        %7007 = vmatpush1.msra.mxu0 0.0
        %7008 = vmatprep.subr.mxu0 0.0
        %7009 = vmatpush1.msra.mxu0 0.0
        %7010 = vmatprep.subr.mxu0 0.0
        %7011 = vmatpush1.msra.mxu0 0.0
        %7012 = vmatprep.subr.mxu0 0.0
        %7013 = vmatpush1.msra.mxu0 0.0
        %7014 = vmatprep.subr.mxu0 0.0
        %7015 = vmatpush1.msra.mxu0 0.0
        %7016 = vmatprep.subr.mxu0 0.0
        %7017 = vmatpush1.msra.mxu0 0.0
        %7018 = vmatprep.subr.mxu0 0.0
        %7019 = vmatpush1.msra.mxu0 0.0
        %7020 = vmatprep.subr.mxu0 0.0
        %7021 = vmatpush1.msra.mxu0 0.0
        %7022 = vmatprep.subr.mxu0 0.0
        %7023 = vmatpush1.msra.mxu0 0.0
        %7024 = vmatprep.subr.mxu0 0.0
        %7025 = vmatpush1.msra.mxu0 0.0
        %7026 = vmatprep.subr.mxu0 0.0
        %7027 = vmatpush1.msra.mxu0 0.0
        %7028 = vmatprep.subr.mxu0 0.0
        %7029 = vmatpush1.msra.mxu0 0.0
        %7030 = vmatprep.subr.mxu0 0.0
        %7031 = vmatpush1.msra.mxu0 0.0
        %7032 = vmatprep.subr.mxu0 0.0
        %7033 = vmatpush1.msra.mxu0 0.0
        %7034 = vmatprep.subr.mxu0 0.0
        %7035 = vmatpush1.msra.mxu0 0.0
        %7036 = vmatprep.subr.mxu0 0.0
        %7037 = vmatpush1.msra.mxu0 0.0
        %7038 = vmatprep.subr.mxu0 0.0
        %7039 = vmatpush1.msra.mxu0 0.0
        %7040 = vmatprep.subr.mxu0 0.0
        %7041 = vmatpush1.msra.mxu0 0.0
        %7042 = vmatprep.subr.mxu0 0.0
        %7043 = vmatpush1.msra.mxu0 0.0
        %7044 = vmatprep.subr.mxu0 0.0
        %7045 = vmatpush1.msra.mxu0 0.0
        %7046 = vmatprep.subr.mxu0 0.0
        %7047 = vmatpush1.msra.mxu0 0.0
        %7048 = vmatprep.subr.mxu0 0.0
        %7049 = vmatpush1.msra.mxu0 0.0
        %7050 = vmatprep.subr.mxu0 0.0
        %7051 = vmatpush1.msra.mxu0 0.0
        %7052 = vmatprep.subr.mxu0 0.0
        %7053 = vmatpush1.msra.mxu0 0.0
        %7054 = vmatprep.subr.mxu0 0.0
        %7055 = vmatpush1.msra.mxu0 0.0
        %7056 = vmatprep.mubr.f32.mxu0 0.0
        %7057 = vmatmul.mubr.f32.gmra.mrb[0].mxu0 %v6777
        %v7058 = vpop.f32.mrb[0].mxu0
        %v7059 = vadd.f32 0.0, %v7058
        %v7060 = vpop.f32.mrb[0].mxu0
        %v7061 = vadd.f32 0.0, %v7060
        %7062 = vdwg.mxu0
        %v7063 = vadd.f32 %v6734, %v6846
        %v7064 = vadd.f32 %v6735, %v6848
        %v7065 = vadd.f32 %v6736, %v6917
        %v7066 = vadd.f32 %v6737, %v6919
        %v7067 = vadd.f32 %v6738, %v6988
        %v7068 = vadd.f32 %v6739, %v6990
        %v7069 = vadd.f32 %v6740, %v7059
        %v7070 = vadd.f32 %v6741, %v7061
        %v7071 = vld [vmem:[%s5] sm:$0xff]
        %7073 = vset.pattern.permute.xlu0 0
        %7074 = vperm.xlu0 %7073, %v7071
        %v7075 = vpop.permute.xlu0 %7074
        %v7077 = vadd.f32 %v7063, %v7075
        %v7078 = vadd.f32 %v7064, %v7075
        %v7079 = vadd.f32 %v7065, %v7075
        %v7080 = vadd.f32 %v7066, %v7075
        %v7081 = vadd.f32 %v7067, %v7075
        %v7082 = vadd.f32 %v7068, %v7075
        %v7083 = vadd.f32 %v7069, %v7075
        %v7084 = vadd.f32 %v7070, %v7075
        %v7085 = vadd.f32 %v7077, %v7078
        %v7086 = vadd.f32 %v7085, %v7079
        %v7087 = vadd.f32 %v7086, %v7080
        %v7088 = vadd.f32 %v7087, %v7081
        %v7089 = vadd.f32 %v7088, %v7082
        %v7090 = vadd.f32 %v7089, %v7083
        %v7091 = vadd.f32 %v7090, %v7084
        %7092 = vadd.xlane.f32.xlu0 %v7091
        %v7093 = vpop.xlane.xlu0 %7092
        %v7094 = vmul.f32 %v7093, 0.0009765625
        %v7095 = vsub.f32 %v7077, %v7094
        %v7096 = vsub.f32 %v7078, %v7094
        %v7097 = vsub.f32 %v7079, %v7094
        %v7098 = vsub.f32 %v7080, %v7094
        %v7099 = vsub.f32 %v7081, %v7094
        %v7100 = vsub.f32 %v7082, %v7094
        %v7101 = vsub.f32 %v7083, %v7094
        %v7102 = vsub.f32 %v7084, %v7094
        %v7103 = vmul.f32 %v7095, %v7095
        %v7104 = vmul.f32 %v7096, %v7096
        %v7105 = vmul.f32 %v7097, %v7097
        %v7106 = vmul.f32 %v7098, %v7098
        %v7107 = vmul.f32 %v7099, %v7099
        %v7108 = vmul.f32 %v7100, %v7100
        %v7109 = vmul.f32 %v7101, %v7101
        %v7110 = vmul.f32 %v7102, %v7102
        %v7111 = vadd.f32 %v7103, %v7104
        %v7112 = vadd.f32 %v7111, %v7105
        %v7113 = vadd.f32 %v7112, %v7106
        %v7114 = vadd.f32 %v7113, %v7107
        %v7115 = vadd.f32 %v7114, %v7108
        %v7116 = vadd.f32 %v7115, %v7109
        %v7117 = vadd.f32 %v7116, %v7110
        %7118 = vadd.xlane.f32.xlu0 %v7117
        %v7119 = vpop.xlane.xlu0 %7118
        %v7120 = vmul.f32 %v7119, 0.0009765625
        %v7121 = vadd.f32 %v7120, 1e-05
        %v7122 = vrsqrt.pop %v7121
        %v7123 = vmul.f32 %v7095, %v7122
        %v7124 = vmul.f32 %v7096, %v7122
        %v7125 = vmul.f32 %v7097, %v7122
        %v7126 = vmul.f32 %v7098, %v7122
        %v7127 = vmul.f32 %v7099, %v7122
        %v7128 = vmul.f32 %v7100, %v7122
        %v7129 = vmul.f32 %v7101, %v7122
        %v7130 = vmul.f32 %v7102, %v7122
        %v7131 = vmul.f32 %v7123, 0.70710677
        %v7132 = vmul.f32 %v7124, 0.70710677
        %v7133 = vmul.f32 %v7125, 0.70710677
        %v7134 = vmul.f32 %v7126, 0.70710677
        %v7135 = vmul.f32 %v7127, 0.70710677
        %v7136 = vmul.f32 %v7128, 0.70710677
        %v7137 = vmul.f32 %v7129, 0.70710677
        %v7138 = vmul.f32 %v7130, 0.70710677
        %v7139 = vand.u32 2147483647, %v7131
        %v7140 = vand.u32 2147483647, %v7132
        %v7141 = vand.u32 2147483647, %v7133
        %v7142 = vand.u32 2147483647, %v7134
        %v7143 = vand.u32 2147483647, %v7135
        %v7144 = vand.u32 2147483647, %v7136
        %v7145 = vand.u32 2147483647, %v7137
        %v7146 = vand.u32 2147483647, %v7138
        %v7147 = vmul.f32 %v7139, 0.5
        %v7148 = vmul.f32 %v7140, 0.5
        %v7149 = vmul.f32 %v7141, 0.5
        %v7150 = vmul.f32 %v7142, 0.5
        %v7151 = vmul.f32 %v7143, 0.5
        %v7152 = vmul.f32 %v7144, 0.5
        %v7153 = vmul.f32 %v7145, 0.5
        %v7154 = vmul.f32 %v7146, 0.5
        %v7155 = vadd.f32 %v7147, 1.0
        %v7156 = vadd.f32 %v7148, 1.0
        %v7157 = vadd.f32 %v7149, 1.0
        %v7158 = vadd.f32 %v7150, 1.0
        %v7159 = vadd.f32 %v7151, 1.0
        %v7160 = vadd.f32 %v7152, 1.0
        %v7161 = vadd.f32 %v7153, 1.0
        %v7162 = vadd.f32 %v7154, 1.0
        %v7163 = vrcp.pop %v7155
        %v7164 = vrcp.pop %v7156
        %v7165 = vrcp.pop %v7157
        %v7166 = vrcp.pop %v7158
        %v7167 = vrcp.pop %v7159
        %v7168 = vrcp.pop %v7160
        %v7169 = vrcp.pop %v7161
        %v7170 = vrcp.pop %v7162
        %v7171 = vmul.f32 %v7163, 0.17087276
        %v7172 = vmul.f32 %v7164, 0.17087276
        %v7173 = vmul.f32 %v7165, 0.17087276
        %v7174 = vmul.f32 %v7166, 0.17087276
        %v7175 = vmul.f32 %v7167, 0.17087276
        %v7176 = vmul.f32 %v7168, 0.17087276
        %v7177 = vmul.f32 %v7169, 0.17087276
        %v7178 = vmul.f32 %v7170, 0.17087276
        %v7179 = vadd.f32 %v7171, -0.82215226
        %v7180 = vadd.f32 %v7172, -0.82215226
        %v7181 = vadd.f32 %v7173, -0.82215226
        %v7182 = vadd.f32 %v7174, -0.82215226
        %v7183 = vadd.f32 %v7175, -0.82215226
        %v7184 = vadd.f32 %v7176, -0.82215226
        %v7185 = vadd.f32 %v7177, -0.82215226
        %v7186 = vadd.f32 %v7178, -0.82215226
        %v7187 = vmul.f32 %v7163, %v7179
        %v7188 = vmul.f32 %v7164, %v7180
        %v7189 = vmul.f32 %v7165, %v7181
        %v7190 = vmul.f32 %v7166, %v7182
        %v7191 = vmul.f32 %v7167, %v7183
        %v7192 = vmul.f32 %v7168, %v7184
        %v7193 = vmul.f32 %v7169, %v7185
        %v7194 = vmul.f32 %v7170, %v7186
        %v7195 = vadd.f32 %v7187, 1.4885159
        %v7196 = vadd.f32 %v7188, 1.4885159
        %v7197 = vadd.f32 %v7189, 1.4885159
        %v7198 = vadd.f32 %v7190, 1.4885159
        %v7199 = vadd.f32 %v7191, 1.4885159
        %v7200 = vadd.f32 %v7192, 1.4885159
        %v7201 = vadd.f32 %v7193, 1.4885159
        %v7202 = vadd.f32 %v7194, 1.4885159
        %v7203 = vmul.f32 %v7163, %v7195
        %v7204 = vmul.f32 %v7164, %v7196
        %v7205 = vmul.f32 %v7165, %v7197
        %v7206 = vmul.f32 %v7166, %v7198
        %v7207 = vmul.f32 %v7167, %v7199
        %v7208 = vmul.f32 %v7168, %v7200
        %v7209 = vmul.f32 %v7169, %v7201
        %v7210 = vmul.f32 %v7170, %v7202
        %v7211 = vadd.f32 %v7203, -1.135204
        %v7212 = vadd.f32 %v7204, -1.135204
        %v7213 = vadd.f32 %v7205, -1.135204
        %v7214 = vadd.f32 %v7206, -1.135204
        %v7215 = vadd.f32 %v7207, -1.135204
        %v7216 = vadd.f32 %v7208, -1.135204
        %v7217 = vadd.f32 %v7209, -1.135204
        %v7218 = vadd.f32 %v7210, -1.135204
        %v7219 = vmul.f32 %v7163, %v7211
        %v7220 = vmul.f32 %v7164, %v7212
        %v7221 = vmul.f32 %v7165, %v7213
        %v7222 = vmul.f32 %v7166, %v7214
        %v7223 = vmul.f32 %v7167, %v7215
        %v7224 = vmul.f32 %v7168, %v7216
        %v7225 = vmul.f32 %v7169, %v7217
        %v7226 = vmul.f32 %v7170, %v7218
        %v7227 = vadd.f32 %v7219, 0.27886808
        %v7228 = vadd.f32 %v7220, 0.27886808
        %v7229 = vadd.f32 %v7221, 0.27886808
        %v7230 = vadd.f32 %v7222, 0.27886808
        %v7231 = vadd.f32 %v7223, 0.27886808
        %v7232 = vadd.f32 %v7224, 0.27886808
        %v7233 = vadd.f32 %v7225, 0.27886808
        %v7234 = vadd.f32 %v7226, 0.27886808
        %v7235 = vmul.f32 %v7163, %v7227
        %v7236 = vmul.f32 %v7164, %v7228
        %v7237 = vmul.f32 %v7165, %v7229
        %v7238 = vmul.f32 %v7166, %v7230
        %v7239 = vmul.f32 %v7167, %v7231
        %v7240 = vmul.f32 %v7168, %v7232
        %v7241 = vmul.f32 %v7169, %v7233
        %v7242 = vmul.f32 %v7170, %v7234
        %v7243 = vadd.f32 %v7235, -0.18628806
        %v7244 = vadd.f32 %v7236, -0.18628806
        %v7245 = vadd.f32 %v7237, -0.18628806
        %v7246 = vadd.f32 %v7238, -0.18628806
        %v7247 = vadd.f32 %v7239, -0.18628806
        %v7248 = vadd.f32 %v7240, -0.18628806
        %v7249 = vadd.f32 %v7241, -0.18628806
        %v7250 = vadd.f32 %v7242, -0.18628806
        %v7251 = vmul.f32 %v7163, %v7243
        %v7252 = vmul.f32 %v7164, %v7244
        %v7253 = vmul.f32 %v7165, %v7245
        %v7254 = vmul.f32 %v7166, %v7246
        %v7255 = vmul.f32 %v7167, %v7247
        %v7256 = vmul.f32 %v7168, %v7248
        %v7257 = vmul.f32 %v7169, %v7249
        %v7258 = vmul.f32 %v7170, %v7250
        %v7259 = vadd.f32 %v7251, 0.09678418
        %v7260 = vadd.f32 %v7252, 0.09678418
        %v7261 = vadd.f32 %v7253, 0.09678418
        %v7262 = vadd.f32 %v7254, 0.09678418
        %v7263 = vadd.f32 %v7255, 0.09678418
        %v7264 = vadd.f32 %v7256, 0.09678418
        %v7265 = vadd.f32 %v7257, 0.09678418
        %v7266 = vadd.f32 %v7258, 0.09678418
        %v7267 = vmul.f32 %v7163, %v7259
        %v7268 = vmul.f32 %v7164, %v7260
        %v7269 = vmul.f32 %v7165, %v7261
        %v7270 = vmul.f32 %v7166, %v7262
        %v7271 = vmul.f32 %v7167, %v7263
        %v7272 = vmul.f32 %v7168, %v7264
        %v7273 = vmul.f32 %v7169, %v7265
        %v7274 = vmul.f32 %v7170, %v7266
        %v7275 = vadd.f32 %v7267, 0.37409195
        %v7276 = vadd.f32 %v7268, 0.37409195
        %v7277 = vadd.f32 %v7269, 0.37409195
        %v7278 = vadd.f32 %v7270, 0.37409195
        %v7279 = vadd.f32 %v7271, 0.37409195
        %v7280 = vadd.f32 %v7272, 0.37409195
        %v7281 = vadd.f32 %v7273, 0.37409195
        %v7282 = vadd.f32 %v7274, 0.37409195
        %v7283 = vmul.f32 %v7163, %v7275
        %v7284 = vmul.f32 %v7164, %v7276
        %v7285 = vmul.f32 %v7165, %v7277
        %v7286 = vmul.f32 %v7166, %v7278
        %v7287 = vmul.f32 %v7167, %v7279
        %v7288 = vmul.f32 %v7168, %v7280
        %v7289 = vmul.f32 %v7169, %v7281
        %v7290 = vmul.f32 %v7170, %v7282
        %v7291 = vadd.f32 %v7283, 1.0000237
        %v7292 = vadd.f32 %v7284, 1.0000237
        %v7293 = vadd.f32 %v7285, 1.0000237
        %v7294 = vadd.f32 %v7286, 1.0000237
        %v7295 = vadd.f32 %v7287, 1.0000237
        %v7296 = vadd.f32 %v7288, 1.0000237
        %v7297 = vadd.f32 %v7289, 1.0000237
        %v7298 = vadd.f32 %v7290, 1.0000237
        %v7299 = vmul.f32 %v7163, %v7291
        %v7300 = vmul.f32 %v7164, %v7292
        %v7301 = vmul.f32 %v7165, %v7293
        %v7302 = vmul.f32 %v7166, %v7294
        %v7303 = vmul.f32 %v7167, %v7295
        %v7304 = vmul.f32 %v7168, %v7296
        %v7305 = vmul.f32 %v7169, %v7297
        %v7306 = vmul.f32 %v7170, %v7298
        %v7307 = vadd.f32 %v7299, -1.2655122
        %v7308 = vadd.f32 %v7300, -1.2655122
        %v7309 = vadd.f32 %v7301, -1.2655122
        %v7310 = vadd.f32 %v7302, -1.2655122
        %v7311 = vadd.f32 %v7303, -1.2655122
        %v7312 = vadd.f32 %v7304, -1.2655122
        %v7313 = vadd.f32 %v7305, -1.2655122
        %v7314 = vadd.f32 %v7306, -1.2655122
        %v7315 = vsub.f32 0.0, %v7139
        %v7316 = vsub.f32 0.0, %v7140
        %v7317 = vsub.f32 0.0, %v7141
        %v7318 = vsub.f32 0.0, %v7142
        %v7319 = vsub.f32 0.0, %v7143
        %v7320 = vsub.f32 0.0, %v7144
        %v7321 = vsub.f32 0.0, %v7145
        %v7322 = vsub.f32 0.0, %v7146
        %v7323 = vmul.f32 %v7315, %v7139
        %v7324 = vmul.f32 %v7316, %v7140
        %v7325 = vmul.f32 %v7317, %v7141
        %v7326 = vmul.f32 %v7318, %v7142
        %v7327 = vmul.f32 %v7319, %v7143
        %v7328 = vmul.f32 %v7320, %v7144
        %v7329 = vmul.f32 %v7321, %v7145
        %v7330 = vmul.f32 %v7322, %v7146
        %v7331 = vadd.f32 %v7323, %v7307
        %v7332 = vadd.f32 %v7324, %v7308
        %v7333 = vadd.f32 %v7325, %v7309
        %v7334 = vadd.f32 %v7326, %v7310
        %v7335 = vadd.f32 %v7327, %v7311
        %v7336 = vadd.f32 %v7328, %v7312
        %v7337 = vadd.f32 %v7329, %v7313
        %v7338 = vadd.f32 %v7330, %v7314
        %v7339 = vmul.f32 %v7331, 1.442695
        %v7340 = vpow.pop %v7339
        %v7341 = vmul.f32 %v7332, 1.442695
        %v7342 = vpow.pop %v7341
        %v7343 = vmul.f32 %v7333, 1.442695
        %v7344 = vpow.pop %v7343
        %v7345 = vmul.f32 %v7334, 1.442695
        %v7346 = vpow.pop %v7345
        %v7347 = vmul.f32 %v7335, 1.442695
        %v7348 = vpow.pop %v7347
        %v7349 = vmul.f32 %v7336, 1.442695
        %v7350 = vpow.pop %v7349
        %v7351 = vmul.f32 %v7337, 1.442695
        %v7352 = vpow.pop %v7351
        %v7353 = vmul.f32 %v7338, 1.442695
        %v7354 = vpow.pop %v7353
        %v7355 = vmul.f32 %v7163, %v7340
        %v7356 = vmul.f32 %v7164, %v7342
        %v7357 = vmul.f32 %v7165, %v7344
        %v7358 = vmul.f32 %v7166, %v7346
        %v7359 = vmul.f32 %v7167, %v7348
        %v7360 = vmul.f32 %v7168, %v7350
        %v7361 = vmul.f32 %v7169, %v7352
        %v7362 = vmul.f32 %v7170, %v7354
        %vm7363 = vcmp.ge.f32.partialorder %v7131, 0.0
        %vm7364 = vcmp.ge.f32.partialorder %v7132, 0.0
        %vm7365 = vcmp.ge.f32.partialorder %v7133, 0.0
        %vm7366 = vcmp.ge.f32.partialorder %v7134, 0.0
        %vm7367 = vcmp.ge.f32.partialorder %v7135, 0.0
        %vm7368 = vcmp.ge.f32.partialorder %v7136, 0.0
        %vm7369 = vcmp.ge.f32.partialorder %v7137, 0.0
        %vm7370 = vcmp.ge.f32.partialorder %v7138, 0.0
        %v7371 = vsub.f32 1.0, %v7355
        %v7372 = vsub.f32 1.0, %v7356
        %v7373 = vsub.f32 1.0, %v7357
        %v7374 = vsub.f32 1.0, %v7358
        %v7375 = vsub.f32 1.0, %v7359
        %v7376 = vsub.f32 1.0, %v7360
        %v7377 = vsub.f32 1.0, %v7361
        %v7378 = vsub.f32 1.0, %v7362
        %v7379 = vsub.f32 %v7355, 1.0
        %v7380 = vsub.f32 %v7356, 1.0
        %v7381 = vsub.f32 %v7357, 1.0
        %v7382 = vsub.f32 %v7358, 1.0
        %v7383 = vsub.f32 %v7359, 1.0
        %v7384 = vsub.f32 %v7360, 1.0
        %v7385 = vsub.f32 %v7361, 1.0
        %v7386 = vsub.f32 %v7362, 1.0
        %v7387 = vsel %vm7363, %v7371, %v7379
        %v7388 = vsel %vm7364, %v7372, %v7380
        %v7389 = vsel %vm7365, %v7373, %v7381
        %v7390 = vsel %vm7366, %v7374, %v7382
        %v7391 = vsel %vm7367, %v7375, %v7383
        %v7392 = vsel %vm7368, %v7376, %v7384
        %v7393 = vsel %vm7369, %v7377, %v7385
        %v7394 = vsel %vm7370, %v7378, %v7386
        %v7395 = vmul.f32 %v7123, 0.5
        %v7396 = vmul.f32 %v7124, 0.5
        %v7397 = vmul.f32 %v7125, 0.5
        %v7398 = vmul.f32 %v7126, 0.5
        %v7399 = vmul.f32 %v7127, 0.5
        %v7400 = vmul.f32 %v7128, 0.5
        %v7401 = vmul.f32 %v7129, 0.5
        %v7402 = vmul.f32 %v7130, 0.5
        %v7403 = vadd.f32 %v7387, 1.0
        %v7404 = vadd.f32 %v7388, 1.0
        %v7405 = vadd.f32 %v7389, 1.0
        %v7406 = vadd.f32 %v7390, 1.0
        %v7407 = vadd.f32 %v7391, 1.0
        %v7408 = vadd.f32 %v7392, 1.0
        %v7409 = vadd.f32 %v7393, 1.0
        %v7410 = vadd.f32 %v7394, 1.0
        %v7411 = vmul.f32 %v7395, %v7403
        %v7412 = vmul.f32 %v7396, %v7404
        %v7413 = vmul.f32 %v7397, %v7405
        %v7414 = vmul.f32 %v7398, %v7406
        %v7415 = vmul.f32 %v7399, %v7407
        %v7416 = vmul.f32 %v7400, %v7408
        %v7417 = vmul.f32 %v7401, %v7409
        %v7418 = vmul.f32 %v7402, %v7410
        %7419 = vst [vmem:[%s266] sm:$0xff] %v7411
        %7420 = vst [vmem:[%s266 + $0x8] sm:$0xff] %v7412
        %7421 = vst [vmem:[%s266 + $0x10] sm:$0xff] %v7413
        %7422 = vst [vmem:[%s266 + $0x18] sm:$0xff] %v7414
        %7423 = vst [vmem:[%s266 + $0x20] sm:$0xff] %v7415
        %7424 = vst [vmem:[%s266 + $0x28] sm:$0xff] %v7416
        %7425 = vst [vmem:[%s266 + $0x30] sm:$0xff] %v7417
        %7426 = vst [vmem:[%s266 + $0x38] sm:$0xff] %v7418
        %p7427 = scmp.lt.s32.totalorder %s18, 1
        %s7428 = scalar_select %p7427, %s18, 1
        %s7429 = smul.addr %s7428, 8
        %s7430 = smul.addr %s7429, 8
        %s7431 = scalar_lea.vmem %s6, %s7430
        // Predicated region
        $region49: #{residual_upsample_block.1} parent=43 // pred_check
          %p7432 = pneg %p167
        $region50: #{residual_upsample_block.1} parent=43 // pred_check_branch
          %7434 = sbr.rel (%p7432) target = $region52
        $region51: #{residual_upsample_block.1} parent=43 // pred_region
          _
        $region52: #{residual_upsample_block.1} parent=43 // pred_fallthru
          _
      $region44: #{residual_upsample_block.1} parent=5 // pred_fallthru
        _
      %p7435 = scmp.le.s32.totalorder 2, %s13
      // Predicated region
      $region53: #{residual_upsample_block.1} parent=5 // pred_check
        %p7436 = pneg %p7435
      $region54: #{residual_upsample_block.1} parent=5 // pred_check_branch
        %7438 = sbr.rel (%p7436) target = $region56
      $region55: #{residual_upsample_block.1} parent=5 // pred_region
        %s7439 = ssub.s32 %s13, 2
        // Predicated region
        $region57: #{residual_upsample_block.1} parent=55 // pred_check
          %p7440 = pneg %p173
        $region58: #{residual_upsample_block.1} parent=55 // pred_check_branch
          %7442 = sbr.rel (%p7440) target = $region60
        $region59: #{residual_upsample_block.1} parent=55 // pred_region
          %p7443 = scmp.lt.s32.totalorder %s19, 1
          %s7444 = scalar_select %p7443, %s19, 1
          %s7445 = smul.addr %s7444, 8
          %s7446 = smul.addr %s7445, 8
          %s7447 = scalar_lea.vmem %s6, %s7446
        $region60: #{residual_upsample_block.1} parent=55 // pred_fallthru
          _
      $region56: #{residual_upsample_block.1} parent=5 // pred_fallthru
        _
    $region6: #{residual_upsample_block.1} parent=1 // loop_footer
      %s17 = sadd.s32 1, %s13
    $region7: #{residual_upsample_block.1} parent=1 // loop_footer_branch
      %12 = sbr.rel target = $region3
    $region8: #{residual_upsample_block.1} parent=1 // loop_exit
      _
    %7448 = vsyncpa [#allocation3], 1
    %s7449 = scalar_lea.sflag [#allocation3], 1
    %7450 = vsyncpa %s7449, 1

</llo_original>
